<compile_context>
chip_gen: v5e
topology: v5e:2x2
jax: 0.10.0
libtpu: 0.0.40
codegen_flags: <defaults>
</compile_context>

<pallas_src>
import functools

import jax
import jax.numpy as jnp
from jax.experimental import pallas as pl
from jax.experimental.pallas import tpu as pltpu


# ----------------------------- Pallas kernels -----------------------------

def _conv_stack_kernel(xpad_ref, mask_ref, w0_ref, b0_ref, w1_ref, b1_ref,
                       w2_ref, b2_ref, o_ref,
                       p1_ref, c1_ref, p2_ref, c2_ref, *, H, W):
    """Fused per-image conv stack.

    xpad_ref : ((H+3)*(W+2), 1) f32  zero-padded raw image, widened-row layout
    mask_ref : ((H+3)*(W+2), 1) f32  1 on real pixels, 0 on the padding halo
    w0/b0    : (1, 16) f32           1x1 input conv (Cin=1) + bias
    w1/b1    : (144, 32) bf16 / (1, 32) f32   conv1 tap-major weights + bias
    w2/b2    : (288, 64) bf16 / (1, 64) f32   conv2 tap-major weights + bias
    o_ref    : (49, 64) bf16         pooled 7x7x64 feature map (NHWC order)
    """
    Wp1 = W + 2
    M1 = H * Wp1
    H2, W2 = H // 2, W // 2
    Wp2 = W2 + 2
    M2 = H2 * Wp2
    H3, W3 = H2 // 2, W2 // 2

    # ---- input_layer: 1x1 conv (Cin=1) + ReLU, written straight into the
    #      zero-haloed conv1 input buffer.  The mask zeroes the halo, which
    #      would otherwise pick up relu(b0) instead of the conv1 zero-padding.
    h0 = jnp.maximum(xpad_ref[...] * w0_ref[...] + b0_ref[...], 0.0)     # (P1, 16)
    p1_ref[...] = h0 * mask_ref[...]

    # ---- conv1: 3x3, pad=1, + bias + ReLU as ONE matmul (M=M1, K=9*16=144).
    #      Each tap is a contiguous sublane window of the widened-row buffer;
    #      im2col happens in VMEM by concatenating taps along lanes.
    a1 = jnp.concatenate(
        [p1_ref[pl.ds(ky * Wp1 + kx, M1), :] for ky in range(3) for kx in range(3)],
        axis=1).astype(jnp.bfloat16)                                      # (M1, 144)
    c1 = jnp.dot(a1, w1_ref[...], preferred_element_type=jnp.float32)     # (M1, 32)
    c1_ref[...] = jnp.maximum(c1 + b1_ref[...], 0.0)

    # ---- 2x2 maxpool (fused): stride-2 reads skip the widened-row junk
    #      columns; result goes straight into the zero-haloed conv2 buffer.
    p2_ref[...] = jnp.zeros_like(p2_ref)
    for py in range(H2):
        top = 2 * py * Wp1
        bot = top + Wp1
        row = jnp.maximum(
            jnp.maximum(c1_ref[pl.ds(top, W2, 2), :],
                        c1_ref[pl.ds(top + 1, W2, 2), :]),
            jnp.maximum(c1_ref[pl.ds(bot, W2, 2), :],
                        c1_ref[pl.ds(bot + 1, W2, 2), :]))                # (W2, 32)
        p2_ref[pl.ds((py + 1) * Wp2 + 1, W2), :] = row

    # ---- conv2: 3x3, pad=1, + bias + ReLU as ONE matmul (M=M2, K=9*32=288).
    a2 = jnp.concatenate(
        [p2_ref[pl.ds(ky * Wp2 + kx, M2), :] for ky in range(3) for kx in range(3)],
        axis=1).astype(jnp.bfloat16)                                      # (M2, 288)
    c2 = jnp.dot(a2, w2_ref[...], preferred_element_type=jnp.float32)     # (M2, 64)
    c2_ref[...] = jnp.maximum(c2 + b2_ref[...], 0.0)

    # ---- 2x2 maxpool (fused).  AdaptiveAvgPool2d((7,7)) is the identity at 7x7.
    for py in range(H3):
        top = 2 * py * Wp2
        bot = top + Wp2
        row = jnp.maximum(
            jnp.maximum(c2_ref[pl.ds(top, W3, 2), :],
                        c2_ref[pl.ds(top + 1, W3, 2), :]),
            jnp.maximum(c2_ref[pl.ds(bot, W3, 2), :],
                        c2_ref[pl.ds(bot + 1, W3, 2), :]))                # (W3, 64)
        o_ref[pl.ds(py * W3, W3), :] = row.astype(o_ref.dtype)


def _mlp_kernel(x_ref, w1_ref, b1_ref, w2_ref, b2_ref, o_ref):
    """Fused head over the whole batch: o = relu(x @ w1 + b1) @ w2 + b2."""
    h = jnp.dot(x_ref[...].astype(jnp.bfloat16), w1_ref[...],
                preferred_element_type=jnp.float32)
    h = jnp.maximum(h + b1_ref[...], 0.0)
    o = jnp.dot(h.astype(jnp.bfloat16), w2_ref[...],
                preferred_element_type=jnp.float32) + b2_ref[...]
    o_ref[...] = o.astype(o_ref.dtype)


# ----------------------------- Pallas wrappers -----------------------------

def conv_stack(xpad, mask, w0, b0, w1, b1, w2, b2, *, H, W):
    """Fused input-affine + conv1 + pool + conv2 + pool.  Grid over batch.

    Returns the pooled (N, 7*7, 64) bf16 feature map (NHWC flatten order).
    """
    N, P1, _ = xpad.shape
    C0 = w0.shape[-1]
    C1 = w1.shape[-1]
    C2 = w2.shape[-1]
    Wp1 = W + 2
    H2, W2 = H // 2, W // 2
    Wp2 = W2 + 2
    H3, W3 = H2 // 2, W2 // 2
    P2 = (H2 + 3) * Wp2
    return pl.pallas_call(
        functools.partial(_conv_stack_kernel, H=H, W=W),
        grid=(N,),
        in_specs=[
            pl.BlockSpec((None, P1, 1), lambda i: (i, 0, 0)),
            pl.BlockSpec((P1, 1), lambda i: (0, 0)),
            pl.BlockSpec((1, C0), lambda i: (0, 0)),
            pl.BlockSpec((1, C0), lambda i: (0, 0)),
            pl.BlockSpec((9 * C0, C1), lambda i: (0, 0)),
            pl.BlockSpec((1, C1), lambda i: (0, 0)),
            pl.BlockSpec((9 * C1, C2), lambda i: (0, 0)),
            pl.BlockSpec((1, C2), lambda i: (0, 0)),
        ],
        out_specs=pl.BlockSpec((None, H3 * W3, C2), lambda i: (i, 0, 0)),
        out_shape=jax.ShapeDtypeStruct((N, H3 * W3, C2), jnp.bfloat16),
        scratch_shapes=[
            pltpu.VMEM((P1, C0), jnp.float32),        # padded h0 (conv1 input)
            pltpu.VMEM((H * Wp1, C1), jnp.float32),   # conv1 output (widened rows)
            pltpu.VMEM((P2, C1), jnp.float32),        # padded pooled (conv2 input)
            pltpu.VMEM((H2 * Wp2, C2), jnp.float32),  # conv2 output (widened rows)
        ],
        compiler_params=pltpu.CompilerParams(dimension_semantics=("parallel",)),
    )(xpad, mask, w0, b0, w1, b1, w2, b2)


def mlp_head(x, w1, b1, w2, b2):
    """Fused fc1 + ReLU + fc2 over the whole batch.  x: (N, 3136) -> (N, 10)."""
    N, K = x.shape
    Hd = w1.shape[-1]
    O = w2.shape[-1]
    return pl.pallas_call(
        _mlp_kernel,
        grid=(1,),
        in_specs=[
            pl.BlockSpec((N, K), lambda i: (0, 0)),
            pl.BlockSpec((K, Hd), lambda i: (0, 0)),
            pl.BlockSpec((1, Hd), lambda i: (0, 0)),
            pl.BlockSpec((Hd, O), lambda i: (0, 0)),
            pl.BlockSpec((1, O), lambda i: (0, 0)),
        ],
        out_specs=pl.BlockSpec((N, O), lambda i: (0, 0)),
        out_shape=jax.ShapeDtypeStruct((N, O), jnp.float32),
        compiler_params=pltpu.CompilerParams(dimension_semantics=("arbitrary",)),
    )(x, w1, b1, w2, b2)


# ----------------------------- params -----------------------------

def init_params(key):
    ks = jax.random.split(key, 10)

    def rnd(i, shape, fan_in):
        return jax.random.normal(ks[i], shape, jnp.float32) * (1.0 / float(fan_in) ** 0.5)

    return {
        "w0": rnd(0, (16, 1, 1, 1), 1), "b0": rnd(1, (16,), 1),
        "w1": rnd(2, (32, 16, 3, 3), 16 * 9), "b1": rnd(3, (32,), 16 * 9),
        "w2": rnd(4, (64, 32, 3, 3), 32 * 9), "b2": rnd(5, (64,), 32 * 9),
        "wfc1": rnd(6, (128, 64 * 7 * 7), 64 * 7 * 7), "bfc1": rnd(7, (128,), 64 * 7 * 7),
        "wfc2": rnd(8, (10, 128), 128), "bfc2": rnd(9, (10,), 128),
    }


def prepare_params(p):
    """One-time weight repack (hoisted out of the forward pass).

    Conv weights -> tap-major (9*Cin, Cout) bf16 so each 3x3 conv is a single
    K = 9*Cin matmul against the lane-concatenated im2col; fc1 columns are
    permuted so the NHWC flatten feeds it directly (matches PyTorch's NCHW
    view(-1, 64*7*7)); fc2 transposed.  Biases stay f32 for the VPU epilogue.
    """
    return {
        "w0": p["w0"].reshape(1, 16).astype(jnp.float32),
        "b0": p["b0"].reshape(1, 16).astype(jnp.float32),
        "w1": p["w1"].transpose(2, 3, 1, 0).reshape(9 * 16, 32).astype(jnp.bfloat16),
        "b1": p["b1"].reshape(1, 32).astype(jnp.float32),
        "w2": p["w2"].transpose(2, 3, 1, 0).reshape(9 * 32, 64).astype(jnp.bfloat16),
        "b2": p["b2"].reshape(1, 64).astype(jnp.float32),
        "wfc1": p["wfc1"].reshape(128, 64, 7, 7).transpose(2, 3, 1, 0)
                          .reshape(64 * 7 * 7, 128).astype(jnp.bfloat16),
        "bfc1": p["bfc1"].reshape(1, 128).astype(jnp.float32),
        "wfc2": p["wfc2"].T.astype(jnp.bfloat16),
        "bfc2": p["bfc2"].reshape(1, 10).astype(jnp.float32),
    }


# ----------------------------- model -----------------------------

@jax.jit
def cnn_forward(x_nchw, pp):
    N, Cin, H, W = x_nchw.shape
    assert Cin == 1
    # TODO(synk): AdaptiveAvgPool2d((7,7)) is only handled for the 28x28 MNIST
    # input, where the post-pool feature map is already 7x7 (identity).
    assert H == 28 and W == 28

    # Zero-pad the tiny raw 1-channel image (top 1 / bottom 2 / left-right 1)
    # and flatten rows ("widened-row" layout); the 16x-inflated padded
    # activations are built only inside the kernel's VMEM scratch.
    x = x_nchw[:, 0, :, :].astype(jnp.float32)                     # (N, 28, 28)
    xpad = jnp.pad(x, ((0, 0), (1, 2), (1, 1)))                    # (N, 31, 30)
    xpad = xpad.reshape(N, (H + 3) * (W + 2), 1)

    # Interior mask for the widened-row layout (constant-folded under jit).
    fi = jnp.arange((H + 3) * (W + 2))
    r, c = fi // (W + 2), fi % (W + 2)
    mask = ((r >= 1) & (r <= H) & (c >= 1) & (c <= W)).astype(jnp.float32)[:, None]

    # Fused conv stack: input affine -> conv1 -> pool -> conv2 -> pool.
    feat = conv_stack(xpad, mask, pp["w0"], pp["b0"], pp["w1"], pp["b1"],
                      pp["w2"], pp["b2"], H=H, W=W)                # (N, 49, 64) bf16

    # NHWC flatten (free reshape); wfc1 columns are pre-permuted to match
    # PyTorch's NCHW view(-1, 64*7*7) exactly.
    h = feat.reshape(N, 64 * 7 * 7)

    # Fused fc1 + ReLU + fc2 over the whole batch.
    return mlp_head(h, pp["wfc1"], pp["bfc1"], pp["wfc2"], pp["bfc2"])


if __name__ == "__main__":
    key = jax.random.PRNGKey(0)
    kx, kp = jax.random.split(key)
    # batch=2, in_channels=1, 28x28 (MNIST-shaped, as the module implies)
    x = jax.random.normal(kx, (2, 1, 28, 28), jnp.float32)
    params = init_params(kp)
    pp = prepare_params(params)

    out = cnn_forward(x, pp)
    out = jax.block_until_ready(out)
    assert out.shape == (2, 10) and out.dtype == jnp.float32
    print("KERNEL_OK")
</pallas_src>

<mosaic_0001>
module attributes {stable_mosaic.version = 11 : i64} {
  func.func @_conv_stack_kernel(%arg0: i32, %arg1: memref<1x930x1xf32, #tpu.memory_space<vmem>>, %arg2: memref<930x1xf32, #tpu.memory_space<vmem>>, %arg3: memref<1x16xf32, #tpu.memory_space<vmem>>, %arg4: memref<1x16xf32, #tpu.memory_space<vmem>>, %arg5: memref<144x32xbf16, #tpu.memory_space<vmem>>, %arg6: memref<1x32xf32, #tpu.memory_space<vmem>>, %arg7: memref<288x64xbf16, #tpu.memory_space<vmem>>, %arg8: memref<1x64xf32, #tpu.memory_space<vmem>>, %arg9: memref<1x49x64xbf16, #tpu.memory_space<vmem>>, %arg10: memref<930x16xf32, #tpu.memory_space<vmem>>, %arg11: memref<840x32xf32, #tpu.memory_space<vmem>>, %arg12: memref<272x32xf32, #tpu.memory_space<vmem>>, %arg13: memref<224x64xf32, #tpu.memory_space<vmem>>) attributes {dimension_semantics = [#tpu.dimension_semantics<parallel>], iteration_bounds = array<i64: 2>, scalar_prefetch = 0 : i64, scratch_operands = 4 : i64, tpu.core_type = #tpu.core_type<tc>, window_params = [{transform_indices = @transform_0, window_bounds = array<i64: 1, 930, 1>}, {pipeline_mode = #tpu.pipeline_mode<synchronous>, transform_indices = @transform_1, window_bounds = array<i64: 930, 1>}, {pipeline_mode = #tpu.pipeline_mode<synchronous>, transform_indices = @transform_2, window_bounds = array<i64: 1, 16>}, {pipeline_mode = #tpu.pipeline_mode<synchronous>, transform_indices = @transform_3, window_bounds = array<i64: 1, 16>}, {pipeline_mode = #tpu.pipeline_mode<synchronous>, transform_indices = @transform_4, window_bounds = array<i64: 144, 32>}, {pipeline_mode = #tpu.pipeline_mode<synchronous>, transform_indices = @transform_5, window_bounds = array<i64: 1, 32>}, {pipeline_mode = #tpu.pipeline_mode<synchronous>, transform_indices = @transform_6, window_bounds = array<i64: 288, 64>}, {pipeline_mode = #tpu.pipeline_mode<synchronous>, transform_indices = @transform_7, window_bounds = array<i64: 1, 64>}, {transform_indices = @transform_8, window_bounds = array<i64: 1, 49, 64>}]} {
    %c0 = arith.constant 0 : index
    %c0_0 = arith.constant 0 : index
    %c0_1 = arith.constant 0 : index
    %0 = vector.load %arg1[%c0, %c0_0, %c0_1] : memref<1x930x1xf32, #tpu.memory_space<vmem>>, vector<1x930x1xf32>
    %1 = vector.shape_cast %0 : vector<1x930x1xf32> to vector<930x1xf32>
    %c0_2 = arith.constant 0 : index
    %c0_3 = arith.constant 0 : index
    %2 = vector.load %arg3[%c0_2, %c0_3] : memref<1x16xf32, #tpu.memory_space<vmem>>, vector<1x16xf32>
    %3 = vector.broadcast %1 : vector<930x1xf32> to vector<930x16xf32>
    %4 = vector.broadcast %2 : vector<1x16xf32> to vector<930x16xf32>
    %5 = arith.mulf %3, %4 : vector<930x16xf32>
    %c0_4 = arith.constant 0 : index
    %c0_5 = arith.constant 0 : index
    %6 = vector.load %arg4[%c0_4, %c0_5] : memref<1x16xf32, #tpu.memory_space<vmem>>, vector<1x16xf32>
    %7 = vector.broadcast %6 : vector<1x16xf32> to vector<930x16xf32>
    %8 = arith.addf %5, %7 : vector<930x16xf32>
    %cst = arith.constant 0.000000e+00 : f32
    %9 = vector.broadcast %cst : f32 to vector<930x16xf32>
    %10 = arith.maximumf %8, %9 : vector<930x16xf32>
    %c0_6 = arith.constant 0 : index
    %c0_7 = arith.constant 0 : index
    %11 = vector.load %arg2[%c0_6, %c0_7] : memref<930x1xf32, #tpu.memory_space<vmem>>, vector<930x1xf32>
    %12 = vector.broadcast %11 : vector<930x1xf32> to vector<930x16xf32>
    %13 = arith.mulf %10, %12 : vector<930x16xf32>
    %c0_8 = arith.constant 0 : index
    %c0_9 = arith.constant 0 : index
    %14 = vector.load %arg10[%c0_8, %c0_9] : memref<930x16xf32, #tpu.memory_space<vmem>>, vector<930x16xf32>
    tpu.vector_store %arg10[%c0_8, %c0_9], %13 {strides = array<i32>} : memref<930x16xf32, #tpu.memory_space<vmem>>, vector<930x16xf32>,
    %c0_10 = arith.constant 0 : index
    %c0_11 = arith.constant 0 : index
    %15 = vector.load %arg10[%c0_10, %c0_11] : memref<930x16xf32, #tpu.memory_space<vmem>>, vector<840x16xf32>
    %c1 = arith.constant 1 : index
    %c0_12 = arith.constant 0 : index
    %16 = vector.load %arg10[%c1, %c0_12] : memref<930x16xf32, #tpu.memory_space<vmem>>, vector<840x16xf32>
    %c2 = arith.constant 2 : index
    %c0_13 = arith.constant 0 : index
    %17 = vector.load %arg10[%c2, %c0_13] : memref<930x16xf32, #tpu.memory_space<vmem>>, vector<840x16xf32>
    %c30 = arith.constant 30 : index
    %c0_14 = arith.constant 0 : index
    %18 = vector.load %arg10[%c30, %c0_14] : memref<930x16xf32, #tpu.memory_space<vmem>>, vector<840x16xf32>
    %c31 = arith.constant 31 : index
    %c0_15 = arith.constant 0 : index
    %19 = vector.load %arg10[%c31, %c0_15] : memref<930x16xf32, #tpu.memory_space<vmem>>, vector<840x16xf32>
    %c32 = arith.constant 32 : index
    %c0_16 = arith.constant 0 : index
    %20 = vector.load %arg10[%c32, %c0_16] : memref<930x16xf32, #tpu.memory_space<vmem>>, vector<840x16xf32>
    %c60 = arith.constant 60 : index
    %c0_17 = arith.constant 0 : index
    %21 = vector.load %arg10[%c60, %c0_17] : memref<930x16xf32, #tpu.memory_space<vmem>>, vector<840x16xf32>
    %c61 = arith.constant 61 : index
    %c0_18 = arith.constant 0 : index
    %22 = vector.load %arg10[%c61, %c0_18] : memref<930x16xf32, #tpu.memory_space<vmem>>, vector<840x16xf32>
    %c62 = arith.constant 62 : index
    %c0_19 = arith.constant 0 : index
    %23 = vector.load %arg10[%c62, %c0_19] : memref<930x16xf32, #tpu.memory_space<vmem>>, vector<840x16xf32>
    %24 = tpu.concatenate %15, %16, %17, %18, %19, %20, %21, %22, %23 in 1 : vector<840x16xf32>, vector<840x16xf32>, vector<840x16xf32>, vector<840x16xf32>, vector<840x16xf32>, vector<840x16xf32>, vector<840x16xf32>, vector<840x16xf32>, vector<840x16xf32> -> vector<840x144xf32>
    %25 = arith.truncf %24 : vector<840x144xf32> to vector<840x144xbf16>
    %c0_20 = arith.constant 0 : index
    %c0_21 = arith.constant 0 : index
    %26 = vector.load %arg5[%c0_20, %c0_21] : memref<144x32xbf16, #tpu.memory_space<vmem>>, vector<144x32xbf16>
    %cst_22 = arith.constant dense<0.000000e+00> : vector<840x32xf32>
    %27 = tpu.matmul %25, %26, %cst_22 {dimension_numbers = #tpu.dot_dimension_numbers<[1], [0], [0], [1], [0, 0, 1, 1], [], []>} : vector<840x144xbf16>, vector<144x32xbf16>, vector<840x32xf32> -> vector<840x32xf32>
    %c0_23 = arith.constant 0 : index
    %c0_24 = arith.constant 0 : index
    %28 = vector.load %arg6[%c0_23, %c0_24] : memref<1x32xf32, #tpu.memory_space<vmem>>, vector<1x32xf32>
    %29 = vector.broadcast %28 : vector<1x32xf32> to vector<840x32xf32>
    %30 = arith.addf %27, %29 : vector<840x32xf32>
    %cst_25 = arith.constant 0.000000e+00 : f32
    %31 = vector.broadcast %cst_25 : f32 to vector<840x32xf32>
    %32 = arith.maximumf %30, %31 : vector<840x32xf32>
    %c0_26 = arith.constant 0 : index
    %c0_27 = arith.constant 0 : index
    %33 = vector.load %arg11[%c0_26, %c0_27] : memref<840x32xf32, #tpu.memory_space<vmem>>, vector<840x32xf32>
    tpu.vector_store %arg11[%c0_26, %c0_27], %32 {strides = array<i32>} : memref<840x32xf32, #tpu.memory_space<vmem>>, vector<840x32xf32>,
    %cst_28 = arith.constant 0.000000e+00 : f32
    %34 = vector.broadcast %cst_28 : f32 to vector<272x32xf32>
    %c0_29 = arith.constant 0 : index
    %c0_30 = arith.constant 0 : index
    %35 = vector.load %arg12[%c0_29, %c0_30] : memref<272x32xf32, #tpu.memory_space<vmem>>, vector<272x32xf32>
    tpu.vector_store %arg12[%c0_29, %c0_30], %34 {strides = array<i32>} : memref<272x32xf32, #tpu.memory_space<vmem>>, vector<272x32xf32>,
    %c0_31 = arith.constant 0 : index
    %c0_32 = arith.constant 0 : index
    %36 = tpu.strided_load %arg11[%c0_31, %c0_32] {strides = array<i32: 2, 1>} : memref<840x32xf32, #tpu.memory_space<vmem>>, vector<14x32xf32>
    %c1_33 = arith.constant 1 : index
    %c0_34 = arith.constant 0 : index
    %37 = tpu.strided_load %arg11[%c1_33, %c0_34] {strides = array<i32: 2, 1>} : memref<840x32xf32, #tpu.memory_space<vmem>>, vector<14x32xf32>
    %38 = arith.maximumf %36, %37 : vector<14x32xf32>
    %c30_35 = arith.constant 30 : index
    %c0_36 = arith.constant 0 : index
    %39 = tpu.strided_load %arg11[%c30_35, %c0_36] {strides = array<i32: 2, 1>} : memref<840x32xf32, #tpu.memory_space<vmem>>, vector<14x32xf32>
    %c31_37 = arith.constant 31 : index
    %c0_38 = arith.constant 0 : index
    %40 = tpu.strided_load %arg11[%c31_37, %c0_38] {strides = array<i32: 2, 1>} : memref<840x32xf32, #tpu.memory_space<vmem>>, vector<14x32xf32>
    %41 = arith.maximumf %39, %40 : vector<14x32xf32>
    %42 = arith.maximumf %38, %41 : vector<14x32xf32>
    %c17 = arith.constant 17 : index
    %c0_39 = arith.constant 0 : index
    %43 = vector.load %arg12[%c17, %c0_39] : memref<272x32xf32, #tpu.memory_space<vmem>>, vector<14x32xf32>
    tpu.vector_store %arg12[%c17, %c0_39], %42 {strides = array<i32>} : memref<272x32xf32, #tpu.memory_space<vmem>>, vector<14x32xf32>,
    %c60_40 = arith.constant 60 : index
    %c0_41 = arith.constant 0 : index
    %44 = tpu.strided_load %arg11[%c60_40, %c0_41] {strides = array<i32: 2, 1>} : memref<840x32xf32, #tpu.memory_space<vmem>>, vector<14x32xf32>
    %c61_42 = arith.constant 61 : index
    %c0_43 = arith.constant 0 : index
    %45 = tpu.strided_load %arg11[%c61_42, %c0_43] {strides = array<i32: 2, 1>} : memref<840x32xf32, #tpu.memory_space<vmem>>, vector<14x32xf32>
    %46 = arith.maximumf %44, %45 : vector<14x32xf32>
    %c90 = arith.constant 90 : index
    %c0_44 = arith.constant 0 : index
    %47 = tpu.strided_load %arg11[%c90, %c0_44] {strides = array<i32: 2, 1>} : memref<840x32xf32, #tpu.memory_space<vmem>>, vector<14x32xf32>
    %c91 = arith.constant 91 : index
    %c0_45 = arith.constant 0 : index
    %48 = tpu.strided_load %arg11[%c91, %c0_45] {strides = array<i32: 2, 1>} : memref<840x32xf32, #tpu.memory_space<vmem>>, vector<14x32xf32>
    %49 = arith.maximumf %47, %48 : vector<14x32xf32>
    %50 = arith.maximumf %46, %49 : vector<14x32xf32>
    %c33 = arith.constant 33 : index
    %c0_46 = arith.constant 0 : index
    %51 = vector.load %arg12[%c33, %c0_46] : memref<272x32xf32, #tpu.memory_space<vmem>>, vector<14x32xf32>
    tpu.vector_store %arg12[%c33, %c0_46], %50 {strides = array<i32>} : memref<272x32xf32, #tpu.memory_space<vmem>>, vector<14x32xf32>,
    %c120 = arith.constant 120 : index
    %c0_47 = arith.constant 0 : index
    %52 = tpu.strided_load %arg11[%c120, %c0_47] {strides = array<i32: 2, 1>} : memref<840x32xf32, #tpu.memory_space<vmem>>, vector<14x32xf32>
    %c121 = arith.constant 121 : index
    %c0_48 = arith.constant 0 : index
    %53 = tpu.strided_load %arg11[%c121, %c0_48] {strides = array<i32: 2, 1>} : memref<840x32xf32, #tpu.memory_space<vmem>>, vector<14x32xf32>
    %54 = arith.maximumf %52, %53 : vector<14x32xf32>
    %c150 = arith.constant 150 : index
    %c0_49 = arith.constant 0 : index
    %55 = tpu.strided_load %arg11[%c150, %c0_49] {strides = array<i32: 2, 1>} : memref<840x32xf32, #tpu.memory_space<vmem>>, vector<14x32xf32>
    %c151 = arith.constant 151 : index
    %c0_50 = arith.constant 0 : index
    %56 = tpu.strided_load %arg11[%c151, %c0_50] {strides = array<i32: 2, 1>} : memref<840x32xf32, #tpu.memory_space<vmem>>, vector<14x32xf32>
    %57 = arith.maximumf %55, %56 : vector<14x32xf32>
    %58 = arith.maximumf %54, %57 : vector<14x32xf32>
    %c49 = arith.constant 49 : index
    %c0_51 = arith.constant 0 : index
    %59 = vector.load %arg12[%c49, %c0_51] : memref<272x32xf32, #tpu.memory_space<vmem>>, vector<14x32xf32>
    tpu.vector_store %arg12[%c49, %c0_51], %58 {strides = array<i32>} : memref<272x32xf32, #tpu.memory_space<vmem>>, vector<14x32xf32>,
    %c180 = arith.constant 180 : index
    %c0_52 = arith.constant 0 : index
    %60 = tpu.strided_load %arg11[%c180, %c0_52] {strides = array<i32: 2, 1>} : memref<840x32xf32, #tpu.memory_space<vmem>>, vector<14x32xf32>
    %c181 = arith.constant 181 : index
    %c0_53 = arith.constant 0 : index
    %61 = tpu.strided_load %arg11[%c181, %c0_53] {strides = array<i32: 2, 1>} : memref<840x32xf32, #tpu.memory_space<vmem>>, vector<14x32xf32>
    %62 = arith.maximumf %60, %61 : vector<14x32xf32>
    %c210 = arith.constant 210 : index
    %c0_54 = arith.constant 0 : index
    %63 = tpu.strided_load %arg11[%c210, %c0_54] {strides = array<i32: 2, 1>} : memref<840x32xf32, #tpu.memory_space<vmem>>, vector<14x32xf32>
    %c211 = arith.constant 211 : index
    %c0_55 = arith.constant 0 : index
    %64 = tpu.strided_load %arg11[%c211, %c0_55] {strides = array<i32: 2, 1>} : memref<840x32xf32, #tpu.memory_space<vmem>>, vector<14x32xf32>
    %65 = arith.maximumf %63, %64 : vector<14x32xf32>
    %66 = arith.maximumf %62, %65 : vector<14x32xf32>
    %c65 = arith.constant 65 : index
    %c0_56 = arith.constant 0 : index
    %67 = vector.load %arg12[%c65, %c0_56] : memref<272x32xf32, #tpu.memory_space<vmem>>, vector<14x32xf32>
    tpu.vector_store %arg12[%c65, %c0_56], %66 {strides = array<i32>} : memref<272x32xf32, #tpu.memory_space<vmem>>, vector<14x32xf32>,
    %c240 = arith.constant 240 : index
    %c0_57 = arith.constant 0 : index
    %68 = tpu.strided_load %arg11[%c240, %c0_57] {strides = array<i32: 2, 1>} : memref<840x32xf32, #tpu.memory_space<vmem>>, vector<14x32xf32>
    %c241 = arith.constant 241 : index
    %c0_58 = arith.constant 0 : index
    %69 = tpu.strided_load %arg11[%c241, %c0_58] {strides = array<i32: 2, 1>} : memref<840x32xf32, #tpu.memory_space<vmem>>, vector<14x32xf32>
    %70 = arith.maximumf %68, %69 : vector<14x32xf32>
    %c270 = arith.constant 270 : index
    %c0_59 = arith.constant 0 : index
    %71 = tpu.strided_load %arg11[%c270, %c0_59] {strides = array<i32: 2, 1>} : memref<840x32xf32, #tpu.memory_space<vmem>>, vector<14x32xf32>
    %c271 = arith.constant 271 : index
    %c0_60 = arith.constant 0 : index
    %72 = tpu.strided_load %arg11[%c271, %c0_60] {strides = array<i32: 2, 1>} : memref<840x32xf32, #tpu.memory_space<vmem>>, vector<14x32xf32>
    %73 = arith.maximumf %71, %72 : vector<14x32xf32>
    %74 = arith.maximumf %70, %73 : vector<14x32xf32>
    %c81 = arith.constant 81 : index
    %c0_61 = arith.constant 0 : index
    %75 = vector.load %arg12[%c81, %c0_61] : memref<272x32xf32, #tpu.memory_space<vmem>>, vector<14x32xf32>
    tpu.vector_store %arg12[%c81, %c0_61], %74 {strides = array<i32>} : memref<272x32xf32, #tpu.memory_space<vmem>>, vector<14x32xf32>,
    %c300 = arith.constant 300 : index
    %c0_62 = arith.constant 0 : index
    %76 = tpu.strided_load %arg11[%c300, %c0_62] {strides = array<i32: 2, 1>} : memref<840x32xf32, #tpu.memory_space<vmem>>, vector<14x32xf32>
    %c301 = arith.constant 301 : index
    %c0_63 = arith.constant 0 : index
    %77 = tpu.strided_load %arg11[%c301, %c0_63] {strides = array<i32: 2, 1>} : memref<840x32xf32, #tpu.memory_space<vmem>>, vector<14x32xf32>
    %78 = arith.maximumf %76, %77 : vector<14x32xf32>
    %c330 = arith.constant 330 : index
    %c0_64 = arith.constant 0 : index
    %79 = tpu.strided_load %arg11[%c330, %c0_64] {strides = array<i32: 2, 1>} : memref<840x32xf32, #tpu.memory_space<vmem>>, vector<14x32xf32>
    %c331 = arith.constant 331 : index
    %c0_65 = arith.constant 0 : index
    %80 = tpu.strided_load %arg11[%c331, %c0_65] {strides = array<i32: 2, 1>} : memref<840x32xf32, #tpu.memory_space<vmem>>, vector<14x32xf32>
    %81 = arith.maximumf %79, %80 : vector<14x32xf32>
    %82 = arith.maximumf %78, %81 : vector<14x32xf32>
    %c97 = arith.constant 97 : index
    %c0_66 = arith.constant 0 : index
    %83 = vector.load %arg12[%c97, %c0_66] : memref<272x32xf32, #tpu.memory_space<vmem>>, vector<14x32xf32>
    tpu.vector_store %arg12[%c97, %c0_66], %82 {strides = array<i32>} : memref<272x32xf32, #tpu.memory_space<vmem>>, vector<14x32xf32>,
    %c360 = arith.constant 360 : index
    %c0_67 = arith.constant 0 : index
    %84 = tpu.strided_load %arg11[%c360, %c0_67] {strides = array<i32: 2, 1>} : memref<840x32xf32, #tpu.memory_space<vmem>>, vector<14x32xf32>
    %c361 = arith.constant 361 : index
    %c0_68 = arith.constant 0 : index
    %85 = tpu.strided_load %arg11[%c361, %c0_68] {strides = array<i32: 2, 1>} : memref<840x32xf32, #tpu.memory_space<vmem>>, vector<14x32xf32>
    %86 = arith.maximumf %84, %85 : vector<14x32xf32>
    %c390 = arith.constant 390 : index
    %c0_69 = arith.constant 0 : index
    %87 = tpu.strided_load %arg11[%c390, %c0_69] {strides = array<i32: 2, 1>} : memref<840x32xf32, #tpu.memory_space<vmem>>, vector<14x32xf32>
    %c391 = arith.constant 391 : index
    %c0_70 = arith.constant 0 : index
    %88 = tpu.strided_load %arg11[%c391, %c0_70] {strides = array<i32: 2, 1>} : memref<840x32xf32, #tpu.memory_space<vmem>>, vector<14x32xf32>
    %89 = arith.maximumf %87, %88 : vector<14x32xf32>
    %90 = arith.maximumf %86, %89 : vector<14x32xf32>
    %c113 = arith.constant 113 : index
    %c0_71 = arith.constant 0 : index
    %91 = vector.load %arg12[%c113, %c0_71] : memref<272x32xf32, #tpu.memory_space<vmem>>, vector<14x32xf32>
    tpu.vector_store %arg12[%c113, %c0_71], %90 {strides = array<i32>} : memref<272x32xf32, #tpu.memory_space<vmem>>, vector<14x32xf32>,
    %c420 = arith.constant 420 : index
    %c0_72 = arith.constant 0 : index
    %92 = tpu.strided_load %arg11[%c420, %c0_72] {strides = array<i32: 2, 1>} : memref<840x32xf32, #tpu.memory_space<vmem>>, vector<14x32xf32>
    %c421 = arith.constant 421 : index
    %c0_73 = arith.constant 0 : index
    %93 = tpu.strided_load %arg11[%c421, %c0_73] {strides = array<i32: 2, 1>} : memref<840x32xf32, #tpu.memory_space<vmem>>, vector<14x32xf32>
    %94 = arith.maximumf %92, %93 : vector<14x32xf32>
    %c450 = arith.constant 450 : index
    %c0_74 = arith.constant 0 : index
    %95 = tpu.strided_load %arg11[%c450, %c0_74] {strides = array<i32: 2, 1>} : memref<840x32xf32, #tpu.memory_space<vmem>>, vector<14x32xf32>
    %c451 = arith.constant 451 : index
    %c0_75 = arith.constant 0 : index
    %96 = tpu.strided_load %arg11[%c451, %c0_75] {strides = array<i32: 2, 1>} : memref<840x32xf32, #tpu.memory_space<vmem>>, vector<14x32xf32>
    %97 = arith.maximumf %95, %96 : vector<14x32xf32>
    %98 = arith.maximumf %94, %97 : vector<14x32xf32>
    %c129 = arith.constant 129 : index
    %c0_76 = arith.constant 0 : index
    %99 = vector.load %arg12[%c129, %c0_76] : memref<272x32xf32, #tpu.memory_space<vmem>>, vector<14x32xf32>
    tpu.vector_store %arg12[%c129, %c0_76], %98 {strides = array<i32>} : memref<272x32xf32, #tpu.memory_space<vmem>>, vector<14x32xf32>,
    %c480 = arith.constant 480 : index
    %c0_77 = arith.constant 0 : index
    %100 = tpu.strided_load %arg11[%c480, %c0_77] {strides = array<i32: 2, 1>} : memref<840x32xf32, #tpu.memory_space<vmem>>, vector<14x32xf32>
    %c481 = arith.constant 481 : index
    %c0_78 = arith.constant 0 : index
    %101 = tpu.strided_load %arg11[%c481, %c0_78] {strides = array<i32: 2, 1>} : memref<840x32xf32, #tpu.memory_space<vmem>>, vector<14x32xf32>
    %102 = arith.maximumf %100, %101 : vector<14x32xf32>
    %c510 = arith.constant 510 : index
    %c0_79 = arith.constant 0 : index
    %103 = tpu.strided_load %arg11[%c510, %c0_79] {strides = array<i32: 2, 1>} : memref<840x32xf32, #tpu.memory_space<vmem>>, vector<14x32xf32>
    %c511 = arith.constant 511 : index
    %c0_80 = arith.constant 0 : index
    %104 = tpu.strided_load %arg11[%c511, %c0_80] {strides = array<i32: 2, 1>} : memref<840x32xf32, #tpu.memory_space<vmem>>, vector<14x32xf32>
    %105 = arith.maximumf %103, %104 : vector<14x32xf32>
    %106 = arith.maximumf %102, %105 : vector<14x32xf32>
    %c145 = arith.constant 145 : index
    %c0_81 = arith.constant 0 : index
    %107 = vector.load %arg12[%c145, %c0_81] : memref<272x32xf32, #tpu.memory_space<vmem>>, vector<14x32xf32>
    tpu.vector_store %arg12[%c145, %c0_81], %106 {strides = array<i32>} : memref<272x32xf32, #tpu.memory_space<vmem>>, vector<14x32xf32>,
    %c540 = arith.constant 540 : index
    %c0_82 = arith.constant 0 : index
    %108 = tpu.strided_load %arg11[%c540, %c0_82] {strides = array<i32: 2, 1>} : memref<840x32xf32, #tpu.memory_space<vmem>>, vector<14x32xf32>
    %c541 = arith.constant 541 : index
    %c0_83 = arith.constant 0 : index
    %109 = tpu.strided_load %arg11[%c541, %c0_83] {strides = array<i32: 2, 1>} : memref<840x32xf32, #tpu.memory_space<vmem>>, vector<14x32xf32>
    %110 = arith.maximumf %108, %109 : vector<14x32xf32>
    %c570 = arith.constant 570 : index
    %c0_84 = arith.constant 0 : index
    %111 = tpu.strided_load %arg11[%c570, %c0_84] {strides = array<i32: 2, 1>} : memref<840x32xf32, #tpu.memory_space<vmem>>, vector<14x32xf32>
    %c571 = arith.constant 571 : index
    %c0_85 = arith.constant 0 : index
    %112 = tpu.strided_load %arg11[%c571, %c0_85] {strides = array<i32: 2, 1>} : memref<840x32xf32, #tpu.memory_space<vmem>>, vector<14x32xf32>
    %113 = arith.maximumf %111, %112 : vector<14x32xf32>
    %114 = arith.maximumf %110, %113 : vector<14x32xf32>
    %c161 = arith.constant 161 : index
    %c0_86 = arith.constant 0 : index
    %115 = vector.load %arg12[%c161, %c0_86] : memref<272x32xf32, #tpu.memory_space<vmem>>, vector<14x32xf32>
    tpu.vector_store %arg12[%c161, %c0_86], %114 {strides = array<i32>} : memref<272x32xf32, #tpu.memory_space<vmem>>, vector<14x32xf32>,
    %c600 = arith.constant 600 : index
    %c0_87 = arith.constant 0 : index
    %116 = tpu.strided_load %arg11[%c600, %c0_87] {strides = array<i32: 2, 1>} : memref<840x32xf32, #tpu.memory_space<vmem>>, vector<14x32xf32>
    %c601 = arith.constant 601 : index
    %c0_88 = arith.constant 0 : index
    %117 = tpu.strided_load %arg11[%c601, %c0_88] {strides = array<i32: 2, 1>} : memref<840x32xf32, #tpu.memory_space<vmem>>, vector<14x32xf32>
    %118 = arith.maximumf %116, %117 : vector<14x32xf32>
    %c630 = arith.constant 630 : index
    %c0_89 = arith.constant 0 : index
    %119 = tpu.strided_load %arg11[%c630, %c0_89] {strides = array<i32: 2, 1>} : memref<840x32xf32, #tpu.memory_space<vmem>>, vector<14x32xf32>
    %c631 = arith.constant 631 : index
    %c0_90 = arith.constant 0 : index
    %120 = tpu.strided_load %arg11[%c631, %c0_90] {strides = array<i32: 2, 1>} : memref<840x32xf32, #tpu.memory_space<vmem>>, vector<14x32xf32>
    %121 = arith.maximumf %119, %120 : vector<14x32xf32>
    %122 = arith.maximumf %118, %121 : vector<14x32xf32>
    %c177 = arith.constant 177 : index
    %c0_91 = arith.constant 0 : index
    %123 = vector.load %arg12[%c177, %c0_91] : memref<272x32xf32, #tpu.memory_space<vmem>>, vector<14x32xf32>
    tpu.vector_store %arg12[%c177, %c0_91], %122 {strides = array<i32>} : memref<272x32xf32, #tpu.memory_space<vmem>>, vector<14x32xf32>,
    %c660 = arith.constant 660 : index
    %c0_92 = arith.constant 0 : index
    %124 = tpu.strided_load %arg11[%c660, %c0_92] {strides = array<i32: 2, 1>} : memref<840x32xf32, #tpu.memory_space<vmem>>, vector<14x32xf32>
    %c661 = arith.constant 661 : index
    %c0_93 = arith.constant 0 : index
    %125 = tpu.strided_load %arg11[%c661, %c0_93] {strides = array<i32: 2, 1>} : memref<840x32xf32, #tpu.memory_space<vmem>>, vector<14x32xf32>
    %126 = arith.maximumf %124, %125 : vector<14x32xf32>
    %c690 = arith.constant 690 : index
    %c0_94 = arith.constant 0 : index
    %127 = tpu.strided_load %arg11[%c690, %c0_94] {strides = array<i32: 2, 1>} : memref<840x32xf32, #tpu.memory_space<vmem>>, vector<14x32xf32>
    %c691 = arith.constant 691 : index
    %c0_95 = arith.constant 0 : index
    %128 = tpu.strided_load %arg11[%c691, %c0_95] {strides = array<i32: 2, 1>} : memref<840x32xf32, #tpu.memory_space<vmem>>, vector<14x32xf32>
    %129 = arith.maximumf %127, %128 : vector<14x32xf32>
    %130 = arith.maximumf %126, %129 : vector<14x32xf32>
    %c193 = arith.constant 193 : index
    %c0_96 = arith.constant 0 : index
    %131 = vector.load %arg12[%c193, %c0_96] : memref<272x32xf32, #tpu.memory_space<vmem>>, vector<14x32xf32>
    tpu.vector_store %arg12[%c193, %c0_96], %130 {strides = array<i32>} : memref<272x32xf32, #tpu.memory_space<vmem>>, vector<14x32xf32>,
    %c720 = arith.constant 720 : index
    %c0_97 = arith.constant 0 : index
    %132 = tpu.strided_load %arg11[%c720, %c0_97] {strides = array<i32: 2, 1>} : memref<840x32xf32, #tpu.memory_space<vmem>>, vector<14x32xf32>
    %c721 = arith.constant 721 : index
    %c0_98 = arith.constant 0 : index
    %133 = tpu.strided_load %arg11[%c721, %c0_98] {strides = array<i32: 2, 1>} : memref<840x32xf32, #tpu.memory_space<vmem>>, vector<14x32xf32>
    %134 = arith.maximumf %132, %133 : vector<14x32xf32>
    %c750 = arith.constant 750 : index
    %c0_99 = arith.constant 0 : index
    %135 = tpu.strided_load %arg11[%c750, %c0_99] {strides = array<i32: 2, 1>} : memref<840x32xf32, #tpu.memory_space<vmem>>, vector<14x32xf32>
    %c751 = arith.constant 751 : index
    %c0_100 = arith.constant 0 : index
    %136 = tpu.strided_load %arg11[%c751, %c0_100] {strides = array<i32: 2, 1>} : memref<840x32xf32, #tpu.memory_space<vmem>>, vector<14x32xf32>
    %137 = arith.maximumf %135, %136 : vector<14x32xf32>
    %138 = arith.maximumf %134, %137 : vector<14x32xf32>
    %c209 = arith.constant 209 : index
    %c0_101 = arith.constant 0 : index
    %139 = vector.load %arg12[%c209, %c0_101] : memref<272x32xf32, #tpu.memory_space<vmem>>, vector<14x32xf32>
    tpu.vector_store %arg12[%c209, %c0_101], %138 {strides = array<i32>} : memref<272x32xf32, #tpu.memory_space<vmem>>, vector<14x32xf32>,
    %c780 = arith.constant 780 : index
    %c0_102 = arith.constant 0 : index
    %140 = tpu.strided_load %arg11[%c780, %c0_102] {strides = array<i32: 2, 1>} : memref<840x32xf32, #tpu.memory_space<vmem>>, vector<14x32xf32>
    %c781 = arith.constant 781 : index
    %c0_103 = arith.constant 0 : index
    %141 = tpu.strided_load %arg11[%c781, %c0_103] {strides = array<i32: 2, 1>} : memref<840x32xf32, #tpu.memory_space<vmem>>, vector<14x32xf32>
    %142 = arith.maximumf %140, %141 : vector<14x32xf32>
    %c810 = arith.constant 810 : index
    %c0_104 = arith.constant 0 : index
    %143 = tpu.strided_load %arg11[%c810, %c0_104] {strides = array<i32: 2, 1>} : memref<840x32xf32, #tpu.memory_space<vmem>>, vector<14x32xf32>
    %c811 = arith.constant 811 : index
    %c0_105 = arith.constant 0 : index
    %144 = tpu.strided_load %arg11[%c811, %c0_105] {strides = array<i32: 2, 1>} : memref<840x32xf32, #tpu.memory_space<vmem>>, vector<14x32xf32>
    %145 = arith.maximumf %143, %144 : vector<14x32xf32>
    %146 = arith.maximumf %142, %145 : vector<14x32xf32>
    %c225 = arith.constant 225 : index
    %c0_106 = arith.constant 0 : index
    %147 = vector.load %arg12[%c225, %c0_106] : memref<272x32xf32, #tpu.memory_space<vmem>>, vector<14x32xf32>
    tpu.vector_store %arg12[%c225, %c0_106], %146 {strides = array<i32>} : memref<272x32xf32, #tpu.memory_space<vmem>>, vector<14x32xf32>,
    %c0_107 = arith.constant 0 : index
    %c0_108 = arith.constant 0 : index
    %148 = vector.load %arg12[%c0_107, %c0_108] : memref<272x32xf32, #tpu.memory_space<vmem>>, vector<224x32xf32>
    %c1_109 = arith.constant 1 : index
    %c0_110 = arith.constant 0 : index
    %149 = vector.load %arg12[%c1_109, %c0_110] : memref<272x32xf32, #tpu.memory_space<vmem>>, vector<224x32xf32>
    %c2_111 = arith.constant 2 : index
    %c0_112 = arith.constant 0 : index
    %150 = vector.load %arg12[%c2_111, %c0_112] : memref<272x32xf32, #tpu.memory_space<vmem>>, vector<224x32xf32>
    %c16 = arith.constant 16 : index
    %c0_113 = arith.constant 0 : index
    %151 = vector.load %arg12[%c16, %c0_113] : memref<272x32xf32, #tpu.memory_space<vmem>>, vector<224x32xf32>
    %c17_114 = arith.constant 17 : index
    %c0_115 = arith.constant 0 : index
    %152 = vector.load %arg12[%c17_114, %c0_115] : memref<272x32xf32, #tpu.memory_space<vmem>>, vector<224x32xf32>
    %c18 = arith.constant 18 : index
    %c0_116 = arith.constant 0 : index
    %153 = vector.load %arg12[%c18, %c0_116] : memref<272x32xf32, #tpu.memory_space<vmem>>, vector<224x32xf32>
    %c32_117 = arith.constant 32 : index
    %c0_118 = arith.constant 0 : index
    %154 = vector.load %arg12[%c32_117, %c0_118] : memref<272x32xf32, #tpu.memory_space<vmem>>, vector<224x32xf32>
    %c33_119 = arith.constant 33 : index
    %c0_120 = arith.constant 0 : index
    %155 = vector.load %arg12[%c33_119, %c0_120] : memref<272x32xf32, #tpu.memory_space<vmem>>, vector<224x32xf32>
    %c34 = arith.constant 34 : index
    %c0_121 = arith.constant 0 : index
    %156 = vector.load %arg12[%c34, %c0_121] : memref<272x32xf32, #tpu.memory_space<vmem>>, vector<224x32xf32>
    %157 = tpu.concatenate %148, %149, %150, %151, %152, %153, %154, %155, %156 in 1 : vector<224x32xf32>, vector<224x32xf32>, vector<224x32xf32>, vector<224x32xf32>, vector<224x32xf32>, vector<224x32xf32>, vector<224x32xf32>, vector<224x32xf32>, vector<224x32xf32> -> vector<224x288xf32>
    %158 = arith.truncf %157 : vector<224x288xf32> to vector<224x288xbf16>
    %c0_122 = arith.constant 0 : index
    %c0_123 = arith.constant 0 : index
    %159 = vector.load %arg7[%c0_122, %c0_123] : memref<288x64xbf16, #tpu.memory_space<vmem>>, vector<288x64xbf16>
    %cst_124 = arith.constant dense<0.000000e+00> : vector<224x64xf32>
    %160 = tpu.matmul %158, %159, %cst_124 {dimension_numbers = #tpu.dot_dimension_numbers<[1], [0], [0], [1], [0, 0, 1, 1], [], []>} : vector<224x288xbf16>, vector<288x64xbf16>, vector<224x64xf32> -> vector<224x64xf32>
    %c0_125 = arith.constant 0 : index
    %c0_126 = arith.constant 0 : index
    %161 = vector.load %arg8[%c0_125, %c0_126] : memref<1x64xf32, #tpu.memory_space<vmem>>, vector<1x64xf32>
    %162 = vector.broadcast %161 : vector<1x64xf32> to vector<224x64xf32>
    %163 = arith.addf %160, %162 : vector<224x64xf32>
    %cst_127 = arith.constant 0.000000e+00 : f32
    %164 = vector.broadcast %cst_127 : f32 to vector<224x64xf32>
    %165 = arith.maximumf %163, %164 : vector<224x64xf32>
    %c0_128 = arith.constant 0 : index
    %c0_129 = arith.constant 0 : index
    %166 = vector.load %arg13[%c0_128, %c0_129] : memref<224x64xf32, #tpu.memory_space<vmem>>, vector<224x64xf32>
    tpu.vector_store %arg13[%c0_128, %c0_129], %165 {strides = array<i32>} : memref<224x64xf32, #tpu.memory_space<vmem>>, vector<224x64xf32>,
    %c0_130 = arith.constant 0 : index
    %c0_131 = arith.constant 0 : index
    %167 = tpu.strided_load %arg13[%c0_130, %c0_131] {strides = array<i32: 2, 1>} : memref<224x64xf32, #tpu.memory_space<vmem>>, vector<7x64xf32>
    %c1_132 = arith.constant 1 : index
    %c0_133 = arith.constant 0 : index
    %168 = tpu.strided_load %arg13[%c1_132, %c0_133] {strides = array<i32: 2, 1>} : memref<224x64xf32, #tpu.memory_space<vmem>>, vector<7x64xf32>
    %169 = arith.maximumf %167, %168 : vector<7x64xf32>
    %c16_134 = arith.constant 16 : index
    %c0_135 = arith.constant 0 : index
    %170 = tpu.strided_load %arg13[%c16_134, %c0_135] {strides = array<i32: 2, 1>} : memref<224x64xf32, #tpu.memory_space<vmem>>, vector<7x64xf32>
    %c17_136 = arith.constant 17 : index
    %c0_137 = arith.constant 0 : index
    %171 = tpu.strided_load %arg13[%c17_136, %c0_137] {strides = array<i32: 2, 1>} : memref<224x64xf32, #tpu.memory_space<vmem>>, vector<7x64xf32>
    %172 = arith.maximumf %170, %171 : vector<7x64xf32>
    %173 = arith.maximumf %169, %172 : vector<7x64xf32>
    %174 = arith.truncf %173 : vector<7x64xf32> to vector<7x64xbf16>
    %c0_138 = arith.constant 0 : index
    %c0_139 = arith.constant 0 : index
    %c0_140 = arith.constant 0 : index
    %175 = vector.load %arg9[%c0_138, %c0_139, %c0_140] : memref<1x49x64xbf16, #tpu.memory_space<vmem>>, vector<1x7x64xbf16>
    %176 = vector.shape_cast %175 : vector<1x7x64xbf16> to vector<7x64xbf16>
    %177 = vector.shape_cast %174 : vector<7x64xbf16> to vector<1x7x64xbf16>
    tpu.vector_store %arg9[%c0_138, %c0_139, %c0_140], %177 {strides = array<i32>} : memref<1x49x64xbf16, #tpu.memory_space<vmem>>, vector<1x7x64xbf16>,
    %c32_141 = arith.constant 32 : index
    %c0_142 = arith.constant 0 : index
    %178 = tpu.strided_load %arg13[%c32_141, %c0_142] {strides = array<i32: 2, 1>} : memref<224x64xf32, #tpu.memory_space<vmem>>, vector<7x64xf32>
    %c33_143 = arith.constant 33 : index
    %c0_144 = arith.constant 0 : index
    %179 = tpu.strided_load %arg13[%c33_143, %c0_144] {strides = array<i32: 2, 1>} : memref<224x64xf32, #tpu.memory_space<vmem>>, vector<7x64xf32>
    %180 = arith.maximumf %178, %179 : vector<7x64xf32>
    %c48 = arith.constant 48 : index
    %c0_145 = arith.constant 0 : index
    %181 = tpu.strided_load %arg13[%c48, %c0_145] {strides = array<i32: 2, 1>} : memref<224x64xf32, #tpu.memory_space<vmem>>, vector<7x64xf32>
    %c49_146 = arith.constant 49 : index
    %c0_147 = arith.constant 0 : index
    %182 = tpu.strided_load %arg13[%c49_146, %c0_147] {strides = array<i32: 2, 1>} : memref<224x64xf32, #tpu.memory_space<vmem>>, vector<7x64xf32>
    %183 = arith.maximumf %181, %182 : vector<7x64xf32>
    %184 = arith.maximumf %180, %183 : vector<7x64xf32>
    %185 = arith.truncf %184 : vector<7x64xf32> to vector<7x64xbf16>
    %c0_148 = arith.constant 0 : index
    %c7 = arith.constant 7 : index
    %c0_149 = arith.constant 0 : index
    %186 = vector.load %arg9[%c0_148, %c7, %c0_149] : memref<1x49x64xbf16, #tpu.memory_space<vmem>>, vector<1x7x64xbf16>
    %187 = vector.shape_cast %186 : vector<1x7x64xbf16> to vector<7x64xbf16>
    %188 = vector.shape_cast %185 : vector<7x64xbf16> to vector<1x7x64xbf16>
    tpu.vector_store %arg9[%c0_148, %c7, %c0_149], %188 {strides = array<i32>} : memref<1x49x64xbf16, #tpu.memory_space<vmem>>, vector<1x7x64xbf16>,
    %c64 = arith.constant 64 : index
    %c0_150 = arith.constant 0 : index
    %189 = tpu.strided_load %arg13[%c64, %c0_150] {strides = array<i32: 2, 1>} : memref<224x64xf32, #tpu.memory_space<vmem>>, vector<7x64xf32>
    %c65_151 = arith.constant 65 : index
    %c0_152 = arith.constant 0 : index
    %190 = tpu.strided_load %arg13[%c65_151, %c0_152] {strides = array<i32: 2, 1>} : memref<224x64xf32, #tpu.memory_space<vmem>>, vector<7x64xf32>
    %191 = arith.maximumf %189, %190 : vector<7x64xf32>
    %c80 = arith.constant 80 : index
    %c0_153 = arith.constant 0 : index
    %192 = tpu.strided_load %arg13[%c80, %c0_153] {strides = array<i32: 2, 1>} : memref<224x64xf32, #tpu.memory_space<vmem>>, vector<7x64xf32>
    %c81_154 = arith.constant 81 : index
    %c0_155 = arith.constant 0 : index
    %193 = tpu.strided_load %arg13[%c81_154, %c0_155] {strides = array<i32: 2, 1>} : memref<224x64xf32, #tpu.memory_space<vmem>>, vector<7x64xf32>
    %194 = arith.maximumf %192, %193 : vector<7x64xf32>
    %195 = arith.maximumf %191, %194 : vector<7x64xf32>
    %196 = arith.truncf %195 : vector<7x64xf32> to vector<7x64xbf16>
    %c0_156 = arith.constant 0 : index
    %c14 = arith.constant 14 : index
    %c0_157 = arith.constant 0 : index
    %197 = vector.load %arg9[%c0_156, %c14, %c0_157] : memref<1x49x64xbf16, #tpu.memory_space<vmem>>, vector<1x7x64xbf16>
    %198 = vector.shape_cast %197 : vector<1x7x64xbf16> to vector<7x64xbf16>
    %199 = vector.shape_cast %196 : vector<7x64xbf16> to vector<1x7x64xbf16>
    tpu.vector_store %arg9[%c0_156, %c14, %c0_157], %199 {strides = array<i32>} : memref<1x49x64xbf16, #tpu.memory_space<vmem>>, vector<1x7x64xbf16>,
    %c96 = arith.constant 96 : index
    %c0_158 = arith.constant 0 : index
    %200 = tpu.strided_load %arg13[%c96, %c0_158] {strides = array<i32: 2, 1>} : memref<224x64xf32, #tpu.memory_space<vmem>>, vector<7x64xf32>
    %c97_159 = arith.constant 97 : index
    %c0_160 = arith.constant 0 : index
    %201 = tpu.strided_load %arg13[%c97_159, %c0_160] {strides = array<i32: 2, 1>} : memref<224x64xf32, #tpu.memory_space<vmem>>, vector<7x64xf32>
    %202 = arith.maximumf %200, %201 : vector<7x64xf32>
    %c112 = arith.constant 112 : index
    %c0_161 = arith.constant 0 : index
    %203 = tpu.strided_load %arg13[%c112, %c0_161] {strides = array<i32: 2, 1>} : memref<224x64xf32, #tpu.memory_space<vmem>>, vector<7x64xf32>
    %c113_162 = arith.constant 113 : index
    %c0_163 = arith.constant 0 : index
    %204 = tpu.strided_load %arg13[%c113_162, %c0_163] {strides = array<i32: 2, 1>} : memref<224x64xf32, #tpu.memory_space<vmem>>, vector<7x64xf32>
    %205 = arith.maximumf %203, %204 : vector<7x64xf32>
    %206 = arith.maximumf %202, %205 : vector<7x64xf32>
    %207 = arith.truncf %206 : vector<7x64xf32> to vector<7x64xbf16>
    %c0_164 = arith.constant 0 : index
    %c21 = arith.constant 21 : index
    %c0_165 = arith.constant 0 : index
    %208 = vector.load %arg9[%c0_164, %c21, %c0_165] : memref<1x49x64xbf16, #tpu.memory_space<vmem>>, vector<1x7x64xbf16>
    %209 = vector.shape_cast %208 : vector<1x7x64xbf16> to vector<7x64xbf16>
    %210 = vector.shape_cast %207 : vector<7x64xbf16> to vector<1x7x64xbf16>
    tpu.vector_store %arg9[%c0_164, %c21, %c0_165], %210 {strides = array<i32>} : memref<1x49x64xbf16, #tpu.memory_space<vmem>>, vector<1x7x64xbf16>,
    %c128 = arith.constant 128 : index
    %c0_166 = arith.constant 0 : index
    %211 = tpu.strided_load %arg13[%c128, %c0_166] {strides = array<i32: 2, 1>} : memref<224x64xf32, #tpu.memory_space<vmem>>, vector<7x64xf32>
    %c129_167 = arith.constant 129 : index
    %c0_168 = arith.constant 0 : index
    %212 = tpu.strided_load %arg13[%c129_167, %c0_168] {strides = array<i32: 2, 1>} : memref<224x64xf32, #tpu.memory_space<vmem>>, vector<7x64xf32>
    %213 = arith.maximumf %211, %212 : vector<7x64xf32>
    %c144 = arith.constant 144 : index
    %c0_169 = arith.constant 0 : index
    %214 = tpu.strided_load %arg13[%c144, %c0_169] {strides = array<i32: 2, 1>} : memref<224x64xf32, #tpu.memory_space<vmem>>, vector<7x64xf32>
    %c145_170 = arith.constant 145 : index
    %c0_171 = arith.constant 0 : index
    %215 = tpu.strided_load %arg13[%c145_170, %c0_171] {strides = array<i32: 2, 1>} : memref<224x64xf32, #tpu.memory_space<vmem>>, vector<7x64xf32>
    %216 = arith.maximumf %214, %215 : vector<7x64xf32>
    %217 = arith.maximumf %213, %216 : vector<7x64xf32>
    %218 = arith.truncf %217 : vector<7x64xf32> to vector<7x64xbf16>
    %c0_172 = arith.constant 0 : index
    %c28 = arith.constant 28 : index
    %c0_173 = arith.constant 0 : index
    %219 = vector.load %arg9[%c0_172, %c28, %c0_173] : memref<1x49x64xbf16, #tpu.memory_space<vmem>>, vector<1x7x64xbf16>
    %220 = vector.shape_cast %219 : vector<1x7x64xbf16> to vector<7x64xbf16>
    %221 = vector.shape_cast %218 : vector<7x64xbf16> to vector<1x7x64xbf16>
    tpu.vector_store %arg9[%c0_172, %c28, %c0_173], %221 {strides = array<i32>} : memref<1x49x64xbf16, #tpu.memory_space<vmem>>, vector<1x7x64xbf16>,
    %c160 = arith.constant 160 : index
    %c0_174 = arith.constant 0 : index
    %222 = tpu.strided_load %arg13[%c160, %c0_174] {strides = array<i32: 2, 1>} : memref<224x64xf32, #tpu.memory_space<vmem>>, vector<7x64xf32>
    %c161_175 = arith.constant 161 : index
    %c0_176 = arith.constant 0 : index
    %223 = tpu.strided_load %arg13[%c161_175, %c0_176] {strides = array<i32: 2, 1>} : memref<224x64xf32, #tpu.memory_space<vmem>>, vector<7x64xf32>
    %224 = arith.maximumf %222, %223 : vector<7x64xf32>
    %c176 = arith.constant 176 : index
    %c0_177 = arith.constant 0 : index
    %225 = tpu.strided_load %arg13[%c176, %c0_177] {strides = array<i32: 2, 1>} : memref<224x64xf32, #tpu.memory_space<vmem>>, vector<7x64xf32>
    %c177_178 = arith.constant 177 : index
    %c0_179 = arith.constant 0 : index
    %226 = tpu.strided_load %arg13[%c177_178, %c0_179] {strides = array<i32: 2, 1>} : memref<224x64xf32, #tpu.memory_space<vmem>>, vector<7x64xf32>
    %227 = arith.maximumf %225, %226 : vector<7x64xf32>
    %228 = arith.maximumf %224, %227 : vector<7x64xf32>
    %229 = arith.truncf %228 : vector<7x64xf32> to vector<7x64xbf16>
    %c0_180 = arith.constant 0 : index
    %c35 = arith.constant 35 : index
    %c0_181 = arith.constant 0 : index
    %230 = vector.load %arg9[%c0_180, %c35, %c0_181] : memref<1x49x64xbf16, #tpu.memory_space<vmem>>, vector<1x7x64xbf16>
    %231 = vector.shape_cast %230 : vector<1x7x64xbf16> to vector<7x64xbf16>
    %232 = vector.shape_cast %229 : vector<7x64xbf16> to vector<1x7x64xbf16>
    tpu.vector_store %arg9[%c0_180, %c35, %c0_181], %232 {strides = array<i32>} : memref<1x49x64xbf16, #tpu.memory_space<vmem>>, vector<1x7x64xbf16>,
    %c192 = arith.constant 192 : index
    %c0_182 = arith.constant 0 : index
    %233 = tpu.strided_load %arg13[%c192, %c0_182] {strides = array<i32: 2, 1>} : memref<224x64xf32, #tpu.memory_space<vmem>>, vector<7x64xf32>
    %c193_183 = arith.constant 193 : index
    %c0_184 = arith.constant 0 : index
    %234 = tpu.strided_load %arg13[%c193_183, %c0_184] {strides = array<i32: 2, 1>} : memref<224x64xf32, #tpu.memory_space<vmem>>, vector<7x64xf32>
    %235 = arith.maximumf %233, %234 : vector<7x64xf32>
    %c208 = arith.constant 208 : index
    %c0_185 = arith.constant 0 : index
    %236 = tpu.strided_load %arg13[%c208, %c0_185] {strides = array<i32: 2, 1>} : memref<224x64xf32, #tpu.memory_space<vmem>>, vector<7x64xf32>
    %c209_186 = arith.constant 209 : index
    %c0_187 = arith.constant 0 : index
    %237 = tpu.strided_load %arg13[%c209_186, %c0_187] {strides = array<i32: 2, 1>} : memref<224x64xf32, #tpu.memory_space<vmem>>, vector<7x64xf32>
    %238 = arith.maximumf %236, %237 : vector<7x64xf32>
    %239 = arith.maximumf %235, %238 : vector<7x64xf32>
    %240 = arith.truncf %239 : vector<7x64xf32> to vector<7x64xbf16>
    %c0_188 = arith.constant 0 : index
    %c42 = arith.constant 42 : index
    %c0_189 = arith.constant 0 : index
    %241 = vector.load %arg9[%c0_188, %c42, %c0_189] : memref<1x49x64xbf16, #tpu.memory_space<vmem>>, vector<1x7x64xbf16>
    %242 = vector.shape_cast %241 : vector<1x7x64xbf16> to vector<7x64xbf16>
    %243 = vector.shape_cast %240 : vector<7x64xbf16> to vector<1x7x64xbf16>
    tpu.vector_store %arg9[%c0_188, %c42, %c0_189], %243 {strides = array<i32>} : memref<1x49x64xbf16, #tpu.memory_space<vmem>>, vector<1x7x64xbf16>,
    return
  }
  func.func @transform_0(%arg0: i32) -> (i32, i32, i32) {
    %c0_i32 = arith.constant 0 : i32
    %c0_i32_0 = arith.constant 0 : i32
    %c0_i32_1 = arith.constant 0 : i32
    return %arg0, %c0_i32, %c0_i32_0 : i32, i32, i32
  }
  func.func @transform_1(%arg0: i32) -> (i32, i32) {
    %c0_i32 = arith.constant 0 : i32
    %c0_i32_0 = arith.constant 0 : i32
    %c0_i32_1 = arith.constant 0 : i32
    return %c0_i32, %c0_i32_0 : i32, i32
  }
  func.func @transform_2(%arg0: i32) -> (i32, i32) {
    %c0_i32 = arith.constant 0 : i32
    %c0_i32_0 = arith.constant 0 : i32
    %c0_i32_1 = arith.constant 0 : i32
    return %c0_i32, %c0_i32_0 : i32, i32
  }
  func.func @transform_3(%arg0: i32) -> (i32, i32) {
    %c0_i32 = arith.constant 0 : i32
    %c0_i32_0 = arith.constant 0 : i32
    %c0_i32_1 = arith.constant 0 : i32
    return %c0_i32, %c0_i32_0 : i32, i32
  }
  func.func @transform_4(%arg0: i32) -> (i32, i32) {
    %c0_i32 = arith.constant 0 : i32
    %c0_i32_0 = arith.constant 0 : i32
    %c0_i32_1 = arith.constant 0 : i32
    return %c0_i32, %c0_i32_0 : i32, i32
  }
  func.func @transform_5(%arg0: i32) -> (i32, i32) {
    %c0_i32 = arith.constant 0 : i32
    %c0_i32_0 = arith.constant 0 : i32
    %c0_i32_1 = arith.constant 0 : i32
    return %c0_i32, %c0_i32_0 : i32, i32
  }
  func.func @transform_6(%arg0: i32) -> (i32, i32) {
    %c0_i32 = arith.constant 0 : i32
    %c0_i32_0 = arith.constant 0 : i32
    %c0_i32_1 = arith.constant 0 : i32
    return %c0_i32, %c0_i32_0 : i32, i32
  }
  func.func @transform_7(%arg0: i32) -> (i32, i32) {
    %c0_i32 = arith.constant 0 : i32
    %c0_i32_0 = arith.constant 0 : i32
    %c0_i32_1 = arith.constant 0 : i32
    return %c0_i32, %c0_i32_0 : i32, i32
  }
  func.func @transform_8(%arg0: i32) -> (i32, i32, i32) {
    %c0_i32 = arith.constant 0 : i32
    %c0_i32_0 = arith.constant 0 : i32
    %c0_i32_1 = arith.constant 0 : i32
    return %arg0, %c0_i32, %c0_i32_0 : i32, i32, i32
  }
}

module attributes {stable_mosaic.version = 11 : i64} {
  func.func @_mlp_kernel(%arg0: i32, %arg1: memref<2x3136xbf16, #tpu.memory_space<vmem>>, %arg2: memref<3136x128xbf16, #tpu.memory_space<vmem>>, %arg3: memref<1x128xf32, #tpu.memory_space<vmem>>, %arg4: memref<128x10xbf16, #tpu.memory_space<vmem>>, %arg5: memref<1x10xf32, #tpu.memory_space<vmem>>, %arg6: memref<2x10xf32, #tpu.memory_space<vmem>>) attributes {dimension_semantics = [#tpu.dimension_semantics<arbitrary>], iteration_bounds = array<i64: 1>, scalar_prefetch = 0 : i64, scratch_operands = 0 : i64, tpu.core_type = #tpu.core_type<tc>, window_params = [{pipeline_mode = #tpu.pipeline_mode<synchronous>, transform_indices = @transform_0, window_bounds = array<i64: 2, 3136>}, {pipeline_mode = #tpu.pipeline_mode<synchronous>, transform_indices = @transform_1, window_bounds = array<i64: 3136, 128>}, {pipeline_mode = #tpu.pipeline_mode<synchronous>, transform_indices = @transform_2, window_bounds = array<i64: 1, 128>}, {pipeline_mode = #tpu.pipeline_mode<synchronous>, transform_indices = @transform_3, window_bounds = array<i64: 128, 10>}, {pipeline_mode = #tpu.pipeline_mode<synchronous>, transform_indices = @transform_4, window_bounds = array<i64: 1, 10>}, {pipeline_mode = #tpu.pipeline_mode<synchronous>, transform_indices = @transform_5, window_bounds = array<i64: 2, 10>}]} {
    %c0 = arith.constant 0 : index
    %c0_0 = arith.constant 0 : index
    %0 = vector.load %arg1[%c0, %c0_0] : memref<2x3136xbf16, #tpu.memory_space<vmem>>, vector<2x3136xbf16>
    %c0_1 = arith.constant 0 : index
    %c0_2 = arith.constant 0 : index
    %1 = vector.load %arg2[%c0_1, %c0_2] : memref<3136x128xbf16, #tpu.memory_space<vmem>>, vector<3136x128xbf16>
    %cst = arith.constant dense<0.000000e+00> : vector<2x128xf32>
    %2 = tpu.matmul %0, %1, %cst {dimension_numbers = #tpu.dot_dimension_numbers<[1], [0], [0], [1], [0, 0, 1, 1], [], []>} : vector<2x3136xbf16>, vector<3136x128xbf16>, vector<2x128xf32> -> vector<2x128xf32>
    %c0_3 = arith.constant 0 : index
    %c0_4 = arith.constant 0 : index
    %3 = vector.load %arg3[%c0_3, %c0_4] : memref<1x128xf32, #tpu.memory_space<vmem>>, vector<1x128xf32>
    %4 = vector.broadcast %3 : vector<1x128xf32> to vector<2x128xf32>
    %5 = arith.addf %2, %4 : vector<2x128xf32>
    %cst_5 = arith.constant 0.000000e+00 : f32
    %6 = vector.broadcast %cst_5 : f32 to vector<2x128xf32>
    %7 = arith.maximumf %5, %6 : vector<2x128xf32>
    %8 = arith.truncf %7 : vector<2x128xf32> to vector<2x128xbf16>
    %c0_6 = arith.constant 0 : index
    %c0_7 = arith.constant 0 : index
    %9 = vector.load %arg4[%c0_6, %c0_7] : memref<128x10xbf16, #tpu.memory_space<vmem>>, vector<128x10xbf16>
    %cst_8 = arith.constant dense<0.000000e+00> : vector<2x10xf32>
    %10 = tpu.matmul %8, %9, %cst_8 {dimension_numbers = #tpu.dot_dimension_numbers<[1], [0], [0], [1], [0, 0, 1, 1], [], []>} : vector<2x128xbf16>, vector<128x10xbf16>, vector<2x10xf32> -> vector<2x10xf32>
    %c0_9 = arith.constant 0 : index
    %c0_10 = arith.constant 0 : index
    %11 = vector.load %arg5[%c0_9, %c0_10] : memref<1x10xf32, #tpu.memory_space<vmem>>, vector<1x10xf32>
    %12 = vector.broadcast %11 : vector<1x10xf32> to vector<2x10xf32>
    %13 = arith.addf %10, %12 : vector<2x10xf32>
    %c0_11 = arith.constant 0 : index
    %c0_12 = arith.constant 0 : index
    %14 = vector.load %arg6[%c0_11, %c0_12] : memref<2x10xf32, #tpu.memory_space<vmem>>, vector<2x10xf32>
    tpu.vector_store %arg6[%c0_11, %c0_12], %13 {strides = array<i32>} : memref<2x10xf32, #tpu.memory_space<vmem>>, vector<2x10xf32>,
    return
  }
  func.func @transform_0(%arg0: i32) -> (i32, i32) {
    %c0_i32 = arith.constant 0 : i32
    %c0_i32_0 = arith.constant 0 : i32
    %c0_i32_1 = arith.constant 0 : i32
    return %c0_i32, %c0_i32_0 : i32, i32
  }
  func.func @transform_1(%arg0: i32) -> (i32, i32) {
    %c0_i32 = arith.constant 0 : i32
    %c0_i32_0 = arith.constant 0 : i32
    %c0_i32_1 = arith.constant 0 : i32
    return %c0_i32, %c0_i32_0 : i32, i32
  }
  func.func @transform_2(%arg0: i32) -> (i32, i32) {
    %c0_i32 = arith.constant 0 : i32
    %c0_i32_0 = arith.constant 0 : i32
    %c0_i32_1 = arith.constant 0 : i32
    return %c0_i32, %c0_i32_0 : i32, i32
  }
  func.func @transform_3(%arg0: i32) -> (i32, i32) {
    %c0_i32 = arith.constant 0 : i32
    %c0_i32_0 = arith.constant 0 : i32
    %c0_i32_1 = arith.constant 0 : i32
    return %c0_i32, %c0_i32_0 : i32, i32
  }
  func.func @transform_4(%arg0: i32) -> (i32, i32) {
    %c0_i32 = arith.constant 0 : i32
    %c0_i32_0 = arith.constant 0 : i32
    %c0_i32_1 = arith.constant 0 : i32
    return %c0_i32, %c0_i32_0 : i32, i32
  }
  func.func @transform_5(%arg0: i32) -> (i32, i32) {
    %c0_i32 = arith.constant 0 : i32
    %c0_i32_0 = arith.constant 0 : i32
    %c0_i32_1 = arith.constant 0 : i32
    return %c0_i32, %c0_i32_0 : i32, i32
  }
}

</mosaic_0001>

<llo_original>
// kernel: cnn_forward.3
$region0: #{cnn_forward.3}
  #allocation0 [shape = 'u32[]', space=smem, size = 0x4, offset = 0x4, fixed_abs, tag = 'smem constant byte address 0x4 - core index']
  #allocation1 [shape = 'u32[72,128]{1,0:T(1,128)}', space=vmem, size = 0x9000, scoped, tag = 'internal scratch']
  %s0 = inlined_call_operand.vmem [shape: bf16[2,3136], index: 0, kind: input, shape index: {}]
  %s1 = inlined_call_operand.vmem [shape: bf16[3136,128], index: 1, kind: input, shape index: {}]
  %s2 = inlined_call_operand.vmem [shape: f32[1,128], index: 2, kind: input, shape index: {}]
  %s3 = inlined_call_operand.vmem [shape: bf16[128,10], index: 3, kind: input, shape index: {}]
  %s4 = inlined_call_operand.vmem [shape: f32[1,10], index: 4, kind: input, shape index: {}]
  %s5 = inlined_call_operand.hbm [shape: f32[2,10], index: 5, kind: output, shape index: {}]
  %s6 = sld [smem:[#allocation0]]
  $region30: #{cnn_forward.3} parent=0
    _
  %s8 = ssub.s32 1, %s6
  %s9 = scalar_select 0, %s8, %s6
  $region1: #{cnn_forward.3} parent=0
    #allocation2 [shape = 'u8[1024]{0}', space=vmem, size = 0x400, scoped, tag = 'output window, operand 0, single buffered']
    #allocation3 [shape = 's32[1]{0}', space=sflag, size = 0x4, scoped, tag = 'scoped memory for cnn_forward.3']
    %10 = vsyncpa [#allocation3], 0
    // Predicated region
    $region2: #{cnn_forward.3} parent=1 // pred_check
      _
    $region3: #{cnn_forward.3} parent=1 // pred_check_branch
      %12 = sbr.rel (0) target = $region5
    $region4: #{cnn_forward.3} parent=1 // pred_region
      _
    $region5: #{cnn_forward.3} parent=1 // pred_fallthru
      _
    // Predicated region
    $region6: #{cnn_forward.3} parent=1 // pred_check
      _
    $region7: #{cnn_forward.3} parent=1 // pred_check_branch
      %14 = sbr.rel (0) target = $region9
    $region8: #{cnn_forward.3} parent=1 // pred_region
      _
    $region9: #{cnn_forward.3} parent=1 // pred_fallthru
      _
    // Predicated region
    $region10: #{cnn_forward.3} parent=1 // pred_check
      _
    $region11: #{cnn_forward.3} parent=1 // pred_check_branch
      %16 = sbr.rel (0) target = $region13
    $region12: #{cnn_forward.3} parent=1 // pred_region
      _
    $region13: #{cnn_forward.3} parent=1 // pred_fallthru
      _
    // Predicated region
    $region14: #{cnn_forward.3} parent=1 // pred_check
      _
    $region15: #{cnn_forward.3} parent=1 // pred_check_branch
      %18 = sbr.rel (0) target = $region17
    $region16: #{cnn_forward.3} parent=1 // pred_region
      _
    $region17: #{cnn_forward.3} parent=1 // pred_fallthru
      _
    // Predicated region
    $region18: #{cnn_forward.3} parent=1 // pred_check
      _
    $region19: #{cnn_forward.3} parent=1 // pred_check_branch
      %20 = sbr.rel (0) target = $region21
    $region20: #{cnn_forward.3} parent=1 // pred_region
      _
    $region21: #{cnn_forward.3} parent=1 // pred_fallthru
      _
    %v22 = vld [vmem:[%s0] sm:$0xff]
    %v23 = vld [vmem:[%s0 + $0x8] sm:$0xff]
    %v24 = vld [vmem:[%s0 + $0x10] sm:$0xff]
    %v25 = vld [vmem:[%s0 + $0x18] sm:$0x1]
    %v26 = vld [vmem:[%s1] sm:$0xf]
    %v27 = vld [vmem:[%s1 + $0x4] sm:$0xf]
    %v28 = vld [vmem:[%s1 + $0x8] sm:$0xf]
    %v29 = vld [vmem:[%s1 + $0xc] sm:$0xf]
    %v30 = vld [vmem:[%s1 + $0x10] sm:$0xf]
    %v31 = vld [vmem:[%s1 + $0x14] sm:$0xf]
    %v32 = vld [vmem:[%s1 + $0x18] sm:$0xf]
    %v33 = vld [vmem:[%s1 + $0x1c] sm:$0xf]
    %v34 = vld [vmem:[%s1 + $0x20] sm:$0xf]
    %v35 = vld [vmem:[%s1 + $0x24] sm:$0xf]
    %v36 = vld [vmem:[%s1 + $0x28] sm:$0xf]
    %v37 = vld [vmem:[%s1 + $0x2c] sm:$0xf]
    %v38 = vld [vmem:[%s1 + $0x30] sm:$0xf]
    %v39 = vld [vmem:[%s1 + $0x34] sm:$0xf]
    %v40 = vld [vmem:[%s1 + $0x38] sm:$0xf]
    %v41 = vld [vmem:[%s1 + $0x3c] sm:$0xf]
    %v42 = vld [vmem:[%s1 + $0x40] sm:$0xf]
    %v43 = vld [vmem:[%s1 + $0x44] sm:$0xf]
    %v44 = vld [vmem:[%s1 + $0x48] sm:$0xf]
    %v45 = vld [vmem:[%s1 + $0x4c] sm:$0xf]
    %v46 = vld [vmem:[%s1 + $0x50] sm:$0xf]
    %v47 = vld [vmem:[%s1 + $0x54] sm:$0xf]
    %v48 = vld [vmem:[%s1 + $0x58] sm:$0xf]
    %v49 = vld [vmem:[%s1 + $0x5c] sm:$0xf]
    %v50 = vld [vmem:[%s1 + $0x60] sm:$0xf]
    %v51 = vld [vmem:[%s1 + $0x64] sm:$0xf]
    %v52 = vld [vmem:[%s1 + $0x68] sm:$0xf]
    %v53 = vld [vmem:[%s1 + $0x6c] sm:$0xf]
    %v54 = vld [vmem:[%s1 + $0x70] sm:$0xf]
    %v55 = vld [vmem:[%s1 + $0x74] sm:$0xf]
    %v56 = vld [vmem:[%s1 + $0x78] sm:$0xf]
    %v57 = vld [vmem:[%s1 + $0x7c] sm:$0xf]
    %v58 = vld [vmem:[%s1 + $0x80] sm:$0xf]
    %v59 = vld [vmem:[%s1 + $0x84] sm:$0xf]
    %v60 = vld [vmem:[%s1 + $0x88] sm:$0xf]
    %v61 = vld [vmem:[%s1 + $0x8c] sm:$0xf]
    %v62 = vld [vmem:[%s1 + $0x90] sm:$0xf]
    %v63 = vld [vmem:[%s1 + $0x94] sm:$0xf]
    %v64 = vld [vmem:[%s1 + $0x98] sm:$0xf]
    %v65 = vld [vmem:[%s1 + $0x9c] sm:$0xf]
    %v66 = vld [vmem:[%s1 + $0xa0] sm:$0xf]
    %v67 = vld [vmem:[%s1 + $0xa4] sm:$0xf]
    %v68 = vld [vmem:[%s1 + $0xa8] sm:$0xf]
    %v69 = vld [vmem:[%s1 + $0xac] sm:$0xf]
    %v70 = vld [vmem:[%s1 + $0xb0] sm:$0xf]
    %v71 = vld [vmem:[%s1 + $0xb4] sm:$0xf]
    %v72 = vld [vmem:[%s1 + $0xb8] sm:$0xf]
    %v73 = vld [vmem:[%s1 + $0xbc] sm:$0xf]
    %v74 = vld [vmem:[%s1 + $0xc0] sm:$0xf]
    %v75 = vld [vmem:[%s1 + $0xc4] sm:$0xf]
    %v76 = vld [vmem:[%s1 + $0xc8] sm:$0xf]
    %v77 = vld [vmem:[%s1 + $0xcc] sm:$0xf]
    %v78 = vld [vmem:[%s1 + $0xd0] sm:$0xf]
    %v79 = vld [vmem:[%s1 + $0xd4] sm:$0xf]
    %v80 = vld [vmem:[%s1 + $0xd8] sm:$0xf]
    %v81 = vld [vmem:[%s1 + $0xdc] sm:$0xf]
    %v82 = vld [vmem:[%s1 + $0xe0] sm:$0xf]
    %v83 = vld [vmem:[%s1 + $0xe4] sm:$0xf]
    %v84 = vld [vmem:[%s1 + $0xe8] sm:$0xf]
    %v85 = vld [vmem:[%s1 + $0xec] sm:$0xf]
    %v86 = vld [vmem:[%s1 + $0xf0] sm:$0xf]
    %v87 = vld [vmem:[%s1 + $0xf4] sm:$0xf]
    %v88 = vld [vmem:[%s1 + $0xf8] sm:$0xf]
    %v89 = vld [vmem:[%s1 + $0xfc] sm:$0xf]
    %v90 = vld [vmem:[%s1 + $0x100] sm:$0xf]
    %v91 = vld [vmem:[%s1 + $0x104] sm:$0xf]
    %v92 = vld [vmem:[%s1 + $0x108] sm:$0xf]
    %v93 = vld [vmem:[%s1 + $0x10c] sm:$0xf]
    %v94 = vld [vmem:[%s1 + $0x110] sm:$0xf]
    %v95 = vld [vmem:[%s1 + $0x114] sm:$0xf]
    %v96 = vld [vmem:[%s1 + $0x118] sm:$0xf]
    %v97 = vld [vmem:[%s1 + $0x11c] sm:$0xf]
    %v98 = vld [vmem:[%s1 + $0x120] sm:$0xf]
    %v99 = vld [vmem:[%s1 + $0x124] sm:$0xf]
    %v100 = vld [vmem:[%s1 + $0x128] sm:$0xf]
    %v101 = vld [vmem:[%s1 + $0x12c] sm:$0xf]
    %v102 = vld [vmem:[%s1 + $0x130] sm:$0xf]
    %v103 = vld [vmem:[%s1 + $0x134] sm:$0xf]
    %v104 = vld [vmem:[%s1 + $0x138] sm:$0xf]
    %v105 = vld [vmem:[%s1 + $0x13c] sm:$0xf]
    %v106 = vld [vmem:[%s1 + $0x140] sm:$0xf]
    %v107 = vld [vmem:[%s1 + $0x144] sm:$0xf]
    %v108 = vld [vmem:[%s1 + $0x148] sm:$0xf]
    %v109 = vld [vmem:[%s1 + $0x14c] sm:$0xf]
    %v110 = vld [vmem:[%s1 + $0x150] sm:$0xf]
    %v111 = vld [vmem:[%s1 + $0x154] sm:$0xf]
    %v112 = vld [vmem:[%s1 + $0x158] sm:$0xf]
    %v113 = vld [vmem:[%s1 + $0x15c] sm:$0xf]
    %v114 = vld [vmem:[%s1 + $0x160] sm:$0xf]
    %v115 = vld [vmem:[%s1 + $0x164] sm:$0xf]
    %v116 = vld [vmem:[%s1 + $0x168] sm:$0xf]
    %v117 = vld [vmem:[%s1 + $0x16c] sm:$0xf]
    %v118 = vld [vmem:[%s1 + $0x170] sm:$0xf]
    %v119 = vld [vmem:[%s1 + $0x174] sm:$0xf]
    %v120 = vld [vmem:[%s1 + $0x178] sm:$0xf]
    %v121 = vld [vmem:[%s1 + $0x17c] sm:$0xf]
    %v122 = vld [vmem:[%s1 + $0x180] sm:$0xf]
    %v123 = vld [vmem:[%s1 + $0x184] sm:$0xf]
    %v124 = vld [vmem:[%s1 + $0x188] sm:$0xf]
    %v125 = vld [vmem:[%s1 + $0x18c] sm:$0xf]
    %v126 = vld [vmem:[%s1 + $0x190] sm:$0xf]
    %v127 = vld [vmem:[%s1 + $0x194] sm:$0xf]
    %v128 = vld [vmem:[%s1 + $0x198] sm:$0xf]
    %v129 = vld [vmem:[%s1 + $0x19c] sm:$0xf]
    %v130 = vld [vmem:[%s1 + $0x1a0] sm:$0xf]
    %v131 = vld [vmem:[%s1 + $0x1a4] sm:$0xf]
    %v132 = vld [vmem:[%s1 + $0x1a8] sm:$0xf]
    %v133 = vld [vmem:[%s1 + $0x1ac] sm:$0xf]
    %v134 = vld [vmem:[%s1 + $0x1b0] sm:$0xf]
    %v135 = vld [vmem:[%s1 + $0x1b4] sm:$0xf]
    %v136 = vld [vmem:[%s1 + $0x1b8] sm:$0xf]
    %v137 = vld [vmem:[%s1 + $0x1bc] sm:$0xf]
    %v138 = vld [vmem:[%s1 + $0x1c0] sm:$0xf]
    %v139 = vld [vmem:[%s1 + $0x1c4] sm:$0xf]
    %v140 = vld [vmem:[%s1 + $0x1c8] sm:$0xf]
    %v141 = vld [vmem:[%s1 + $0x1cc] sm:$0xf]
    %v142 = vld [vmem:[%s1 + $0x1d0] sm:$0xf]
    %v143 = vld [vmem:[%s1 + $0x1d4] sm:$0xf]
    %v144 = vld [vmem:[%s1 + $0x1d8] sm:$0xf]
    %v145 = vld [vmem:[%s1 + $0x1dc] sm:$0xf]
    %v146 = vld [vmem:[%s1 + $0x1e0] sm:$0xf]
    %v147 = vld [vmem:[%s1 + $0x1e4] sm:$0xf]
    %v148 = vld [vmem:[%s1 + $0x1e8] sm:$0xf]
    %v149 = vld [vmem:[%s1 + $0x1ec] sm:$0xf]
    %v150 = vld [vmem:[%s1 + $0x1f0] sm:$0xf]
    %v151 = vld [vmem:[%s1 + $0x1f4] sm:$0xf]
    %v152 = vld [vmem:[%s1 + $0x1f8] sm:$0xf]
    %v153 = vld [vmem:[%s1 + $0x1fc] sm:$0xf]
    %v154 = vld [vmem:[%s1 + $0x200] sm:$0xf]
    %v155 = vld [vmem:[%s1 + $0x204] sm:$0xf]
    %v156 = vld [vmem:[%s1 + $0x208] sm:$0xf]
    %v157 = vld [vmem:[%s1 + $0x20c] sm:$0xf]
    %v158 = vld [vmem:[%s1 + $0x210] sm:$0xf]
    %v159 = vld [vmem:[%s1 + $0x214] sm:$0xf]
    %v160 = vld [vmem:[%s1 + $0x218] sm:$0xf]
    %v161 = vld [vmem:[%s1 + $0x21c] sm:$0xf]
    %v162 = vld [vmem:[%s1 + $0x220] sm:$0xf]
    %v163 = vld [vmem:[%s1 + $0x224] sm:$0xf]
    %v164 = vld [vmem:[%s1 + $0x228] sm:$0xf]
    %v165 = vld [vmem:[%s1 + $0x22c] sm:$0xf]
    %v166 = vld [vmem:[%s1 + $0x230] sm:$0xf]
    %v167 = vld [vmem:[%s1 + $0x234] sm:$0xf]
    %v168 = vld [vmem:[%s1 + $0x238] sm:$0xf]
    %v169 = vld [vmem:[%s1 + $0x23c] sm:$0xf]
    %v170 = vld [vmem:[%s1 + $0x240] sm:$0xf]
    %v171 = vld [vmem:[%s1 + $0x244] sm:$0xf]
    %v172 = vld [vmem:[%s1 + $0x248] sm:$0xf]
    %v173 = vld [vmem:[%s1 + $0x24c] sm:$0xf]
    %v174 = vld [vmem:[%s1 + $0x250] sm:$0xf]
    %v175 = vld [vmem:[%s1 + $0x254] sm:$0xf]
    %v176 = vld [vmem:[%s1 + $0x258] sm:$0xf]
    %v177 = vld [vmem:[%s1 + $0x25c] sm:$0xf]
    %v178 = vld [vmem:[%s1 + $0x260] sm:$0xf]
    %v179 = vld [vmem:[%s1 + $0x264] sm:$0xf]
    %v180 = vld [vmem:[%s1 + $0x268] sm:$0xf]
    %v181 = vld [vmem:[%s1 + $0x26c] sm:$0xf]
    %v182 = vld [vmem:[%s1 + $0x270] sm:$0xf]
    %v183 = vld [vmem:[%s1 + $0x274] sm:$0xf]
    %v184 = vld [vmem:[%s1 + $0x278] sm:$0xf]
    %v185 = vld [vmem:[%s1 + $0x27c] sm:$0xf]
    %v186 = vld [vmem:[%s1 + $0x280] sm:$0xf]
    %v187 = vld [vmem:[%s1 + $0x284] sm:$0xf]
    %v188 = vld [vmem:[%s1 + $0x288] sm:$0xf]
    %v189 = vld [vmem:[%s1 + $0x28c] sm:$0xf]
    %v190 = vld [vmem:[%s1 + $0x290] sm:$0xf]
    %v191 = vld [vmem:[%s1 + $0x294] sm:$0xf]
    %v192 = vld [vmem:[%s1 + $0x298] sm:$0xf]
    %v193 = vld [vmem:[%s1 + $0x29c] sm:$0xf]
    %v194 = vld [vmem:[%s1 + $0x2a0] sm:$0xf]
    %v195 = vld [vmem:[%s1 + $0x2a4] sm:$0xf]
    %v196 = vld [vmem:[%s1 + $0x2a8] sm:$0xf]
    %v197 = vld [vmem:[%s1 + $0x2ac] sm:$0xf]
    %v198 = vld [vmem:[%s1 + $0x2b0] sm:$0xf]
    %v199 = vld [vmem:[%s1 + $0x2b4] sm:$0xf]
    %v200 = vld [vmem:[%s1 + $0x2b8] sm:$0xf]
    %v201 = vld [vmem:[%s1 + $0x2bc] sm:$0xf]
    %v202 = vld [vmem:[%s1 + $0x2c0] sm:$0xf]
    %v203 = vld [vmem:[%s1 + $0x2c4] sm:$0xf]
    %v204 = vld [vmem:[%s1 + $0x2c8] sm:$0xf]
    %v205 = vld [vmem:[%s1 + $0x2cc] sm:$0xf]
    %v206 = vld [vmem:[%s1 + $0x2d0] sm:$0xf]
    %v207 = vld [vmem:[%s1 + $0x2d4] sm:$0xf]
    %v208 = vld [vmem:[%s1 + $0x2d8] sm:$0xf]
    %v209 = vld [vmem:[%s1 + $0x2dc] sm:$0xf]
    %v210 = vld [vmem:[%s1 + $0x2e0] sm:$0xf]
    %v211 = vld [vmem:[%s1 + $0x2e4] sm:$0xf]
    %v212 = vld [vmem:[%s1 + $0x2e8] sm:$0xf]
    %v213 = vld [vmem:[%s1 + $0x2ec] sm:$0xf]
    %v214 = vld [vmem:[%s1 + $0x2f0] sm:$0xf]
    %v215 = vld [vmem:[%s1 + $0x2f4] sm:$0xf]
    %v216 = vld [vmem:[%s1 + $0x2f8] sm:$0xf]
    %v217 = vld [vmem:[%s1 + $0x2fc] sm:$0xf]
    %v218 = vld [vmem:[%s1 + $0x300] sm:$0xf]
    %v219 = vld [vmem:[%s1 + $0x304] sm:$0xf]
    %v220 = vld [vmem:[%s1 + $0x308] sm:$0xf]
    %v221 = vld [vmem:[%s1 + $0x30c] sm:$0xf]
    %v222 = vld [vmem:[%s1 + $0x310] sm:$0xf]
    %v223 = vld [vmem:[%s1 + $0x314] sm:$0xf]
    %v224 = vld [vmem:[%s1 + $0x318] sm:$0xf]
    %v225 = vld [vmem:[%s1 + $0x31c] sm:$0xf]
    %v226 = vld [vmem:[%s1 + $0x320] sm:$0xf]
    %v227 = vld [vmem:[%s1 + $0x324] sm:$0xf]
    %v228 = vld [vmem:[%s1 + $0x328] sm:$0xf]
    %v229 = vld [vmem:[%s1 + $0x32c] sm:$0xf]
    %v230 = vld [vmem:[%s1 + $0x330] sm:$0xf]
    %v231 = vld [vmem:[%s1 + $0x334] sm:$0xf]
    %v232 = vld [vmem:[%s1 + $0x338] sm:$0xf]
    %v233 = vld [vmem:[%s1 + $0x33c] sm:$0xf]
    %v234 = vld [vmem:[%s1 + $0x340] sm:$0xf]
    %v235 = vld [vmem:[%s1 + $0x344] sm:$0xf]
    %v236 = vld [vmem:[%s1 + $0x348] sm:$0xf]
    %v237 = vld [vmem:[%s1 + $0x34c] sm:$0xf]
    %v238 = vld [vmem:[%s1 + $0x350] sm:$0xf]
    %v239 = vld [vmem:[%s1 + $0x354] sm:$0xf]
    %v240 = vld [vmem:[%s1 + $0x358] sm:$0xf]
    %v241 = vld [vmem:[%s1 + $0x35c] sm:$0xf]
    %v242 = vld [vmem:[%s1 + $0x360] sm:$0xf]
    %v243 = vld [vmem:[%s1 + $0x364] sm:$0xf]
    %v244 = vld [vmem:[%s1 + $0x368] sm:$0xf]
    %v245 = vld [vmem:[%s1 + $0x36c] sm:$0xf]
    %v246 = vld [vmem:[%s1 + $0x370] sm:$0xf]
    %v247 = vld [vmem:[%s1 + $0x374] sm:$0xf]
    %v248 = vld [vmem:[%s1 + $0x378] sm:$0xf]
    %v249 = vld [vmem:[%s1 + $0x37c] sm:$0xf]
    %v250 = vld [vmem:[%s1 + $0x380] sm:$0xf]
    %v251 = vld [vmem:[%s1 + $0x384] sm:$0xf]
    %v252 = vld [vmem:[%s1 + $0x388] sm:$0xf]
    %v253 = vld [vmem:[%s1 + $0x38c] sm:$0xf]
    %v254 = vld [vmem:[%s1 + $0x390] sm:$0xf]
    %v255 = vld [vmem:[%s1 + $0x394] sm:$0xf]
    %v256 = vld [vmem:[%s1 + $0x398] sm:$0xf]
    %v257 = vld [vmem:[%s1 + $0x39c] sm:$0xf]
    %v258 = vld [vmem:[%s1 + $0x3a0] sm:$0xf]
    %v259 = vld [vmem:[%s1 + $0x3a4] sm:$0xf]
    %v260 = vld [vmem:[%s1 + $0x3a8] sm:$0xf]
    %v261 = vld [vmem:[%s1 + $0x3ac] sm:$0xf]
    %v262 = vld [vmem:[%s1 + $0x3b0] sm:$0xf]
    %v263 = vld [vmem:[%s1 + $0x3b4] sm:$0xf]
    %v264 = vld [vmem:[%s1 + $0x3b8] sm:$0xf]
    %v265 = vld [vmem:[%s1 + $0x3bc] sm:$0xf]
    %v266 = vld [vmem:[%s1 + $0x3c0] sm:$0xf]
    %v267 = vld [vmem:[%s1 + $0x3c4] sm:$0xf]
    %v268 = vld [vmem:[%s1 + $0x3c8] sm:$0xf]
    %v269 = vld [vmem:[%s1 + $0x3cc] sm:$0xf]
    %v270 = vld [vmem:[%s1 + $0x3d0] sm:$0xf]
    %v271 = vld [vmem:[%s1 + $0x3d4] sm:$0xf]
    %v272 = vld [vmem:[%s1 + $0x3d8] sm:$0xf]
    %v273 = vld [vmem:[%s1 + $0x3dc] sm:$0xf]
    %v274 = vld [vmem:[%s1 + $0x3e0] sm:$0xf]
    %v275 = vld [vmem:[%s1 + $0x3e4] sm:$0xf]
    %v276 = vld [vmem:[%s1 + $0x3e8] sm:$0xf]
    %v277 = vld [vmem:[%s1 + $0x3ec] sm:$0xf]
    %v278 = vld [vmem:[%s1 + $0x3f0] sm:$0xf]
    %v279 = vld [vmem:[%s1 + $0x3f4] sm:$0xf]
    %v280 = vld [vmem:[%s1 + $0x3f8] sm:$0xf]
    %v281 = vld [vmem:[%s1 + $0x3fc] sm:$0xf]
    %v282 = vld [vmem:[%s1 + $0x400] sm:$0xf]
    %v283 = vld [vmem:[%s1 + $0x404] sm:$0xf]
    %v284 = vld [vmem:[%s1 + $0x408] sm:$0xf]
    %v285 = vld [vmem:[%s1 + $0x40c] sm:$0xf]
    %v286 = vld [vmem:[%s1 + $0x410] sm:$0xf]
    %v287 = vld [vmem:[%s1 + $0x414] sm:$0xf]
    %v288 = vld [vmem:[%s1 + $0x418] sm:$0xf]
    %v289 = vld [vmem:[%s1 + $0x41c] sm:$0xf]
    %v290 = vld [vmem:[%s1 + $0x420] sm:$0xf]
    %v291 = vld [vmem:[%s1 + $0x424] sm:$0xf]
    %v292 = vld [vmem:[%s1 + $0x428] sm:$0xf]
    %v293 = vld [vmem:[%s1 + $0x42c] sm:$0xf]
    %v294 = vld [vmem:[%s1 + $0x430] sm:$0xf]
    %v295 = vld [vmem:[%s1 + $0x434] sm:$0xf]
    %v296 = vld [vmem:[%s1 + $0x438] sm:$0xf]
    %v297 = vld [vmem:[%s1 + $0x43c] sm:$0xf]
    %v298 = vld [vmem:[%s1 + $0x440] sm:$0xf]
    %v299 = vld [vmem:[%s1 + $0x444] sm:$0xf]
    %v300 = vld [vmem:[%s1 + $0x448] sm:$0xf]
    %v301 = vld [vmem:[%s1 + $0x44c] sm:$0xf]
    %v302 = vld [vmem:[%s1 + $0x450] sm:$0xf]
    %v303 = vld [vmem:[%s1 + $0x454] sm:$0xf]
    %v304 = vld [vmem:[%s1 + $0x458] sm:$0xf]
    %v305 = vld [vmem:[%s1 + $0x45c] sm:$0xf]
    %v306 = vld [vmem:[%s1 + $0x460] sm:$0xf]
    %v307 = vld [vmem:[%s1 + $0x464] sm:$0xf]
    %v308 = vld [vmem:[%s1 + $0x468] sm:$0xf]
    %v309 = vld [vmem:[%s1 + $0x46c] sm:$0xf]
    %v310 = vld [vmem:[%s1 + $0x470] sm:$0xf]
    %v311 = vld [vmem:[%s1 + $0x474] sm:$0xf]
    %v312 = vld [vmem:[%s1 + $0x478] sm:$0xf]
    %v313 = vld [vmem:[%s1 + $0x47c] sm:$0xf]
    %v314 = vld [vmem:[%s1 + $0x480] sm:$0xf]
    %v315 = vld [vmem:[%s1 + $0x484] sm:$0xf]
    %v316 = vld [vmem:[%s1 + $0x488] sm:$0xf]
    %v317 = vld [vmem:[%s1 + $0x48c] sm:$0xf]
    %v318 = vld [vmem:[%s1 + $0x490] sm:$0xf]
    %v319 = vld [vmem:[%s1 + $0x494] sm:$0xf]
    %v320 = vld [vmem:[%s1 + $0x498] sm:$0xf]
    %v321 = vld [vmem:[%s1 + $0x49c] sm:$0xf]
    %v322 = vld [vmem:[%s1 + $0x4a0] sm:$0xf]
    %v323 = vld [vmem:[%s1 + $0x4a4] sm:$0xf]
    %v324 = vld [vmem:[%s1 + $0x4a8] sm:$0xf]
    %v325 = vld [vmem:[%s1 + $0x4ac] sm:$0xf]
    %v326 = vld [vmem:[%s1 + $0x4b0] sm:$0xf]
    %v327 = vld [vmem:[%s1 + $0x4b4] sm:$0xf]
    %v328 = vld [vmem:[%s1 + $0x4b8] sm:$0xf]
    %v329 = vld [vmem:[%s1 + $0x4bc] sm:$0xf]
    %v330 = vld [vmem:[%s1 + $0x4c0] sm:$0xf]
    %v331 = vld [vmem:[%s1 + $0x4c4] sm:$0xf]
    %v332 = vld [vmem:[%s1 + $0x4c8] sm:$0xf]
    %v333 = vld [vmem:[%s1 + $0x4cc] sm:$0xf]
    %v334 = vld [vmem:[%s1 + $0x4d0] sm:$0xf]
    %v335 = vld [vmem:[%s1 + $0x4d4] sm:$0xf]
    %v336 = vld [vmem:[%s1 + $0x4d8] sm:$0xf]
    %v337 = vld [vmem:[%s1 + $0x4dc] sm:$0xf]
    %v338 = vld [vmem:[%s1 + $0x4e0] sm:$0xf]
    %v339 = vld [vmem:[%s1 + $0x4e4] sm:$0xf]
    %v340 = vld [vmem:[%s1 + $0x4e8] sm:$0xf]
    %v341 = vld [vmem:[%s1 + $0x4ec] sm:$0xf]
    %v342 = vld [vmem:[%s1 + $0x4f0] sm:$0xf]
    %v343 = vld [vmem:[%s1 + $0x4f4] sm:$0xf]
    %v344 = vld [vmem:[%s1 + $0x4f8] sm:$0xf]
    %v345 = vld [vmem:[%s1 + $0x4fc] sm:$0xf]
    %v346 = vld [vmem:[%s1 + $0x500] sm:$0xf]
    %v347 = vld [vmem:[%s1 + $0x504] sm:$0xf]
    %v348 = vld [vmem:[%s1 + $0x508] sm:$0xf]
    %v349 = vld [vmem:[%s1 + $0x50c] sm:$0xf]
    %v350 = vld [vmem:[%s1 + $0x510] sm:$0xf]
    %v351 = vld [vmem:[%s1 + $0x514] sm:$0xf]
    %v352 = vld [vmem:[%s1 + $0x518] sm:$0xf]
    %v353 = vld [vmem:[%s1 + $0x51c] sm:$0xf]
    %v354 = vld [vmem:[%s1 + $0x520] sm:$0xf]
    %v355 = vld [vmem:[%s1 + $0x524] sm:$0xf]
    %v356 = vld [vmem:[%s1 + $0x528] sm:$0xf]
    %v357 = vld [vmem:[%s1 + $0x52c] sm:$0xf]
    %v358 = vld [vmem:[%s1 + $0x530] sm:$0xf]
    %v359 = vld [vmem:[%s1 + $0x534] sm:$0xf]
    %v360 = vld [vmem:[%s1 + $0x538] sm:$0xf]
    %v361 = vld [vmem:[%s1 + $0x53c] sm:$0xf]
    %v362 = vld [vmem:[%s1 + $0x540] sm:$0xf]
    %v363 = vld [vmem:[%s1 + $0x544] sm:$0xf]
    %v364 = vld [vmem:[%s1 + $0x548] sm:$0xf]
    %v365 = vld [vmem:[%s1 + $0x54c] sm:$0xf]
    %v366 = vld [vmem:[%s1 + $0x550] sm:$0xf]
    %v367 = vld [vmem:[%s1 + $0x554] sm:$0xf]
    %v368 = vld [vmem:[%s1 + $0x558] sm:$0xf]
    %v369 = vld [vmem:[%s1 + $0x55c] sm:$0xf]
    %v370 = vld [vmem:[%s1 + $0x560] sm:$0xf]
    %v371 = vld [vmem:[%s1 + $0x564] sm:$0xf]
    %v372 = vld [vmem:[%s1 + $0x568] sm:$0xf]
    %v373 = vld [vmem:[%s1 + $0x56c] sm:$0xf]
    %v374 = vld [vmem:[%s1 + $0x570] sm:$0xf]
    %v375 = vld [vmem:[%s1 + $0x574] sm:$0xf]
    %v376 = vld [vmem:[%s1 + $0x578] sm:$0xf]
    %v377 = vld [vmem:[%s1 + $0x57c] sm:$0xf]
    %v378 = vld [vmem:[%s1 + $0x580] sm:$0xf]
    %v379 = vld [vmem:[%s1 + $0x584] sm:$0xf]
    %v380 = vld [vmem:[%s1 + $0x588] sm:$0xf]
    %v381 = vld [vmem:[%s1 + $0x58c] sm:$0xf]
    %v382 = vld [vmem:[%s1 + $0x590] sm:$0xf]
    %v383 = vld [vmem:[%s1 + $0x594] sm:$0xf]
    %v384 = vld [vmem:[%s1 + $0x598] sm:$0xf]
    %v385 = vld [vmem:[%s1 + $0x59c] sm:$0xf]
    %v386 = vld [vmem:[%s1 + $0x5a0] sm:$0xf]
    %v387 = vld [vmem:[%s1 + $0x5a4] sm:$0xf]
    %v388 = vld [vmem:[%s1 + $0x5a8] sm:$0xf]
    %v389 = vld [vmem:[%s1 + $0x5ac] sm:$0xf]
    %v390 = vld [vmem:[%s1 + $0x5b0] sm:$0xf]
    %v391 = vld [vmem:[%s1 + $0x5b4] sm:$0xf]
    %v392 = vld [vmem:[%s1 + $0x5b8] sm:$0xf]
    %v393 = vld [vmem:[%s1 + $0x5bc] sm:$0xf]
    %v394 = vld [vmem:[%s1 + $0x5c0] sm:$0xf]
    %v395 = vld [vmem:[%s1 + $0x5c4] sm:$0xf]
    %v396 = vld [vmem:[%s1 + $0x5c8] sm:$0xf]
    %v397 = vld [vmem:[%s1 + $0x5cc] sm:$0xf]
    %v398 = vld [vmem:[%s1 + $0x5d0] sm:$0xf]
    %v399 = vld [vmem:[%s1 + $0x5d4] sm:$0xf]
    %v400 = vld [vmem:[%s1 + $0x5d8] sm:$0xf]
    %v401 = vld [vmem:[%s1 + $0x5dc] sm:$0xf]
    %v402 = vld [vmem:[%s1 + $0x5e0] sm:$0xf]
    %v403 = vld [vmem:[%s1 + $0x5e4] sm:$0xf]
    %v404 = vld [vmem:[%s1 + $0x5e8] sm:$0xf]
    %v405 = vld [vmem:[%s1 + $0x5ec] sm:$0xf]
    %v406 = vld [vmem:[%s1 + $0x5f0] sm:$0xf]
    %v407 = vld [vmem:[%s1 + $0x5f4] sm:$0xf]
    %v408 = vld [vmem:[%s1 + $0x5f8] sm:$0xf]
    %v409 = vld [vmem:[%s1 + $0x5fc] sm:$0xf]
    %v410 = vld [vmem:[%s1 + $0x600] sm:$0xf]
    %v411 = vld [vmem:[%s1 + $0x604] sm:$0xf]
    %v412 = vld [vmem:[%s1 + $0x608] sm:$0xf]
    %v413 = vld [vmem:[%s1 + $0x60c] sm:$0xf]
    %v414 = vld [vmem:[%s1 + $0x610] sm:$0xf]
    %v415 = vld [vmem:[%s1 + $0x614] sm:$0xf]
    %v416 = vld [vmem:[%s1 + $0x618] sm:$0xf]
    %v417 = vld [vmem:[%s1 + $0x61c] sm:$0xf]
    %v418 = vld [vmem:[%s2] sm:$0x1]
    %v420 = vperm.slane %v418, 0
    %423 = vst [vmem:[#allocation1] ss:$9 sm:$0xff] %v22
    %v424 = vld [vmem:[#allocation1] sm:$0xff]
    %v425 = vld [vmem:[#allocation1 + $0x9] sm:$0xff]
    %v426 = vld [vmem:[#allocation1 + $0x12] sm:$0xff]
    %v427 = vld [vmem:[#allocation1 + $0x1b] sm:$0xff]
    %v428 = vld [vmem:[#allocation1 + $0x24] sm:$0xff]
    %v429 = vld [vmem:[#allocation1 + $0x2d] sm:$0xff]
    %v430 = vld [vmem:[#allocation1 + $0x36] sm:$0xff]
    %v431 = vld [vmem:[#allocation1 + $0x3f] sm:$0xff]
    %433 = vst [vmem:[#allocation1] ss:$9 sm:$0xff] %v23
    %v434 = vld [vmem:[#allocation1] sm:$0xff]
    %v435 = vld [vmem:[#allocation1 + $0x9] sm:$0xff]
    %v436 = vld [vmem:[#allocation1 + $0x12] sm:$0xff]
    %v437 = vld [vmem:[#allocation1 + $0x1b] sm:$0xff]
    %v438 = vld [vmem:[#allocation1 + $0x24] sm:$0xff]
    %v439 = vld [vmem:[#allocation1 + $0x2d] sm:$0xff]
    %v440 = vld [vmem:[#allocation1 + $0x36] sm:$0xff]
    %v441 = vld [vmem:[#allocation1 + $0x3f] sm:$0xff]
    %443 = vst [vmem:[#allocation1] ss:$9 sm:$0xff] %v24
    %v444 = vld [vmem:[#allocation1] sm:$0xff]
    %v445 = vld [vmem:[#allocation1 + $0x9] sm:$0xff]
    %v446 = vld [vmem:[#allocation1 + $0x12] sm:$0xff]
    %v447 = vld [vmem:[#allocation1 + $0x1b] sm:$0xff]
    %v448 = vld [vmem:[#allocation1 + $0x24] sm:$0xff]
    %v449 = vld [vmem:[#allocation1 + $0x2d] sm:$0xff]
    %v450 = vld [vmem:[#allocation1 + $0x36] sm:$0xff]
    %v451 = vld [vmem:[#allocation1 + $0x3f] sm:$0xff]
    %453 = vst [vmem:[#allocation1] ss:$9 sm:$0xff] %v25
    %v454 = vld [vmem:[#allocation1] sm:$0xff]
    %v871 = vunpack.c.l.b16 %v26
    %v872 = vunpack.c.l.b16 %v27
    %v873 = vunpack.c.l.b16 %v28
    %v874 = vunpack.c.l.b16 %v29
    %v875 = vunpack.c.l.b16 %v30
    %v876 = vunpack.c.l.b16 %v31
    %v877 = vunpack.c.l.b16 %v32
    %v878 = vunpack.c.l.b16 %v33
    %v879 = vunpack.c.l.b16 %v34
    %v880 = vunpack.c.l.b16 %v35
    %v881 = vunpack.c.l.b16 %v36
    %v882 = vunpack.c.l.b16 %v37
    %v883 = vunpack.c.l.b16 %v38
    %v884 = vunpack.c.l.b16 %v39
    %v885 = vunpack.c.l.b16 %v40
    %v886 = vunpack.c.l.b16 %v41
    %v887 = vunpack.c.l.b16 %v42
    %v888 = vunpack.c.l.b16 %v43
    %v889 = vunpack.c.l.b16 %v44
    %v890 = vunpack.c.l.b16 %v45
    %v891 = vunpack.c.l.b16 %v46
    %v892 = vunpack.c.l.b16 %v47
    %v893 = vunpack.c.l.b16 %v48
    %v894 = vunpack.c.l.b16 %v49
    %v895 = vunpack.c.l.b16 %v50
    %v896 = vunpack.c.l.b16 %v51
    %v897 = vunpack.c.l.b16 %v52
    %v898 = vunpack.c.l.b16 %v53
    %v899 = vunpack.c.l.b16 %v54
    %v900 = vunpack.c.l.b16 %v55
    %v901 = vunpack.c.l.b16 %v56
    %v902 = vunpack.c.l.b16 %v57
    %v903 = vunpack.c.l.b16 %v58
    %v904 = vunpack.c.l.b16 %v59
    %v905 = vunpack.c.l.b16 %v60
    %v906 = vunpack.c.l.b16 %v61
    %v907 = vunpack.c.l.b16 %v62
    %v908 = vunpack.c.l.b16 %v63
    %v909 = vunpack.c.l.b16 %v64
    %v910 = vunpack.c.l.b16 %v65
    %v911 = vunpack.c.l.b16 %v66
    %v912 = vunpack.c.l.b16 %v67
    %v913 = vunpack.c.l.b16 %v68
    %v914 = vunpack.c.l.b16 %v69
    %v915 = vunpack.c.l.b16 %v70
    %v916 = vunpack.c.l.b16 %v71
    %v917 = vunpack.c.l.b16 %v72
    %v918 = vunpack.c.l.b16 %v73
    %v919 = vunpack.c.l.b16 %v74
    %v920 = vunpack.c.l.b16 %v75
    %v921 = vunpack.c.l.b16 %v76
    %v922 = vunpack.c.l.b16 %v77
    %v923 = vunpack.c.l.b16 %v78
    %v924 = vunpack.c.l.b16 %v79
    %v925 = vunpack.c.l.b16 %v80
    %v926 = vunpack.c.l.b16 %v81
    %v927 = vunpack.c.l.b16 %v82
    %v928 = vunpack.c.l.b16 %v83
    %v929 = vunpack.c.l.b16 %v84
    %v930 = vunpack.c.l.b16 %v85
    %v931 = vunpack.c.l.b16 %v86
    %v932 = vunpack.c.l.b16 %v87
    %v933 = vunpack.c.l.b16 %v88
    %v934 = vunpack.c.l.b16 %v89
    %v935 = vunpack.c.l.b16 %v90
    %v936 = vunpack.c.l.b16 %v91
    %v937 = vunpack.c.l.b16 %v92
    %v938 = vunpack.c.l.b16 %v93
    %v939 = vunpack.c.l.b16 %v94
    %v940 = vunpack.c.l.b16 %v95
    %v941 = vunpack.c.l.b16 %v96
    %v942 = vunpack.c.l.b16 %v97
    %v943 = vunpack.c.l.b16 %v98
    %v944 = vunpack.c.l.b16 %v99
    %v945 = vunpack.c.l.b16 %v100
    %v946 = vunpack.c.l.b16 %v101
    %v947 = vunpack.c.l.b16 %v102
    %v948 = vunpack.c.l.b16 %v103
    %v949 = vunpack.c.l.b16 %v104
    %v950 = vunpack.c.l.b16 %v105
    %v951 = vunpack.c.l.b16 %v106
    %v952 = vunpack.c.l.b16 %v107
    %v953 = vunpack.c.l.b16 %v108
    %v954 = vunpack.c.l.b16 %v109
    %v955 = vunpack.c.l.b16 %v110
    %v956 = vunpack.c.l.b16 %v111
    %v957 = vunpack.c.l.b16 %v112
    %v958 = vunpack.c.l.b16 %v113
    %v959 = vunpack.c.l.b16 %v114
    %v960 = vunpack.c.l.b16 %v115
    %v961 = vunpack.c.l.b16 %v116
    %v962 = vunpack.c.l.b16 %v117
    %v963 = vunpack.c.l.b16 %v118
    %v964 = vunpack.c.l.b16 %v119
    %v965 = vunpack.c.l.b16 %v120
    %v966 = vunpack.c.l.b16 %v121
    %v967 = vunpack.c.l.b16 %v122
    %v968 = vunpack.c.l.b16 %v123
    %v969 = vunpack.c.l.b16 %v124
    %v970 = vunpack.c.l.b16 %v125
    %v971 = vunpack.c.l.b16 %v126
    %v972 = vunpack.c.l.b16 %v127
    %v973 = vunpack.c.l.b16 %v128
    %v974 = vunpack.c.l.b16 %v129
    %v975 = vunpack.c.l.b16 %v130
    %v976 = vunpack.c.l.b16 %v131
    %v977 = vunpack.c.l.b16 %v132
    %v978 = vunpack.c.l.b16 %v133
    %v979 = vunpack.c.l.b16 %v134
    %v980 = vunpack.c.l.b16 %v135
    %v981 = vunpack.c.l.b16 %v136
    %v982 = vunpack.c.l.b16 %v137
    %v983 = vunpack.c.l.b16 %v138
    %v984 = vunpack.c.l.b16 %v139
    %v985 = vunpack.c.l.b16 %v140
    %v986 = vunpack.c.l.b16 %v141
    %v987 = vunpack.c.l.b16 %v142
    %v988 = vunpack.c.l.b16 %v143
    %v989 = vunpack.c.l.b16 %v144
    %v990 = vunpack.c.l.b16 %v145
    %v991 = vunpack.c.l.b16 %v146
    %v992 = vunpack.c.l.b16 %v147
    %v993 = vunpack.c.l.b16 %v148
    %v994 = vunpack.c.l.b16 %v149
    %v995 = vunpack.c.l.b16 %v150
    %v996 = vunpack.c.l.b16 %v151
    %v997 = vunpack.c.l.b16 %v152
    %v998 = vunpack.c.l.b16 %v153
    %v999 = vunpack.c.l.b16 %v154
    %v1000 = vunpack.c.l.b16 %v155
    %v1001 = vunpack.c.l.b16 %v156
    %v1002 = vunpack.c.l.b16 %v157
    %v1003 = vunpack.c.l.b16 %v158
    %v1004 = vunpack.c.l.b16 %v159
    %v1005 = vunpack.c.l.b16 %v160
    %v1006 = vunpack.c.l.b16 %v161
    %v1007 = vunpack.c.l.b16 %v162
    %v1008 = vunpack.c.l.b16 %v163
    %v1009 = vunpack.c.l.b16 %v164
    %v1010 = vunpack.c.l.b16 %v165
    %v1011 = vunpack.c.l.b16 %v166
    %v1012 = vunpack.c.l.b16 %v167
    %v1013 = vunpack.c.l.b16 %v168
    %v1014 = vunpack.c.l.b16 %v169
    %v1015 = vunpack.c.l.b16 %v170
    %v1016 = vunpack.c.l.b16 %v171
    %v1017 = vunpack.c.l.b16 %v172
    %v1018 = vunpack.c.l.b16 %v173
    %v1019 = vunpack.c.l.b16 %v174
    %v1020 = vunpack.c.l.b16 %v175
    %v1021 = vunpack.c.l.b16 %v176
    %v1022 = vunpack.c.l.b16 %v177
    %v1023 = vunpack.c.l.b16 %v178
    %v1024 = vunpack.c.l.b16 %v179
    %v1025 = vunpack.c.l.b16 %v180
    %v1026 = vunpack.c.l.b16 %v181
    %v1027 = vunpack.c.l.b16 %v182
    %v1028 = vunpack.c.l.b16 %v183
    %v1029 = vunpack.c.l.b16 %v184
    %v1030 = vunpack.c.l.b16 %v185
    %v1031 = vunpack.c.l.b16 %v186
    %v1032 = vunpack.c.l.b16 %v187
    %v1033 = vunpack.c.l.b16 %v188
    %v1034 = vunpack.c.l.b16 %v189
    %v1035 = vunpack.c.l.b16 %v190
    %v1036 = vunpack.c.l.b16 %v191
    %v1037 = vunpack.c.l.b16 %v192
    %v1038 = vunpack.c.l.b16 %v193
    %v1039 = vunpack.c.l.b16 %v194
    %v1040 = vunpack.c.l.b16 %v195
    %v1041 = vunpack.c.l.b16 %v196
    %v1042 = vunpack.c.l.b16 %v197
    %v1043 = vunpack.c.l.b16 %v198
    %v1044 = vunpack.c.l.b16 %v199
    %v1045 = vunpack.c.l.b16 %v200
    %v1046 = vunpack.c.l.b16 %v201
    %v1047 = vunpack.c.l.b16 %v202
    %v1048 = vunpack.c.l.b16 %v203
    %v1049 = vunpack.c.l.b16 %v204
    %v1050 = vunpack.c.l.b16 %v205
    %v1051 = vunpack.c.l.b16 %v206
    %v1052 = vunpack.c.l.b16 %v207
    %v1053 = vunpack.c.l.b16 %v208
    %v1054 = vunpack.c.l.b16 %v209
    %v1055 = vunpack.c.l.b16 %v210
    %v1056 = vunpack.c.l.b16 %v211
    %v1057 = vunpack.c.l.b16 %v212
    %v1058 = vunpack.c.l.b16 %v213
    %v1059 = vunpack.c.l.b16 %v214
    %v1060 = vunpack.c.l.b16 %v215
    %v1061 = vunpack.c.l.b16 %v216
    %v1062 = vunpack.c.l.b16 %v217
    %v1063 = vunpack.c.l.b16 %v218
    %v1064 = vunpack.c.l.b16 %v219
    %v1065 = vunpack.c.l.b16 %v220
    %v1066 = vunpack.c.l.b16 %v221
    %v1067 = vunpack.c.l.b16 %v222
    %v1068 = vunpack.c.l.b16 %v223
    %v1069 = vunpack.c.l.b16 %v224
    %v1070 = vunpack.c.l.b16 %v225
    %v1071 = vunpack.c.l.b16 %v226
    %v1072 = vunpack.c.l.b16 %v227
    %v1073 = vunpack.c.l.b16 %v228
    %v1074 = vunpack.c.l.b16 %v229
    %v1075 = vunpack.c.l.b16 %v230
    %v1076 = vunpack.c.l.b16 %v231
    %v1077 = vunpack.c.l.b16 %v232
    %v1078 = vunpack.c.l.b16 %v233
    %v1079 = vunpack.c.l.b16 %v234
    %v1080 = vunpack.c.l.b16 %v235
    %v1081 = vunpack.c.l.b16 %v236
    %v1082 = vunpack.c.l.b16 %v237
    %v1083 = vunpack.c.l.b16 %v238
    %v1084 = vunpack.c.l.b16 %v239
    %v1085 = vunpack.c.l.b16 %v240
    %v1086 = vunpack.c.l.b16 %v241
    %v1087 = vunpack.c.l.b16 %v242
    %v1088 = vunpack.c.l.b16 %v243
    %v1089 = vunpack.c.l.b16 %v244
    %v1090 = vunpack.c.l.b16 %v245
    %v1091 = vunpack.c.l.b16 %v246
    %v1092 = vunpack.c.l.b16 %v247
    %v1093 = vunpack.c.l.b16 %v248
    %v1094 = vunpack.c.l.b16 %v249
    %v1095 = vunpack.c.l.b16 %v250
    %v1096 = vunpack.c.l.b16 %v251
    %v1097 = vunpack.c.l.b16 %v252
    %v1098 = vunpack.c.l.b16 %v253
    %v1099 = vunpack.c.l.b16 %v254
    %v1100 = vunpack.c.l.b16 %v255
    %v1101 = vunpack.c.l.b16 %v256
    %v1102 = vunpack.c.l.b16 %v257
    %v1103 = vunpack.c.l.b16 %v258
    %v1104 = vunpack.c.l.b16 %v259
    %v1105 = vunpack.c.l.b16 %v260
    %v1106 = vunpack.c.l.b16 %v261
    %v1107 = vunpack.c.l.b16 %v262
    %v1108 = vunpack.c.l.b16 %v263
    %v1109 = vunpack.c.l.b16 %v264
    %v1110 = vunpack.c.l.b16 %v265
    %v1111 = vunpack.c.l.b16 %v266
    %v1112 = vunpack.c.l.b16 %v267
    %v1113 = vunpack.c.l.b16 %v268
    %v1114 = vunpack.c.l.b16 %v269
    %v1115 = vunpack.c.l.b16 %v270
    %v1116 = vunpack.c.l.b16 %v271
    %v1117 = vunpack.c.l.b16 %v272
    %v1118 = vunpack.c.l.b16 %v273
    %v1119 = vunpack.c.l.b16 %v274
    %v1120 = vunpack.c.l.b16 %v275
    %v1121 = vunpack.c.l.b16 %v276
    %v1122 = vunpack.c.l.b16 %v277
    %v1123 = vunpack.c.l.b16 %v278
    %v1124 = vunpack.c.l.b16 %v279
    %v1125 = vunpack.c.l.b16 %v280
    %v1126 = vunpack.c.l.b16 %v281
    %v1127 = vunpack.c.l.b16 %v282
    %v1128 = vunpack.c.l.b16 %v283
    %v1129 = vunpack.c.l.b16 %v284
    %v1130 = vunpack.c.l.b16 %v285
    %v1131 = vunpack.c.l.b16 %v286
    %v1132 = vunpack.c.l.b16 %v287
    %v1133 = vunpack.c.l.b16 %v288
    %v1134 = vunpack.c.l.b16 %v289
    %v1135 = vunpack.c.l.b16 %v290
    %v1136 = vunpack.c.l.b16 %v291
    %v1137 = vunpack.c.l.b16 %v292
    %v1138 = vunpack.c.l.b16 %v293
    %v1139 = vunpack.c.l.b16 %v294
    %v1140 = vunpack.c.l.b16 %v295
    %v1141 = vunpack.c.l.b16 %v296
    %v1142 = vunpack.c.l.b16 %v297
    %v1143 = vunpack.c.l.b16 %v298
    %v1144 = vunpack.c.l.b16 %v299
    %v1145 = vunpack.c.l.b16 %v300
    %v1146 = vunpack.c.l.b16 %v301
    %v1147 = vunpack.c.l.b16 %v302
    %v1148 = vunpack.c.l.b16 %v303
    %v1149 = vunpack.c.l.b16 %v304
    %v1150 = vunpack.c.l.b16 %v305
    %v1151 = vunpack.c.l.b16 %v306
    %v1152 = vunpack.c.l.b16 %v307
    %v1153 = vunpack.c.l.b16 %v308
    %v1154 = vunpack.c.l.b16 %v309
    %v1155 = vunpack.c.l.b16 %v310
    %v1156 = vunpack.c.l.b16 %v311
    %v1157 = vunpack.c.l.b16 %v312
    %v1158 = vunpack.c.l.b16 %v313
    %v1159 = vunpack.c.l.b16 %v314
    %v1160 = vunpack.c.l.b16 %v315
    %v1161 = vunpack.c.l.b16 %v316
    %v1162 = vunpack.c.l.b16 %v317
    %v1163 = vunpack.c.l.b16 %v318
    %v1164 = vunpack.c.l.b16 %v319
    %v1165 = vunpack.c.l.b16 %v320
    %v1166 = vunpack.c.l.b16 %v321
    %v1167 = vunpack.c.l.b16 %v322
    %v1168 = vunpack.c.l.b16 %v323
    %v1169 = vunpack.c.l.b16 %v324
    %v1170 = vunpack.c.l.b16 %v325
    %v1171 = vunpack.c.l.b16 %v326
    %v1172 = vunpack.c.l.b16 %v327
    %v1173 = vunpack.c.l.b16 %v328
    %v1174 = vunpack.c.l.b16 %v329
    %v1175 = vunpack.c.l.b16 %v330
    %v1176 = vunpack.c.l.b16 %v331
    %v1177 = vunpack.c.l.b16 %v332
    %v1178 = vunpack.c.l.b16 %v333
    %v1179 = vunpack.c.l.b16 %v334
    %v1180 = vunpack.c.l.b16 %v335
    %v1181 = vunpack.c.l.b16 %v336
    %v1182 = vunpack.c.l.b16 %v337
    %v1183 = vunpack.c.l.b16 %v338
    %v1184 = vunpack.c.l.b16 %v339
    %v1185 = vunpack.c.l.b16 %v340
    %v1186 = vunpack.c.l.b16 %v341
    %v1187 = vunpack.c.l.b16 %v342
    %v1188 = vunpack.c.l.b16 %v343
    %v1189 = vunpack.c.l.b16 %v344
    %v1190 = vunpack.c.l.b16 %v345
    %v1191 = vunpack.c.l.b16 %v346
    %v1192 = vunpack.c.l.b16 %v347
    %v1193 = vunpack.c.l.b16 %v348
    %v1194 = vunpack.c.l.b16 %v349
    %v1195 = vunpack.c.l.b16 %v350
    %v1196 = vunpack.c.l.b16 %v351
    %v1197 = vunpack.c.l.b16 %v352
    %v1198 = vunpack.c.l.b16 %v353
    %v1199 = vunpack.c.l.b16 %v354
    %v1200 = vunpack.c.l.b16 %v355
    %v1201 = vunpack.c.l.b16 %v356
    %v1202 = vunpack.c.l.b16 %v357
    %v1203 = vunpack.c.l.b16 %v358
    %v1204 = vunpack.c.l.b16 %v359
    %v1205 = vunpack.c.l.b16 %v360
    %v1206 = vunpack.c.l.b16 %v361
    %v1207 = vunpack.c.l.b16 %v362
    %v1208 = vunpack.c.l.b16 %v363
    %v1209 = vunpack.c.l.b16 %v364
    %v1210 = vunpack.c.l.b16 %v365
    %v1211 = vunpack.c.l.b16 %v366
    %v1212 = vunpack.c.l.b16 %v367
    %v1213 = vunpack.c.l.b16 %v368
    %v1214 = vunpack.c.l.b16 %v369
    %v1215 = vunpack.c.l.b16 %v370
    %v1216 = vunpack.c.l.b16 %v371
    %v1217 = vunpack.c.l.b16 %v372
    %v1218 = vunpack.c.l.b16 %v373
    %v1219 = vunpack.c.l.b16 %v374
    %v1220 = vunpack.c.l.b16 %v375
    %v1221 = vunpack.c.l.b16 %v376
    %v1222 = vunpack.c.l.b16 %v377
    %v1223 = vunpack.c.l.b16 %v378
    %v1224 = vunpack.c.l.b16 %v379
    %v1225 = vunpack.c.l.b16 %v380
    %v1226 = vunpack.c.l.b16 %v381
    %v1227 = vunpack.c.l.b16 %v382
    %v1228 = vunpack.c.l.b16 %v383
    %v1229 = vunpack.c.l.b16 %v384
    %v1230 = vunpack.c.l.b16 %v385
    %v1231 = vunpack.c.l.b16 %v386
    %v1232 = vunpack.c.l.b16 %v387
    %v1233 = vunpack.c.l.b16 %v388
    %v1234 = vunpack.c.l.b16 %v389
    %v1235 = vunpack.c.l.b16 %v390
    %v1236 = vunpack.c.l.b16 %v391
    %v1237 = vunpack.c.l.b16 %v392
    %v1238 = vunpack.c.l.b16 %v393
    %v1239 = vunpack.c.l.b16 %v394
    %v1240 = vunpack.c.l.b16 %v395
    %v1241 = vunpack.c.l.b16 %v396
    %v1242 = vunpack.c.l.b16 %v397
    %v1243 = vunpack.c.l.b16 %v398
    %v1244 = vunpack.c.l.b16 %v399
    %v1245 = vunpack.c.l.b16 %v400
    %v1246 = vunpack.c.l.b16 %v401
    %v1247 = vunpack.c.l.b16 %v402
    %v1248 = vunpack.c.l.b16 %v403
    %v1249 = vunpack.c.l.b16 %v404
    %v1250 = vunpack.c.l.b16 %v405
    %v1251 = vunpack.c.l.b16 %v406
    %v1252 = vunpack.c.l.b16 %v407
    %v1253 = vunpack.c.l.b16 %v408
    %v1254 = vunpack.c.l.b16 %v409
    %v1255 = vunpack.c.l.b16 %v410
    %v1256 = vunpack.c.l.b16 %v411
    %v1257 = vunpack.c.l.b16 %v412
    %v1258 = vunpack.c.l.b16 %v413
    %v1259 = vunpack.c.l.b16 %v414
    %v1260 = vunpack.c.l.b16 %v415
    %v1261 = vunpack.c.l.b16 %v416
    %v1262 = vunpack.c.l.b16 %v417
    %v1263 = vpack.c.b16 %v872, %v871
    %v1264 = vpack.c.b16 %v874, %v873
    %v1265 = vpack.c.b16 %v876, %v875
    %v1266 = vpack.c.b16 %v878, %v877
    %v1267 = vpack.c.b16 %v880, %v879
    %v1268 = vpack.c.b16 %v882, %v881
    %v1269 = vpack.c.b16 %v884, %v883
    %v1270 = vpack.c.b16 %v886, %v885
    %v1271 = vpack.c.b16 %v888, %v887
    %v1272 = vpack.c.b16 %v890, %v889
    %v1273 = vpack.c.b16 %v892, %v891
    %v1274 = vpack.c.b16 %v894, %v893
    %v1275 = vpack.c.b16 %v896, %v895
    %v1276 = vpack.c.b16 %v898, %v897
    %v1277 = vpack.c.b16 %v900, %v899
    %v1278 = vpack.c.b16 %v902, %v901
    %v1279 = vpack.c.b16 %v904, %v903
    %v1280 = vpack.c.b16 %v906, %v905
    %v1281 = vpack.c.b16 %v908, %v907
    %v1282 = vpack.c.b16 %v910, %v909
    %v1283 = vpack.c.b16 %v912, %v911
    %v1284 = vpack.c.b16 %v914, %v913
    %v1285 = vpack.c.b16 %v916, %v915
    %v1286 = vpack.c.b16 %v918, %v917
    %v1287 = vpack.c.b16 %v920, %v919
    %v1288 = vpack.c.b16 %v922, %v921
    %v1289 = vpack.c.b16 %v924, %v923
    %v1290 = vpack.c.b16 %v926, %v925
    %v1291 = vpack.c.b16 %v928, %v927
    %v1292 = vpack.c.b16 %v930, %v929
    %v1293 = vpack.c.b16 %v932, %v931
    %v1294 = vpack.c.b16 %v934, %v933
    %v1295 = vpack.c.b16 %v936, %v935
    %v1296 = vpack.c.b16 %v938, %v937
    %v1297 = vpack.c.b16 %v940, %v939
    %v1298 = vpack.c.b16 %v942, %v941
    %v1299 = vpack.c.b16 %v944, %v943
    %v1300 = vpack.c.b16 %v946, %v945
    %v1301 = vpack.c.b16 %v948, %v947
    %v1302 = vpack.c.b16 %v950, %v949
    %v1303 = vpack.c.b16 %v952, %v951
    %v1304 = vpack.c.b16 %v954, %v953
    %v1305 = vpack.c.b16 %v956, %v955
    %v1306 = vpack.c.b16 %v958, %v957
    %v1307 = vpack.c.b16 %v960, %v959
    %v1308 = vpack.c.b16 %v962, %v961
    %v1309 = vpack.c.b16 %v964, %v963
    %v1310 = vpack.c.b16 %v966, %v965
    %v1311 = vpack.c.b16 %v968, %v967
    %v1312 = vpack.c.b16 %v970, %v969
    %v1313 = vpack.c.b16 %v972, %v971
    %v1314 = vpack.c.b16 %v974, %v973
    %v1315 = vpack.c.b16 %v976, %v975
    %v1316 = vpack.c.b16 %v978, %v977
    %v1317 = vpack.c.b16 %v980, %v979
    %v1318 = vpack.c.b16 %v982, %v981
    %v1319 = vpack.c.b16 %v984, %v983
    %v1320 = vpack.c.b16 %v986, %v985
    %v1321 = vpack.c.b16 %v988, %v987
    %v1322 = vpack.c.b16 %v990, %v989
    %v1323 = vpack.c.b16 %v992, %v991
    %v1324 = vpack.c.b16 %v994, %v993
    %v1325 = vpack.c.b16 %v996, %v995
    %v1326 = vpack.c.b16 %v998, %v997
    %v1327 = vpack.c.b16 %v1000, %v999
    %v1328 = vpack.c.b16 %v1002, %v1001
    %v1329 = vpack.c.b16 %v1004, %v1003
    %v1330 = vpack.c.b16 %v1006, %v1005
    %v1331 = vpack.c.b16 %v1008, %v1007
    %v1332 = vpack.c.b16 %v1010, %v1009
    %v1333 = vpack.c.b16 %v1012, %v1011
    %v1334 = vpack.c.b16 %v1014, %v1013
    %v1335 = vpack.c.b16 %v1016, %v1015
    %v1336 = vpack.c.b16 %v1018, %v1017
    %v1337 = vpack.c.b16 %v1020, %v1019
    %v1338 = vpack.c.b16 %v1022, %v1021
    %v1339 = vpack.c.b16 %v1024, %v1023
    %v1340 = vpack.c.b16 %v1026, %v1025
    %v1341 = vpack.c.b16 %v1028, %v1027
    %v1342 = vpack.c.b16 %v1030, %v1029
    %v1343 = vpack.c.b16 %v1032, %v1031
    %v1344 = vpack.c.b16 %v1034, %v1033
    %v1345 = vpack.c.b16 %v1036, %v1035
    %v1346 = vpack.c.b16 %v1038, %v1037
    %v1347 = vpack.c.b16 %v1040, %v1039
    %v1348 = vpack.c.b16 %v1042, %v1041
    %v1349 = vpack.c.b16 %v1044, %v1043
    %v1350 = vpack.c.b16 %v1046, %v1045
    %v1351 = vpack.c.b16 %v1048, %v1047
    %v1352 = vpack.c.b16 %v1050, %v1049
    %v1353 = vpack.c.b16 %v1052, %v1051
    %v1354 = vpack.c.b16 %v1054, %v1053
    %v1355 = vpack.c.b16 %v1056, %v1055
    %v1356 = vpack.c.b16 %v1058, %v1057
    %v1357 = vpack.c.b16 %v1060, %v1059
    %v1358 = vpack.c.b16 %v1062, %v1061
    %v1359 = vpack.c.b16 %v1064, %v1063
    %v1360 = vpack.c.b16 %v1066, %v1065
    %v1361 = vpack.c.b16 %v1068, %v1067
    %v1362 = vpack.c.b16 %v1070, %v1069
    %v1363 = vpack.c.b16 %v1072, %v1071
    %v1364 = vpack.c.b16 %v1074, %v1073
    %v1365 = vpack.c.b16 %v1076, %v1075
    %v1366 = vpack.c.b16 %v1078, %v1077
    %v1367 = vpack.c.b16 %v1080, %v1079
    %v1368 = vpack.c.b16 %v1082, %v1081
    %v1369 = vpack.c.b16 %v1084, %v1083
    %v1370 = vpack.c.b16 %v1086, %v1085
    %v1371 = vpack.c.b16 %v1088, %v1087
    %v1372 = vpack.c.b16 %v1090, %v1089
    %v1373 = vpack.c.b16 %v1092, %v1091
    %v1374 = vpack.c.b16 %v1094, %v1093
    %v1375 = vpack.c.b16 %v1096, %v1095
    %v1376 = vpack.c.b16 %v1098, %v1097
    %v1377 = vpack.c.b16 %v1100, %v1099
    %v1378 = vpack.c.b16 %v1102, %v1101
    %v1379 = vpack.c.b16 %v1104, %v1103
    %v1380 = vpack.c.b16 %v1106, %v1105
    %v1381 = vpack.c.b16 %v1108, %v1107
    %v1382 = vpack.c.b16 %v1110, %v1109
    %v1383 = vpack.c.b16 %v1112, %v1111
    %v1384 = vpack.c.b16 %v1114, %v1113
    %v1385 = vpack.c.b16 %v1116, %v1115
    %v1386 = vpack.c.b16 %v1118, %v1117
    %v1387 = vpack.c.b16 %v1120, %v1119
    %v1388 = vpack.c.b16 %v1122, %v1121
    %v1389 = vpack.c.b16 %v1124, %v1123
    %v1390 = vpack.c.b16 %v1126, %v1125
    %v1391 = vpack.c.b16 %v1128, %v1127
    %v1392 = vpack.c.b16 %v1130, %v1129
    %v1393 = vpack.c.b16 %v1132, %v1131
    %v1394 = vpack.c.b16 %v1134, %v1133
    %v1395 = vpack.c.b16 %v1136, %v1135
    %v1396 = vpack.c.b16 %v1138, %v1137
    %v1397 = vpack.c.b16 %v1140, %v1139
    %v1398 = vpack.c.b16 %v1142, %v1141
    %v1399 = vpack.c.b16 %v1144, %v1143
    %v1400 = vpack.c.b16 %v1146, %v1145
    %v1401 = vpack.c.b16 %v1148, %v1147
    %v1402 = vpack.c.b16 %v1150, %v1149
    %v1403 = vpack.c.b16 %v1152, %v1151
    %v1404 = vpack.c.b16 %v1154, %v1153
    %v1405 = vpack.c.b16 %v1156, %v1155
    %v1406 = vpack.c.b16 %v1158, %v1157
    %v1407 = vpack.c.b16 %v1160, %v1159
    %v1408 = vpack.c.b16 %v1162, %v1161
    %v1409 = vpack.c.b16 %v1164, %v1163
    %v1410 = vpack.c.b16 %v1166, %v1165
    %v1411 = vpack.c.b16 %v1168, %v1167
    %v1412 = vpack.c.b16 %v1170, %v1169
    %v1413 = vpack.c.b16 %v1172, %v1171
    %v1414 = vpack.c.b16 %v1174, %v1173
    %v1415 = vpack.c.b16 %v1176, %v1175
    %v1416 = vpack.c.b16 %v1178, %v1177
    %v1417 = vpack.c.b16 %v1180, %v1179
    %v1418 = vpack.c.b16 %v1182, %v1181
    %v1419 = vpack.c.b16 %v1184, %v1183
    %v1420 = vpack.c.b16 %v1186, %v1185
    %v1421 = vpack.c.b16 %v1188, %v1187
    %v1422 = vpack.c.b16 %v1190, %v1189
    %v1423 = vpack.c.b16 %v1192, %v1191
    %v1424 = vpack.c.b16 %v1194, %v1193
    %v1425 = vpack.c.b16 %v1196, %v1195
    %v1426 = vpack.c.b16 %v1198, %v1197
    %v1427 = vpack.c.b16 %v1200, %v1199
    %v1428 = vpack.c.b16 %v1202, %v1201
    %v1429 = vpack.c.b16 %v1204, %v1203
    %v1430 = vpack.c.b16 %v1206, %v1205
    %v1431 = vpack.c.b16 %v1208, %v1207
    %v1432 = vpack.c.b16 %v1210, %v1209
    %v1433 = vpack.c.b16 %v1212, %v1211
    %v1434 = vpack.c.b16 %v1214, %v1213
    %v1435 = vpack.c.b16 %v1216, %v1215
    %v1436 = vpack.c.b16 %v1218, %v1217
    %v1437 = vpack.c.b16 %v1220, %v1219
    %v1438 = vpack.c.b16 %v1222, %v1221
    %v1439 = vpack.c.b16 %v1224, %v1223
    %v1440 = vpack.c.b16 %v1226, %v1225
    %v1441 = vpack.c.b16 %v1228, %v1227
    %v1442 = vpack.c.b16 %v1230, %v1229
    %v1443 = vpack.c.b16 %v1232, %v1231
    %v1444 = vpack.c.b16 %v1234, %v1233
    %v1445 = vpack.c.b16 %v1236, %v1235
    %v1446 = vpack.c.b16 %v1238, %v1237
    %v1447 = vpack.c.b16 %v1240, %v1239
    %v1448 = vpack.c.b16 %v1242, %v1241
    %v1449 = vpack.c.b16 %v1244, %v1243
    %v1450 = vpack.c.b16 %v1246, %v1245
    %v1451 = vpack.c.b16 %v1248, %v1247
    %v1452 = vpack.c.b16 %v1250, %v1249
    %v1453 = vpack.c.b16 %v1252, %v1251
    %v1454 = vpack.c.b16 %v1254, %v1253
    %v1455 = vpack.c.b16 %v1256, %v1255
    %v1456 = vpack.c.b16 %v1258, %v1257
    %v1457 = vpack.c.b16 %v1260, %v1259
    %v1458 = vpack.c.b16 %v1262, %v1261
    %vm1655 = vcmask 523264
    %v1656 = vsel %vm1655, %v454, 0
    %1658 = vmatpush.bf16.msra.mxu0 %v1270
    %1659 = vmatpush.bf16.msra.mxu0 %v1269
    %1660 = vmatpush.bf16.msra.mxu0 %v1268
    %1661 = vmatpush.bf16.msra.mxu0 %v1267
    %1662 = vmatpush.bf16.msra.mxu0 %v1266
    %1663 = vmatpush.bf16.msra.mxu0 %v1265
    %1664 = vmatpush.bf16.msra.mxu0 %v1264
    %1665 = vmatpush.bf16.msra.mxu0 %v1263
    %1666 = vmatmul.bf16.gmra.mxu0 %v424
    %v1667 = vpop.f32.mrf.mxu0
    %v1668 = vadd.f32 %v420, %v1667
    %v1669 = vpop.f32.mrf.mxu0
    %1670 = vdwg.mxu0
    %1671 = vmatpush.bf16.msra.mxu0 %v1278
    %1672 = vmatpush.bf16.msra.mxu0 %v1277
    %1673 = vmatpush.bf16.msra.mxu0 %v1276
    %1674 = vmatpush.bf16.msra.mxu0 %v1275
    %1675 = vmatpush.bf16.msra.mxu0 %v1274
    %1676 = vmatpush.bf16.msra.mxu0 %v1273
    %1677 = vmatpush.bf16.msra.mxu0 %v1272
    %1678 = vmatpush.bf16.msra.mxu0 %v1271
    %1679 = vmatmul.bf16.gmra.mxu0 %v425
    %v1680 = vpop.f32.mrf.mxu0
    %v1681 = vadd.f32 %v1668, %v1680
    %v1682 = vpop.f32.mrf.mxu0
    %1683 = vdwg.mxu0
    %1684 = vmatpush.bf16.msra.mxu0 %v1286
    %1685 = vmatpush.bf16.msra.mxu0 %v1285
    %1686 = vmatpush.bf16.msra.mxu0 %v1284
    %1687 = vmatpush.bf16.msra.mxu0 %v1283
    %1688 = vmatpush.bf16.msra.mxu0 %v1282
    %1689 = vmatpush.bf16.msra.mxu0 %v1281
    %1690 = vmatpush.bf16.msra.mxu0 %v1280
    %1691 = vmatpush.bf16.msra.mxu0 %v1279
    %1692 = vmatmul.bf16.gmra.mxu0 %v426
    %v1693 = vpop.f32.mrf.mxu0
    %v1694 = vadd.f32 %v1681, %v1693
    %v1695 = vpop.f32.mrf.mxu0
    %1696 = vdwg.mxu0
    %1697 = vmatpush.bf16.msra.mxu0 %v1294
    %1698 = vmatpush.bf16.msra.mxu0 %v1293
    %1699 = vmatpush.bf16.msra.mxu0 %v1292
    %1700 = vmatpush.bf16.msra.mxu0 %v1291
    %1701 = vmatpush.bf16.msra.mxu0 %v1290
    %1702 = vmatpush.bf16.msra.mxu0 %v1289
    %1703 = vmatpush.bf16.msra.mxu0 %v1288
    %1704 = vmatpush.bf16.msra.mxu0 %v1287
    %1705 = vmatmul.bf16.gmra.mxu0 %v427
    %v1706 = vpop.f32.mrf.mxu0
    %v1707 = vadd.f32 %v1694, %v1706
    %v1708 = vpop.f32.mrf.mxu0
    %1709 = vdwg.mxu0
    %1710 = vmatpush.bf16.msra.mxu0 %v1302
    %1711 = vmatpush.bf16.msra.mxu0 %v1301
    %1712 = vmatpush.bf16.msra.mxu0 %v1300
    %1713 = vmatpush.bf16.msra.mxu0 %v1299
    %1714 = vmatpush.bf16.msra.mxu0 %v1298
    %1715 = vmatpush.bf16.msra.mxu0 %v1297
    %1716 = vmatpush.bf16.msra.mxu0 %v1296
    %1717 = vmatpush.bf16.msra.mxu0 %v1295
    %1718 = vmatmul.bf16.gmra.mxu0 %v428
    %v1719 = vpop.f32.mrf.mxu0
    %v1720 = vadd.f32 %v1707, %v1719
    %v1721 = vpop.f32.mrf.mxu0
    %1722 = vdwg.mxu0
    %1723 = vmatpush.bf16.msra.mxu0 %v1310
    %1724 = vmatpush.bf16.msra.mxu0 %v1309
    %1725 = vmatpush.bf16.msra.mxu0 %v1308
    %1726 = vmatpush.bf16.msra.mxu0 %v1307
    %1727 = vmatpush.bf16.msra.mxu0 %v1306
    %1728 = vmatpush.bf16.msra.mxu0 %v1305
    %1729 = vmatpush.bf16.msra.mxu0 %v1304
    %1730 = vmatpush.bf16.msra.mxu0 %v1303
    %1731 = vmatmul.bf16.gmra.mxu0 %v429
    %v1732 = vpop.f32.mrf.mxu0
    %v1733 = vadd.f32 %v1720, %v1732
    %v1734 = vpop.f32.mrf.mxu0
    %1735 = vdwg.mxu0
    %1736 = vmatpush.bf16.msra.mxu0 %v1318
    %1737 = vmatpush.bf16.msra.mxu0 %v1317
    %1738 = vmatpush.bf16.msra.mxu0 %v1316
    %1739 = vmatpush.bf16.msra.mxu0 %v1315
    %1740 = vmatpush.bf16.msra.mxu0 %v1314
    %1741 = vmatpush.bf16.msra.mxu0 %v1313
    %1742 = vmatpush.bf16.msra.mxu0 %v1312
    %1743 = vmatpush.bf16.msra.mxu0 %v1311
    %1744 = vmatmul.bf16.gmra.mxu0 %v430
    %v1745 = vpop.f32.mrf.mxu0
    %v1746 = vadd.f32 %v1733, %v1745
    %v1747 = vpop.f32.mrf.mxu0
    %1748 = vdwg.mxu0
    %1749 = vmatpush.bf16.msra.mxu0 %v1326
    %1750 = vmatpush.bf16.msra.mxu0 %v1325
    %1751 = vmatpush.bf16.msra.mxu0 %v1324
    %1752 = vmatpush.bf16.msra.mxu0 %v1323
    %1753 = vmatpush.bf16.msra.mxu0 %v1322
    %1754 = vmatpush.bf16.msra.mxu0 %v1321
    %1755 = vmatpush.bf16.msra.mxu0 %v1320
    %1756 = vmatpush.bf16.msra.mxu0 %v1319
    %1757 = vmatmul.bf16.gmra.mxu0 %v431
    %v1758 = vpop.f32.mrf.mxu0
    %v1759 = vadd.f32 %v1746, %v1758
    %v1760 = vpop.f32.mrf.mxu0
    %1761 = vdwg.mxu0
    %1762 = vmatpush.bf16.msra.mxu0 %v1334
    %1763 = vmatpush.bf16.msra.mxu0 %v1333
    %1764 = vmatpush.bf16.msra.mxu0 %v1332
    %1765 = vmatpush.bf16.msra.mxu0 %v1331
    %1766 = vmatpush.bf16.msra.mxu0 %v1330
    %1767 = vmatpush.bf16.msra.mxu0 %v1329
    %1768 = vmatpush.bf16.msra.mxu0 %v1328
    %1769 = vmatpush.bf16.msra.mxu0 %v1327
    %1770 = vmatmul.bf16.gmra.mxu0 %v434
    %v1771 = vpop.f32.mrf.mxu0
    %v1772 = vadd.f32 %v1759, %v1771
    %v1773 = vpop.f32.mrf.mxu0
    %1774 = vdwg.mxu0
    %1775 = vmatpush.bf16.msra.mxu0 %v1342
    %1776 = vmatpush.bf16.msra.mxu0 %v1341
    %1777 = vmatpush.bf16.msra.mxu0 %v1340
    %1778 = vmatpush.bf16.msra.mxu0 %v1339
    %1779 = vmatpush.bf16.msra.mxu0 %v1338
    %1780 = vmatpush.bf16.msra.mxu0 %v1337
    %1781 = vmatpush.bf16.msra.mxu0 %v1336
    %1782 = vmatpush.bf16.msra.mxu0 %v1335
    %1783 = vmatmul.bf16.gmra.mxu0 %v435
    %v1784 = vpop.f32.mrf.mxu0
    %v1785 = vadd.f32 %v1772, %v1784
    %v1786 = vpop.f32.mrf.mxu0
    %1787 = vdwg.mxu0
    %1788 = vmatpush.bf16.msra.mxu0 %v1350
    %1789 = vmatpush.bf16.msra.mxu0 %v1349
    %1790 = vmatpush.bf16.msra.mxu0 %v1348
    %1791 = vmatpush.bf16.msra.mxu0 %v1347
    %1792 = vmatpush.bf16.msra.mxu0 %v1346
    %1793 = vmatpush.bf16.msra.mxu0 %v1345
    %1794 = vmatpush.bf16.msra.mxu0 %v1344
    %1795 = vmatpush.bf16.msra.mxu0 %v1343
    %1796 = vmatmul.bf16.gmra.mxu0 %v436
    %v1797 = vpop.f32.mrf.mxu0
    %v1798 = vadd.f32 %v1785, %v1797
    %v1799 = vpop.f32.mrf.mxu0
    %1800 = vdwg.mxu0
    %1801 = vmatpush.bf16.msra.mxu0 %v1358
    %1802 = vmatpush.bf16.msra.mxu0 %v1357
    %1803 = vmatpush.bf16.msra.mxu0 %v1356
    %1804 = vmatpush.bf16.msra.mxu0 %v1355
    %1805 = vmatpush.bf16.msra.mxu0 %v1354
    %1806 = vmatpush.bf16.msra.mxu0 %v1353
    %1807 = vmatpush.bf16.msra.mxu0 %v1352
    %1808 = vmatpush.bf16.msra.mxu0 %v1351
    %1809 = vmatmul.bf16.gmra.mxu0 %v437
    %v1810 = vpop.f32.mrf.mxu0
    %v1811 = vadd.f32 %v1798, %v1810
    %v1812 = vpop.f32.mrf.mxu0
    %1813 = vdwg.mxu0
    %1814 = vmatpush.bf16.msra.mxu0 %v1366
    %1815 = vmatpush.bf16.msra.mxu0 %v1365
    %1816 = vmatpush.bf16.msra.mxu0 %v1364
    %1817 = vmatpush.bf16.msra.mxu0 %v1363
    %1818 = vmatpush.bf16.msra.mxu0 %v1362
    %1819 = vmatpush.bf16.msra.mxu0 %v1361
    %1820 = vmatpush.bf16.msra.mxu0 %v1360
    %1821 = vmatpush.bf16.msra.mxu0 %v1359
    %1822 = vmatmul.bf16.gmra.mxu0 %v438
    %v1823 = vpop.f32.mrf.mxu0
    %v1824 = vadd.f32 %v1811, %v1823
    %v1825 = vpop.f32.mrf.mxu0
    %1826 = vdwg.mxu0
    %1827 = vmatpush.bf16.msra.mxu0 %v1374
    %1828 = vmatpush.bf16.msra.mxu0 %v1373
    %1829 = vmatpush.bf16.msra.mxu0 %v1372
    %1830 = vmatpush.bf16.msra.mxu0 %v1371
    %1831 = vmatpush.bf16.msra.mxu0 %v1370
    %1832 = vmatpush.bf16.msra.mxu0 %v1369
    %1833 = vmatpush.bf16.msra.mxu0 %v1368
    %1834 = vmatpush.bf16.msra.mxu0 %v1367
    %1835 = vmatmul.bf16.gmra.mxu0 %v439
    %v1836 = vpop.f32.mrf.mxu0
    %v1837 = vadd.f32 %v1824, %v1836
    %v1838 = vpop.f32.mrf.mxu0
    %1839 = vdwg.mxu0
    %1840 = vmatpush.bf16.msra.mxu0 %v1382
    %1841 = vmatpush.bf16.msra.mxu0 %v1381
    %1842 = vmatpush.bf16.msra.mxu0 %v1380
    %1843 = vmatpush.bf16.msra.mxu0 %v1379
    %1844 = vmatpush.bf16.msra.mxu0 %v1378
    %1845 = vmatpush.bf16.msra.mxu0 %v1377
    %1846 = vmatpush.bf16.msra.mxu0 %v1376
    %1847 = vmatpush.bf16.msra.mxu0 %v1375
    %1848 = vmatmul.bf16.gmra.mxu0 %v440
    %v1849 = vpop.f32.mrf.mxu0
    %v1850 = vadd.f32 %v1837, %v1849
    %v1851 = vpop.f32.mrf.mxu0
    %1852 = vdwg.mxu0
    %1853 = vmatpush.bf16.msra.mxu0 %v1390
    %1854 = vmatpush.bf16.msra.mxu0 %v1389
    %1855 = vmatpush.bf16.msra.mxu0 %v1388
    %1856 = vmatpush.bf16.msra.mxu0 %v1387
    %1857 = vmatpush.bf16.msra.mxu0 %v1386
    %1858 = vmatpush.bf16.msra.mxu0 %v1385
    %1859 = vmatpush.bf16.msra.mxu0 %v1384
    %1860 = vmatpush.bf16.msra.mxu0 %v1383
    %1861 = vmatmul.bf16.gmra.mxu0 %v441
    %v1862 = vpop.f32.mrf.mxu0
    %v1863 = vadd.f32 %v1850, %v1862
    %v1864 = vpop.f32.mrf.mxu0
    %1865 = vdwg.mxu0
    %1866 = vmatpush.bf16.msra.mxu0 %v1398
    %1867 = vmatpush.bf16.msra.mxu0 %v1397
    %1868 = vmatpush.bf16.msra.mxu0 %v1396
    %1869 = vmatpush.bf16.msra.mxu0 %v1395
    %1870 = vmatpush.bf16.msra.mxu0 %v1394
    %1871 = vmatpush.bf16.msra.mxu0 %v1393
    %1872 = vmatpush.bf16.msra.mxu0 %v1392
    %1873 = vmatpush.bf16.msra.mxu0 %v1391
    %1874 = vmatmul.bf16.gmra.mxu0 %v444
    %v1875 = vpop.f32.mrf.mxu0
    %v1876 = vadd.f32 %v1863, %v1875
    %v1877 = vpop.f32.mrf.mxu0
    %1878 = vdwg.mxu0
    %1879 = vmatpush.bf16.msra.mxu0 %v1406
    %1880 = vmatpush.bf16.msra.mxu0 %v1405
    %1881 = vmatpush.bf16.msra.mxu0 %v1404
    %1882 = vmatpush.bf16.msra.mxu0 %v1403
    %1883 = vmatpush.bf16.msra.mxu0 %v1402
    %1884 = vmatpush.bf16.msra.mxu0 %v1401
    %1885 = vmatpush.bf16.msra.mxu0 %v1400
    %1886 = vmatpush.bf16.msra.mxu0 %v1399
    %1887 = vmatmul.bf16.gmra.mxu0 %v445
    %v1888 = vpop.f32.mrf.mxu0
    %v1889 = vadd.f32 %v1876, %v1888
    %v1890 = vpop.f32.mrf.mxu0
    %1891 = vdwg.mxu0
    %1892 = vmatpush.bf16.msra.mxu0 %v1414
    %1893 = vmatpush.bf16.msra.mxu0 %v1413
    %1894 = vmatpush.bf16.msra.mxu0 %v1412
    %1895 = vmatpush.bf16.msra.mxu0 %v1411
    %1896 = vmatpush.bf16.msra.mxu0 %v1410
    %1897 = vmatpush.bf16.msra.mxu0 %v1409
    %1898 = vmatpush.bf16.msra.mxu0 %v1408
    %1899 = vmatpush.bf16.msra.mxu0 %v1407
    %1900 = vmatmul.bf16.gmra.mxu0 %v446
    %v1901 = vpop.f32.mrf.mxu0
    %v1902 = vadd.f32 %v1889, %v1901
    %v1903 = vpop.f32.mrf.mxu0
    %1904 = vdwg.mxu0
    %1905 = vmatpush.bf16.msra.mxu0 %v1422
    %1906 = vmatpush.bf16.msra.mxu0 %v1421
    %1907 = vmatpush.bf16.msra.mxu0 %v1420
    %1908 = vmatpush.bf16.msra.mxu0 %v1419
    %1909 = vmatpush.bf16.msra.mxu0 %v1418
    %1910 = vmatpush.bf16.msra.mxu0 %v1417
    %1911 = vmatpush.bf16.msra.mxu0 %v1416
    %1912 = vmatpush.bf16.msra.mxu0 %v1415
    %1913 = vmatmul.bf16.gmra.mxu0 %v447
    %v1914 = vpop.f32.mrf.mxu0
    %v1915 = vadd.f32 %v1902, %v1914
    %v1916 = vpop.f32.mrf.mxu0
    %1917 = vdwg.mxu0
    %1918 = vmatpush.bf16.msra.mxu0 %v1430
    %1919 = vmatpush.bf16.msra.mxu0 %v1429
    %1920 = vmatpush.bf16.msra.mxu0 %v1428
    %1921 = vmatpush.bf16.msra.mxu0 %v1427
    %1922 = vmatpush.bf16.msra.mxu0 %v1426
    %1923 = vmatpush.bf16.msra.mxu0 %v1425
    %1924 = vmatpush.bf16.msra.mxu0 %v1424
    %1925 = vmatpush.bf16.msra.mxu0 %v1423
    %1926 = vmatmul.bf16.gmra.mxu0 %v448
    %v1927 = vpop.f32.mrf.mxu0
    %v1928 = vadd.f32 %v1915, %v1927
    %v1929 = vpop.f32.mrf.mxu0
    %1930 = vdwg.mxu0
    %1931 = vmatpush.bf16.msra.mxu0 %v1438
    %1932 = vmatpush.bf16.msra.mxu0 %v1437
    %1933 = vmatpush.bf16.msra.mxu0 %v1436
    %1934 = vmatpush.bf16.msra.mxu0 %v1435
    %1935 = vmatpush.bf16.msra.mxu0 %v1434
    %1936 = vmatpush.bf16.msra.mxu0 %v1433
    %1937 = vmatpush.bf16.msra.mxu0 %v1432
    %1938 = vmatpush.bf16.msra.mxu0 %v1431
    %1939 = vmatmul.bf16.gmra.mxu0 %v449
    %v1940 = vpop.f32.mrf.mxu0
    %v1941 = vadd.f32 %v1928, %v1940
    %v1942 = vpop.f32.mrf.mxu0
    %1943 = vdwg.mxu0
    %1944 = vmatpush.bf16.msra.mxu0 %v1446
    %1945 = vmatpush.bf16.msra.mxu0 %v1445
    %1946 = vmatpush.bf16.msra.mxu0 %v1444
    %1947 = vmatpush.bf16.msra.mxu0 %v1443
    %1948 = vmatpush.bf16.msra.mxu0 %v1442
    %1949 = vmatpush.bf16.msra.mxu0 %v1441
    %1950 = vmatpush.bf16.msra.mxu0 %v1440
    %1951 = vmatpush.bf16.msra.mxu0 %v1439
    %1952 = vmatmul.bf16.gmra.mxu0 %v450
    %v1953 = vpop.f32.mrf.mxu0
    %v1954 = vadd.f32 %v1941, %v1953
    %v1955 = vpop.f32.mrf.mxu0
    %1956 = vdwg.mxu0
    %1957 = vmatpush.bf16.msra.mxu0 %v1454
    %1958 = vmatpush.bf16.msra.mxu0 %v1453
    %1959 = vmatpush.bf16.msra.mxu0 %v1452
    %1960 = vmatpush.bf16.msra.mxu0 %v1451
    %1961 = vmatpush.bf16.msra.mxu0 %v1450
    %1962 = vmatpush.bf16.msra.mxu0 %v1449
    %1963 = vmatpush.bf16.msra.mxu0 %v1448
    %1964 = vmatpush.bf16.msra.mxu0 %v1447
    %1965 = vmatmul.bf16.gmra.mxu0 %v451
    %v1966 = vpop.f32.mrf.mxu0
    %v1967 = vadd.f32 %v1954, %v1966
    %v1968 = vpop.f32.mrf.mxu0
    %1969 = vdwg.mxu0
    %1970 = vmatpush.bf16.msra.mxu0 0
    %1971 = vmatpush.bf16.msra.mxu0 0
    %1972 = vmatpush.bf16.msra.mxu0 0
    %1973 = vmatpush.bf16.msra.mxu0 0
    %1974 = vmatpush.bf16.msra.mxu0 %v1458
    %1975 = vmatpush.bf16.msra.mxu0 %v1457
    %1976 = vmatpush.bf16.msra.mxu0 %v1456
    %1977 = vmatpush.bf16.msra.mxu0 %v1455
    %1978 = vmatmul.bf16.gmra.mxu0 %v1656
    %v1979 = vpop.f32.mrf.mxu0
    %v1980 = vadd.f32 %v1967, %v1979
    %v1981 = vpop.f32.mrf.mxu0
    %1982 = vdwg.mxu0
    %v1983 = vmax.f32 %v1980, 0.0
    %v1984 = vpack.c.bf16 %v1983, %v1983
    %v1985 = vld [vmem:[%s3] sm:$0xf]
    %v1986 = vld [vmem:[%s3 + $0x4] sm:$0xf]
    %v1987 = vld [vmem:[%s3 + $0x8] sm:$0xf]
    %v1988 = vld [vmem:[%s3 + $0xc] sm:$0xf]
    %v1989 = vld [vmem:[%s3 + $0x10] sm:$0xf]
    %v1990 = vld [vmem:[%s3 + $0x14] sm:$0xf]
    %v1991 = vld [vmem:[%s3 + $0x18] sm:$0xf]
    %v1992 = vld [vmem:[%s3 + $0x1c] sm:$0xf]
    %v1993 = vld [vmem:[%s3 + $0x20] sm:$0xf]
    %v1994 = vld [vmem:[%s3 + $0x24] sm:$0xf]
    %v1995 = vld [vmem:[%s3 + $0x28] sm:$0xf]
    %v1996 = vld [vmem:[%s3 + $0x2c] sm:$0xf]
    %v1997 = vld [vmem:[%s3 + $0x30] sm:$0xf]
    %v1998 = vld [vmem:[%s3 + $0x34] sm:$0xf]
    %v1999 = vld [vmem:[%s3 + $0x38] sm:$0xf]
    %v2000 = vld [vmem:[%s3 + $0x3c] sm:$0xf]
    %v2001 = vld [vmem:[%s4] sm:$0x1]
    %v2003 = vperm.slane %v2001, 0
    %v2021 = vunpack.c.l.b16 %v1985
    %v2022 = vunpack.c.l.b16 %v1986
    %v2023 = vunpack.c.l.b16 %v1987
    %v2024 = vunpack.c.l.b16 %v1988
    %v2025 = vunpack.c.l.b16 %v1989
    %v2026 = vunpack.c.l.b16 %v1990
    %v2027 = vunpack.c.l.b16 %v1991
    %v2028 = vunpack.c.l.b16 %v1992
    %v2029 = vunpack.c.l.b16 %v1993
    %v2030 = vunpack.c.l.b16 %v1994
    %v2031 = vunpack.c.l.b16 %v1995
    %v2032 = vunpack.c.l.b16 %v1996
    %v2033 = vunpack.c.l.b16 %v1997
    %v2034 = vunpack.c.l.b16 %v1998
    %v2035 = vunpack.c.l.b16 %v1999
    %v2036 = vunpack.c.l.b16 %v2000
    %v2037 = vpack.c.b16 %v2022, %v2021
    %v2038 = vpack.c.b16 %v2024, %v2023
    %v2039 = vpack.c.b16 %v2026, %v2025
    %v2040 = vpack.c.b16 %v2028, %v2027
    %v2041 = vpack.c.b16 %v2030, %v2029
    %v2042 = vpack.c.b16 %v2032, %v2031
    %v2043 = vpack.c.b16 %v2034, %v2033
    %v2044 = vpack.c.b16 %v2036, %v2035
    %2053 = vmatpush.bf16.msra.mxu0 %v2044
    %2054 = vmatpush.bf16.msra.mxu0 %v2043
    %2055 = vmatpush.bf16.msra.mxu0 %v2042
    %2056 = vmatpush.bf16.msra.mxu0 %v2041
    %2057 = vmatpush.bf16.msra.mxu0 %v2040
    %2058 = vmatpush.bf16.msra.mxu0 %v2039
    %2059 = vmatpush.bf16.msra.mxu0 %v2038
    %2060 = vmatpush.bf16.msra.mxu0 %v2037
    %2061 = vmatmul.bf16.gmra.mxu0 %v1984
    %v2062 = vpop.f32.mrf.mxu0
    %v2063 = vadd.f32 %v2003, %v2062
    %v2064 = vpop.f32.mrf.mxu0
    %2065 = vdwg.mxu0
    %vm2066 = vcmask 74752
    %2067 = vst.msk [vmem:[#allocation2] sm:$0x3] %vm2066, %v2063
    // Predicated region
    $region22: #{cnn_forward.3} parent=1 // pred_check
      _
    $region23: #{cnn_forward.3} parent=1 // pred_check_branch
      %2069 = sbr.rel (0) target = $region25
    $region24: #{cnn_forward.3} parent=1 // pred_region
      %2071 = vsyncadd [#allocation3], 0
      %s2073 = sshll.u32 [#allocation2], 4
      %s2074 = int_to_ptr.vmem [resolvable:$true] %s2073
      %s2075 = sshll.u32 %s5, 4
      %s2076 = int_to_ptr.hbm [resolvable:$true] %s2075
      %2078 = dma.vmem_to_hbm [thread:$0]  %s2074, 32, %s2076, [#allocation3]
    $region25: #{cnn_forward.3} parent=1 // pred_fallthru
      _
    // Predicated region
    $region26: #{cnn_forward.3} parent=1 // pred_check
      _
    $region27: #{cnn_forward.3} parent=1 // pred_check_branch
      %2080 = sbr.rel (0) target = $region29
    $region28: #{cnn_forward.3} parent=1 // pred_region
      %2082 = dma.done [#allocation3], 32
    $region29: #{cnn_forward.3} parent=1 // pred_fallthru
      _
    %2083 = vsyncpa [#allocation3], 1

// kernel: cnn_forward.2
$region0: #{cnn_forward.2}
  #allocation0 [shape = 'u32[]', space=smem, size = 0x4, offset = 0x4, fixed_abs, tag = 'smem constant byte address 0x4 - core index']
  #allocation1 [shape = 'u32[72,128]{1,0:T(1,128)}', space=vmem, size = 0x9000, scoped, tag = 'internal scratch']
  #allocation2 [shape = 'f32[930,16]{1,0:T(8,128)}', space=vmem, size = 0x75000, scoped, tag = 'scratch operand']
  #allocation3 [shape = 'f32[840,32]{1,0:T(8,128)}', space=vmem, size = 0x69000, scoped, tag = 'scratch operand']
  #allocation4 [shape = 'f32[272,32]{1,0:T(8,128)}', space=vmem, size = 0x22000, scoped, tag = 'scratch operand']
  #allocation5 [shape = 'f32[224,64]{1,0:T(8,128)}', space=vmem, size = 0x1c000, scoped, tag = 'scratch operand']
  %s0 = inlined_call_operand.vmem [shape: f32[2,930,1], index: 0, kind: input, shape index: {}]
  %s1 = inlined_call_operand.vmem [shape: f32[930,1], index: 1, kind: input, shape index: {}]
  %s2 = inlined_call_operand.vmem [shape: f32[1,16], index: 2, kind: input, shape index: {}]
  %s3 = inlined_call_operand.vmem [shape: f32[1,16], index: 3, kind: input, shape index: {}]
  %s4 = inlined_call_operand.vmem [shape: bf16[144,32], index: 4, kind: input, shape index: {}]
  %s5 = inlined_call_operand.vmem [shape: f32[1,32], index: 5, kind: input, shape index: {}]
  %s6 = inlined_call_operand.vmem [shape: bf16[288,64], index: 6, kind: input, shape index: {}]
  %s7 = inlined_call_operand.vmem [shape: f32[1,64], index: 7, kind: input, shape index: {}]
  %s8 = inlined_call_operand.vmem [shape: bf16[2,49,64], index: 8, kind: output, shape index: {}]
  %s9 = sld [smem:[#allocation0]]
  $region65: #{cnn_forward.2} parent=0
    _
  %s11 = ssub.s32 1, %s9
  %s12 = scalar_select 0, %s11, %s9
  loop: start=0, step=1, limit=4
  $region2: #{cnn_forward.2} parent=0 // loop_pre_header
    _
  $region3: #{cnn_forward.2} parent=0 // loop_header
    %s14 = sphi 0, %s18
    %p15 = scmp.ge.s32.totalorder %s14, 4
    %s24 = sphi 0, %s26
    %s27 = sphi 0, %s24
    %s28 = sphi 0, %s27
    %s44 = sphi 0, %s28
    %s48 = sphi 0, %s48
    %s50 = sphi 0, %s48
    %s51 = sphi 0, %s50
    %s65 = sphi 0, %s51
    %s69 = sphi 0, %s69
    %s71 = sphi 0, %s69
    %s72 = sphi 0, %s71
    %s86 = sphi 0, %s72
    %s90 = sphi 0, %s90
    %s92 = sphi 0, %s90
    %s93 = sphi 0, %s92
    %s107 = sphi 0, %s93
    %s111 = sphi 0, %s111
    %s113 = sphi 0, %s111
    %s114 = sphi 0, %s113
    %s128 = sphi 0, %s114
    %s132 = sphi 0, %s132
    %s134 = sphi 0, %s132
    %s135 = sphi 0, %s134
    %s149 = sphi 0, %s135
    %s153 = sphi 0, %s153
    %s155 = sphi 0, %s153
    %s156 = sphi 0, %s155
    %s170 = sphi 0, %s156
    %s174 = sphi 0, %s174
    %s176 = sphi 0, %s174
    %s177 = sphi 0, %s176
    %s191 = sphi 0, %s177
    %s197 = sphi 0, %s199
    %s200 = sphi 0, %s197
    %s201 = sphi 0, %s200
    %s217 = sphi 0, %s201
  $region4: #{cnn_forward.2} parent=0 // loop_header_branch
    %17 = sbr.rel (%p15) target = $region8
  $region5: #{cnn_forward.2} parent=0 // loop_body
    %s19 = ssub.s32 %s14, 1
    %s20 = ssub.s32 %s14, 2
    %s21 = sadd.s32 %s14, 1
    %s22 = ssub.s32 %s14, %s21
    %p23 = scmp.eq.s32.totalorder %s22, 0
    %s25 = sadd.s32 %s24, 1
    %s26 = scalar_select %p23, %s24, %s25
    %p29 = pneg %p23
    %p30 = scmp.eq.s32.totalorder %s14, 1
    %p31 = por %p29, %p30
    %p32 = scmp.ne.s32.totalorder %s24, %s27
    %p33 = scmp.eq.s32.totalorder %s14, 0
    %p34 = por %p32, %p33
    %p35 = scmp.ne.s32.totalorder %s24, %s27
    %p36 = scmp.eq.s32.totalorder %s19, 1
    %p37 = por %p35, %p36
    %p38 = scmp.ne.s32.totalorder %s27, %s28
    %p39 = scmp.eq.s32.totalorder %s19, 0
    %p40 = por %p38, %p39
    %p41 = scmp.ne.s32.totalorder %s27, %s28
    %p42 = scmp.eq.s32.totalorder %s20, 1
    %p43 = por %p41, %p42
    %p45 = scmp.ne.s32.totalorder %s28, %s44
    %p46 = scmp.eq.s32.totalorder %s20, 0
    %p47 = por %p45, %p46
    %s49 = sadd.s32 %s48, 1
    %p52 = scmp.eq.s32.totalorder %s14, 1
    %p53 = scmp.ne.s32.totalorder %s48, %s50
    %p54 = scmp.eq.s32.totalorder %s14, 0
    %p55 = por %p53, %p54
    %p56 = scmp.ne.s32.totalorder %s48, %s50
    %p57 = scmp.eq.s32.totalorder %s19, 1
    %p58 = por %p56, %p57
    %p59 = scmp.ne.s32.totalorder %s50, %s51
    %p60 = scmp.eq.s32.totalorder %s19, 0
    %p61 = por %p59, %p60
    %p62 = scmp.ne.s32.totalorder %s50, %s51
    %p63 = scmp.eq.s32.totalorder %s20, 1
    %p64 = por %p62, %p63
    %p66 = scmp.ne.s32.totalorder %s51, %s65
    %p67 = scmp.eq.s32.totalorder %s20, 0
    %p68 = por %p66, %p67
    %s70 = sadd.s32 %s69, 1
    %p73 = scmp.eq.s32.totalorder %s14, 1
    %p74 = scmp.ne.s32.totalorder %s69, %s71
    %p75 = scmp.eq.s32.totalorder %s14, 0
    %p76 = por %p74, %p75
    %p77 = scmp.ne.s32.totalorder %s69, %s71
    %p78 = scmp.eq.s32.totalorder %s19, 1
    %p79 = por %p77, %p78
    %p80 = scmp.ne.s32.totalorder %s71, %s72
    %p81 = scmp.eq.s32.totalorder %s19, 0
    %p82 = por %p80, %p81
    %p83 = scmp.ne.s32.totalorder %s71, %s72
    %p84 = scmp.eq.s32.totalorder %s20, 1
    %p85 = por %p83, %p84
    %p87 = scmp.ne.s32.totalorder %s72, %s86
    %p88 = scmp.eq.s32.totalorder %s20, 0
    %p89 = por %p87, %p88
    %s91 = sadd.s32 %s90, 1
    %p94 = scmp.eq.s32.totalorder %s14, 1
    %p95 = scmp.ne.s32.totalorder %s90, %s92
    %p96 = scmp.eq.s32.totalorder %s14, 0
    %p97 = por %p95, %p96
    %p98 = scmp.ne.s32.totalorder %s90, %s92
    %p99 = scmp.eq.s32.totalorder %s19, 1
    %p100 = por %p98, %p99
    %p101 = scmp.ne.s32.totalorder %s92, %s93
    %p102 = scmp.eq.s32.totalorder %s19, 0
    %p103 = por %p101, %p102
    %p104 = scmp.ne.s32.totalorder %s92, %s93
    %p105 = scmp.eq.s32.totalorder %s20, 1
    %p106 = por %p104, %p105
    %p108 = scmp.ne.s32.totalorder %s93, %s107
    %p109 = scmp.eq.s32.totalorder %s20, 0
    %p110 = por %p108, %p109
    %s112 = sadd.s32 %s111, 1
    %p115 = scmp.eq.s32.totalorder %s14, 1
    %p116 = scmp.ne.s32.totalorder %s111, %s113
    %p117 = scmp.eq.s32.totalorder %s14, 0
    %p118 = por %p116, %p117
    %p119 = scmp.ne.s32.totalorder %s111, %s113
    %p120 = scmp.eq.s32.totalorder %s19, 1
    %p121 = por %p119, %p120
    %p122 = scmp.ne.s32.totalorder %s113, %s114
    %p123 = scmp.eq.s32.totalorder %s19, 0
    %p124 = por %p122, %p123
    %p125 = scmp.ne.s32.totalorder %s113, %s114
    %p126 = scmp.eq.s32.totalorder %s20, 1
    %p127 = por %p125, %p126
    %p129 = scmp.ne.s32.totalorder %s114, %s128
    %p130 = scmp.eq.s32.totalorder %s20, 0
    %p131 = por %p129, %p130
    %s133 = sadd.s32 %s132, 1
    %p136 = scmp.eq.s32.totalorder %s14, 1
    %p137 = scmp.ne.s32.totalorder %s132, %s134
    %p138 = scmp.eq.s32.totalorder %s14, 0
    %p139 = por %p137, %p138
    %p140 = scmp.ne.s32.totalorder %s132, %s134
    %p141 = scmp.eq.s32.totalorder %s19, 1
    %p142 = por %p140, %p141
    %p143 = scmp.ne.s32.totalorder %s134, %s135
    %p144 = scmp.eq.s32.totalorder %s19, 0
    %p145 = por %p143, %p144
    %p146 = scmp.ne.s32.totalorder %s134, %s135
    %p147 = scmp.eq.s32.totalorder %s20, 1
    %p148 = por %p146, %p147
    %p150 = scmp.ne.s32.totalorder %s135, %s149
    %p151 = scmp.eq.s32.totalorder %s20, 0
    %p152 = por %p150, %p151
    %s154 = sadd.s32 %s153, 1
    %p157 = scmp.eq.s32.totalorder %s14, 1
    %p158 = scmp.ne.s32.totalorder %s153, %s155
    %p159 = scmp.eq.s32.totalorder %s14, 0
    %p160 = por %p158, %p159
    %p161 = scmp.ne.s32.totalorder %s153, %s155
    %p162 = scmp.eq.s32.totalorder %s19, 1
    %p163 = por %p161, %p162
    %p164 = scmp.ne.s32.totalorder %s155, %s156
    %p165 = scmp.eq.s32.totalorder %s19, 0
    %p166 = por %p164, %p165
    %p167 = scmp.ne.s32.totalorder %s155, %s156
    %p168 = scmp.eq.s32.totalorder %s20, 1
    %p169 = por %p167, %p168
    %p171 = scmp.ne.s32.totalorder %s156, %s170
    %p172 = scmp.eq.s32.totalorder %s20, 0
    %p173 = por %p171, %p172
    %s175 = sadd.s32 %s174, 1
    %p178 = scmp.eq.s32.totalorder %s14, 1
    %p179 = scmp.ne.s32.totalorder %s174, %s176
    %p180 = scmp.eq.s32.totalorder %s14, 0
    %p181 = por %p179, %p180
    %p182 = scmp.ne.s32.totalorder %s174, %s176
    %p183 = scmp.eq.s32.totalorder %s19, 1
    %p184 = por %p182, %p183
    %p185 = scmp.ne.s32.totalorder %s176, %s177
    %p186 = scmp.eq.s32.totalorder %s19, 0
    %p187 = por %p185, %p186
    %p188 = scmp.ne.s32.totalorder %s176, %s177
    %p189 = scmp.eq.s32.totalorder %s20, 1
    %p190 = por %p188, %p189
    %p192 = scmp.ne.s32.totalorder %s177, %s191
    %p193 = scmp.eq.s32.totalorder %s20, 0
    %p194 = por %p192, %p193
    %s195 = ssub.s32 %s14, %s21
    %p196 = scmp.eq.s32.totalorder %s195, 0
    %s198 = sadd.s32 %s197, 1
    %s199 = scalar_select %p196, %s197, %s198
    %p202 = pneg %p196
    %p203 = scmp.eq.s32.totalorder %s14, 1
    %p204 = por %p202, %p203
    %p205 = scmp.ne.s32.totalorder %s197, %s200
    %p206 = scmp.eq.s32.totalorder %s14, 0
    %p207 = por %p205, %p206
    %p208 = scmp.ne.s32.totalorder %s197, %s200
    %p209 = scmp.eq.s32.totalorder %s19, 1
    %p210 = por %p208, %p209
    %p211 = scmp.ne.s32.totalorder %s200, %s201
    %p212 = scmp.eq.s32.totalorder %s19, 0
    %p213 = por %p211, %p212
    %p214 = scmp.ne.s32.totalorder %s200, %s201
    %p215 = scmp.eq.s32.totalorder %s20, 1
    %p216 = por %p214, %p215
    %p218 = scmp.ne.s32.totalorder %s201, %s217
    %p219 = scmp.eq.s32.totalorder %s20, 0
    %p220 = por %p218, %p219
    %p221 = scmp.le.s32.totalorder 1, %s14
    %p222 = scmp.lt.s32.totalorder %s14, 3
    %p223 = pnand %p221, %p222
    %p224 = pneg %p223
    // Predicated region
    $region9: #{cnn_forward.2} parent=5 // pred_check
      _
    $region10: #{cnn_forward.2} parent=5 // pred_check_branch
      %226 = sbr.rel (%p223) target = $region12
    $region11: #{cnn_forward.2} parent=5 // pred_region
      %s227 = ssub.s32 %s14, 1
      // Predicated region
      $region13: #{cnn_forward.2} parent=11 // pred_check
        %p228 = pneg %p61
      $region14: #{cnn_forward.2} parent=11 // pred_check_branch
        %230 = sbr.rel (%p228) target = $region16
      $region15: #{cnn_forward.2} parent=11 // pred_region
        _
      $region16: #{cnn_forward.2} parent=11 // pred_fallthru
        _
      // Predicated region
      $region17: #{cnn_forward.2} parent=11 // pred_check
        %p231 = pneg %p82
      $region18: #{cnn_forward.2} parent=11 // pred_check_branch
        %233 = sbr.rel (%p231) target = $region20
      $region19: #{cnn_forward.2} parent=11 // pred_region
        _
      $region20: #{cnn_forward.2} parent=11 // pred_fallthru
        _
      // Predicated region
      $region21: #{cnn_forward.2} parent=11 // pred_check
        %p234 = pneg %p103
      $region22: #{cnn_forward.2} parent=11 // pred_check_branch
        %236 = sbr.rel (%p234) target = $region24
      $region23: #{cnn_forward.2} parent=11 // pred_region
        _
      $region24: #{cnn_forward.2} parent=11 // pred_fallthru
        _
      // Predicated region
      $region25: #{cnn_forward.2} parent=11 // pred_check
        %p237 = pneg %p124
      $region26: #{cnn_forward.2} parent=11 // pred_check_branch
        %239 = sbr.rel (%p237) target = $region28
      $region27: #{cnn_forward.2} parent=11 // pred_region
        _
      $region28: #{cnn_forward.2} parent=11 // pred_fallthru
        _
      // Predicated region
      $region29: #{cnn_forward.2} parent=11 // pred_check
        %p240 = pneg %p145
      $region30: #{cnn_forward.2} parent=11 // pred_check_branch
        %242 = sbr.rel (%p240) target = $region32
      $region31: #{cnn_forward.2} parent=11 // pred_region
        _
      $region32: #{cnn_forward.2} parent=11 // pred_fallthru
        _
      // Predicated region
      $region33: #{cnn_forward.2} parent=11 // pred_check
        %p243 = pneg %p166
      $region34: #{cnn_forward.2} parent=11 // pred_check_branch
        %245 = sbr.rel (%p243) target = $region36
      $region35: #{cnn_forward.2} parent=11 // pred_region
        _
      $region36: #{cnn_forward.2} parent=11 // pred_fallthru
        _
      // Predicated region
      $region37: #{cnn_forward.2} parent=11 // pred_check
        %p246 = pneg %p187
      $region38: #{cnn_forward.2} parent=11 // pred_check_branch
        %248 = sbr.rel (%p246) target = $region40
      $region39: #{cnn_forward.2} parent=11 // pred_region
        _
      $region40: #{cnn_forward.2} parent=11 // pred_fallthru
        _
    $region12: #{cnn_forward.2} parent=5 // pred_fallthru
      _
    %p249 = scmp.lt.s32.totalorder %s14, 2
    // Predicated region
    $region41: #{cnn_forward.2} parent=5 // pred_check
      %p250 = pneg %p249
    $region42: #{cnn_forward.2} parent=5 // pred_check_branch
      %252 = sbr.rel (%p250) target = $region44
    $region43: #{cnn_forward.2} parent=5 // pred_region
      // Predicated region
      $region45: #{cnn_forward.2} parent=43 // pred_check
        %p253 = pneg %p34
      $region46: #{cnn_forward.2} parent=43 // pred_check_branch
        %255 = sbr.rel (%p253) target = $region48
      $region47: #{cnn_forward.2} parent=43 // pred_region
        %p256 = scmp.lt.s32.totalorder %s14, 1
        %s257 = scalar_select %p256, %s14, 1
        %s258 = smul.addr %s257, 117
        %s259 = smul.addr %s258, 8
        %s260 = scalar_lea.vmem %s0, %s259
      $region48: #{cnn_forward.2} parent=43 // pred_fallthru
        _
    $region44: #{cnn_forward.2} parent=5 // pred_fallthru
      _
    %p261 = scmp.le.s32.totalorder 1, %s14
    %p262 = scmp.lt.s32.totalorder %s14, 3
    %p263 = pnand %p261, %p262
    %p264 = pneg %p263
    // Predicated region
    $region49: #{cnn_forward.2} parent=5 // pred_check
      _
    $region50: #{cnn_forward.2} parent=5 // pred_check_branch
      %266 = sbr.rel (%p263) target = $region52
    $region51: #{cnn_forward.2} parent=5 // pred_region
      %s267 = ssub.s32 %s14, 1
      %p268 = scmp.lt.s32.totalorder %s19, 1
      %s269 = scalar_select %p268, %s19, 1
      %s270 = smul.addr %s269, 117
      %s271 = smul.addr %s270, 8
      %s272 = scalar_lea.vmem %s0, %s271
      %p273 = pneg %p40
      %p274 = pneg %p37
      %p275 = pneg %p61
      %p276 = pneg %p58
      %p277 = pneg %p82
      %p278 = pneg %p79
      %p279 = pneg %p103
      %p280 = pneg %p100
      %p281 = pneg %p124
      %p282 = pneg %p121
      %p283 = pneg %p145
      %p284 = pneg %p142
      %p285 = pneg %p166
      %p286 = pneg %p163
      %p287 = pneg %p187
      %p288 = pneg %p184
      %p289 = pneg %p213
      %p290 = pneg %p210
      %p291 = scmp.lt.s32.totalorder %s19, 1
      %s292 = scalar_select %p291, %s19, 1
      %s293 = smul.addr %s292, 7
      %s294 = smul.addr %s293, 4
      %s295 = scalar_lea.vmem %s8, %s294
      %p296 = scmp.lt.s32.totalorder %s19, 1
      %s297 = scalar_select %p296, %s19, 1
      %s298 = smul.addr %s297, 117
      %s299 = smul.addr %s298, 8
      %s300 = scalar_lea.vmem %s0, %s299
      %p301 = scmp.lt.s32.totalorder %s19, 1
      %s302 = scalar_select %p301, %s19, 1
      %s303 = smul.addr %s302, 7
      %s304 = smul.addr %s303, 4
      %s305 = scalar_lea.vmem %s8, %s304
      %v307 = vld [vmem:[%s300] sm:$0xff]
      %v308 = vld [vmem:[%s300 + $0x8] sm:$0xff]
      %v309 = vld [vmem:[%s300 + $0x10] sm:$0xff]
      %v310 = vld [vmem:[%s300 + $0x18] sm:$0xff]
      %v311 = vld [vmem:[%s300 + $0x20] sm:$0xff]
      %v312 = vld [vmem:[%s300 + $0x28] sm:$0xff]
      %v313 = vld [vmem:[%s300 + $0x30] sm:$0xff]
      %v314 = vld [vmem:[%s300 + $0x38] sm:$0xff]
      %v315 = vld [vmem:[%s300 + $0x40] sm:$0xff]
      %v316 = vld [vmem:[%s300 + $0x48] sm:$0xff]
      %v317 = vld [vmem:[%s300 + $0x50] sm:$0xff]
      %v318 = vld [vmem:[%s300 + $0x58] sm:$0xff]
      %v319 = vld [vmem:[%s300 + $0x60] sm:$0xff]
      %v320 = vld [vmem:[%s300 + $0x68] sm:$0xff]
      %v321 = vld [vmem:[%s300 + $0x70] sm:$0xff]
      %v322 = vld [vmem:[%s300 + $0x78] sm:$0xff]
      %v323 = vld [vmem:[%s300 + $0x80] sm:$0xff]
      %v324 = vld [vmem:[%s300 + $0x88] sm:$0xff]
      %v325 = vld [vmem:[%s300 + $0x90] sm:$0xff]
      %v326 = vld [vmem:[%s300 + $0x98] sm:$0xff]
      %v327 = vld [vmem:[%s300 + $0xa0] sm:$0xff]
      %v328 = vld [vmem:[%s300 + $0xa8] sm:$0xff]
      %v329 = vld [vmem:[%s300 + $0xb0] sm:$0xff]
      %v330 = vld [vmem:[%s300 + $0xb8] sm:$0xff]
      %v331 = vld [vmem:[%s300 + $0xc0] sm:$0xff]
      %v332 = vld [vmem:[%s300 + $0xc8] sm:$0xff]
      %v333 = vld [vmem:[%s300 + $0xd0] sm:$0xff]
      %v334 = vld [vmem:[%s300 + $0xd8] sm:$0xff]
      %v335 = vld [vmem:[%s300 + $0xe0] sm:$0xff]
      %v336 = vld [vmem:[%s300 + $0xe8] sm:$0xff]
      %v337 = vld [vmem:[%s300 + $0xf0] sm:$0xff]
      %v338 = vld [vmem:[%s300 + $0xf8] sm:$0xff]
      %v339 = vld [vmem:[%s300 + $0x100] sm:$0xff]
      %v340 = vld [vmem:[%s300 + $0x108] sm:$0xff]
      %v341 = vld [vmem:[%s300 + $0x110] sm:$0xff]
      %v342 = vld [vmem:[%s300 + $0x118] sm:$0xff]
      %v343 = vld [vmem:[%s300 + $0x120] sm:$0xff]
      %v344 = vld [vmem:[%s300 + $0x128] sm:$0xff]
      %v345 = vld [vmem:[%s300 + $0x130] sm:$0xff]
      %v346 = vld [vmem:[%s300 + $0x138] sm:$0xff]
      %v347 = vld [vmem:[%s300 + $0x140] sm:$0xff]
      %v348 = vld [vmem:[%s300 + $0x148] sm:$0xff]
      %v349 = vld [vmem:[%s300 + $0x150] sm:$0xff]
      %v350 = vld [vmem:[%s300 + $0x158] sm:$0xff]
      %v351 = vld [vmem:[%s300 + $0x160] sm:$0xff]
      %v352 = vld [vmem:[%s300 + $0x168] sm:$0xff]
      %v353 = vld [vmem:[%s300 + $0x170] sm:$0xff]
      %v354 = vld [vmem:[%s300 + $0x178] sm:$0xff]
      %v355 = vld [vmem:[%s300 + $0x180] sm:$0xff]
      %v356 = vld [vmem:[%s300 + $0x188] sm:$0xff]
      %v357 = vld [vmem:[%s300 + $0x190] sm:$0xff]
      %v358 = vld [vmem:[%s300 + $0x198] sm:$0xff]
      %v359 = vld [vmem:[%s300 + $0x1a0] sm:$0xff]
      %v360 = vld [vmem:[%s300 + $0x1a8] sm:$0xff]
      %v361 = vld [vmem:[%s300 + $0x1b0] sm:$0xff]
      %v362 = vld [vmem:[%s300 + $0x1b8] sm:$0xff]
      %v363 = vld [vmem:[%s300 + $0x1c0] sm:$0xff]
      %v364 = vld [vmem:[%s300 + $0x1c8] sm:$0xff]
      %v365 = vld [vmem:[%s300 + $0x1d0] sm:$0xff]
      %v366 = vld [vmem:[%s300 + $0x1d8] sm:$0xff]
      %v367 = vld [vmem:[%s300 + $0x1e0] sm:$0xff]
      %v368 = vld [vmem:[%s300 + $0x1e8] sm:$0xff]
      %v369 = vld [vmem:[%s300 + $0x1f0] sm:$0xff]
      %v370 = vld [vmem:[%s300 + $0x1f8] sm:$0xff]
      %v371 = vld [vmem:[%s300 + $0x200] sm:$0xff]
      %v372 = vld [vmem:[%s300 + $0x208] sm:$0xff]
      %v373 = vld [vmem:[%s300 + $0x210] sm:$0xff]
      %v374 = vld [vmem:[%s300 + $0x218] sm:$0xff]
      %v375 = vld [vmem:[%s300 + $0x220] sm:$0xff]
      %v376 = vld [vmem:[%s300 + $0x228] sm:$0xff]
      %v377 = vld [vmem:[%s300 + $0x230] sm:$0xff]
      %v378 = vld [vmem:[%s300 + $0x238] sm:$0xff]
      %v379 = vld [vmem:[%s300 + $0x240] sm:$0xff]
      %v380 = vld [vmem:[%s300 + $0x248] sm:$0xff]
      %v381 = vld [vmem:[%s300 + $0x250] sm:$0xff]
      %v382 = vld [vmem:[%s300 + $0x258] sm:$0xff]
      %v383 = vld [vmem:[%s300 + $0x260] sm:$0xff]
      %v384 = vld [vmem:[%s300 + $0x268] sm:$0xff]
      %v385 = vld [vmem:[%s300 + $0x270] sm:$0xff]
      %v386 = vld [vmem:[%s300 + $0x278] sm:$0xff]
      %v387 = vld [vmem:[%s300 + $0x280] sm:$0xff]
      %v388 = vld [vmem:[%s300 + $0x288] sm:$0xff]
      %v389 = vld [vmem:[%s300 + $0x290] sm:$0xff]
      %v390 = vld [vmem:[%s300 + $0x298] sm:$0xff]
      %v391 = vld [vmem:[%s300 + $0x2a0] sm:$0xff]
      %v392 = vld [vmem:[%s300 + $0x2a8] sm:$0xff]
      %v393 = vld [vmem:[%s300 + $0x2b0] sm:$0xff]
      %v394 = vld [vmem:[%s300 + $0x2b8] sm:$0xff]
      %v395 = vld [vmem:[%s300 + $0x2c0] sm:$0xff]
      %v396 = vld [vmem:[%s300 + $0x2c8] sm:$0xff]
      %v397 = vld [vmem:[%s300 + $0x2d0] sm:$0xff]
      %v398 = vld [vmem:[%s300 + $0x2d8] sm:$0xff]
      %v399 = vld [vmem:[%s300 + $0x2e0] sm:$0xff]
      %v400 = vld [vmem:[%s300 + $0x2e8] sm:$0xff]
      %v401 = vld [vmem:[%s300 + $0x2f0] sm:$0xff]
      %v402 = vld [vmem:[%s300 + $0x2f8] sm:$0xff]
      %v403 = vld [vmem:[%s300 + $0x300] sm:$0xff]
      %v404 = vld [vmem:[%s300 + $0x308] sm:$0xff]
      %v405 = vld [vmem:[%s300 + $0x310] sm:$0xff]
      %v406 = vld [vmem:[%s300 + $0x318] sm:$0xff]
      %v407 = vld [vmem:[%s300 + $0x320] sm:$0xff]
      %v408 = vld [vmem:[%s300 + $0x328] sm:$0xff]
      %v409 = vld [vmem:[%s300 + $0x330] sm:$0xff]
      %v410 = vld [vmem:[%s300 + $0x338] sm:$0xff]
      %v411 = vld [vmem:[%s300 + $0x340] sm:$0xff]
      %v412 = vld [vmem:[%s300 + $0x348] sm:$0xff]
      %v413 = vld [vmem:[%s300 + $0x350] sm:$0xff]
      %v414 = vld [vmem:[%s300 + $0x358] sm:$0xff]
      %v415 = vld [vmem:[%s300 + $0x360] sm:$0xff]
      %v416 = vld [vmem:[%s300 + $0x368] sm:$0xff]
      %v417 = vld [vmem:[%s300 + $0x370] sm:$0xff]
      %v418 = vld [vmem:[%s300 + $0x378] sm:$0xff]
      %v419 = vld [vmem:[%s300 + $0x380] sm:$0xff]
      %v420 = vld [vmem:[%s300 + $0x388] sm:$0xff]
      %v421 = vld [vmem:[%s300 + $0x390] sm:$0xff]
      %v422 = vld [vmem:[%s300 + $0x398] sm:$0xff]
      %v423 = vld [vmem:[%s300 + $0x3a0] sm:$0x3]
      %v424 = vld [vmem:[%s2] sm:$0x1]
      %426 = vset.pattern.permute.xlu0 0
      %427 = vperm.xlu0 %426, %v307
      %v428 = vpop.permute.xlu0 %427
      %431 = vset.pattern.permute.xlu0 0
      %432 = vperm.xlu0 %431, %v308
      %v433 = vpop.permute.xlu0 %432
      %436 = vset.pattern.permute.xlu0 0
      %437 = vperm.xlu0 %436, %v309
      %v438 = vpop.permute.xlu0 %437
      %441 = vset.pattern.permute.xlu0 0
      %442 = vperm.xlu0 %441, %v310
      %v443 = vpop.permute.xlu0 %442
      %446 = vset.pattern.permute.xlu0 0
      %447 = vperm.xlu0 %446, %v311
      %v448 = vpop.permute.xlu0 %447
      %451 = vset.pattern.permute.xlu0 0
      %452 = vperm.xlu0 %451, %v312
      %v453 = vpop.permute.xlu0 %452
      %456 = vset.pattern.permute.xlu0 0
      %457 = vperm.xlu0 %456, %v313
      %v458 = vpop.permute.xlu0 %457
      %461 = vset.pattern.permute.xlu0 0
      %462 = vperm.xlu0 %461, %v314
      %v463 = vpop.permute.xlu0 %462
      %466 = vset.pattern.permute.xlu0 0
      %467 = vperm.xlu0 %466, %v315
      %v468 = vpop.permute.xlu0 %467
      %471 = vset.pattern.permute.xlu0 0
      %472 = vperm.xlu0 %471, %v316
      %v473 = vpop.permute.xlu0 %472
      %476 = vset.pattern.permute.xlu0 0
      %477 = vperm.xlu0 %476, %v317
      %v478 = vpop.permute.xlu0 %477
      %481 = vset.pattern.permute.xlu0 0
      %482 = vperm.xlu0 %481, %v318
      %v483 = vpop.permute.xlu0 %482
      %486 = vset.pattern.permute.xlu0 0
      %487 = vperm.xlu0 %486, %v319
      %v488 = vpop.permute.xlu0 %487
      %491 = vset.pattern.permute.xlu0 0
      %492 = vperm.xlu0 %491, %v320
      %v493 = vpop.permute.xlu0 %492
      %496 = vset.pattern.permute.xlu0 0
      %497 = vperm.xlu0 %496, %v321
      %v498 = vpop.permute.xlu0 %497
      %501 = vset.pattern.permute.xlu0 0
      %502 = vperm.xlu0 %501, %v322
      %v503 = vpop.permute.xlu0 %502
      %506 = vset.pattern.permute.xlu0 0
      %507 = vperm.xlu0 %506, %v323
      %v508 = vpop.permute.xlu0 %507
      %511 = vset.pattern.permute.xlu0 0
      %512 = vperm.xlu0 %511, %v324
      %v513 = vpop.permute.xlu0 %512
      %516 = vset.pattern.permute.xlu0 0
      %517 = vperm.xlu0 %516, %v325
      %v518 = vpop.permute.xlu0 %517
      %521 = vset.pattern.permute.xlu0 0
      %522 = vperm.xlu0 %521, %v326
      %v523 = vpop.permute.xlu0 %522
      %526 = vset.pattern.permute.xlu0 0
      %527 = vperm.xlu0 %526, %v327
      %v528 = vpop.permute.xlu0 %527
      %531 = vset.pattern.permute.xlu0 0
      %532 = vperm.xlu0 %531, %v328
      %v533 = vpop.permute.xlu0 %532
      %536 = vset.pattern.permute.xlu0 0
      %537 = vperm.xlu0 %536, %v329
      %v538 = vpop.permute.xlu0 %537
      %541 = vset.pattern.permute.xlu0 0
      %542 = vperm.xlu0 %541, %v330
      %v543 = vpop.permute.xlu0 %542
      %546 = vset.pattern.permute.xlu0 0
      %547 = vperm.xlu0 %546, %v331
      %v548 = vpop.permute.xlu0 %547
      %551 = vset.pattern.permute.xlu0 0
      %552 = vperm.xlu0 %551, %v332
      %v553 = vpop.permute.xlu0 %552
      %556 = vset.pattern.permute.xlu0 0
      %557 = vperm.xlu0 %556, %v333
      %v558 = vpop.permute.xlu0 %557
      %561 = vset.pattern.permute.xlu0 0
      %562 = vperm.xlu0 %561, %v334
      %v563 = vpop.permute.xlu0 %562
      %566 = vset.pattern.permute.xlu0 0
      %567 = vperm.xlu0 %566, %v335
      %v568 = vpop.permute.xlu0 %567
      %571 = vset.pattern.permute.xlu0 0
      %572 = vperm.xlu0 %571, %v336
      %v573 = vpop.permute.xlu0 %572
      %576 = vset.pattern.permute.xlu0 0
      %577 = vperm.xlu0 %576, %v337
      %v578 = vpop.permute.xlu0 %577
      %581 = vset.pattern.permute.xlu0 0
      %582 = vperm.xlu0 %581, %v338
      %v583 = vpop.permute.xlu0 %582
      %586 = vset.pattern.permute.xlu0 0
      %587 = vperm.xlu0 %586, %v339
      %v588 = vpop.permute.xlu0 %587
      %591 = vset.pattern.permute.xlu0 0
      %592 = vperm.xlu0 %591, %v340
      %v593 = vpop.permute.xlu0 %592
      %596 = vset.pattern.permute.xlu0 0
      %597 = vperm.xlu0 %596, %v341
      %v598 = vpop.permute.xlu0 %597
      %601 = vset.pattern.permute.xlu0 0
      %602 = vperm.xlu0 %601, %v342
      %v603 = vpop.permute.xlu0 %602
      %606 = vset.pattern.permute.xlu0 0
      %607 = vperm.xlu0 %606, %v343
      %v608 = vpop.permute.xlu0 %607
      %611 = vset.pattern.permute.xlu0 0
      %612 = vperm.xlu0 %611, %v344
      %v613 = vpop.permute.xlu0 %612
      %616 = vset.pattern.permute.xlu0 0
      %617 = vperm.xlu0 %616, %v345
      %v618 = vpop.permute.xlu0 %617
      %621 = vset.pattern.permute.xlu0 0
      %622 = vperm.xlu0 %621, %v346
      %v623 = vpop.permute.xlu0 %622
      %626 = vset.pattern.permute.xlu0 0
      %627 = vperm.xlu0 %626, %v347
      %v628 = vpop.permute.xlu0 %627
      %631 = vset.pattern.permute.xlu0 0
      %632 = vperm.xlu0 %631, %v348
      %v633 = vpop.permute.xlu0 %632
      %636 = vset.pattern.permute.xlu0 0
      %637 = vperm.xlu0 %636, %v349
      %v638 = vpop.permute.xlu0 %637
      %641 = vset.pattern.permute.xlu0 0
      %642 = vperm.xlu0 %641, %v350
      %v643 = vpop.permute.xlu0 %642
      %646 = vset.pattern.permute.xlu0 0
      %647 = vperm.xlu0 %646, %v351
      %v648 = vpop.permute.xlu0 %647
      %651 = vset.pattern.permute.xlu0 0
      %652 = vperm.xlu0 %651, %v352
      %v653 = vpop.permute.xlu0 %652
      %656 = vset.pattern.permute.xlu0 0
      %657 = vperm.xlu0 %656, %v353
      %v658 = vpop.permute.xlu0 %657
      %661 = vset.pattern.permute.xlu0 0
      %662 = vperm.xlu0 %661, %v354
      %v663 = vpop.permute.xlu0 %662
      %666 = vset.pattern.permute.xlu0 0
      %667 = vperm.xlu0 %666, %v355
      %v668 = vpop.permute.xlu0 %667
      %671 = vset.pattern.permute.xlu0 0
      %672 = vperm.xlu0 %671, %v356
      %v673 = vpop.permute.xlu0 %672
      %676 = vset.pattern.permute.xlu0 0
      %677 = vperm.xlu0 %676, %v357
      %v678 = vpop.permute.xlu0 %677
      %681 = vset.pattern.permute.xlu0 0
      %682 = vperm.xlu0 %681, %v358
      %v683 = vpop.permute.xlu0 %682
      %686 = vset.pattern.permute.xlu0 0
      %687 = vperm.xlu0 %686, %v359
      %v688 = vpop.permute.xlu0 %687
      %691 = vset.pattern.permute.xlu0 0
      %692 = vperm.xlu0 %691, %v360
      %v693 = vpop.permute.xlu0 %692
      %696 = vset.pattern.permute.xlu0 0
      %697 = vperm.xlu0 %696, %v361
      %v698 = vpop.permute.xlu0 %697
      %701 = vset.pattern.permute.xlu0 0
      %702 = vperm.xlu0 %701, %v362
      %v703 = vpop.permute.xlu0 %702
      %706 = vset.pattern.permute.xlu0 0
      %707 = vperm.xlu0 %706, %v363
      %v708 = vpop.permute.xlu0 %707
      %711 = vset.pattern.permute.xlu0 0
      %712 = vperm.xlu0 %711, %v364
      %v713 = vpop.permute.xlu0 %712
      %716 = vset.pattern.permute.xlu0 0
      %717 = vperm.xlu0 %716, %v365
      %v718 = vpop.permute.xlu0 %717
      %721 = vset.pattern.permute.xlu0 0
      %722 = vperm.xlu0 %721, %v366
      %v723 = vpop.permute.xlu0 %722
      %726 = vset.pattern.permute.xlu0 0
      %727 = vperm.xlu0 %726, %v367
      %v728 = vpop.permute.xlu0 %727
      %731 = vset.pattern.permute.xlu0 0
      %732 = vperm.xlu0 %731, %v368
      %v733 = vpop.permute.xlu0 %732
      %736 = vset.pattern.permute.xlu0 0
      %737 = vperm.xlu0 %736, %v369
      %v738 = vpop.permute.xlu0 %737
      %741 = vset.pattern.permute.xlu0 0
      %742 = vperm.xlu0 %741, %v370
      %v743 = vpop.permute.xlu0 %742
      %746 = vset.pattern.permute.xlu0 0
      %747 = vperm.xlu0 %746, %v371
      %v748 = vpop.permute.xlu0 %747
      %751 = vset.pattern.permute.xlu0 0
      %752 = vperm.xlu0 %751, %v372
      %v753 = vpop.permute.xlu0 %752
      %756 = vset.pattern.permute.xlu0 0
      %757 = vperm.xlu0 %756, %v373
      %v758 = vpop.permute.xlu0 %757
      %761 = vset.pattern.permute.xlu0 0
      %762 = vperm.xlu0 %761, %v374
      %v763 = vpop.permute.xlu0 %762
      %766 = vset.pattern.permute.xlu0 0
      %767 = vperm.xlu0 %766, %v375
      %v768 = vpop.permute.xlu0 %767
      %771 = vset.pattern.permute.xlu0 0
      %772 = vperm.xlu0 %771, %v376
      %v773 = vpop.permute.xlu0 %772
      %776 = vset.pattern.permute.xlu0 0
      %777 = vperm.xlu0 %776, %v377
      %v778 = vpop.permute.xlu0 %777
      %781 = vset.pattern.permute.xlu0 0
      %782 = vperm.xlu0 %781, %v378
      %v783 = vpop.permute.xlu0 %782
      %786 = vset.pattern.permute.xlu0 0
      %787 = vperm.xlu0 %786, %v379
      %v788 = vpop.permute.xlu0 %787
      %791 = vset.pattern.permute.xlu0 0
      %792 = vperm.xlu0 %791, %v380
      %v793 = vpop.permute.xlu0 %792
      %796 = vset.pattern.permute.xlu0 0
      %797 = vperm.xlu0 %796, %v381
      %v798 = vpop.permute.xlu0 %797
      %801 = vset.pattern.permute.xlu0 0
      %802 = vperm.xlu0 %801, %v382
      %v803 = vpop.permute.xlu0 %802
      %806 = vset.pattern.permute.xlu0 0
      %807 = vperm.xlu0 %806, %v383
      %v808 = vpop.permute.xlu0 %807
      %811 = vset.pattern.permute.xlu0 0
      %812 = vperm.xlu0 %811, %v384
      %v813 = vpop.permute.xlu0 %812
      %816 = vset.pattern.permute.xlu0 0
      %817 = vperm.xlu0 %816, %v385
      %v818 = vpop.permute.xlu0 %817
      %821 = vset.pattern.permute.xlu0 0
      %822 = vperm.xlu0 %821, %v386
      %v823 = vpop.permute.xlu0 %822
      %826 = vset.pattern.permute.xlu0 0
      %827 = vperm.xlu0 %826, %v387
      %v828 = vpop.permute.xlu0 %827
      %831 = vset.pattern.permute.xlu0 0
      %832 = vperm.xlu0 %831, %v388
      %v833 = vpop.permute.xlu0 %832
      %836 = vset.pattern.permute.xlu0 0
      %837 = vperm.xlu0 %836, %v389
      %v838 = vpop.permute.xlu0 %837
      %841 = vset.pattern.permute.xlu0 0
      %842 = vperm.xlu0 %841, %v390
      %v843 = vpop.permute.xlu0 %842
      %846 = vset.pattern.permute.xlu0 0
      %847 = vperm.xlu0 %846, %v391
      %v848 = vpop.permute.xlu0 %847
      %851 = vset.pattern.permute.xlu0 0
      %852 = vperm.xlu0 %851, %v392
      %v853 = vpop.permute.xlu0 %852
      %856 = vset.pattern.permute.xlu0 0
      %857 = vperm.xlu0 %856, %v393
      %v858 = vpop.permute.xlu0 %857
      %861 = vset.pattern.permute.xlu0 0
      %862 = vperm.xlu0 %861, %v394
      %v863 = vpop.permute.xlu0 %862
      %866 = vset.pattern.permute.xlu0 0
      %867 = vperm.xlu0 %866, %v395
      %v868 = vpop.permute.xlu0 %867
      %871 = vset.pattern.permute.xlu0 0
      %872 = vperm.xlu0 %871, %v396
      %v873 = vpop.permute.xlu0 %872
      %876 = vset.pattern.permute.xlu0 0
      %877 = vperm.xlu0 %876, %v397
      %v878 = vpop.permute.xlu0 %877
      %881 = vset.pattern.permute.xlu0 0
      %882 = vperm.xlu0 %881, %v398
      %v883 = vpop.permute.xlu0 %882
      %886 = vset.pattern.permute.xlu0 0
      %887 = vperm.xlu0 %886, %v399
      %v888 = vpop.permute.xlu0 %887
      %891 = vset.pattern.permute.xlu0 0
      %892 = vperm.xlu0 %891, %v400
      %v893 = vpop.permute.xlu0 %892
      %896 = vset.pattern.permute.xlu0 0
      %897 = vperm.xlu0 %896, %v401
      %v898 = vpop.permute.xlu0 %897
      %901 = vset.pattern.permute.xlu0 0
      %902 = vperm.xlu0 %901, %v402
      %v903 = vpop.permute.xlu0 %902
      %906 = vset.pattern.permute.xlu0 0
      %907 = vperm.xlu0 %906, %v403
      %v908 = vpop.permute.xlu0 %907
      %911 = vset.pattern.permute.xlu0 0
      %912 = vperm.xlu0 %911, %v404
      %v913 = vpop.permute.xlu0 %912
      %916 = vset.pattern.permute.xlu0 0
      %917 = vperm.xlu0 %916, %v405
      %v918 = vpop.permute.xlu0 %917
      %921 = vset.pattern.permute.xlu0 0
      %922 = vperm.xlu0 %921, %v406
      %v923 = vpop.permute.xlu0 %922
      %926 = vset.pattern.permute.xlu0 0
      %927 = vperm.xlu0 %926, %v407
      %v928 = vpop.permute.xlu0 %927
      %931 = vset.pattern.permute.xlu0 0
      %932 = vperm.xlu0 %931, %v408
      %v933 = vpop.permute.xlu0 %932
      %936 = vset.pattern.permute.xlu0 0
      %937 = vperm.xlu0 %936, %v409
      %v938 = vpop.permute.xlu0 %937
      %941 = vset.pattern.permute.xlu0 0
      %942 = vperm.xlu0 %941, %v410
      %v943 = vpop.permute.xlu0 %942
      %946 = vset.pattern.permute.xlu0 0
      %947 = vperm.xlu0 %946, %v411
      %v948 = vpop.permute.xlu0 %947
      %951 = vset.pattern.permute.xlu0 0
      %952 = vperm.xlu0 %951, %v412
      %v953 = vpop.permute.xlu0 %952
      %956 = vset.pattern.permute.xlu0 0
      %957 = vperm.xlu0 %956, %v413
      %v958 = vpop.permute.xlu0 %957
      %961 = vset.pattern.permute.xlu0 0
      %962 = vperm.xlu0 %961, %v414
      %v963 = vpop.permute.xlu0 %962
      %966 = vset.pattern.permute.xlu0 0
      %967 = vperm.xlu0 %966, %v415
      %v968 = vpop.permute.xlu0 %967
      %971 = vset.pattern.permute.xlu0 0
      %972 = vperm.xlu0 %971, %v416
      %v973 = vpop.permute.xlu0 %972
      %976 = vset.pattern.permute.xlu0 0
      %977 = vperm.xlu0 %976, %v417
      %v978 = vpop.permute.xlu0 %977
      %981 = vset.pattern.permute.xlu0 0
      %982 = vperm.xlu0 %981, %v418
      %v983 = vpop.permute.xlu0 %982
      %986 = vset.pattern.permute.xlu0 0
      %987 = vperm.xlu0 %986, %v419
      %v988 = vpop.permute.xlu0 %987
      %991 = vset.pattern.permute.xlu0 0
      %992 = vperm.xlu0 %991, %v420
      %v993 = vpop.permute.xlu0 %992
      %996 = vset.pattern.permute.xlu0 0
      %997 = vperm.xlu0 %996, %v421
      %v998 = vpop.permute.xlu0 %997
      %1001 = vset.pattern.permute.xlu0 0
      %1002 = vperm.xlu0 %1001, %v422
      %v1003 = vpop.permute.xlu0 %1002
      %1006 = vset.pattern.permute.xlu0 0
      %1007 = vperm.xlu0 %1006, %v423
      %v1008 = vpop.permute.xlu0 %1007
      %v1011 = vperm.slane %v424, 0
      %v1013 = vmul.f32 %v428, %v1011
      %v1014 = vmul.f32 %v433, %v1011
      %v1015 = vmul.f32 %v438, %v1011
      %v1016 = vmul.f32 %v443, %v1011
      %v1017 = vmul.f32 %v448, %v1011
      %v1018 = vmul.f32 %v453, %v1011
      %v1019 = vmul.f32 %v458, %v1011
      %v1020 = vmul.f32 %v463, %v1011
      %v1021 = vmul.f32 %v468, %v1011
      %v1022 = vmul.f32 %v473, %v1011
      %v1023 = vmul.f32 %v478, %v1011
      %v1024 = vmul.f32 %v483, %v1011
      %v1025 = vmul.f32 %v488, %v1011
      %v1026 = vmul.f32 %v493, %v1011
      %v1027 = vmul.f32 %v498, %v1011
      %v1028 = vmul.f32 %v503, %v1011
      %v1029 = vmul.f32 %v508, %v1011
      %v1030 = vmul.f32 %v513, %v1011
      %v1031 = vmul.f32 %v518, %v1011
      %v1032 = vmul.f32 %v523, %v1011
      %v1033 = vmul.f32 %v528, %v1011
      %v1034 = vmul.f32 %v533, %v1011
      %v1035 = vmul.f32 %v538, %v1011
      %v1036 = vmul.f32 %v543, %v1011
      %v1037 = vmul.f32 %v548, %v1011
      %v1038 = vmul.f32 %v553, %v1011
      %v1039 = vmul.f32 %v558, %v1011
      %v1040 = vmul.f32 %v563, %v1011
      %v1041 = vmul.f32 %v568, %v1011
      %v1042 = vmul.f32 %v573, %v1011
      %v1043 = vmul.f32 %v578, %v1011
      %v1044 = vmul.f32 %v583, %v1011
      %v1045 = vmul.f32 %v588, %v1011
      %v1046 = vmul.f32 %v593, %v1011
      %v1047 = vmul.f32 %v598, %v1011
      %v1048 = vmul.f32 %v603, %v1011
      %v1049 = vmul.f32 %v608, %v1011
      %v1050 = vmul.f32 %v613, %v1011
      %v1051 = vmul.f32 %v618, %v1011
      %v1052 = vmul.f32 %v623, %v1011
      %v1053 = vmul.f32 %v628, %v1011
      %v1054 = vmul.f32 %v633, %v1011
      %v1055 = vmul.f32 %v638, %v1011
      %v1056 = vmul.f32 %v643, %v1011
      %v1057 = vmul.f32 %v648, %v1011
      %v1058 = vmul.f32 %v653, %v1011
      %v1059 = vmul.f32 %v658, %v1011
      %v1060 = vmul.f32 %v663, %v1011
      %v1061 = vmul.f32 %v668, %v1011
      %v1062 = vmul.f32 %v673, %v1011
      %v1063 = vmul.f32 %v678, %v1011
      %v1064 = vmul.f32 %v683, %v1011
      %v1065 = vmul.f32 %v688, %v1011
      %v1066 = vmul.f32 %v693, %v1011
      %v1067 = vmul.f32 %v698, %v1011
      %v1068 = vmul.f32 %v703, %v1011
      %v1069 = vmul.f32 %v708, %v1011
      %v1070 = vmul.f32 %v713, %v1011
      %v1071 = vmul.f32 %v718, %v1011
      %v1072 = vmul.f32 %v723, %v1011
      %v1073 = vmul.f32 %v728, %v1011
      %v1074 = vmul.f32 %v733, %v1011
      %v1075 = vmul.f32 %v738, %v1011
      %v1076 = vmul.f32 %v743, %v1011
      %v1077 = vmul.f32 %v748, %v1011
      %v1078 = vmul.f32 %v753, %v1011
      %v1079 = vmul.f32 %v758, %v1011
      %v1080 = vmul.f32 %v763, %v1011
      %v1081 = vmul.f32 %v768, %v1011
      %v1082 = vmul.f32 %v773, %v1011
      %v1083 = vmul.f32 %v778, %v1011
      %v1084 = vmul.f32 %v783, %v1011
      %v1085 = vmul.f32 %v788, %v1011
      %v1086 = vmul.f32 %v793, %v1011
      %v1087 = vmul.f32 %v798, %v1011
      %v1088 = vmul.f32 %v803, %v1011
      %v1089 = vmul.f32 %v808, %v1011
      %v1090 = vmul.f32 %v813, %v1011
      %v1091 = vmul.f32 %v818, %v1011
      %v1092 = vmul.f32 %v823, %v1011
      %v1093 = vmul.f32 %v828, %v1011
      %v1094 = vmul.f32 %v833, %v1011
      %v1095 = vmul.f32 %v838, %v1011
      %v1096 = vmul.f32 %v843, %v1011
      %v1097 = vmul.f32 %v848, %v1011
      %v1098 = vmul.f32 %v853, %v1011
      %v1099 = vmul.f32 %v858, %v1011
      %v1100 = vmul.f32 %v863, %v1011
      %v1101 = vmul.f32 %v868, %v1011
      %v1102 = vmul.f32 %v873, %v1011
      %v1103 = vmul.f32 %v878, %v1011
      %v1104 = vmul.f32 %v883, %v1011
      %v1105 = vmul.f32 %v888, %v1011
      %v1106 = vmul.f32 %v893, %v1011
      %v1107 = vmul.f32 %v898, %v1011
      %v1108 = vmul.f32 %v903, %v1011
      %v1109 = vmul.f32 %v908, %v1011
      %v1110 = vmul.f32 %v913, %v1011
      %v1111 = vmul.f32 %v918, %v1011
      %v1112 = vmul.f32 %v923, %v1011
      %v1113 = vmul.f32 %v928, %v1011
      %v1114 = vmul.f32 %v933, %v1011
      %v1115 = vmul.f32 %v938, %v1011
      %v1116 = vmul.f32 %v943, %v1011
      %v1117 = vmul.f32 %v948, %v1011
      %v1118 = vmul.f32 %v953, %v1011
      %v1119 = vmul.f32 %v958, %v1011
      %v1120 = vmul.f32 %v963, %v1011
      %v1121 = vmul.f32 %v968, %v1011
      %v1122 = vmul.f32 %v973, %v1011
      %v1123 = vmul.f32 %v978, %v1011
      %v1124 = vmul.f32 %v983, %v1011
      %v1125 = vmul.f32 %v988, %v1011
      %v1126 = vmul.f32 %v993, %v1011
      %v1127 = vmul.f32 %v998, %v1011
      %v1128 = vmul.f32 %v1003, %v1011
      %v1129 = vmul.f32 %v1008, %v1011
      %v1130 = vld [vmem:[%s3] sm:$0x1]
      %v1132 = vperm.slane %v1130, 0
      %v1134 = vadd.f32 %v1013, %v1132
      %v1135 = vadd.f32 %v1014, %v1132
      %v1136 = vadd.f32 %v1015, %v1132
      %v1137 = vadd.f32 %v1016, %v1132
      %v1138 = vadd.f32 %v1017, %v1132
      %v1139 = vadd.f32 %v1018, %v1132
      %v1140 = vadd.f32 %v1019, %v1132
      %v1141 = vadd.f32 %v1020, %v1132
      %v1142 = vadd.f32 %v1021, %v1132
      %v1143 = vadd.f32 %v1022, %v1132
      %v1144 = vadd.f32 %v1023, %v1132
      %v1145 = vadd.f32 %v1024, %v1132
      %v1146 = vadd.f32 %v1025, %v1132
      %v1147 = vadd.f32 %v1026, %v1132
      %v1148 = vadd.f32 %v1027, %v1132
      %v1149 = vadd.f32 %v1028, %v1132
      %v1150 = vadd.f32 %v1029, %v1132
      %v1151 = vadd.f32 %v1030, %v1132
      %v1152 = vadd.f32 %v1031, %v1132
      %v1153 = vadd.f32 %v1032, %v1132
      %v1154 = vadd.f32 %v1033, %v1132
      %v1155 = vadd.f32 %v1034, %v1132
      %v1156 = vadd.f32 %v1035, %v1132
      %v1157 = vadd.f32 %v1036, %v1132
      %v1158 = vadd.f32 %v1037, %v1132
      %v1159 = vadd.f32 %v1038, %v1132
      %v1160 = vadd.f32 %v1039, %v1132
      %v1161 = vadd.f32 %v1040, %v1132
      %v1162 = vadd.f32 %v1041, %v1132
      %v1163 = vadd.f32 %v1042, %v1132
      %v1164 = vadd.f32 %v1043, %v1132
      %v1165 = vadd.f32 %v1044, %v1132
      %v1166 = vadd.f32 %v1045, %v1132
      %v1167 = vadd.f32 %v1046, %v1132
      %v1168 = vadd.f32 %v1047, %v1132
      %v1169 = vadd.f32 %v1048, %v1132
      %v1170 = vadd.f32 %v1049, %v1132
      %v1171 = vadd.f32 %v1050, %v1132
      %v1172 = vadd.f32 %v1051, %v1132
      %v1173 = vadd.f32 %v1052, %v1132
      %v1174 = vadd.f32 %v1053, %v1132
      %v1175 = vadd.f32 %v1054, %v1132
      %v1176 = vadd.f32 %v1055, %v1132
      %v1177 = vadd.f32 %v1056, %v1132
      %v1178 = vadd.f32 %v1057, %v1132
      %v1179 = vadd.f32 %v1058, %v1132
      %v1180 = vadd.f32 %v1059, %v1132
      %v1181 = vadd.f32 %v1060, %v1132
      %v1182 = vadd.f32 %v1061, %v1132
      %v1183 = vadd.f32 %v1062, %v1132
      %v1184 = vadd.f32 %v1063, %v1132
      %v1185 = vadd.f32 %v1064, %v1132
      %v1186 = vadd.f32 %v1065, %v1132
      %v1187 = vadd.f32 %v1066, %v1132
      %v1188 = vadd.f32 %v1067, %v1132
      %v1189 = vadd.f32 %v1068, %v1132
      %v1190 = vadd.f32 %v1069, %v1132
      %v1191 = vadd.f32 %v1070, %v1132
      %v1192 = vadd.f32 %v1071, %v1132
      %v1193 = vadd.f32 %v1072, %v1132
      %v1194 = vadd.f32 %v1073, %v1132
      %v1195 = vadd.f32 %v1074, %v1132
      %v1196 = vadd.f32 %v1075, %v1132
      %v1197 = vadd.f32 %v1076, %v1132
      %v1198 = vadd.f32 %v1077, %v1132
      %v1199 = vadd.f32 %v1078, %v1132
      %v1200 = vadd.f32 %v1079, %v1132
      %v1201 = vadd.f32 %v1080, %v1132
      %v1202 = vadd.f32 %v1081, %v1132
      %v1203 = vadd.f32 %v1082, %v1132
      %v1204 = vadd.f32 %v1083, %v1132
      %v1205 = vadd.f32 %v1084, %v1132
      %v1206 = vadd.f32 %v1085, %v1132
      %v1207 = vadd.f32 %v1086, %v1132
      %v1208 = vadd.f32 %v1087, %v1132
      %v1209 = vadd.f32 %v1088, %v1132
      %v1210 = vadd.f32 %v1089, %v1132
      %v1211 = vadd.f32 %v1090, %v1132
      %v1212 = vadd.f32 %v1091, %v1132
      %v1213 = vadd.f32 %v1092, %v1132
      %v1214 = vadd.f32 %v1093, %v1132
      %v1215 = vadd.f32 %v1094, %v1132
      %v1216 = vadd.f32 %v1095, %v1132
      %v1217 = vadd.f32 %v1096, %v1132
      %v1218 = vadd.f32 %v1097, %v1132
      %v1219 = vadd.f32 %v1098, %v1132
      %v1220 = vadd.f32 %v1099, %v1132
      %v1221 = vadd.f32 %v1100, %v1132
      %v1222 = vadd.f32 %v1101, %v1132
      %v1223 = vadd.f32 %v1102, %v1132
      %v1224 = vadd.f32 %v1103, %v1132
      %v1225 = vadd.f32 %v1104, %v1132
      %v1226 = vadd.f32 %v1105, %v1132
      %v1227 = vadd.f32 %v1106, %v1132
      %v1228 = vadd.f32 %v1107, %v1132
      %v1229 = vadd.f32 %v1108, %v1132
      %v1230 = vadd.f32 %v1109, %v1132
      %v1231 = vadd.f32 %v1110, %v1132
      %v1232 = vadd.f32 %v1111, %v1132
      %v1233 = vadd.f32 %v1112, %v1132
      %v1234 = vadd.f32 %v1113, %v1132
      %v1235 = vadd.f32 %v1114, %v1132
      %v1236 = vadd.f32 %v1115, %v1132
      %v1237 = vadd.f32 %v1116, %v1132
      %v1238 = vadd.f32 %v1117, %v1132
      %v1239 = vadd.f32 %v1118, %v1132
      %v1240 = vadd.f32 %v1119, %v1132
      %v1241 = vadd.f32 %v1120, %v1132
      %v1242 = vadd.f32 %v1121, %v1132
      %v1243 = vadd.f32 %v1122, %v1132
      %v1244 = vadd.f32 %v1123, %v1132
      %v1245 = vadd.f32 %v1124, %v1132
      %v1246 = vadd.f32 %v1125, %v1132
      %v1247 = vadd.f32 %v1126, %v1132
      %v1248 = vadd.f32 %v1127, %v1132
      %v1249 = vadd.f32 %v1128, %v1132
      %v1250 = vadd.f32 %v1129, %v1132
      %v1251 = vmax.f32 %v1134, 0.0
      %v1252 = vmax.f32 %v1135, 0.0
      %v1253 = vmax.f32 %v1136, 0.0
      %v1254 = vmax.f32 %v1137, 0.0
      %v1255 = vmax.f32 %v1138, 0.0
      %v1256 = vmax.f32 %v1139, 0.0
      %v1257 = vmax.f32 %v1140, 0.0
      %v1258 = vmax.f32 %v1141, 0.0
      %v1259 = vmax.f32 %v1142, 0.0
      %v1260 = vmax.f32 %v1143, 0.0
      %v1261 = vmax.f32 %v1144, 0.0
      %v1262 = vmax.f32 %v1145, 0.0
      %v1263 = vmax.f32 %v1146, 0.0
      %v1264 = vmax.f32 %v1147, 0.0
      %v1265 = vmax.f32 %v1148, 0.0
      %v1266 = vmax.f32 %v1149, 0.0
      %v1267 = vmax.f32 %v1150, 0.0
      %v1268 = vmax.f32 %v1151, 0.0
      %v1269 = vmax.f32 %v1152, 0.0
      %v1270 = vmax.f32 %v1153, 0.0
      %v1271 = vmax.f32 %v1154, 0.0
      %v1272 = vmax.f32 %v1155, 0.0
      %v1273 = vmax.f32 %v1156, 0.0
      %v1274 = vmax.f32 %v1157, 0.0
      %v1275 = vmax.f32 %v1158, 0.0
      %v1276 = vmax.f32 %v1159, 0.0
      %v1277 = vmax.f32 %v1160, 0.0
      %v1278 = vmax.f32 %v1161, 0.0
      %v1279 = vmax.f32 %v1162, 0.0
      %v1280 = vmax.f32 %v1163, 0.0
      %v1281 = vmax.f32 %v1164, 0.0
      %v1282 = vmax.f32 %v1165, 0.0
      %v1283 = vmax.f32 %v1166, 0.0
      %v1284 = vmax.f32 %v1167, 0.0
      %v1285 = vmax.f32 %v1168, 0.0
      %v1286 = vmax.f32 %v1169, 0.0
      %v1287 = vmax.f32 %v1170, 0.0
      %v1288 = vmax.f32 %v1171, 0.0
      %v1289 = vmax.f32 %v1172, 0.0
      %v1290 = vmax.f32 %v1173, 0.0
      %v1291 = vmax.f32 %v1174, 0.0
      %v1292 = vmax.f32 %v1175, 0.0
      %v1293 = vmax.f32 %v1176, 0.0
      %v1294 = vmax.f32 %v1177, 0.0
      %v1295 = vmax.f32 %v1178, 0.0
      %v1296 = vmax.f32 %v1179, 0.0
      %v1297 = vmax.f32 %v1180, 0.0
      %v1298 = vmax.f32 %v1181, 0.0
      %v1299 = vmax.f32 %v1182, 0.0
      %v1300 = vmax.f32 %v1183, 0.0
      %v1301 = vmax.f32 %v1184, 0.0
      %v1302 = vmax.f32 %v1185, 0.0
      %v1303 = vmax.f32 %v1186, 0.0
      %v1304 = vmax.f32 %v1187, 0.0
      %v1305 = vmax.f32 %v1188, 0.0
      %v1306 = vmax.f32 %v1189, 0.0
      %v1307 = vmax.f32 %v1190, 0.0
      %v1308 = vmax.f32 %v1191, 0.0
      %v1309 = vmax.f32 %v1192, 0.0
      %v1310 = vmax.f32 %v1193, 0.0
      %v1311 = vmax.f32 %v1194, 0.0
      %v1312 = vmax.f32 %v1195, 0.0
      %v1313 = vmax.f32 %v1196, 0.0
      %v1314 = vmax.f32 %v1197, 0.0
      %v1315 = vmax.f32 %v1198, 0.0
      %v1316 = vmax.f32 %v1199, 0.0
      %v1317 = vmax.f32 %v1200, 0.0
      %v1318 = vmax.f32 %v1201, 0.0
      %v1319 = vmax.f32 %v1202, 0.0
      %v1320 = vmax.f32 %v1203, 0.0
      %v1321 = vmax.f32 %v1204, 0.0
      %v1322 = vmax.f32 %v1205, 0.0
      %v1323 = vmax.f32 %v1206, 0.0
      %v1324 = vmax.f32 %v1207, 0.0
      %v1325 = vmax.f32 %v1208, 0.0
      %v1326 = vmax.f32 %v1209, 0.0
      %v1327 = vmax.f32 %v1210, 0.0
      %v1328 = vmax.f32 %v1211, 0.0
      %v1329 = vmax.f32 %v1212, 0.0
      %v1330 = vmax.f32 %v1213, 0.0
      %v1331 = vmax.f32 %v1214, 0.0
      %v1332 = vmax.f32 %v1215, 0.0
      %v1333 = vmax.f32 %v1216, 0.0
      %v1334 = vmax.f32 %v1217, 0.0
      %v1335 = vmax.f32 %v1218, 0.0
      %v1336 = vmax.f32 %v1219, 0.0
      %v1337 = vmax.f32 %v1220, 0.0
      %v1338 = vmax.f32 %v1221, 0.0
      %v1339 = vmax.f32 %v1222, 0.0
      %v1340 = vmax.f32 %v1223, 0.0
      %v1341 = vmax.f32 %v1224, 0.0
      %v1342 = vmax.f32 %v1225, 0.0
      %v1343 = vmax.f32 %v1226, 0.0
      %v1344 = vmax.f32 %v1227, 0.0
      %v1345 = vmax.f32 %v1228, 0.0
      %v1346 = vmax.f32 %v1229, 0.0
      %v1347 = vmax.f32 %v1230, 0.0
      %v1348 = vmax.f32 %v1231, 0.0
      %v1349 = vmax.f32 %v1232, 0.0
      %v1350 = vmax.f32 %v1233, 0.0
      %v1351 = vmax.f32 %v1234, 0.0
      %v1352 = vmax.f32 %v1235, 0.0
      %v1353 = vmax.f32 %v1236, 0.0
      %v1354 = vmax.f32 %v1237, 0.0
      %v1355 = vmax.f32 %v1238, 0.0
      %v1356 = vmax.f32 %v1239, 0.0
      %v1357 = vmax.f32 %v1240, 0.0
      %v1358 = vmax.f32 %v1241, 0.0
      %v1359 = vmax.f32 %v1242, 0.0
      %v1360 = vmax.f32 %v1243, 0.0
      %v1361 = vmax.f32 %v1244, 0.0
      %v1362 = vmax.f32 %v1245, 0.0
      %v1363 = vmax.f32 %v1246, 0.0
      %v1364 = vmax.f32 %v1247, 0.0
      %v1365 = vmax.f32 %v1248, 0.0
      %v1366 = vmax.f32 %v1249, 0.0
      %v1367 = vmax.f32 %v1250, 0.0
      %v1368 = vld [vmem:[%s1] sm:$0xff]
      %v1369 = vld [vmem:[%s1 + $0x8] sm:$0xff]
      %v1370 = vld [vmem:[%s1 + $0x10] sm:$0xff]
      %v1371 = vld [vmem:[%s1 + $0x18] sm:$0xff]
      %v1372 = vld [vmem:[%s1 + $0x20] sm:$0xff]
      %v1373 = vld [vmem:[%s1 + $0x28] sm:$0xff]
      %v1374 = vld [vmem:[%s1 + $0x30] sm:$0xff]
      %v1375 = vld [vmem:[%s1 + $0x38] sm:$0xff]
      %v1376 = vld [vmem:[%s1 + $0x40] sm:$0xff]
      %v1377 = vld [vmem:[%s1 + $0x48] sm:$0xff]
      %v1378 = vld [vmem:[%s1 + $0x50] sm:$0xff]
      %v1379 = vld [vmem:[%s1 + $0x58] sm:$0xff]
      %v1380 = vld [vmem:[%s1 + $0x60] sm:$0xff]
      %v1381 = vld [vmem:[%s1 + $0x68] sm:$0xff]
      %v1382 = vld [vmem:[%s1 + $0x70] sm:$0xff]
      %v1383 = vld [vmem:[%s1 + $0x78] sm:$0xff]
      %v1384 = vld [vmem:[%s1 + $0x80] sm:$0xff]
      %v1385 = vld [vmem:[%s1 + $0x88] sm:$0xff]
      %v1386 = vld [vmem:[%s1 + $0x90] sm:$0xff]
      %v1387 = vld [vmem:[%s1 + $0x98] sm:$0xff]
      %v1388 = vld [vmem:[%s1 + $0xa0] sm:$0xff]
      %v1389 = vld [vmem:[%s1 + $0xa8] sm:$0xff]
      %v1390 = vld [vmem:[%s1 + $0xb0] sm:$0xff]
      %v1391 = vld [vmem:[%s1 + $0xb8] sm:$0xff]
      %v1392 = vld [vmem:[%s1 + $0xc0] sm:$0xff]
      %v1393 = vld [vmem:[%s1 + $0xc8] sm:$0xff]
      %v1394 = vld [vmem:[%s1 + $0xd0] sm:$0xff]
      %v1395 = vld [vmem:[%s1 + $0xd8] sm:$0xff]
      %v1396 = vld [vmem:[%s1 + $0xe0] sm:$0xff]
      %v1397 = vld [vmem:[%s1 + $0xe8] sm:$0xff]
      %v1398 = vld [vmem:[%s1 + $0xf0] sm:$0xff]
      %v1399 = vld [vmem:[%s1 + $0xf8] sm:$0xff]
      %v1400 = vld [vmem:[%s1 + $0x100] sm:$0xff]
      %v1401 = vld [vmem:[%s1 + $0x108] sm:$0xff]
      %v1402 = vld [vmem:[%s1 + $0x110] sm:$0xff]
      %v1403 = vld [vmem:[%s1 + $0x118] sm:$0xff]
      %v1404 = vld [vmem:[%s1 + $0x120] sm:$0xff]
      %v1405 = vld [vmem:[%s1 + $0x128] sm:$0xff]
      %v1406 = vld [vmem:[%s1 + $0x130] sm:$0xff]
      %v1407 = vld [vmem:[%s1 + $0x138] sm:$0xff]
      %v1408 = vld [vmem:[%s1 + $0x140] sm:$0xff]
      %v1409 = vld [vmem:[%s1 + $0x148] sm:$0xff]
      %v1410 = vld [vmem:[%s1 + $0x150] sm:$0xff]
      %v1411 = vld [vmem:[%s1 + $0x158] sm:$0xff]
      %v1412 = vld [vmem:[%s1 + $0x160] sm:$0xff]
      %v1413 = vld [vmem:[%s1 + $0x168] sm:$0xff]
      %v1414 = vld [vmem:[%s1 + $0x170] sm:$0xff]
      %v1415 = vld [vmem:[%s1 + $0x178] sm:$0xff]
      %v1416 = vld [vmem:[%s1 + $0x180] sm:$0xff]
      %v1417 = vld [vmem:[%s1 + $0x188] sm:$0xff]
      %v1418 = vld [vmem:[%s1 + $0x190] sm:$0xff]
      %v1419 = vld [vmem:[%s1 + $0x198] sm:$0xff]
      %v1420 = vld [vmem:[%s1 + $0x1a0] sm:$0xff]
      %v1421 = vld [vmem:[%s1 + $0x1a8] sm:$0xff]
      %v1422 = vld [vmem:[%s1 + $0x1b0] sm:$0xff]
      %v1423 = vld [vmem:[%s1 + $0x1b8] sm:$0xff]
      %v1424 = vld [vmem:[%s1 + $0x1c0] sm:$0xff]
      %v1425 = vld [vmem:[%s1 + $0x1c8] sm:$0xff]
      %v1426 = vld [vmem:[%s1 + $0x1d0] sm:$0xff]
      %v1427 = vld [vmem:[%s1 + $0x1d8] sm:$0xff]
      %v1428 = vld [vmem:[%s1 + $0x1e0] sm:$0xff]
      %v1429 = vld [vmem:[%s1 + $0x1e8] sm:$0xff]
      %v1430 = vld [vmem:[%s1 + $0x1f0] sm:$0xff]
      %v1431 = vld [vmem:[%s1 + $0x1f8] sm:$0xff]
      %v1432 = vld [vmem:[%s1 + $0x200] sm:$0xff]
      %v1433 = vld [vmem:[%s1 + $0x208] sm:$0xff]
      %v1434 = vld [vmem:[%s1 + $0x210] sm:$0xff]
      %v1435 = vld [vmem:[%s1 + $0x218] sm:$0xff]
      %v1436 = vld [vmem:[%s1 + $0x220] sm:$0xff]
      %v1437 = vld [vmem:[%s1 + $0x228] sm:$0xff]
      %v1438 = vld [vmem:[%s1 + $0x230] sm:$0xff]
      %v1439 = vld [vmem:[%s1 + $0x238] sm:$0xff]
      %v1440 = vld [vmem:[%s1 + $0x240] sm:$0xff]
      %v1441 = vld [vmem:[%s1 + $0x248] sm:$0xff]
      %v1442 = vld [vmem:[%s1 + $0x250] sm:$0xff]
      %v1443 = vld [vmem:[%s1 + $0x258] sm:$0xff]
      %v1444 = vld [vmem:[%s1 + $0x260] sm:$0xff]
      %v1445 = vld [vmem:[%s1 + $0x268] sm:$0xff]
      %v1446 = vld [vmem:[%s1 + $0x270] sm:$0xff]
      %v1447 = vld [vmem:[%s1 + $0x278] sm:$0xff]
      %v1448 = vld [vmem:[%s1 + $0x280] sm:$0xff]
      %v1449 = vld [vmem:[%s1 + $0x288] sm:$0xff]
      %v1450 = vld [vmem:[%s1 + $0x290] sm:$0xff]
      %v1451 = vld [vmem:[%s1 + $0x298] sm:$0xff]
      %v1452 = vld [vmem:[%s1 + $0x2a0] sm:$0xff]
      %v1453 = vld [vmem:[%s1 + $0x2a8] sm:$0xff]
      %v1454 = vld [vmem:[%s1 + $0x2b0] sm:$0xff]
      %v1455 = vld [vmem:[%s1 + $0x2b8] sm:$0xff]
      %v1456 = vld [vmem:[%s1 + $0x2c0] sm:$0xff]
      %v1457 = vld [vmem:[%s1 + $0x2c8] sm:$0xff]
      %v1458 = vld [vmem:[%s1 + $0x2d0] sm:$0xff]
      %v1459 = vld [vmem:[%s1 + $0x2d8] sm:$0xff]
      %v1460 = vld [vmem:[%s1 + $0x2e0] sm:$0xff]
      %v1461 = vld [vmem:[%s1 + $0x2e8] sm:$0xff]
      %v1462 = vld [vmem:[%s1 + $0x2f0] sm:$0xff]
      %v1463 = vld [vmem:[%s1 + $0x2f8] sm:$0xff]
      %v1464 = vld [vmem:[%s1 + $0x300] sm:$0xff]
      %v1465 = vld [vmem:[%s1 + $0x308] sm:$0xff]
      %v1466 = vld [vmem:[%s1 + $0x310] sm:$0xff]
      %v1467 = vld [vmem:[%s1 + $0x318] sm:$0xff]
      %v1468 = vld [vmem:[%s1 + $0x320] sm:$0xff]
      %v1469 = vld [vmem:[%s1 + $0x328] sm:$0xff]
      %v1470 = vld [vmem:[%s1 + $0x330] sm:$0xff]
      %v1471 = vld [vmem:[%s1 + $0x338] sm:$0xff]
      %v1472 = vld [vmem:[%s1 + $0x340] sm:$0xff]
      %v1473 = vld [vmem:[%s1 + $0x348] sm:$0xff]
      %v1474 = vld [vmem:[%s1 + $0x350] sm:$0xff]
      %v1475 = vld [vmem:[%s1 + $0x358] sm:$0xff]
      %v1476 = vld [vmem:[%s1 + $0x360] sm:$0xff]
      %v1477 = vld [vmem:[%s1 + $0x368] sm:$0xff]
      %v1478 = vld [vmem:[%s1 + $0x370] sm:$0xff]
      %v1479 = vld [vmem:[%s1 + $0x378] sm:$0xff]
      %v1480 = vld [vmem:[%s1 + $0x380] sm:$0xff]
      %v1481 = vld [vmem:[%s1 + $0x388] sm:$0xff]
      %v1482 = vld [vmem:[%s1 + $0x390] sm:$0xff]
      %v1483 = vld [vmem:[%s1 + $0x398] sm:$0xff]
      %v1484 = vld [vmem:[%s1 + $0x3a0] sm:$0x3]
      %1486 = vset.pattern.permute.xlu0 0
      %1487 = vperm.xlu0 %1486, %v1368
      %v1488 = vpop.permute.xlu0 %1487
      %1491 = vset.pattern.permute.xlu0 0
      %1492 = vperm.xlu0 %1491, %v1369
      %v1493 = vpop.permute.xlu0 %1492
      %1496 = vset.pattern.permute.xlu0 0
      %1497 = vperm.xlu0 %1496, %v1370
      %v1498 = vpop.permute.xlu0 %1497
      %1501 = vset.pattern.permute.xlu0 0
      %1502 = vperm.xlu0 %1501, %v1371
      %v1503 = vpop.permute.xlu0 %1502
      %1506 = vset.pattern.permute.xlu0 0
      %1507 = vperm.xlu0 %1506, %v1372
      %v1508 = vpop.permute.xlu0 %1507
      %1511 = vset.pattern.permute.xlu0 0
      %1512 = vperm.xlu0 %1511, %v1373
      %v1513 = vpop.permute.xlu0 %1512
      %1516 = vset.pattern.permute.xlu0 0
      %1517 = vperm.xlu0 %1516, %v1374
      %v1518 = vpop.permute.xlu0 %1517
      %1521 = vset.pattern.permute.xlu0 0
      %1522 = vperm.xlu0 %1521, %v1375
      %v1523 = vpop.permute.xlu0 %1522
      %1526 = vset.pattern.permute.xlu0 0
      %1527 = vperm.xlu0 %1526, %v1376
      %v1528 = vpop.permute.xlu0 %1527
      %1531 = vset.pattern.permute.xlu0 0
      %1532 = vperm.xlu0 %1531, %v1377
      %v1533 = vpop.permute.xlu0 %1532
      %1536 = vset.pattern.permute.xlu0 0
      %1537 = vperm.xlu0 %1536, %v1378
      %v1538 = vpop.permute.xlu0 %1537
      %1541 = vset.pattern.permute.xlu0 0
      %1542 = vperm.xlu0 %1541, %v1379
      %v1543 = vpop.permute.xlu0 %1542
      %1546 = vset.pattern.permute.xlu0 0
      %1547 = vperm.xlu0 %1546, %v1380
      %v1548 = vpop.permute.xlu0 %1547
      %1551 = vset.pattern.permute.xlu0 0
      %1552 = vperm.xlu0 %1551, %v1381
      %v1553 = vpop.permute.xlu0 %1552
      %1556 = vset.pattern.permute.xlu0 0
      %1557 = vperm.xlu0 %1556, %v1382
      %v1558 = vpop.permute.xlu0 %1557
      %1561 = vset.pattern.permute.xlu0 0
      %1562 = vperm.xlu0 %1561, %v1383
      %v1563 = vpop.permute.xlu0 %1562
      %1566 = vset.pattern.permute.xlu0 0
      %1567 = vperm.xlu0 %1566, %v1384
      %v1568 = vpop.permute.xlu0 %1567
      %1571 = vset.pattern.permute.xlu0 0
      %1572 = vperm.xlu0 %1571, %v1385
      %v1573 = vpop.permute.xlu0 %1572
      %1576 = vset.pattern.permute.xlu0 0
      %1577 = vperm.xlu0 %1576, %v1386
      %v1578 = vpop.permute.xlu0 %1577
      %1581 = vset.pattern.permute.xlu0 0
      %1582 = vperm.xlu0 %1581, %v1387
      %v1583 = vpop.permute.xlu0 %1582
      %1586 = vset.pattern.permute.xlu0 0
      %1587 = vperm.xlu0 %1586, %v1388
      %v1588 = vpop.permute.xlu0 %1587
      %1591 = vset.pattern.permute.xlu0 0
      %1592 = vperm.xlu0 %1591, %v1389
      %v1593 = vpop.permute.xlu0 %1592
      %1596 = vset.pattern.permute.xlu0 0
      %1597 = vperm.xlu0 %1596, %v1390
      %v1598 = vpop.permute.xlu0 %1597
      %1601 = vset.pattern.permute.xlu0 0
      %1602 = vperm.xlu0 %1601, %v1391
      %v1603 = vpop.permute.xlu0 %1602
      %1606 = vset.pattern.permute.xlu0 0
      %1607 = vperm.xlu0 %1606, %v1392
      %v1608 = vpop.permute.xlu0 %1607
      %1611 = vset.pattern.permute.xlu0 0
      %1612 = vperm.xlu0 %1611, %v1393
      %v1613 = vpop.permute.xlu0 %1612
      %1616 = vset.pattern.permute.xlu0 0
      %1617 = vperm.xlu0 %1616, %v1394
      %v1618 = vpop.permute.xlu0 %1617
      %1621 = vset.pattern.permute.xlu0 0
      %1622 = vperm.xlu0 %1621, %v1395
      %v1623 = vpop.permute.xlu0 %1622
      %1626 = vset.pattern.permute.xlu0 0
      %1627 = vperm.xlu0 %1626, %v1396
      %v1628 = vpop.permute.xlu0 %1627
      %1631 = vset.pattern.permute.xlu0 0
      %1632 = vperm.xlu0 %1631, %v1397
      %v1633 = vpop.permute.xlu0 %1632
      %1636 = vset.pattern.permute.xlu0 0
      %1637 = vperm.xlu0 %1636, %v1398
      %v1638 = vpop.permute.xlu0 %1637
      %1641 = vset.pattern.permute.xlu0 0
      %1642 = vperm.xlu0 %1641, %v1399
      %v1643 = vpop.permute.xlu0 %1642
      %1646 = vset.pattern.permute.xlu0 0
      %1647 = vperm.xlu0 %1646, %v1400
      %v1648 = vpop.permute.xlu0 %1647
      %1651 = vset.pattern.permute.xlu0 0
      %1652 = vperm.xlu0 %1651, %v1401
      %v1653 = vpop.permute.xlu0 %1652
      %1656 = vset.pattern.permute.xlu0 0
      %1657 = vperm.xlu0 %1656, %v1402
      %v1658 = vpop.permute.xlu0 %1657
      %1661 = vset.pattern.permute.xlu0 0
      %1662 = vperm.xlu0 %1661, %v1403
      %v1663 = vpop.permute.xlu0 %1662
      %1666 = vset.pattern.permute.xlu0 0
      %1667 = vperm.xlu0 %1666, %v1404
      %v1668 = vpop.permute.xlu0 %1667
      %1671 = vset.pattern.permute.xlu0 0
      %1672 = vperm.xlu0 %1671, %v1405
      %v1673 = vpop.permute.xlu0 %1672
      %1676 = vset.pattern.permute.xlu0 0
      %1677 = vperm.xlu0 %1676, %v1406
      %v1678 = vpop.permute.xlu0 %1677
      %1681 = vset.pattern.permute.xlu0 0
      %1682 = vperm.xlu0 %1681, %v1407
      %v1683 = vpop.permute.xlu0 %1682
      %1686 = vset.pattern.permute.xlu0 0
      %1687 = vperm.xlu0 %1686, %v1408
      %v1688 = vpop.permute.xlu0 %1687
      %1691 = vset.pattern.permute.xlu0 0
      %1692 = vperm.xlu0 %1691, %v1409
      %v1693 = vpop.permute.xlu0 %1692
      %1696 = vset.pattern.permute.xlu0 0
      %1697 = vperm.xlu0 %1696, %v1410
      %v1698 = vpop.permute.xlu0 %1697
      %1701 = vset.pattern.permute.xlu0 0
      %1702 = vperm.xlu0 %1701, %v1411
      %v1703 = vpop.permute.xlu0 %1702
      %1706 = vset.pattern.permute.xlu0 0
      %1707 = vperm.xlu0 %1706, %v1412
      %v1708 = vpop.permute.xlu0 %1707
      %1711 = vset.pattern.permute.xlu0 0
      %1712 = vperm.xlu0 %1711, %v1413
      %v1713 = vpop.permute.xlu0 %1712
      %1716 = vset.pattern.permute.xlu0 0
      %1717 = vperm.xlu0 %1716, %v1414
      %v1718 = vpop.permute.xlu0 %1717
      %1721 = vset.pattern.permute.xlu0 0
      %1722 = vperm.xlu0 %1721, %v1415
      %v1723 = vpop.permute.xlu0 %1722
      %1726 = vset.pattern.permute.xlu0 0
      %1727 = vperm.xlu0 %1726, %v1416
      %v1728 = vpop.permute.xlu0 %1727
      %1731 = vset.pattern.permute.xlu0 0
      %1732 = vperm.xlu0 %1731, %v1417
      %v1733 = vpop.permute.xlu0 %1732
      %1736 = vset.pattern.permute.xlu0 0
      %1737 = vperm.xlu0 %1736, %v1418
      %v1738 = vpop.permute.xlu0 %1737
      %1741 = vset.pattern.permute.xlu0 0
      %1742 = vperm.xlu0 %1741, %v1419
      %v1743 = vpop.permute.xlu0 %1742
      %1746 = vset.pattern.permute.xlu0 0
      %1747 = vperm.xlu0 %1746, %v1420
      %v1748 = vpop.permute.xlu0 %1747
      %1751 = vset.pattern.permute.xlu0 0
      %1752 = vperm.xlu0 %1751, %v1421
      %v1753 = vpop.permute.xlu0 %1752
      %1756 = vset.pattern.permute.xlu0 0
      %1757 = vperm.xlu0 %1756, %v1422
      %v1758 = vpop.permute.xlu0 %1757
      %1761 = vset.pattern.permute.xlu0 0
      %1762 = vperm.xlu0 %1761, %v1423
      %v1763 = vpop.permute.xlu0 %1762
      %1766 = vset.pattern.permute.xlu0 0
      %1767 = vperm.xlu0 %1766, %v1424
      %v1768 = vpop.permute.xlu0 %1767
      %1771 = vset.pattern.permute.xlu0 0
      %1772 = vperm.xlu0 %1771, %v1425
      %v1773 = vpop.permute.xlu0 %1772
      %1776 = vset.pattern.permute.xlu0 0
      %1777 = vperm.xlu0 %1776, %v1426
      %v1778 = vpop.permute.xlu0 %1777
      %1781 = vset.pattern.permute.xlu0 0
      %1782 = vperm.xlu0 %1781, %v1427
      %v1783 = vpop.permute.xlu0 %1782
      %1786 = vset.pattern.permute.xlu0 0
      %1787 = vperm.xlu0 %1786, %v1428
      %v1788 = vpop.permute.xlu0 %1787
      %1791 = vset.pattern.permute.xlu0 0
      %1792 = vperm.xlu0 %1791, %v1429
      %v1793 = vpop.permute.xlu0 %1792
      %1796 = vset.pattern.permute.xlu0 0
      %1797 = vperm.xlu0 %1796, %v1430
      %v1798 = vpop.permute.xlu0 %1797
      %1801 = vset.pattern.permute.xlu0 0
      %1802 = vperm.xlu0 %1801, %v1431
      %v1803 = vpop.permute.xlu0 %1802
      %1806 = vset.pattern.permute.xlu0 0
      %1807 = vperm.xlu0 %1806, %v1432
      %v1808 = vpop.permute.xlu0 %1807
      %1811 = vset.pattern.permute.xlu0 0
      %1812 = vperm.xlu0 %1811, %v1433
      %v1813 = vpop.permute.xlu0 %1812
      %1816 = vset.pattern.permute.xlu0 0
      %1817 = vperm.xlu0 %1816, %v1434
      %v1818 = vpop.permute.xlu0 %1817
      %1821 = vset.pattern.permute.xlu0 0
      %1822 = vperm.xlu0 %1821, %v1435
      %v1823 = vpop.permute.xlu0 %1822
      %1826 = vset.pattern.permute.xlu0 0
      %1827 = vperm.xlu0 %1826, %v1436
      %v1828 = vpop.permute.xlu0 %1827
      %1831 = vset.pattern.permute.xlu0 0
      %1832 = vperm.xlu0 %1831, %v1437
      %v1833 = vpop.permute.xlu0 %1832
      %1836 = vset.pattern.permute.xlu0 0
      %1837 = vperm.xlu0 %1836, %v1438
      %v1838 = vpop.permute.xlu0 %1837
      %1841 = vset.pattern.permute.xlu0 0
      %1842 = vperm.xlu0 %1841, %v1439
      %v1843 = vpop.permute.xlu0 %1842
      %1846 = vset.pattern.permute.xlu0 0
      %1847 = vperm.xlu0 %1846, %v1440
      %v1848 = vpop.permute.xlu0 %1847
      %1851 = vset.pattern.permute.xlu0 0
      %1852 = vperm.xlu0 %1851, %v1441
      %v1853 = vpop.permute.xlu0 %1852
      %1856 = vset.pattern.permute.xlu0 0
      %1857 = vperm.xlu0 %1856, %v1442
      %v1858 = vpop.permute.xlu0 %1857
      %1861 = vset.pattern.permute.xlu0 0
      %1862 = vperm.xlu0 %1861, %v1443
      %v1863 = vpop.permute.xlu0 %1862
      %1866 = vset.pattern.permute.xlu0 0
      %1867 = vperm.xlu0 %1866, %v1444
      %v1868 = vpop.permute.xlu0 %1867
      %1871 = vset.pattern.permute.xlu0 0
      %1872 = vperm.xlu0 %1871, %v1445
      %v1873 = vpop.permute.xlu0 %1872
      %1876 = vset.pattern.permute.xlu0 0
      %1877 = vperm.xlu0 %1876, %v1446
      %v1878 = vpop.permute.xlu0 %1877
      %1881 = vset.pattern.permute.xlu0 0
      %1882 = vperm.xlu0 %1881, %v1447
      %v1883 = vpop.permute.xlu0 %1882
      %1886 = vset.pattern.permute.xlu0 0
      %1887 = vperm.xlu0 %1886, %v1448
      %v1888 = vpop.permute.xlu0 %1887
      %1891 = vset.pattern.permute.xlu0 0
      %1892 = vperm.xlu0 %1891, %v1449
      %v1893 = vpop.permute.xlu0 %1892
      %1896 = vset.pattern.permute.xlu0 0
      %1897 = vperm.xlu0 %1896, %v1450
      %v1898 = vpop.permute.xlu0 %1897
      %1901 = vset.pattern.permute.xlu0 0
      %1902 = vperm.xlu0 %1901, %v1451
      %v1903 = vpop.permute.xlu0 %1902
      %1906 = vset.pattern.permute.xlu0 0
      %1907 = vperm.xlu0 %1906, %v1452
      %v1908 = vpop.permute.xlu0 %1907
      %1911 = vset.pattern.permute.xlu0 0
      %1912 = vperm.xlu0 %1911, %v1453
      %v1913 = vpop.permute.xlu0 %1912
      %1916 = vset.pattern.permute.xlu0 0
      %1917 = vperm.xlu0 %1916, %v1454
      %v1918 = vpop.permute.xlu0 %1917
      %1921 = vset.pattern.permute.xlu0 0
      %1922 = vperm.xlu0 %1921, %v1455
      %v1923 = vpop.permute.xlu0 %1922
      %1926 = vset.pattern.permute.xlu0 0
      %1927 = vperm.xlu0 %1926, %v1456
      %v1928 = vpop.permute.xlu0 %1927
      %1931 = vset.pattern.permute.xlu0 0
      %1932 = vperm.xlu0 %1931, %v1457
      %v1933 = vpop.permute.xlu0 %1932
      %1936 = vset.pattern.permute.xlu0 0
      %1937 = vperm.xlu0 %1936, %v1458
      %v1938 = vpop.permute.xlu0 %1937
      %1941 = vset.pattern.permute.xlu0 0
      %1942 = vperm.xlu0 %1941, %v1459
      %v1943 = vpop.permute.xlu0 %1942
      %1946 = vset.pattern.permute.xlu0 0
      %1947 = vperm.xlu0 %1946, %v1460
      %v1948 = vpop.permute.xlu0 %1947
      %1951 = vset.pattern.permute.xlu0 0
      %1952 = vperm.xlu0 %1951, %v1461
      %v1953 = vpop.permute.xlu0 %1952
      %1956 = vset.pattern.permute.xlu0 0
      %1957 = vperm.xlu0 %1956, %v1462
      %v1958 = vpop.permute.xlu0 %1957
      %1961 = vset.pattern.permute.xlu0 0
      %1962 = vperm.xlu0 %1961, %v1463
      %v1963 = vpop.permute.xlu0 %1962
      %1966 = vset.pattern.permute.xlu0 0
      %1967 = vperm.xlu0 %1966, %v1464
      %v1968 = vpop.permute.xlu0 %1967
      %1971 = vset.pattern.permute.xlu0 0
      %1972 = vperm.xlu0 %1971, %v1465
      %v1973 = vpop.permute.xlu0 %1972
      %1976 = vset.pattern.permute.xlu0 0
      %1977 = vperm.xlu0 %1976, %v1466
      %v1978 = vpop.permute.xlu0 %1977
      %1981 = vset.pattern.permute.xlu0 0
      %1982 = vperm.xlu0 %1981, %v1467
      %v1983 = vpop.permute.xlu0 %1982
      %1986 = vset.pattern.permute.xlu0 0
      %1987 = vperm.xlu0 %1986, %v1468
      %v1988 = vpop.permute.xlu0 %1987
      %1991 = vset.pattern.permute.xlu0 0
      %1992 = vperm.xlu0 %1991, %v1469
      %v1993 = vpop.permute.xlu0 %1992
      %1996 = vset.pattern.permute.xlu0 0
      %1997 = vperm.xlu0 %1996, %v1470
      %v1998 = vpop.permute.xlu0 %1997
      %2001 = vset.pattern.permute.xlu0 0
      %2002 = vperm.xlu0 %2001, %v1471
      %v2003 = vpop.permute.xlu0 %2002
      %2006 = vset.pattern.permute.xlu0 0
      %2007 = vperm.xlu0 %2006, %v1472
      %v2008 = vpop.permute.xlu0 %2007
      %2011 = vset.pattern.permute.xlu0 0
      %2012 = vperm.xlu0 %2011, %v1473
      %v2013 = vpop.permute.xlu0 %2012
      %2016 = vset.pattern.permute.xlu0 0
      %2017 = vperm.xlu0 %2016, %v1474
      %v2018 = vpop.permute.xlu0 %2017
      %2021 = vset.pattern.permute.xlu0 0
      %2022 = vperm.xlu0 %2021, %v1475
      %v2023 = vpop.permute.xlu0 %2022
      %2026 = vset.pattern.permute.xlu0 0
      %2027 = vperm.xlu0 %2026, %v1476
      %v2028 = vpop.permute.xlu0 %2027
      %2031 = vset.pattern.permute.xlu0 0
      %2032 = vperm.xlu0 %2031, %v1477
      %v2033 = vpop.permute.xlu0 %2032
      %2036 = vset.pattern.permute.xlu0 0
      %2037 = vperm.xlu0 %2036, %v1478
      %v2038 = vpop.permute.xlu0 %2037
      %2041 = vset.pattern.permute.xlu0 0
      %2042 = vperm.xlu0 %2041, %v1479
      %v2043 = vpop.permute.xlu0 %2042
      %2046 = vset.pattern.permute.xlu0 0
      %2047 = vperm.xlu0 %2046, %v1480
      %v2048 = vpop.permute.xlu0 %2047
      %2051 = vset.pattern.permute.xlu0 0
      %2052 = vperm.xlu0 %2051, %v1481
      %v2053 = vpop.permute.xlu0 %2052
      %2056 = vset.pattern.permute.xlu0 0
      %2057 = vperm.xlu0 %2056, %v1482
      %v2058 = vpop.permute.xlu0 %2057
      %2061 = vset.pattern.permute.xlu0 0
      %2062 = vperm.xlu0 %2061, %v1483
      %v2063 = vpop.permute.xlu0 %2062
      %2066 = vset.pattern.permute.xlu0 0
      %2067 = vperm.xlu0 %2066, %v1484
      %v2068 = vpop.permute.xlu0 %2067
      %v2070 = vmul.f32 %v1251, %v1488
      %v2071 = vmul.f32 %v1252, %v1493
      %v2072 = vmul.f32 %v1253, %v1498
      %v2073 = vmul.f32 %v1254, %v1503
      %v2074 = vmul.f32 %v1255, %v1508
      %v2075 = vmul.f32 %v1256, %v1513
      %v2076 = vmul.f32 %v1257, %v1518
      %v2077 = vmul.f32 %v1258, %v1523
      %v2078 = vmul.f32 %v1259, %v1528
      %v2079 = vmul.f32 %v1260, %v1533
      %v2080 = vmul.f32 %v1261, %v1538
      %v2081 = vmul.f32 %v1262, %v1543
      %v2082 = vmul.f32 %v1263, %v1548
      %v2083 = vmul.f32 %v1264, %v1553
      %v2084 = vmul.f32 %v1265, %v1558
      %v2085 = vmul.f32 %v1266, %v1563
      %v2086 = vmul.f32 %v1267, %v1568
      %v2087 = vmul.f32 %v1268, %v1573
      %v2088 = vmul.f32 %v1269, %v1578
      %v2089 = vmul.f32 %v1270, %v1583
      %v2090 = vmul.f32 %v1271, %v1588
      %v2091 = vmul.f32 %v1272, %v1593
      %v2092 = vmul.f32 %v1273, %v1598
      %v2093 = vmul.f32 %v1274, %v1603
      %v2094 = vmul.f32 %v1275, %v1608
      %v2095 = vmul.f32 %v1276, %v1613
      %v2096 = vmul.f32 %v1277, %v1618
      %v2097 = vmul.f32 %v1278, %v1623
      %v2098 = vmul.f32 %v1279, %v1628
      %v2099 = vmul.f32 %v1280, %v1633
      %v2100 = vmul.f32 %v1281, %v1638
      %v2101 = vmul.f32 %v1282, %v1643
      %v2102 = vmul.f32 %v1283, %v1648
      %v2103 = vmul.f32 %v1284, %v1653
      %v2104 = vmul.f32 %v1285, %v1658
      %v2105 = vmul.f32 %v1286, %v1663
      %v2106 = vmul.f32 %v1287, %v1668
      %v2107 = vmul.f32 %v1288, %v1673
      %v2108 = vmul.f32 %v1289, %v1678
      %v2109 = vmul.f32 %v1290, %v1683
      %v2110 = vmul.f32 %v1291, %v1688
      %v2111 = vmul.f32 %v1292, %v1693
      %v2112 = vmul.f32 %v1293, %v1698
      %v2113 = vmul.f32 %v1294, %v1703
      %v2114 = vmul.f32 %v1295, %v1708
      %v2115 = vmul.f32 %v1296, %v1713
      %v2116 = vmul.f32 %v1297, %v1718
      %v2117 = vmul.f32 %v1298, %v1723
      %v2118 = vmul.f32 %v1299, %v1728
      %v2119 = vmul.f32 %v1300, %v1733
      %v2120 = vmul.f32 %v1301, %v1738
      %v2121 = vmul.f32 %v1302, %v1743
      %v2122 = vmul.f32 %v1303, %v1748
      %v2123 = vmul.f32 %v1304, %v1753
      %v2124 = vmul.f32 %v1305, %v1758
      %v2125 = vmul.f32 %v1306, %v1763
      %v2126 = vmul.f32 %v1307, %v1768
      %v2127 = vmul.f32 %v1308, %v1773
      %v2128 = vmul.f32 %v1309, %v1778
      %v2129 = vmul.f32 %v1310, %v1783
      %v2130 = vmul.f32 %v1311, %v1788
      %v2131 = vmul.f32 %v1312, %v1793
      %v2132 = vmul.f32 %v1313, %v1798
      %v2133 = vmul.f32 %v1314, %v1803
      %v2134 = vmul.f32 %v1315, %v1808
      %v2135 = vmul.f32 %v1316, %v1813
      %v2136 = vmul.f32 %v1317, %v1818
      %v2137 = vmul.f32 %v1318, %v1823
      %v2138 = vmul.f32 %v1319, %v1828
      %v2139 = vmul.f32 %v1320, %v1833
      %v2140 = vmul.f32 %v1321, %v1838
      %v2141 = vmul.f32 %v1322, %v1843
      %v2142 = vmul.f32 %v1323, %v1848
      %v2143 = vmul.f32 %v1324, %v1853
      %v2144 = vmul.f32 %v1325, %v1858
      %v2145 = vmul.f32 %v1326, %v1863
      %v2146 = vmul.f32 %v1327, %v1868
      %v2147 = vmul.f32 %v1328, %v1873
      %v2148 = vmul.f32 %v1329, %v1878
      %v2149 = vmul.f32 %v1330, %v1883
      %v2150 = vmul.f32 %v1331, %v1888
      %v2151 = vmul.f32 %v1332, %v1893
      %v2152 = vmul.f32 %v1333, %v1898
      %v2153 = vmul.f32 %v1334, %v1903
      %v2154 = vmul.f32 %v1335, %v1908
      %v2155 = vmul.f32 %v1336, %v1913
      %v2156 = vmul.f32 %v1337, %v1918
      %v2157 = vmul.f32 %v1338, %v1923
      %v2158 = vmul.f32 %v1339, %v1928
      %v2159 = vmul.f32 %v1340, %v1933
      %v2160 = vmul.f32 %v1341, %v1938
      %v2161 = vmul.f32 %v1342, %v1943
      %v2162 = vmul.f32 %v1343, %v1948
      %v2163 = vmul.f32 %v1344, %v1953
      %v2164 = vmul.f32 %v1345, %v1958
      %v2165 = vmul.f32 %v1346, %v1963
      %v2166 = vmul.f32 %v1347, %v1968
      %v2167 = vmul.f32 %v1348, %v1973
      %v2168 = vmul.f32 %v1349, %v1978
      %v2169 = vmul.f32 %v1350, %v1983
      %v2170 = vmul.f32 %v1351, %v1988
      %v2171 = vmul.f32 %v1352, %v1993
      %v2172 = vmul.f32 %v1353, %v1998
      %v2173 = vmul.f32 %v1354, %v2003
      %v2174 = vmul.f32 %v1355, %v2008
      %v2175 = vmul.f32 %v1356, %v2013
      %v2176 = vmul.f32 %v1357, %v2018
      %v2177 = vmul.f32 %v1358, %v2023
      %v2178 = vmul.f32 %v1359, %v2028
      %v2179 = vmul.f32 %v1360, %v2033
      %v2180 = vmul.f32 %v1361, %v2038
      %v2181 = vmul.f32 %v1362, %v2043
      %v2182 = vmul.f32 %v1363, %v2048
      %v2183 = vmul.f32 %v1364, %v2053
      %v2184 = vmul.f32 %v1365, %v2058
      %v2185 = vmul.f32 %v1366, %v2063
      %v2186 = vmul.f32 %v1367, %v2068
      %vm2187 = vcmask 130048
      %2188 = vst.msk [vmem:[#allocation2] sm:$0xff] %vm2187, %v2070
      %2189 = vst.msk [vmem:[#allocation2 + $0x8] sm:$0xff] %vm2187, %v2071
      %2190 = vst.msk [vmem:[#allocation2 + $0x10] sm:$0xff] %vm2187, %v2072
      %2191 = vst.msk [vmem:[#allocation2 + $0x18] sm:$0xff] %vm2187, %v2073
      %2192 = vst.msk [vmem:[#allocation2 + $0x20] sm:$0xff] %vm2187, %v2074
      %2193 = vst.msk [vmem:[#allocation2 + $0x28] sm:$0xff] %vm2187, %v2075
      %2194 = vst.msk [vmem:[#allocation2 + $0x30] sm:$0xff] %vm2187, %v2076
      %2195 = vst.msk [vmem:[#allocation2 + $0x38] sm:$0xff] %vm2187, %v2077
      %2196 = vst.msk [vmem:[#allocation2 + $0x40] sm:$0xff] %vm2187, %v2078
      %2197 = vst.msk [vmem:[#allocation2 + $0x48] sm:$0xff] %vm2187, %v2079
      %2198 = vst.msk [vmem:[#allocation2 + $0x50] sm:$0xff] %vm2187, %v2080
      %2199 = vst.msk [vmem:[#allocation2 + $0x58] sm:$0xff] %vm2187, %v2081
      %2200 = vst.msk [vmem:[#allocation2 + $0x60] sm:$0xff] %vm2187, %v2082
      %2201 = vst.msk [vmem:[#allocation2 + $0x68] sm:$0xff] %vm2187, %v2083
      %2202 = vst.msk [vmem:[#allocation2 + $0x70] sm:$0xff] %vm2187, %v2084
      %2203 = vst.msk [vmem:[#allocation2 + $0x78] sm:$0xff] %vm2187, %v2085
      %2204 = vst.msk [vmem:[#allocation2 + $0x80] sm:$0xff] %vm2187, %v2086
      %2205 = vst.msk [vmem:[#allocation2 + $0x88] sm:$0xff] %vm2187, %v2087
      %2206 = vst.msk [vmem:[#allocation2 + $0x90] sm:$0xff] %vm2187, %v2088
      %2207 = vst.msk [vmem:[#allocation2 + $0x98] sm:$0xff] %vm2187, %v2089
      %2208 = vst.msk [vmem:[#allocation2 + $0xa0] sm:$0xff] %vm2187, %v2090
      %2209 = vst.msk [vmem:[#allocation2 + $0xa8] sm:$0xff] %vm2187, %v2091
      %2210 = vst.msk [vmem:[#allocation2 + $0xb0] sm:$0xff] %vm2187, %v2092
      %2211 = vst.msk [vmem:[#allocation2 + $0xb8] sm:$0xff] %vm2187, %v2093
      %2212 = vst.msk [vmem:[#allocation2 + $0xc0] sm:$0xff] %vm2187, %v2094
      %2213 = vst.msk [vmem:[#allocation2 + $0xc8] sm:$0xff] %vm2187, %v2095
      %2214 = vst.msk [vmem:[#allocation2 + $0xd0] sm:$0xff] %vm2187, %v2096
      %2215 = vst.msk [vmem:[#allocation2 + $0xd8] sm:$0xff] %vm2187, %v2097
      %2216 = vst.msk [vmem:[#allocation2 + $0xe0] sm:$0xff] %vm2187, %v2098
      %2217 = vst.msk [vmem:[#allocation2 + $0xe8] sm:$0xff] %vm2187, %v2099
      %2218 = vst.msk [vmem:[#allocation2 + $0xf0] sm:$0xff] %vm2187, %v2100
      %2219 = vst.msk [vmem:[#allocation2 + $0xf8] sm:$0xff] %vm2187, %v2101
      %2220 = vst.msk [vmem:[#allocation2 + $0x100] sm:$0xff] %vm2187, %v2102
      %2221 = vst.msk [vmem:[#allocation2 + $0x108] sm:$0xff] %vm2187, %v2103
      %2222 = vst.msk [vmem:[#allocation2 + $0x110] sm:$0xff] %vm2187, %v2104
      %2223 = vst.msk [vmem:[#allocation2 + $0x118] sm:$0xff] %vm2187, %v2105
      %2224 = vst.msk [vmem:[#allocation2 + $0x120] sm:$0xff] %vm2187, %v2106
      %2225 = vst.msk [vmem:[#allocation2 + $0x128] sm:$0xff] %vm2187, %v2107
      %2226 = vst.msk [vmem:[#allocation2 + $0x130] sm:$0xff] %vm2187, %v2108
      %2227 = vst.msk [vmem:[#allocation2 + $0x138] sm:$0xff] %vm2187, %v2109
      %2228 = vst.msk [vmem:[#allocation2 + $0x140] sm:$0xff] %vm2187, %v2110
      %2229 = vst.msk [vmem:[#allocation2 + $0x148] sm:$0xff] %vm2187, %v2111
      %2230 = vst.msk [vmem:[#allocation2 + $0x150] sm:$0xff] %vm2187, %v2112
      %2231 = vst.msk [vmem:[#allocation2 + $0x158] sm:$0xff] %vm2187, %v2113
      %2232 = vst.msk [vmem:[#allocation2 + $0x160] sm:$0xff] %vm2187, %v2114
      %2233 = vst.msk [vmem:[#allocation2 + $0x168] sm:$0xff] %vm2187, %v2115
      %2234 = vst.msk [vmem:[#allocation2 + $0x170] sm:$0xff] %vm2187, %v2116
      %2235 = vst.msk [vmem:[#allocation2 + $0x178] sm:$0xff] %vm2187, %v2117
      %2236 = vst.msk [vmem:[#allocation2 + $0x180] sm:$0xff] %vm2187, %v2118
      %2237 = vst.msk [vmem:[#allocation2 + $0x188] sm:$0xff] %vm2187, %v2119
      %2238 = vst.msk [vmem:[#allocation2 + $0x190] sm:$0xff] %vm2187, %v2120
      %2239 = vst.msk [vmem:[#allocation2 + $0x198] sm:$0xff] %vm2187, %v2121
      %2240 = vst.msk [vmem:[#allocation2 + $0x1a0] sm:$0xff] %vm2187, %v2122
      %2241 = vst.msk [vmem:[#allocation2 + $0x1a8] sm:$0xff] %vm2187, %v2123
      %2242 = vst.msk [vmem:[#allocation2 + $0x1b0] sm:$0xff] %vm2187, %v2124
      %2243 = vst.msk [vmem:[#allocation2 + $0x1b8] sm:$0xff] %vm2187, %v2125
      %2244 = vst.msk [vmem:[#allocation2 + $0x1c0] sm:$0xff] %vm2187, %v2126
      %2245 = vst.msk [vmem:[#allocation2 + $0x1c8] sm:$0xff] %vm2187, %v2127
      %2246 = vst.msk [vmem:[#allocation2 + $0x1d0] sm:$0xff] %vm2187, %v2128
      %2247 = vst.msk [vmem:[#allocation2 + $0x1d8] sm:$0xff] %vm2187, %v2129
      %2248 = vst.msk [vmem:[#allocation2 + $0x1e0] sm:$0xff] %vm2187, %v2130
      %2249 = vst.msk [vmem:[#allocation2 + $0x1e8] sm:$0xff] %vm2187, %v2131
      %2250 = vst.msk [vmem:[#allocation2 + $0x1f0] sm:$0xff] %vm2187, %v2132
      %2251 = vst.msk [vmem:[#allocation2 + $0x1f8] sm:$0xff] %vm2187, %v2133
      %2252 = vst.msk [vmem:[#allocation2 + $0x200] sm:$0xff] %vm2187, %v2134
      %2253 = vst.msk [vmem:[#allocation2 + $0x208] sm:$0xff] %vm2187, %v2135
      %2254 = vst.msk [vmem:[#allocation2 + $0x210] sm:$0xff] %vm2187, %v2136
      %2255 = vst.msk [vmem:[#allocation2 + $0x218] sm:$0xff] %vm2187, %v2137
      %2256 = vst.msk [vmem:[#allocation2 + $0x220] sm:$0xff] %vm2187, %v2138
      %2257 = vst.msk [vmem:[#allocation2 + $0x228] sm:$0xff] %vm2187, %v2139
      %2258 = vst.msk [vmem:[#allocation2 + $0x230] sm:$0xff] %vm2187, %v2140
      %2259 = vst.msk [vmem:[#allocation2 + $0x238] sm:$0xff] %vm2187, %v2141
      %2260 = vst.msk [vmem:[#allocation2 + $0x240] sm:$0xff] %vm2187, %v2142
      %2261 = vst.msk [vmem:[#allocation2 + $0x248] sm:$0xff] %vm2187, %v2143
      %2262 = vst.msk [vmem:[#allocation2 + $0x250] sm:$0xff] %vm2187, %v2144
      %2263 = vst.msk [vmem:[#allocation2 + $0x258] sm:$0xff] %vm2187, %v2145
      %2264 = vst.msk [vmem:[#allocation2 + $0x260] sm:$0xff] %vm2187, %v2146
      %2265 = vst.msk [vmem:[#allocation2 + $0x268] sm:$0xff] %vm2187, %v2147
      %2266 = vst.msk [vmem:[#allocation2 + $0x270] sm:$0xff] %vm2187, %v2148
      %2267 = vst.msk [vmem:[#allocation2 + $0x278] sm:$0xff] %vm2187, %v2149
      %2268 = vst.msk [vmem:[#allocation2 + $0x280] sm:$0xff] %vm2187, %v2150
      %2269 = vst.msk [vmem:[#allocation2 + $0x288] sm:$0xff] %vm2187, %v2151
      %2270 = vst.msk [vmem:[#allocation2 + $0x290] sm:$0xff] %vm2187, %v2152
      %2271 = vst.msk [vmem:[#allocation2 + $0x298] sm:$0xff] %vm2187, %v2153
      %2272 = vst.msk [vmem:[#allocation2 + $0x2a0] sm:$0xff] %vm2187, %v2154
      %2273 = vst.msk [vmem:[#allocation2 + $0x2a8] sm:$0xff] %vm2187, %v2155
      %2274 = vst.msk [vmem:[#allocation2 + $0x2b0] sm:$0xff] %vm2187, %v2156
      %2275 = vst.msk [vmem:[#allocation2 + $0x2b8] sm:$0xff] %vm2187, %v2157
      %2276 = vst.msk [vmem:[#allocation2 + $0x2c0] sm:$0xff] %vm2187, %v2158
      %2277 = vst.msk [vmem:[#allocation2 + $0x2c8] sm:$0xff] %vm2187, %v2159
      %2278 = vst.msk [vmem:[#allocation2 + $0x2d0] sm:$0xff] %vm2187, %v2160
      %2279 = vst.msk [vmem:[#allocation2 + $0x2d8] sm:$0xff] %vm2187, %v2161
      %2280 = vst.msk [vmem:[#allocation2 + $0x2e0] sm:$0xff] %vm2187, %v2162
      %2281 = vst.msk [vmem:[#allocation2 + $0x2e8] sm:$0xff] %vm2187, %v2163
      %2282 = vst.msk [vmem:[#allocation2 + $0x2f0] sm:$0xff] %vm2187, %v2164
      %2283 = vst.msk [vmem:[#allocation2 + $0x2f8] sm:$0xff] %vm2187, %v2165
      %2284 = vst.msk [vmem:[#allocation2 + $0x300] sm:$0xff] %vm2187, %v2166
      %2285 = vst.msk [vmem:[#allocation2 + $0x308] sm:$0xff] %vm2187, %v2167
      %2286 = vst.msk [vmem:[#allocation2 + $0x310] sm:$0xff] %vm2187, %v2168
      %2287 = vst.msk [vmem:[#allocation2 + $0x318] sm:$0xff] %vm2187, %v2169
      %2288 = vst.msk [vmem:[#allocation2 + $0x320] sm:$0xff] %vm2187, %v2170
      %2289 = vst.msk [vmem:[#allocation2 + $0x328] sm:$0xff] %vm2187, %v2171
      %2290 = vst.msk [vmem:[#allocation2 + $0x330] sm:$0xff] %vm2187, %v2172
      %2291 = vst.msk [vmem:[#allocation2 + $0x338] sm:$0xff] %vm2187, %v2173
      %2292 = vst.msk [vmem:[#allocation2 + $0x340] sm:$0xff] %vm2187, %v2174
      %2293 = vst.msk [vmem:[#allocation2 + $0x348] sm:$0xff] %vm2187, %v2175
      %2294 = vst.msk [vmem:[#allocation2 + $0x350] sm:$0xff] %vm2187, %v2176
      %2295 = vst.msk [vmem:[#allocation2 + $0x358] sm:$0xff] %vm2187, %v2177
      %2296 = vst.msk [vmem:[#allocation2 + $0x360] sm:$0xff] %vm2187, %v2178
      %2297 = vst.msk [vmem:[#allocation2 + $0x368] sm:$0xff] %vm2187, %v2179
      %2298 = vst.msk [vmem:[#allocation2 + $0x370] sm:$0xff] %vm2187, %v2180
      %2299 = vst.msk [vmem:[#allocation2 + $0x378] sm:$0xff] %vm2187, %v2181
      %2300 = vst.msk [vmem:[#allocation2 + $0x380] sm:$0xff] %vm2187, %v2182
      %2301 = vst.msk [vmem:[#allocation2 + $0x388] sm:$0xff] %vm2187, %v2183
      %2302 = vst.msk [vmem:[#allocation2 + $0x390] sm:$0xff] %vm2187, %v2184
      %2303 = vst.msk [vmem:[#allocation2 + $0x398] sm:$0xff] %vm2187, %v2185
      %vm2304 = vcmask 123904
      %2305 = vst.msk [vmem:[#allocation2 + $0x3a0] sm:$0x3] %vm2304, %v2186
      %v2306 = vld [vmem:[#allocation2] sm:$0xff]
      %v2307 = vld [vmem:[#allocation2 + $0x8] sm:$0xff]
      %v2308 = vld [vmem:[#allocation2 + $0x10] sm:$0xff]
      %v2309 = vld [vmem:[#allocation2 + $0x18] sm:$0xff]
      %v2310 = vld [vmem:[#allocation2 + $0x20] sm:$0xff]
      %v2311 = vld [vmem:[#allocation2 + $0x28] sm:$0xff]
      %v2312 = vld [vmem:[#allocation2 + $0x30] sm:$0xff]
      %v2313 = vld [vmem:[#allocation2 + $0x38] sm:$0xff]
      %v2314 = vld [vmem:[#allocation2 + $0x40] sm:$0xff]
      %v2315 = vld [vmem:[#allocation2 + $0x48] sm:$0xff]
      %v2316 = vld [vmem:[#allocation2 + $0x50] sm:$0xff]
      %v2317 = vld [vmem:[#allocation2 + $0x58] sm:$0xff]
      %v2318 = vld [vmem:[#allocation2 + $0x60] sm:$0xff]
      %v2319 = vld [vmem:[#allocation2 + $0x68] sm:$0xff]
      %v2320 = vld [vmem:[#allocation2 + $0x70] sm:$0xff]
      %v2321 = vld [vmem:[#allocation2 + $0x78] sm:$0xff]
      %v2322 = vld [vmem:[#allocation2 + $0x80] sm:$0xff]
      %v2323 = vld [vmem:[#allocation2 + $0x88] sm:$0xff]
      %v2324 = vld [vmem:[#allocation2 + $0x90] sm:$0xff]
      %v2325 = vld [vmem:[#allocation2 + $0x98] sm:$0xff]
      %v2326 = vld [vmem:[#allocation2 + $0xa0] sm:$0xff]
      %v2327 = vld [vmem:[#allocation2 + $0xa8] sm:$0xff]
      %v2328 = vld [vmem:[#allocation2 + $0xb0] sm:$0xff]
      %v2329 = vld [vmem:[#allocation2 + $0xb8] sm:$0xff]
      %v2330 = vld [vmem:[#allocation2 + $0xc0] sm:$0xff]
      %v2331 = vld [vmem:[#allocation2 + $0xc8] sm:$0xff]
      %v2332 = vld [vmem:[#allocation2 + $0xd0] sm:$0xff]
      %v2333 = vld [vmem:[#allocation2 + $0xd8] sm:$0xff]
      %v2334 = vld [vmem:[#allocation2 + $0xe0] sm:$0xff]
      %v2335 = vld [vmem:[#allocation2 + $0xe8] sm:$0xff]
      %v2336 = vld [vmem:[#allocation2 + $0xf0] sm:$0xff]
      %v2337 = vld [vmem:[#allocation2 + $0xf8] sm:$0xff]
      %v2338 = vld [vmem:[#allocation2 + $0x100] sm:$0xff]
      %v2339 = vld [vmem:[#allocation2 + $0x108] sm:$0xff]
      %v2340 = vld [vmem:[#allocation2 + $0x110] sm:$0xff]
      %v2341 = vld [vmem:[#allocation2 + $0x118] sm:$0xff]
      %v2342 = vld [vmem:[#allocation2 + $0x120] sm:$0xff]
      %v2343 = vld [vmem:[#allocation2 + $0x128] sm:$0xff]
      %v2344 = vld [vmem:[#allocation2 + $0x130] sm:$0xff]
      %v2345 = vld [vmem:[#allocation2 + $0x138] sm:$0xff]
      %v2346 = vld [vmem:[#allocation2 + $0x140] sm:$0xff]
      %v2347 = vld [vmem:[#allocation2 + $0x148] sm:$0xff]
      %v2348 = vld [vmem:[#allocation2 + $0x150] sm:$0xff]
      %v2349 = vld [vmem:[#allocation2 + $0x158] sm:$0xff]
      %v2350 = vld [vmem:[#allocation2 + $0x160] sm:$0xff]
      %v2351 = vld [vmem:[#allocation2 + $0x168] sm:$0xff]
      %v2352 = vld [vmem:[#allocation2 + $0x170] sm:$0xff]
      %v2353 = vld [vmem:[#allocation2 + $0x178] sm:$0xff]
      %v2354 = vld [vmem:[#allocation2 + $0x180] sm:$0xff]
      %v2355 = vld [vmem:[#allocation2 + $0x188] sm:$0xff]
      %v2356 = vld [vmem:[#allocation2 + $0x190] sm:$0xff]
      %v2357 = vld [vmem:[#allocation2 + $0x198] sm:$0xff]
      %v2358 = vld [vmem:[#allocation2 + $0x1a0] sm:$0xff]
      %v2359 = vld [vmem:[#allocation2 + $0x1a8] sm:$0xff]
      %v2360 = vld [vmem:[#allocation2 + $0x1b0] sm:$0xff]
      %v2361 = vld [vmem:[#allocation2 + $0x1b8] sm:$0xff]
      %v2362 = vld [vmem:[#allocation2 + $0x1c0] sm:$0xff]
      %v2363 = vld [vmem:[#allocation2 + $0x1c8] sm:$0xff]
      %v2364 = vld [vmem:[#allocation2 + $0x1d0] sm:$0xff]
      %v2365 = vld [vmem:[#allocation2 + $0x1d8] sm:$0xff]
      %v2366 = vld [vmem:[#allocation2 + $0x1e0] sm:$0xff]
      %v2367 = vld [vmem:[#allocation2 + $0x1e8] sm:$0xff]
      %v2368 = vld [vmem:[#allocation2 + $0x1f0] sm:$0xff]
      %v2369 = vld [vmem:[#allocation2 + $0x1f8] sm:$0xff]
      %v2370 = vld [vmem:[#allocation2 + $0x200] sm:$0xff]
      %v2371 = vld [vmem:[#allocation2 + $0x208] sm:$0xff]
      %v2372 = vld [vmem:[#allocation2 + $0x210] sm:$0xff]
      %v2373 = vld [vmem:[#allocation2 + $0x218] sm:$0xff]
      %v2374 = vld [vmem:[#allocation2 + $0x220] sm:$0xff]
      %v2375 = vld [vmem:[#allocation2 + $0x228] sm:$0xff]
      %v2376 = vld [vmem:[#allocation2 + $0x230] sm:$0xff]
      %v2377 = vld [vmem:[#allocation2 + $0x238] sm:$0xff]
      %v2378 = vld [vmem:[#allocation2 + $0x240] sm:$0xff]
      %v2379 = vld [vmem:[#allocation2 + $0x248] sm:$0xff]
      %v2380 = vld [vmem:[#allocation2 + $0x250] sm:$0xff]
      %v2381 = vld [vmem:[#allocation2 + $0x258] sm:$0xff]
      %v2382 = vld [vmem:[#allocation2 + $0x260] sm:$0xff]
      %v2383 = vld [vmem:[#allocation2 + $0x268] sm:$0xff]
      %v2384 = vld [vmem:[#allocation2 + $0x270] sm:$0xff]
      %v2385 = vld [vmem:[#allocation2 + $0x278] sm:$0xff]
      %v2386 = vld [vmem:[#allocation2 + $0x280] sm:$0xff]
      %v2387 = vld [vmem:[#allocation2 + $0x288] sm:$0xff]
      %v2388 = vld [vmem:[#allocation2 + $0x290] sm:$0xff]
      %v2389 = vld [vmem:[#allocation2 + $0x298] sm:$0xff]
      %v2390 = vld [vmem:[#allocation2 + $0x2a0] sm:$0xff]
      %v2391 = vld [vmem:[#allocation2 + $0x2a8] sm:$0xff]
      %v2392 = vld [vmem:[#allocation2 + $0x2b0] sm:$0xff]
      %v2393 = vld [vmem:[#allocation2 + $0x2b8] sm:$0xff]
      %v2394 = vld [vmem:[#allocation2 + $0x2c0] sm:$0xff]
      %v2395 = vld [vmem:[#allocation2 + $0x2c8] sm:$0xff]
      %v2396 = vld [vmem:[#allocation2 + $0x2d0] sm:$0xff]
      %v2397 = vld [vmem:[#allocation2 + $0x2d8] sm:$0xff]
      %v2398 = vld [vmem:[#allocation2 + $0x2e0] sm:$0xff]
      %v2399 = vld [vmem:[#allocation2 + $0x2e8] sm:$0xff]
      %v2400 = vld [vmem:[#allocation2 + $0x2f0] sm:$0xff]
      %v2401 = vld [vmem:[#allocation2 + $0x2f8] sm:$0xff]
      %v2402 = vld [vmem:[#allocation2 + $0x300] sm:$0xff]
      %v2403 = vld [vmem:[#allocation2 + $0x308] sm:$0xff]
      %v2404 = vld [vmem:[#allocation2 + $0x310] sm:$0xff]
      %v2405 = vld [vmem:[#allocation2 + $0x318] sm:$0xff]
      %v2406 = vld [vmem:[#allocation2 + $0x320] sm:$0xff]
      %v2407 = vld [vmem:[#allocation2 + $0x328] sm:$0xff]
      %v2408 = vld [vmem:[#allocation2 + $0x330] sm:$0xff]
      %v2409 = vld [vmem:[#allocation2 + $0x338] sm:$0xff]
      %v2410 = vld [vmem:[#allocation2 + $0x340] sm:$0xff]
      %v2411 = vld [vmem:[#allocation2 + $0x1] sm:$0xff]
      %v2412 = vld [vmem:[#allocation2 + $0x9] sm:$0xff]
      %v2413 = vld [vmem:[#allocation2 + $0x11] sm:$0xff]
      %v2414 = vld [vmem:[#allocation2 + $0x19] sm:$0xff]
      %v2415 = vld [vmem:[#allocation2 + $0x21] sm:$0xff]
      %v2416 = vld [vmem:[#allocation2 + $0x29] sm:$0xff]
      %v2417 = vld [vmem:[#allocation2 + $0x31] sm:$0xff]
      %v2418 = vld [vmem:[#allocation2 + $0x39] sm:$0xff]
      %v2419 = vld [vmem:[#allocation2 + $0x41] sm:$0xff]
      %v2420 = vld [vmem:[#allocation2 + $0x49] sm:$0xff]
      %v2421 = vld [vmem:[#allocation2 + $0x51] sm:$0xff]
      %v2422 = vld [vmem:[#allocation2 + $0x59] sm:$0xff]
      %v2423 = vld [vmem:[#allocation2 + $0x61] sm:$0xff]
      %v2424 = vld [vmem:[#allocation2 + $0x69] sm:$0xff]
      %v2425 = vld [vmem:[#allocation2 + $0x71] sm:$0xff]
      %v2426 = vld [vmem:[#allocation2 + $0x79] sm:$0xff]
      %v2427 = vld [vmem:[#allocation2 + $0x81] sm:$0xff]
      %v2428 = vld [vmem:[#allocation2 + $0x89] sm:$0xff]
      %v2429 = vld [vmem:[#allocation2 + $0x91] sm:$0xff]
      %v2430 = vld [vmem:[#allocation2 + $0x99] sm:$0xff]
      %v2431 = vld [vmem:[#allocation2 + $0xa1] sm:$0xff]
      %v2432 = vld [vmem:[#allocation2 + $0xa9] sm:$0xff]
      %v2433 = vld [vmem:[#allocation2 + $0xb1] sm:$0xff]
      %v2434 = vld [vmem:[#allocation2 + $0xb9] sm:$0xff]
      %v2435 = vld [vmem:[#allocation2 + $0xc1] sm:$0xff]
      %v2436 = vld [vmem:[#allocation2 + $0xc9] sm:$0xff]
      %v2437 = vld [vmem:[#allocation2 + $0xd1] sm:$0xff]
      %v2438 = vld [vmem:[#allocation2 + $0xd9] sm:$0xff]
      %v2439 = vld [vmem:[#allocation2 + $0xe1] sm:$0xff]
      %v2440 = vld [vmem:[#allocation2 + $0xe9] sm:$0xff]
      %v2441 = vld [vmem:[#allocation2 + $0xf1] sm:$0xff]
      %v2442 = vld [vmem:[#allocation2 + $0xf9] sm:$0xff]
      %v2443 = vld [vmem:[#allocation2 + $0x101] sm:$0xff]
      %v2444 = vld [vmem:[#allocation2 + $0x109] sm:$0xff]
      %v2445 = vld [vmem:[#allocation2 + $0x111] sm:$0xff]
      %v2446 = vld [vmem:[#allocation2 + $0x119] sm:$0xff]
      %v2447 = vld [vmem:[#allocation2 + $0x121] sm:$0xff]
      %v2448 = vld [vmem:[#allocation2 + $0x129] sm:$0xff]
      %v2449 = vld [vmem:[#allocation2 + $0x131] sm:$0xff]
      %v2450 = vld [vmem:[#allocation2 + $0x139] sm:$0xff]
      %v2451 = vld [vmem:[#allocation2 + $0x141] sm:$0xff]
      %v2452 = vld [vmem:[#allocation2 + $0x149] sm:$0xff]
      %v2453 = vld [vmem:[#allocation2 + $0x151] sm:$0xff]
      %v2454 = vld [vmem:[#allocation2 + $0x159] sm:$0xff]
      %v2455 = vld [vmem:[#allocation2 + $0x161] sm:$0xff]
      %v2456 = vld [vmem:[#allocation2 + $0x169] sm:$0xff]
      %v2457 = vld [vmem:[#allocation2 + $0x171] sm:$0xff]
      %v2458 = vld [vmem:[#allocation2 + $0x179] sm:$0xff]
      %v2459 = vld [vmem:[#allocation2 + $0x181] sm:$0xff]
      %v2460 = vld [vmem:[#allocation2 + $0x189] sm:$0xff]
      %v2461 = vld [vmem:[#allocation2 + $0x191] sm:$0xff]
      %v2462 = vld [vmem:[#allocation2 + $0x199] sm:$0xff]
      %v2463 = vld [vmem:[#allocation2 + $0x1a1] sm:$0xff]
      %v2464 = vld [vmem:[#allocation2 + $0x1a9] sm:$0xff]
      %v2465 = vld [vmem:[#allocation2 + $0x1b1] sm:$0xff]
      %v2466 = vld [vmem:[#allocation2 + $0x1b9] sm:$0xff]
      %v2467 = vld [vmem:[#allocation2 + $0x1c1] sm:$0xff]
      %v2468 = vld [vmem:[#allocation2 + $0x1c9] sm:$0xff]
      %v2469 = vld [vmem:[#allocation2 + $0x1d1] sm:$0xff]
      %v2470 = vld [vmem:[#allocation2 + $0x1d9] sm:$0xff]
      %v2471 = vld [vmem:[#allocation2 + $0x1e1] sm:$0xff]
      %v2472 = vld [vmem:[#allocation2 + $0x1e9] sm:$0xff]
      %v2473 = vld [vmem:[#allocation2 + $0x1f1] sm:$0xff]
      %v2474 = vld [vmem:[#allocation2 + $0x1f9] sm:$0xff]
      %v2475 = vld [vmem:[#allocation2 + $0x201] sm:$0xff]
      %v2476 = vld [vmem:[#allocation2 + $0x209] sm:$0xff]
      %v2477 = vld [vmem:[#allocation2 + $0x211] sm:$0xff]
      %v2478 = vld [vmem:[#allocation2 + $0x219] sm:$0xff]
      %v2479 = vld [vmem:[#allocation2 + $0x221] sm:$0xff]
      %v2480 = vld [vmem:[#allocation2 + $0x229] sm:$0xff]
      %v2481 = vld [vmem:[#allocation2 + $0x231] sm:$0xff]
      %v2482 = vld [vmem:[#allocation2 + $0x239] sm:$0xff]
      %v2483 = vld [vmem:[#allocation2 + $0x241] sm:$0xff]
      %v2484 = vld [vmem:[#allocation2 + $0x249] sm:$0xff]
      %v2485 = vld [vmem:[#allocation2 + $0x251] sm:$0xff]
      %v2486 = vld [vmem:[#allocation2 + $0x259] sm:$0xff]
      %v2487 = vld [vmem:[#allocation2 + $0x261] sm:$0xff]
      %v2488 = vld [vmem:[#allocation2 + $0x269] sm:$0xff]
      %v2489 = vld [vmem:[#allocation2 + $0x271] sm:$0xff]
      %v2490 = vld [vmem:[#allocation2 + $0x279] sm:$0xff]
      %v2491 = vld [vmem:[#allocation2 + $0x281] sm:$0xff]
      %v2492 = vld [vmem:[#allocation2 + $0x289] sm:$0xff]
      %v2493 = vld [vmem:[#allocation2 + $0x291] sm:$0xff]
      %v2494 = vld [vmem:[#allocation2 + $0x299] sm:$0xff]
      %v2495 = vld [vmem:[#allocation2 + $0x2a1] sm:$0xff]
      %v2496 = vld [vmem:[#allocation2 + $0x2a9] sm:$0xff]
      %v2497 = vld [vmem:[#allocation2 + $0x2b1] sm:$0xff]
      %v2498 = vld [vmem:[#allocation2 + $0x2b9] sm:$0xff]
      %v2499 = vld [vmem:[#allocation2 + $0x2c1] sm:$0xff]
      %v2500 = vld [vmem:[#allocation2 + $0x2c9] sm:$0xff]
      %v2501 = vld [vmem:[#allocation2 + $0x2d1] sm:$0xff]
      %v2502 = vld [vmem:[#allocation2 + $0x2d9] sm:$0xff]
      %v2503 = vld [vmem:[#allocation2 + $0x2e1] sm:$0xff]
      %v2504 = vld [vmem:[#allocation2 + $0x2e9] sm:$0xff]
      %v2505 = vld [vmem:[#allocation2 + $0x2f1] sm:$0xff]
      %v2506 = vld [vmem:[#allocation2 + $0x2f9] sm:$0xff]
      %v2507 = vld [vmem:[#allocation2 + $0x301] sm:$0xff]
      %v2508 = vld [vmem:[#allocation2 + $0x309] sm:$0xff]
      %v2509 = vld [vmem:[#allocation2 + $0x311] sm:$0xff]
      %v2510 = vld [vmem:[#allocation2 + $0x319] sm:$0xff]
      %v2511 = vld [vmem:[#allocation2 + $0x321] sm:$0xff]
      %v2512 = vld [vmem:[#allocation2 + $0x329] sm:$0xff]
      %v2513 = vld [vmem:[#allocation2 + $0x331] sm:$0xff]
      %v2514 = vld [vmem:[#allocation2 + $0x339] sm:$0xff]
      %v2515 = vld [vmem:[#allocation2 + $0x341] sm:$0xff]
      %v2516 = vld [vmem:[#allocation2 + $0x2] sm:$0xff]
      %v2517 = vld [vmem:[#allocation2 + $0xa] sm:$0xff]
      %v2518 = vld [vmem:[#allocation2 + $0x12] sm:$0xff]
      %v2519 = vld [vmem:[#allocation2 + $0x1a] sm:$0xff]
      %v2520 = vld [vmem:[#allocation2 + $0x22] sm:$0xff]
      %v2521 = vld [vmem:[#allocation2 + $0x2a] sm:$0xff]
      %v2522 = vld [vmem:[#allocation2 + $0x32] sm:$0xff]
      %v2523 = vld [vmem:[#allocation2 + $0x3a] sm:$0xff]
      %v2524 = vld [vmem:[#allocation2 + $0x42] sm:$0xff]
      %v2525 = vld [vmem:[#allocation2 + $0x4a] sm:$0xff]
      %v2526 = vld [vmem:[#allocation2 + $0x52] sm:$0xff]
      %v2527 = vld [vmem:[#allocation2 + $0x5a] sm:$0xff]
      %v2528 = vld [vmem:[#allocation2 + $0x62] sm:$0xff]
      %v2529 = vld [vmem:[#allocation2 + $0x6a] sm:$0xff]
      %v2530 = vld [vmem:[#allocation2 + $0x72] sm:$0xff]
      %v2531 = vld [vmem:[#allocation2 + $0x7a] sm:$0xff]
      %v2532 = vld [vmem:[#allocation2 + $0x82] sm:$0xff]
      %v2533 = vld [vmem:[#allocation2 + $0x8a] sm:$0xff]
      %v2534 = vld [vmem:[#allocation2 + $0x92] sm:$0xff]
      %v2535 = vld [vmem:[#allocation2 + $0x9a] sm:$0xff]
      %v2536 = vld [vmem:[#allocation2 + $0xa2] sm:$0xff]
      %v2537 = vld [vmem:[#allocation2 + $0xaa] sm:$0xff]
      %v2538 = vld [vmem:[#allocation2 + $0xb2] sm:$0xff]
      %v2539 = vld [vmem:[#allocation2 + $0xba] sm:$0xff]
      %v2540 = vld [vmem:[#allocation2 + $0xc2] sm:$0xff]
      %v2541 = vld [vmem:[#allocation2 + $0xca] sm:$0xff]
      %v2542 = vld [vmem:[#allocation2 + $0xd2] sm:$0xff]
      %v2543 = vld [vmem:[#allocation2 + $0xda] sm:$0xff]
      %v2544 = vld [vmem:[#allocation2 + $0xe2] sm:$0xff]
      %v2545 = vld [vmem:[#allocation2 + $0xea] sm:$0xff]
      %v2546 = vld [vmem:[#allocation2 + $0xf2] sm:$0xff]
      %v2547 = vld [vmem:[#allocation2 + $0xfa] sm:$0xff]
      %v2548 = vld [vmem:[#allocation2 + $0x102] sm:$0xff]
      %v2549 = vld [vmem:[#allocation2 + $0x10a] sm:$0xff]
      %v2550 = vld [vmem:[#allocation2 + $0x112] sm:$0xff]
      %v2551 = vld [vmem:[#allocation2 + $0x11a] sm:$0xff]
      %v2552 = vld [vmem:[#allocation2 + $0x122] sm:$0xff]
      %v2553 = vld [vmem:[#allocation2 + $0x12a] sm:$0xff]
      %v2554 = vld [vmem:[#allocation2 + $0x132] sm:$0xff]
      %v2555 = vld [vmem:[#allocation2 + $0x13a] sm:$0xff]
      %v2556 = vld [vmem:[#allocation2 + $0x142] sm:$0xff]
      %v2557 = vld [vmem:[#allocation2 + $0x14a] sm:$0xff]
      %v2558 = vld [vmem:[#allocation2 + $0x152] sm:$0xff]
      %v2559 = vld [vmem:[#allocation2 + $0x15a] sm:$0xff]
      %v2560 = vld [vmem:[#allocation2 + $0x162] sm:$0xff]
      %v2561 = vld [vmem:[#allocation2 + $0x16a] sm:$0xff]
      %v2562 = vld [vmem:[#allocation2 + $0x172] sm:$0xff]
      %v2563 = vld [vmem:[#allocation2 + $0x17a] sm:$0xff]
      %v2564 = vld [vmem:[#allocation2 + $0x182] sm:$0xff]
      %v2565 = vld [vmem:[#allocation2 + $0x18a] sm:$0xff]
      %v2566 = vld [vmem:[#allocation2 + $0x192] sm:$0xff]
      %v2567 = vld [vmem:[#allocation2 + $0x19a] sm:$0xff]
      %v2568 = vld [vmem:[#allocation2 + $0x1a2] sm:$0xff]
      %v2569 = vld [vmem:[#allocation2 + $0x1aa] sm:$0xff]
      %v2570 = vld [vmem:[#allocation2 + $0x1b2] sm:$0xff]
      %v2571 = vld [vmem:[#allocation2 + $0x1ba] sm:$0xff]
      %v2572 = vld [vmem:[#allocation2 + $0x1c2] sm:$0xff]
      %v2573 = vld [vmem:[#allocation2 + $0x1ca] sm:$0xff]
      %v2574 = vld [vmem:[#allocation2 + $0x1d2] sm:$0xff]
      %v2575 = vld [vmem:[#allocation2 + $0x1da] sm:$0xff]
      %v2576 = vld [vmem:[#allocation2 + $0x1e2] sm:$0xff]
      %v2577 = vld [vmem:[#allocation2 + $0x1ea] sm:$0xff]
      %v2578 = vld [vmem:[#allocation2 + $0x1f2] sm:$0xff]
      %v2579 = vld [vmem:[#allocation2 + $0x1fa] sm:$0xff]
      %v2580 = vld [vmem:[#allocation2 + $0x202] sm:$0xff]
      %v2581 = vld [vmem:[#allocation2 + $0x20a] sm:$0xff]
      %v2582 = vld [vmem:[#allocation2 + $0x212] sm:$0xff]
      %v2583 = vld [vmem:[#allocation2 + $0x21a] sm:$0xff]
      %v2584 = vld [vmem:[#allocation2 + $0x222] sm:$0xff]
      %v2585 = vld [vmem:[#allocation2 + $0x22a] sm:$0xff]
      %v2586 = vld [vmem:[#allocation2 + $0x232] sm:$0xff]
      %v2587 = vld [vmem:[#allocation2 + $0x23a] sm:$0xff]
      %v2588 = vld [vmem:[#allocation2 + $0x242] sm:$0xff]
      %v2589 = vld [vmem:[#allocation2 + $0x24a] sm:$0xff]
      %v2590 = vld [vmem:[#allocation2 + $0x252] sm:$0xff]
      %v2591 = vld [vmem:[#allocation2 + $0x25a] sm:$0xff]
      %v2592 = vld [vmem:[#allocation2 + $0x262] sm:$0xff]
      %v2593 = vld [vmem:[#allocation2 + $0x26a] sm:$0xff]
      %v2594 = vld [vmem:[#allocation2 + $0x272] sm:$0xff]
      %v2595 = vld [vmem:[#allocation2 + $0x27a] sm:$0xff]
      %v2596 = vld [vmem:[#allocation2 + $0x282] sm:$0xff]
      %v2597 = vld [vmem:[#allocation2 + $0x28a] sm:$0xff]
      %v2598 = vld [vmem:[#allocation2 + $0x292] sm:$0xff]
      %v2599 = vld [vmem:[#allocation2 + $0x29a] sm:$0xff]
      %v2600 = vld [vmem:[#allocation2 + $0x2a2] sm:$0xff]
      %v2601 = vld [vmem:[#allocation2 + $0x2aa] sm:$0xff]
      %v2602 = vld [vmem:[#allocation2 + $0x2b2] sm:$0xff]
      %v2603 = vld [vmem:[#allocation2 + $0x2ba] sm:$0xff]
      %v2604 = vld [vmem:[#allocation2 + $0x2c2] sm:$0xff]
      %v2605 = vld [vmem:[#allocation2 + $0x2ca] sm:$0xff]
      %v2606 = vld [vmem:[#allocation2 + $0x2d2] sm:$0xff]
      %v2607 = vld [vmem:[#allocation2 + $0x2da] sm:$0xff]
      %v2608 = vld [vmem:[#allocation2 + $0x2e2] sm:$0xff]
      %v2609 = vld [vmem:[#allocation2 + $0x2ea] sm:$0xff]
      %v2610 = vld [vmem:[#allocation2 + $0x2f2] sm:$0xff]
      %v2611 = vld [vmem:[#allocation2 + $0x2fa] sm:$0xff]
      %v2612 = vld [vmem:[#allocation2 + $0x302] sm:$0xff]
      %v2613 = vld [vmem:[#allocation2 + $0x30a] sm:$0xff]
      %v2614 = vld [vmem:[#allocation2 + $0x312] sm:$0xff]
      %v2615 = vld [vmem:[#allocation2 + $0x31a] sm:$0xff]
      %v2616 = vld [vmem:[#allocation2 + $0x322] sm:$0xff]
      %v2617 = vld [vmem:[#allocation2 + $0x32a] sm:$0xff]
      %v2618 = vld [vmem:[#allocation2 + $0x332] sm:$0xff]
      %v2619 = vld [vmem:[#allocation2 + $0x33a] sm:$0xff]
      %v2620 = vld [vmem:[#allocation2 + $0x342] sm:$0xff]
      %v2621 = vld [vmem:[#allocation2 + $0x1e] sm:$0xff]
      %v2622 = vld [vmem:[#allocation2 + $0x26] sm:$0xff]
      %v2623 = vld [vmem:[#allocation2 + $0x2e] sm:$0xff]
      %v2624 = vld [vmem:[#allocation2 + $0x36] sm:$0xff]
      %v2625 = vld [vmem:[#allocation2 + $0x3e] sm:$0xff]
      %v2626 = vld [vmem:[#allocation2 + $0x46] sm:$0xff]
      %v2627 = vld [vmem:[#allocation2 + $0x4e] sm:$0xff]
      %v2628 = vld [vmem:[#allocation2 + $0x56] sm:$0xff]
      %v2629 = vld [vmem:[#allocation2 + $0x5e] sm:$0xff]
      %v2630 = vld [vmem:[#allocation2 + $0x66] sm:$0xff]
      %v2631 = vld [vmem:[#allocation2 + $0x6e] sm:$0xff]
      %v2632 = vld [vmem:[#allocation2 + $0x76] sm:$0xff]
      %v2633 = vld [vmem:[#allocation2 + $0x7e] sm:$0xff]
      %v2634 = vld [vmem:[#allocation2 + $0x86] sm:$0xff]
      %v2635 = vld [vmem:[#allocation2 + $0x8e] sm:$0xff]
      %v2636 = vld [vmem:[#allocation2 + $0x96] sm:$0xff]
      %v2637 = vld [vmem:[#allocation2 + $0x9e] sm:$0xff]
      %v2638 = vld [vmem:[#allocation2 + $0xa6] sm:$0xff]
      %v2639 = vld [vmem:[#allocation2 + $0xae] sm:$0xff]
      %v2640 = vld [vmem:[#allocation2 + $0xb6] sm:$0xff]
      %v2641 = vld [vmem:[#allocation2 + $0xbe] sm:$0xff]
      %v2642 = vld [vmem:[#allocation2 + $0xc6] sm:$0xff]
      %v2643 = vld [vmem:[#allocation2 + $0xce] sm:$0xff]
      %v2644 = vld [vmem:[#allocation2 + $0xd6] sm:$0xff]
      %v2645 = vld [vmem:[#allocation2 + $0xde] sm:$0xff]
      %v2646 = vld [vmem:[#allocation2 + $0xe6] sm:$0xff]
      %v2647 = vld [vmem:[#allocation2 + $0xee] sm:$0xff]
      %v2648 = vld [vmem:[#allocation2 + $0xf6] sm:$0xff]
      %v2649 = vld [vmem:[#allocation2 + $0xfe] sm:$0xff]
      %v2650 = vld [vmem:[#allocation2 + $0x106] sm:$0xff]
      %v2651 = vld [vmem:[#allocation2 + $0x10e] sm:$0xff]
      %v2652 = vld [vmem:[#allocation2 + $0x116] sm:$0xff]
      %v2653 = vld [vmem:[#allocation2 + $0x11e] sm:$0xff]
      %v2654 = vld [vmem:[#allocation2 + $0x126] sm:$0xff]
      %v2655 = vld [vmem:[#allocation2 + $0x12e] sm:$0xff]
      %v2656 = vld [vmem:[#allocation2 + $0x136] sm:$0xff]
      %v2657 = vld [vmem:[#allocation2 + $0x13e] sm:$0xff]
      %v2658 = vld [vmem:[#allocation2 + $0x146] sm:$0xff]
      %v2659 = vld [vmem:[#allocation2 + $0x14e] sm:$0xff]
      %v2660 = vld [vmem:[#allocation2 + $0x156] sm:$0xff]
      %v2661 = vld [vmem:[#allocation2 + $0x15e] sm:$0xff]
      %v2662 = vld [vmem:[#allocation2 + $0x166] sm:$0xff]
      %v2663 = vld [vmem:[#allocation2 + $0x16e] sm:$0xff]
      %v2664 = vld [vmem:[#allocation2 + $0x176] sm:$0xff]
      %v2665 = vld [vmem:[#allocation2 + $0x17e] sm:$0xff]
      %v2666 = vld [vmem:[#allocation2 + $0x186] sm:$0xff]
      %v2667 = vld [vmem:[#allocation2 + $0x18e] sm:$0xff]
      %v2668 = vld [vmem:[#allocation2 + $0x196] sm:$0xff]
      %v2669 = vld [vmem:[#allocation2 + $0x19e] sm:$0xff]
      %v2670 = vld [vmem:[#allocation2 + $0x1a6] sm:$0xff]
      %v2671 = vld [vmem:[#allocation2 + $0x1ae] sm:$0xff]
      %v2672 = vld [vmem:[#allocation2 + $0x1b6] sm:$0xff]
      %v2673 = vld [vmem:[#allocation2 + $0x1be] sm:$0xff]
      %v2674 = vld [vmem:[#allocation2 + $0x1c6] sm:$0xff]
      %v2675 = vld [vmem:[#allocation2 + $0x1ce] sm:$0xff]
      %v2676 = vld [vmem:[#allocation2 + $0x1d6] sm:$0xff]
      %v2677 = vld [vmem:[#allocation2 + $0x1de] sm:$0xff]
      %v2678 = vld [vmem:[#allocation2 + $0x1e6] sm:$0xff]
      %v2679 = vld [vmem:[#allocation2 + $0x1ee] sm:$0xff]
      %v2680 = vld [vmem:[#allocation2 + $0x1f6] sm:$0xff]
      %v2681 = vld [vmem:[#allocation2 + $0x1fe] sm:$0xff]
      %v2682 = vld [vmem:[#allocation2 + $0x206] sm:$0xff]
      %v2683 = vld [vmem:[#allocation2 + $0x20e] sm:$0xff]
      %v2684 = vld [vmem:[#allocation2 + $0x216] sm:$0xff]
      %v2685 = vld [vmem:[#allocation2 + $0x21e] sm:$0xff]
      %v2686 = vld [vmem:[#allocation2 + $0x226] sm:$0xff]
      %v2687 = vld [vmem:[#allocation2 + $0x22e] sm:$0xff]
      %v2688 = vld [vmem:[#allocation2 + $0x236] sm:$0xff]
      %v2689 = vld [vmem:[#allocation2 + $0x23e] sm:$0xff]
      %v2690 = vld [vmem:[#allocation2 + $0x246] sm:$0xff]
      %v2691 = vld [vmem:[#allocation2 + $0x24e] sm:$0xff]
      %v2692 = vld [vmem:[#allocation2 + $0x256] sm:$0xff]
      %v2693 = vld [vmem:[#allocation2 + $0x25e] sm:$0xff]
      %v2694 = vld [vmem:[#allocation2 + $0x266] sm:$0xff]
      %v2695 = vld [vmem:[#allocation2 + $0x26e] sm:$0xff]
      %v2696 = vld [vmem:[#allocation2 + $0x276] sm:$0xff]
      %v2697 = vld [vmem:[#allocation2 + $0x27e] sm:$0xff]
      %v2698 = vld [vmem:[#allocation2 + $0x286] sm:$0xff]
      %v2699 = vld [vmem:[#allocation2 + $0x28e] sm:$0xff]
      %v2700 = vld [vmem:[#allocation2 + $0x296] sm:$0xff]
      %v2701 = vld [vmem:[#allocation2 + $0x29e] sm:$0xff]
      %v2702 = vld [vmem:[#allocation2 + $0x2a6] sm:$0xff]
      %v2703 = vld [vmem:[#allocation2 + $0x2ae] sm:$0xff]
      %v2704 = vld [vmem:[#allocation2 + $0x2b6] sm:$0xff]
      %v2705 = vld [vmem:[#allocation2 + $0x2be] sm:$0xff]
      %v2706 = vld [vmem:[#allocation2 + $0x2c6] sm:$0xff]
      %v2707 = vld [vmem:[#allocation2 + $0x2ce] sm:$0xff]
      %v2708 = vld [vmem:[#allocation2 + $0x2d6] sm:$0xff]
      %v2709 = vld [vmem:[#allocation2 + $0x2de] sm:$0xff]
      %v2710 = vld [vmem:[#allocation2 + $0x2e6] sm:$0xff]
      %v2711 = vld [vmem:[#allocation2 + $0x2ee] sm:$0xff]
      %v2712 = vld [vmem:[#allocation2 + $0x2f6] sm:$0xff]
      %v2713 = vld [vmem:[#allocation2 + $0x2fe] sm:$0xff]
      %v2714 = vld [vmem:[#allocation2 + $0x306] sm:$0xff]
      %v2715 = vld [vmem:[#allocation2 + $0x30e] sm:$0xff]
      %v2716 = vld [vmem:[#allocation2 + $0x316] sm:$0xff]
      %v2717 = vld [vmem:[#allocation2 + $0x31e] sm:$0xff]
      %v2718 = vld [vmem:[#allocation2 + $0x326] sm:$0xff]
      %v2719 = vld [vmem:[#allocation2 + $0x32e] sm:$0xff]
      %v2720 = vld [vmem:[#allocation2 + $0x336] sm:$0xff]
      %v2721 = vld [vmem:[#allocation2 + $0x33e] sm:$0xff]
      %v2722 = vld [vmem:[#allocation2 + $0x346] sm:$0xff]
      %v2723 = vld [vmem:[#allocation2 + $0x34e] sm:$0xff]
      %v2724 = vld [vmem:[#allocation2 + $0x356] sm:$0xff]
      %v2725 = vld [vmem:[#allocation2 + $0x35e] sm:$0xff]
      %v2726 = vld [vmem:[#allocation2 + $0x1f] sm:$0xff]
      %v2727 = vld [vmem:[#allocation2 + $0x27] sm:$0xff]
      %v2728 = vld [vmem:[#allocation2 + $0x2f] sm:$0xff]
      %v2729 = vld [vmem:[#allocation2 + $0x37] sm:$0xff]
      %v2730 = vld [vmem:[#allocation2 + $0x3f] sm:$0xff]
      %v2731 = vld [vmem:[#allocation2 + $0x47] sm:$0xff]
      %v2732 = vld [vmem:[#allocation2 + $0x4f] sm:$0xff]
      %v2733 = vld [vmem:[#allocation2 + $0x57] sm:$0xff]
      %v2734 = vld [vmem:[#allocation2 + $0x5f] sm:$0xff]
      %v2735 = vld [vmem:[#allocation2 + $0x67] sm:$0xff]
      %v2736 = vld [vmem:[#allocation2 + $0x6f] sm:$0xff]
      %v2737 = vld [vmem:[#allocation2 + $0x77] sm:$0xff]
      %v2738 = vld [vmem:[#allocation2 + $0x7f] sm:$0xff]
      %v2739 = vld [vmem:[#allocation2 + $0x87] sm:$0xff]
      %v2740 = vld [vmem:[#allocation2 + $0x8f] sm:$0xff]
      %v2741 = vld [vmem:[#allocation2 + $0x97] sm:$0xff]
      %v2742 = vld [vmem:[#allocation2 + $0x9f] sm:$0xff]
      %v2743 = vld [vmem:[#allocation2 + $0xa7] sm:$0xff]
      %v2744 = vld [vmem:[#allocation2 + $0xaf] sm:$0xff]
      %v2745 = vld [vmem:[#allocation2 + $0xb7] sm:$0xff]
      %v2746 = vld [vmem:[#allocation2 + $0xbf] sm:$0xff]
      %v2747 = vld [vmem:[#allocation2 + $0xc7] sm:$0xff]
      %v2748 = vld [vmem:[#allocation2 + $0xcf] sm:$0xff]
      %v2749 = vld [vmem:[#allocation2 + $0xd7] sm:$0xff]
      %v2750 = vld [vmem:[#allocation2 + $0xdf] sm:$0xff]
      %v2751 = vld [vmem:[#allocation2 + $0xe7] sm:$0xff]
      %v2752 = vld [vmem:[#allocation2 + $0xef] sm:$0xff]
      %v2753 = vld [vmem:[#allocation2 + $0xf7] sm:$0xff]
      %v2754 = vld [vmem:[#allocation2 + $0xff] sm:$0xff]
      %v2755 = vld [vmem:[#allocation2 + $0x107] sm:$0xff]
      %v2756 = vld [vmem:[#allocation2 + $0x10f] sm:$0xff]
      %v2757 = vld [vmem:[#allocation2 + $0x117] sm:$0xff]
      %v2758 = vld [vmem:[#allocation2 + $0x11f] sm:$0xff]
      %v2759 = vld [vmem:[#allocation2 + $0x127] sm:$0xff]
      %v2760 = vld [vmem:[#allocation2 + $0x12f] sm:$0xff]
      %v2761 = vld [vmem:[#allocation2 + $0x137] sm:$0xff]
      %v2762 = vld [vmem:[#allocation2 + $0x13f] sm:$0xff]
      %v2763 = vld [vmem:[#allocation2 + $0x147] sm:$0xff]
      %v2764 = vld [vmem:[#allocation2 + $0x14f] sm:$0xff]
      %v2765 = vld [vmem:[#allocation2 + $0x157] sm:$0xff]
      %v2766 = vld [vmem:[#allocation2 + $0x15f] sm:$0xff]
      %v2767 = vld [vmem:[#allocation2 + $0x167] sm:$0xff]
      %v2768 = vld [vmem:[#allocation2 + $0x16f] sm:$0xff]
      %v2769 = vld [vmem:[#allocation2 + $0x177] sm:$0xff]
      %v2770 = vld [vmem:[#allocation2 + $0x17f] sm:$0xff]
      %v2771 = vld [vmem:[#allocation2 + $0x187] sm:$0xff]
      %v2772 = vld [vmem:[#allocation2 + $0x18f] sm:$0xff]
      %v2773 = vld [vmem:[#allocation2 + $0x197] sm:$0xff]
      %v2774 = vld [vmem:[#allocation2 + $0x19f] sm:$0xff]
      %v2775 = vld [vmem:[#allocation2 + $0x1a7] sm:$0xff]
      %v2776 = vld [vmem:[#allocation2 + $0x1af] sm:$0xff]
      %v2777 = vld [vmem:[#allocation2 + $0x1b7] sm:$0xff]
      %v2778 = vld [vmem:[#allocation2 + $0x1bf] sm:$0xff]
      %v2779 = vld [vmem:[#allocation2 + $0x1c7] sm:$0xff]
      %v2780 = vld [vmem:[#allocation2 + $0x1cf] sm:$0xff]
      %v2781 = vld [vmem:[#allocation2 + $0x1d7] sm:$0xff]
      %v2782 = vld [vmem:[#allocation2 + $0x1df] sm:$0xff]
      %v2783 = vld [vmem:[#allocation2 + $0x1e7] sm:$0xff]
      %v2784 = vld [vmem:[#allocation2 + $0x1ef] sm:$0xff]
      %v2785 = vld [vmem:[#allocation2 + $0x1f7] sm:$0xff]
      %v2786 = vld [vmem:[#allocation2 + $0x1ff] sm:$0xff]
      %v2787 = vld [vmem:[#allocation2 + $0x207] sm:$0xff]
      %v2788 = vld [vmem:[#allocation2 + $0x20f] sm:$0xff]
      %v2789 = vld [vmem:[#allocation2 + $0x217] sm:$0xff]
      %v2790 = vld [vmem:[#allocation2 + $0x21f] sm:$0xff]
      %v2791 = vld [vmem:[#allocation2 + $0x227] sm:$0xff]
      %v2792 = vld [vmem:[#allocation2 + $0x22f] sm:$0xff]
      %v2793 = vld [vmem:[#allocation2 + $0x237] sm:$0xff]
      %v2794 = vld [vmem:[#allocation2 + $0x23f] sm:$0xff]
      %v2795 = vld [vmem:[#allocation2 + $0x247] sm:$0xff]
      %v2796 = vld [vmem:[#allocation2 + $0x24f] sm:$0xff]
      %v2797 = vld [vmem:[#allocation2 + $0x257] sm:$0xff]
      %v2798 = vld [vmem:[#allocation2 + $0x25f] sm:$0xff]
      %v2799 = vld [vmem:[#allocation2 + $0x267] sm:$0xff]
      %v2800 = vld [vmem:[#allocation2 + $0x26f] sm:$0xff]
      %v2801 = vld [vmem:[#allocation2 + $0x277] sm:$0xff]
      %v2802 = vld [vmem:[#allocation2 + $0x27f] sm:$0xff]
      %v2803 = vld [vmem:[#allocation2 + $0x287] sm:$0xff]
      %v2804 = vld [vmem:[#allocation2 + $0x28f] sm:$0xff]
      %v2805 = vld [vmem:[#allocation2 + $0x297] sm:$0xff]
      %v2806 = vld [vmem:[#allocation2 + $0x29f] sm:$0xff]
      %v2807 = vld [vmem:[#allocation2 + $0x2a7] sm:$0xff]
      %v2808 = vld [vmem:[#allocation2 + $0x2af] sm:$0xff]
      %v2809 = vld [vmem:[#allocation2 + $0x2b7] sm:$0xff]
      %v2810 = vld [vmem:[#allocation2 + $0x2bf] sm:$0xff]
      %v2811 = vld [vmem:[#allocation2 + $0x2c7] sm:$0xff]
      %v2812 = vld [vmem:[#allocation2 + $0x2cf] sm:$0xff]
      %v2813 = vld [vmem:[#allocation2 + $0x2d7] sm:$0xff]
      %v2814 = vld [vmem:[#allocation2 + $0x2df] sm:$0xff]
      %v2815 = vld [vmem:[#allocation2 + $0x2e7] sm:$0xff]
      %v2816 = vld [vmem:[#allocation2 + $0x2ef] sm:$0xff]
      %v2817 = vld [vmem:[#allocation2 + $0x2f7] sm:$0xff]
      %v2818 = vld [vmem:[#allocation2 + $0x2ff] sm:$0xff]
      %v2819 = vld [vmem:[#allocation2 + $0x307] sm:$0xff]
      %v2820 = vld [vmem:[#allocation2 + $0x30f] sm:$0xff]
      %v2821 = vld [vmem:[#allocation2 + $0x317] sm:$0xff]
      %v2822 = vld [vmem:[#allocation2 + $0x31f] sm:$0xff]
      %v2823 = vld [vmem:[#allocation2 + $0x327] sm:$0xff]
      %v2824 = vld [vmem:[#allocation2 + $0x32f] sm:$0xff]
      %v2825 = vld [vmem:[#allocation2 + $0x337] sm:$0xff]
      %v2826 = vld [vmem:[#allocation2 + $0x33f] sm:$0xff]
      %v2827 = vld [vmem:[#allocation2 + $0x347] sm:$0xff]
      %v2828 = vld [vmem:[#allocation2 + $0x34f] sm:$0xff]
      %v2829 = vld [vmem:[#allocation2 + $0x357] sm:$0xff]
      %v2830 = vld [vmem:[#allocation2 + $0x35f] sm:$0xff]
      %v2831 = vld [vmem:[#allocation2 + $0x348] sm:$0xff]
      %v2832 = vld [vmem:[#allocation2 + $0x350] sm:$0xff]
      %v2833 = vld [vmem:[#allocation2 + $0x358] sm:$0xff]
      %v2834 = vld [vmem:[#allocation2 + $0x360] sm:$0xff]
      %v2835 = vld [vmem:[#allocation2 + $0x3c] sm:$0xff]
      %v2836 = vld [vmem:[#allocation2 + $0x44] sm:$0xff]
      %v2837 = vld [vmem:[#allocation2 + $0x4c] sm:$0xff]
      %v2838 = vld [vmem:[#allocation2 + $0x54] sm:$0xff]
      %v2839 = vld [vmem:[#allocation2 + $0x5c] sm:$0xff]
      %v2840 = vld [vmem:[#allocation2 + $0x64] sm:$0xff]
      %v2841 = vld [vmem:[#allocation2 + $0x6c] sm:$0xff]
      %v2842 = vld [vmem:[#allocation2 + $0x74] sm:$0xff]
      %v2843 = vld [vmem:[#allocation2 + $0x7c] sm:$0xff]
      %v2844 = vld [vmem:[#allocation2 + $0x84] sm:$0xff]
      %v2845 = vld [vmem:[#allocation2 + $0x8c] sm:$0xff]
      %v2846 = vld [vmem:[#allocation2 + $0x94] sm:$0xff]
      %v2847 = vld [vmem:[#allocation2 + $0x9c] sm:$0xff]
      %v2848 = vld [vmem:[#allocation2 + $0xa4] sm:$0xff]
      %v2849 = vld [vmem:[#allocation2 + $0xac] sm:$0xff]
      %v2850 = vld [vmem:[#allocation2 + $0xb4] sm:$0xff]
      %v2851 = vld [vmem:[#allocation2 + $0xbc] sm:$0xff]
      %v2852 = vld [vmem:[#allocation2 + $0xc4] sm:$0xff]
      %v2853 = vld [vmem:[#allocation2 + $0xcc] sm:$0xff]
      %v2854 = vld [vmem:[#allocation2 + $0xd4] sm:$0xff]
      %v2855 = vld [vmem:[#allocation2 + $0xdc] sm:$0xff]
      %v2856 = vld [vmem:[#allocation2 + $0xe4] sm:$0xff]
      %v2857 = vld [vmem:[#allocation2 + $0xec] sm:$0xff]
      %v2858 = vld [vmem:[#allocation2 + $0xf4] sm:$0xff]
      %v2859 = vld [vmem:[#allocation2 + $0xfc] sm:$0xff]
      %v2860 = vld [vmem:[#allocation2 + $0x104] sm:$0xff]
      %v2861 = vld [vmem:[#allocation2 + $0x10c] sm:$0xff]
      %v2862 = vld [vmem:[#allocation2 + $0x114] sm:$0xff]
      %v2863 = vld [vmem:[#allocation2 + $0x11c] sm:$0xff]
      %v2864 = vld [vmem:[#allocation2 + $0x124] sm:$0xff]
      %v2865 = vld [vmem:[#allocation2 + $0x12c] sm:$0xff]
      %v2866 = vld [vmem:[#allocation2 + $0x134] sm:$0xff]
      %v2867 = vld [vmem:[#allocation2 + $0x13c] sm:$0xff]
      %v2868 = vld [vmem:[#allocation2 + $0x144] sm:$0xff]
      %v2869 = vld [vmem:[#allocation2 + $0x14c] sm:$0xff]
      %v2870 = vld [vmem:[#allocation2 + $0x154] sm:$0xff]
      %v2871 = vld [vmem:[#allocation2 + $0x15c] sm:$0xff]
      %v2872 = vld [vmem:[#allocation2 + $0x164] sm:$0xff]
      %v2873 = vld [vmem:[#allocation2 + $0x16c] sm:$0xff]
      %v2874 = vld [vmem:[#allocation2 + $0x174] sm:$0xff]
      %v2875 = vld [vmem:[#allocation2 + $0x17c] sm:$0xff]
      %v2876 = vld [vmem:[#allocation2 + $0x184] sm:$0xff]
      %v2877 = vld [vmem:[#allocation2 + $0x18c] sm:$0xff]
      %v2878 = vld [vmem:[#allocation2 + $0x194] sm:$0xff]
      %v2879 = vld [vmem:[#allocation2 + $0x19c] sm:$0xff]
      %v2880 = vld [vmem:[#allocation2 + $0x1a4] sm:$0xff]
      %v2881 = vld [vmem:[#allocation2 + $0x1ac] sm:$0xff]
      %v2882 = vld [vmem:[#allocation2 + $0x1b4] sm:$0xff]
      %v2883 = vld [vmem:[#allocation2 + $0x1bc] sm:$0xff]
      %v2884 = vld [vmem:[#allocation2 + $0x1c4] sm:$0xff]
      %v2885 = vld [vmem:[#allocation2 + $0x1cc] sm:$0xff]
      %v2886 = vld [vmem:[#allocation2 + $0x1d4] sm:$0xff]
      %v2887 = vld [vmem:[#allocation2 + $0x1dc] sm:$0xff]
      %v2888 = vld [vmem:[#allocation2 + $0x1e4] sm:$0xff]
      %v2889 = vld [vmem:[#allocation2 + $0x1ec] sm:$0xff]
      %v2890 = vld [vmem:[#allocation2 + $0x1f4] sm:$0xff]
      %v2891 = vld [vmem:[#allocation2 + $0x1fc] sm:$0xff]
      %v2892 = vld [vmem:[#allocation2 + $0x204] sm:$0xff]
      %v2893 = vld [vmem:[#allocation2 + $0x20c] sm:$0xff]
      %v2894 = vld [vmem:[#allocation2 + $0x214] sm:$0xff]
      %v2895 = vld [vmem:[#allocation2 + $0x21c] sm:$0xff]
      %v2896 = vld [vmem:[#allocation2 + $0x224] sm:$0xff]
      %v2897 = vld [vmem:[#allocation2 + $0x22c] sm:$0xff]
      %v2898 = vld [vmem:[#allocation2 + $0x234] sm:$0xff]
      %v2899 = vld [vmem:[#allocation2 + $0x23c] sm:$0xff]
      %v2900 = vld [vmem:[#allocation2 + $0x244] sm:$0xff]
      %v2901 = vld [vmem:[#allocation2 + $0x24c] sm:$0xff]
      %v2902 = vld [vmem:[#allocation2 + $0x254] sm:$0xff]
      %v2903 = vld [vmem:[#allocation2 + $0x25c] sm:$0xff]
      %v2904 = vld [vmem:[#allocation2 + $0x264] sm:$0xff]
      %v2905 = vld [vmem:[#allocation2 + $0x26c] sm:$0xff]
      %v2906 = vld [vmem:[#allocation2 + $0x274] sm:$0xff]
      %v2907 = vld [vmem:[#allocation2 + $0x27c] sm:$0xff]
      %v2908 = vld [vmem:[#allocation2 + $0x284] sm:$0xff]
      %v2909 = vld [vmem:[#allocation2 + $0x28c] sm:$0xff]
      %v2910 = vld [vmem:[#allocation2 + $0x294] sm:$0xff]
      %v2911 = vld [vmem:[#allocation2 + $0x29c] sm:$0xff]
      %v2912 = vld [vmem:[#allocation2 + $0x2a4] sm:$0xff]
      %v2913 = vld [vmem:[#allocation2 + $0x2ac] sm:$0xff]
      %v2914 = vld [vmem:[#allocation2 + $0x2b4] sm:$0xff]
      %v2915 = vld [vmem:[#allocation2 + $0x2bc] sm:$0xff]
      %v2916 = vld [vmem:[#allocation2 + $0x2c4] sm:$0xff]
      %v2917 = vld [vmem:[#allocation2 + $0x2cc] sm:$0xff]
      %v2918 = vld [vmem:[#allocation2 + $0x2d4] sm:$0xff]
      %v2919 = vld [vmem:[#allocation2 + $0x2dc] sm:$0xff]
      %v2920 = vld [vmem:[#allocation2 + $0x2e4] sm:$0xff]
      %v2921 = vld [vmem:[#allocation2 + $0x2ec] sm:$0xff]
      %v2922 = vld [vmem:[#allocation2 + $0x2f4] sm:$0xff]
      %v2923 = vld [vmem:[#allocation2 + $0x2fc] sm:$0xff]
      %v2924 = vld [vmem:[#allocation2 + $0x304] sm:$0xff]
      %v2925 = vld [vmem:[#allocation2 + $0x30c] sm:$0xff]
      %v2926 = vld [vmem:[#allocation2 + $0x314] sm:$0xff]
      %v2927 = vld [vmem:[#allocation2 + $0x31c] sm:$0xff]
      %v2928 = vld [vmem:[#allocation2 + $0x324] sm:$0xff]
      %v2929 = vld [vmem:[#allocation2 + $0x32c] sm:$0xff]
      %v2930 = vld [vmem:[#allocation2 + $0x334] sm:$0xff]
      %v2931 = vld [vmem:[#allocation2 + $0x33c] sm:$0xff]
      %v2932 = vld [vmem:[#allocation2 + $0x344] sm:$0xff]
      %v2933 = vld [vmem:[#allocation2 + $0x34c] sm:$0xff]
      %v2934 = vld [vmem:[#allocation2 + $0x354] sm:$0xff]
      %v2935 = vld [vmem:[#allocation2 + $0x35c] sm:$0xff]
      %v2936 = vld [vmem:[#allocation2 + $0x364] sm:$0xff]
      %v2937 = vld [vmem:[#allocation2 + $0x36c] sm:$0xff]
      %v2938 = vld [vmem:[#allocation2 + $0x374] sm:$0xff]
      %v2939 = vld [vmem:[#allocation2 + $0x37c] sm:$0xff]
      %v2940 = vld [vmem:[#allocation2 + $0x3d] sm:$0xff]
      %v2941 = vld [vmem:[#allocation2 + $0x45] sm:$0xff]
      %v2942 = vld [vmem:[#allocation2 + $0x4d] sm:$0xff]
      %v2943 = vld [vmem:[#allocation2 + $0x55] sm:$0xff]
      %v2944 = vld [vmem:[#allocation2 + $0x5d] sm:$0xff]
      %v2945 = vld [vmem:[#allocation2 + $0x65] sm:$0xff]
      %v2946 = vld [vmem:[#allocation2 + $0x6d] sm:$0xff]
      %v2947 = vld [vmem:[#allocation2 + $0x75] sm:$0xff]
      %v2948 = vld [vmem:[#allocation2 + $0x7d] sm:$0xff]
      %v2949 = vld [vmem:[#allocation2 + $0x85] sm:$0xff]
      %v2950 = vld [vmem:[#allocation2 + $0x8d] sm:$0xff]
      %v2951 = vld [vmem:[#allocation2 + $0x95] sm:$0xff]
      %v2952 = vld [vmem:[#allocation2 + $0x9d] sm:$0xff]
      %v2953 = vld [vmem:[#allocation2 + $0xa5] sm:$0xff]
      %v2954 = vld [vmem:[#allocation2 + $0xad] sm:$0xff]
      %v2955 = vld [vmem:[#allocation2 + $0xb5] sm:$0xff]
      %v2956 = vld [vmem:[#allocation2 + $0xbd] sm:$0xff]
      %v2957 = vld [vmem:[#allocation2 + $0xc5] sm:$0xff]
      %v2958 = vld [vmem:[#allocation2 + $0xcd] sm:$0xff]
      %v2959 = vld [vmem:[#allocation2 + $0xd5] sm:$0xff]
      %v2960 = vld [vmem:[#allocation2 + $0xdd] sm:$0xff]
      %v2961 = vld [vmem:[#allocation2 + $0xe5] sm:$0xff]
      %v2962 = vld [vmem:[#allocation2 + $0xed] sm:$0xff]
      %v2963 = vld [vmem:[#allocation2 + $0xf5] sm:$0xff]
      %v2964 = vld [vmem:[#allocation2 + $0xfd] sm:$0xff]
      %v2965 = vld [vmem:[#allocation2 + $0x105] sm:$0xff]
      %v2966 = vld [vmem:[#allocation2 + $0x10d] sm:$0xff]
      %v2967 = vld [vmem:[#allocation2 + $0x115] sm:$0xff]
      %v2968 = vld [vmem:[#allocation2 + $0x11d] sm:$0xff]
      %v2969 = vld [vmem:[#allocation2 + $0x125] sm:$0xff]
      %v2970 = vld [vmem:[#allocation2 + $0x12d] sm:$0xff]
      %v2971 = vld [vmem:[#allocation2 + $0x135] sm:$0xff]
      %v2972 = vld [vmem:[#allocation2 + $0x13d] sm:$0xff]
      %v2973 = vld [vmem:[#allocation2 + $0x145] sm:$0xff]
      %v2974 = vld [vmem:[#allocation2 + $0x14d] sm:$0xff]
      %v2975 = vld [vmem:[#allocation2 + $0x155] sm:$0xff]
      %v2976 = vld [vmem:[#allocation2 + $0x15d] sm:$0xff]
      %v2977 = vld [vmem:[#allocation2 + $0x165] sm:$0xff]
      %v2978 = vld [vmem:[#allocation2 + $0x16d] sm:$0xff]
      %v2979 = vld [vmem:[#allocation2 + $0x175] sm:$0xff]
      %v2980 = vld [vmem:[#allocation2 + $0x17d] sm:$0xff]
      %v2981 = vld [vmem:[#allocation2 + $0x185] sm:$0xff]
      %v2982 = vld [vmem:[#allocation2 + $0x18d] sm:$0xff]
      %v2983 = vld [vmem:[#allocation2 + $0x195] sm:$0xff]
      %v2984 = vld [vmem:[#allocation2 + $0x19d] sm:$0xff]
      %v2985 = vld [vmem:[#allocation2 + $0x1a5] sm:$0xff]
      %v2986 = vld [vmem:[#allocation2 + $0x1ad] sm:$0xff]
      %v2987 = vld [vmem:[#allocation2 + $0x1b5] sm:$0xff]
      %v2988 = vld [vmem:[#allocation2 + $0x1bd] sm:$0xff]
      %v2989 = vld [vmem:[#allocation2 + $0x1c5] sm:$0xff]
      %v2990 = vld [vmem:[#allocation2 + $0x1cd] sm:$0xff]
      %v2991 = vld [vmem:[#allocation2 + $0x1d5] sm:$0xff]
      %v2992 = vld [vmem:[#allocation2 + $0x1dd] sm:$0xff]
      %v2993 = vld [vmem:[#allocation2 + $0x1e5] sm:$0xff]
      %v2994 = vld [vmem:[#allocation2 + $0x1ed] sm:$0xff]
      %v2995 = vld [vmem:[#allocation2 + $0x1f5] sm:$0xff]
      %v2996 = vld [vmem:[#allocation2 + $0x1fd] sm:$0xff]
      %v2997 = vld [vmem:[#allocation2 + $0x205] sm:$0xff]
      %v2998 = vld [vmem:[#allocation2 + $0x20d] sm:$0xff]
      %v2999 = vld [vmem:[#allocation2 + $0x215] sm:$0xff]
      %v3000 = vld [vmem:[#allocation2 + $0x21d] sm:$0xff]
      %v3001 = vld [vmem:[#allocation2 + $0x225] sm:$0xff]
      %v3002 = vld [vmem:[#allocation2 + $0x22d] sm:$0xff]
      %v3003 = vld [vmem:[#allocation2 + $0x235] sm:$0xff]
      %v3004 = vld [vmem:[#allocation2 + $0x23d] sm:$0xff]
      %v3005 = vld [vmem:[#allocation2 + $0x245] sm:$0xff]
      %v3006 = vld [vmem:[#allocation2 + $0x24d] sm:$0xff]
      %v3007 = vld [vmem:[#allocation2 + $0x255] sm:$0xff]
      %v3008 = vld [vmem:[#allocation2 + $0x25d] sm:$0xff]
      %v3009 = vld [vmem:[#allocation2 + $0x265] sm:$0xff]
      %v3010 = vld [vmem:[#allocation2 + $0x26d] sm:$0xff]
      %v3011 = vld [vmem:[#allocation2 + $0x275] sm:$0xff]
      %v3012 = vld [vmem:[#allocation2 + $0x27d] sm:$0xff]
      %v3013 = vld [vmem:[#allocation2 + $0x285] sm:$0xff]
      %v3014 = vld [vmem:[#allocation2 + $0x28d] sm:$0xff]
      %v3015 = vld [vmem:[#allocation2 + $0x295] sm:$0xff]
      %v3016 = vld [vmem:[#allocation2 + $0x29d] sm:$0xff]
      %v3017 = vld [vmem:[#allocation2 + $0x2a5] sm:$0xff]
      %v3018 = vld [vmem:[#allocation2 + $0x2ad] sm:$0xff]
      %v3019 = vld [vmem:[#allocation2 + $0x2b5] sm:$0xff]
      %v3020 = vld [vmem:[#allocation2 + $0x2bd] sm:$0xff]
      %v3021 = vld [vmem:[#allocation2 + $0x2c5] sm:$0xff]
      %v3022 = vld [vmem:[#allocation2 + $0x2cd] sm:$0xff]
      %v3023 = vld [vmem:[#allocation2 + $0x2d5] sm:$0xff]
      %v3024 = vld [vmem:[#allocation2 + $0x2dd] sm:$0xff]
      %v3025 = vld [vmem:[#allocation2 + $0x2e5] sm:$0xff]
      %v3026 = vld [vmem:[#allocation2 + $0x2ed] sm:$0xff]
      %v3027 = vld [vmem:[#allocation2 + $0x2f5] sm:$0xff]
      %v3028 = vld [vmem:[#allocation2 + $0x2fd] sm:$0xff]
      %v3029 = vld [vmem:[#allocation2 + $0x305] sm:$0xff]
      %v3030 = vld [vmem:[#allocation2 + $0x30d] sm:$0xff]
      %v3031 = vld [vmem:[#allocation2 + $0x315] sm:$0xff]
      %v3032 = vld [vmem:[#allocation2 + $0x31d] sm:$0xff]
      %v3033 = vld [vmem:[#allocation2 + $0x325] sm:$0xff]
      %v3034 = vld [vmem:[#allocation2 + $0x32d] sm:$0xff]
      %v3035 = vld [vmem:[#allocation2 + $0x335] sm:$0xff]
      %v3036 = vld [vmem:[#allocation2 + $0x33d] sm:$0xff]
      %v3037 = vld [vmem:[#allocation2 + $0x345] sm:$0xff]
      %v3038 = vld [vmem:[#allocation2 + $0x34d] sm:$0xff]
      %v3039 = vld [vmem:[#allocation2 + $0x355] sm:$0xff]
      %v3040 = vld [vmem:[#allocation2 + $0x35d] sm:$0xff]
      %v3041 = vld [vmem:[#allocation2 + $0x365] sm:$0xff]
      %v3042 = vld [vmem:[#allocation2 + $0x36d] sm:$0xff]
      %v3043 = vld [vmem:[#allocation2 + $0x375] sm:$0xff]
      %v3044 = vld [vmem:[#allocation2 + $0x37d] sm:$0xff]
      %v3045 = vld [vmem:[#allocation2 + $0x366] sm:$0xff]
      %v3046 = vld [vmem:[#allocation2 + $0x36e] sm:$0xff]
      %v3047 = vld [vmem:[#allocation2 + $0x376] sm:$0xff]
      %v3048 = vld [vmem:[#allocation2 + $0x37e] sm:$0xff]
      %3154 = vrot.lane.b32.xlu0 %v2411, 16
      %v3155 = vpop.permute.xlu0 %3154
      %3156 = vrot.lane.b32.xlu0 %v2412, 16
      %v3157 = vpop.permute.xlu0 %3156
      %3158 = vrot.lane.b32.xlu0 %v2413, 16
      %v3159 = vpop.permute.xlu0 %3158
      %3160 = vrot.lane.b32.xlu0 %v2414, 16
      %v3161 = vpop.permute.xlu0 %3160
      %3162 = vrot.lane.b32.xlu0 %v2415, 16
      %v3163 = vpop.permute.xlu0 %3162
      %3164 = vrot.lane.b32.xlu0 %v2416, 16
      %v3165 = vpop.permute.xlu0 %3164
      %3166 = vrot.lane.b32.xlu0 %v2417, 16
      %v3167 = vpop.permute.xlu0 %3166
      %3168 = vrot.lane.b32.xlu0 %v2418, 16
      %v3169 = vpop.permute.xlu0 %3168
      %3170 = vrot.lane.b32.xlu0 %v2419, 16
      %v3171 = vpop.permute.xlu0 %3170
      %3172 = vrot.lane.b32.xlu0 %v2420, 16
      %v3173 = vpop.permute.xlu0 %3172
      %3174 = vrot.lane.b32.xlu0 %v2421, 16
      %v3175 = vpop.permute.xlu0 %3174
      %3176 = vrot.lane.b32.xlu0 %v2422, 16
      %v3177 = vpop.permute.xlu0 %3176
      %3178 = vrot.lane.b32.xlu0 %v2423, 16
      %v3179 = vpop.permute.xlu0 %3178
      %3180 = vrot.lane.b32.xlu0 %v2424, 16
      %v3181 = vpop.permute.xlu0 %3180
      %3182 = vrot.lane.b32.xlu0 %v2425, 16
      %v3183 = vpop.permute.xlu0 %3182
      %3184 = vrot.lane.b32.xlu0 %v2426, 16
      %v3185 = vpop.permute.xlu0 %3184
      %3186 = vrot.lane.b32.xlu0 %v2427, 16
      %v3187 = vpop.permute.xlu0 %3186
      %3188 = vrot.lane.b32.xlu0 %v2428, 16
      %v3189 = vpop.permute.xlu0 %3188
      %3190 = vrot.lane.b32.xlu0 %v2429, 16
      %v3191 = vpop.permute.xlu0 %3190
      %3192 = vrot.lane.b32.xlu0 %v2430, 16
      %v3193 = vpop.permute.xlu0 %3192
      %3194 = vrot.lane.b32.xlu0 %v2431, 16
      %v3195 = vpop.permute.xlu0 %3194
      %3196 = vrot.lane.b32.xlu0 %v2432, 16
      %v3197 = vpop.permute.xlu0 %3196
      %3198 = vrot.lane.b32.xlu0 %v2433, 16
      %v3199 = vpop.permute.xlu0 %3198
      %3200 = vrot.lane.b32.xlu0 %v2434, 16
      %v3201 = vpop.permute.xlu0 %3200
      %3202 = vrot.lane.b32.xlu0 %v2435, 16
      %v3203 = vpop.permute.xlu0 %3202
      %3204 = vrot.lane.b32.xlu0 %v2436, 16
      %v3205 = vpop.permute.xlu0 %3204
      %3206 = vrot.lane.b32.xlu0 %v2437, 16
      %v3207 = vpop.permute.xlu0 %3206
      %3208 = vrot.lane.b32.xlu0 %v2438, 16
      %v3209 = vpop.permute.xlu0 %3208
      %3210 = vrot.lane.b32.xlu0 %v2439, 16
      %v3211 = vpop.permute.xlu0 %3210
      %3212 = vrot.lane.b32.xlu0 %v2440, 16
      %v3213 = vpop.permute.xlu0 %3212
      %3214 = vrot.lane.b32.xlu0 %v2441, 16
      %v3215 = vpop.permute.xlu0 %3214
      %3216 = vrot.lane.b32.xlu0 %v2442, 16
      %v3217 = vpop.permute.xlu0 %3216
      %3218 = vrot.lane.b32.xlu0 %v2443, 16
      %v3219 = vpop.permute.xlu0 %3218
      %3220 = vrot.lane.b32.xlu0 %v2444, 16
      %v3221 = vpop.permute.xlu0 %3220
      %3222 = vrot.lane.b32.xlu0 %v2445, 16
      %v3223 = vpop.permute.xlu0 %3222
      %3224 = vrot.lane.b32.xlu0 %v2446, 16
      %v3225 = vpop.permute.xlu0 %3224
      %3226 = vrot.lane.b32.xlu0 %v2447, 16
      %v3227 = vpop.permute.xlu0 %3226
      %3228 = vrot.lane.b32.xlu0 %v2448, 16
      %v3229 = vpop.permute.xlu0 %3228
      %3230 = vrot.lane.b32.xlu0 %v2449, 16
      %v3231 = vpop.permute.xlu0 %3230
      %3232 = vrot.lane.b32.xlu0 %v2450, 16
      %v3233 = vpop.permute.xlu0 %3232
      %3234 = vrot.lane.b32.xlu0 %v2451, 16
      %v3235 = vpop.permute.xlu0 %3234
      %3236 = vrot.lane.b32.xlu0 %v2452, 16
      %v3237 = vpop.permute.xlu0 %3236
      %3238 = vrot.lane.b32.xlu0 %v2453, 16
      %v3239 = vpop.permute.xlu0 %3238
      %3240 = vrot.lane.b32.xlu0 %v2454, 16
      %v3241 = vpop.permute.xlu0 %3240
      %3242 = vrot.lane.b32.xlu0 %v2455, 16
      %v3243 = vpop.permute.xlu0 %3242
      %3244 = vrot.lane.b32.xlu0 %v2456, 16
      %v3245 = vpop.permute.xlu0 %3244
      %3246 = vrot.lane.b32.xlu0 %v2457, 16
      %v3247 = vpop.permute.xlu0 %3246
      %3248 = vrot.lane.b32.xlu0 %v2458, 16
      %v3249 = vpop.permute.xlu0 %3248
      %3250 = vrot.lane.b32.xlu0 %v2459, 16
      %v3251 = vpop.permute.xlu0 %3250
      %3252 = vrot.lane.b32.xlu0 %v2460, 16
      %v3253 = vpop.permute.xlu0 %3252
      %3254 = vrot.lane.b32.xlu0 %v2461, 16
      %v3255 = vpop.permute.xlu0 %3254
      %3256 = vrot.lane.b32.xlu0 %v2462, 16
      %v3257 = vpop.permute.xlu0 %3256
      %3258 = vrot.lane.b32.xlu0 %v2463, 16
      %v3259 = vpop.permute.xlu0 %3258
      %3260 = vrot.lane.b32.xlu0 %v2464, 16
      %v3261 = vpop.permute.xlu0 %3260
      %3262 = vrot.lane.b32.xlu0 %v2465, 16
      %v3263 = vpop.permute.xlu0 %3262
      %3264 = vrot.lane.b32.xlu0 %v2466, 16
      %v3265 = vpop.permute.xlu0 %3264
      %3266 = vrot.lane.b32.xlu0 %v2467, 16
      %v3267 = vpop.permute.xlu0 %3266
      %3268 = vrot.lane.b32.xlu0 %v2468, 16
      %v3269 = vpop.permute.xlu0 %3268
      %3270 = vrot.lane.b32.xlu0 %v2469, 16
      %v3271 = vpop.permute.xlu0 %3270
      %3272 = vrot.lane.b32.xlu0 %v2470, 16
      %v3273 = vpop.permute.xlu0 %3272
      %3274 = vrot.lane.b32.xlu0 %v2471, 16
      %v3275 = vpop.permute.xlu0 %3274
      %3276 = vrot.lane.b32.xlu0 %v2472, 16
      %v3277 = vpop.permute.xlu0 %3276
      %3278 = vrot.lane.b32.xlu0 %v2473, 16
      %v3279 = vpop.permute.xlu0 %3278
      %3280 = vrot.lane.b32.xlu0 %v2474, 16
      %v3281 = vpop.permute.xlu0 %3280
      %3282 = vrot.lane.b32.xlu0 %v2475, 16
      %v3283 = vpop.permute.xlu0 %3282
      %3284 = vrot.lane.b32.xlu0 %v2476, 16
      %v3285 = vpop.permute.xlu0 %3284
      %3286 = vrot.lane.b32.xlu0 %v2477, 16
      %v3287 = vpop.permute.xlu0 %3286
      %3288 = vrot.lane.b32.xlu0 %v2478, 16
      %v3289 = vpop.permute.xlu0 %3288
      %3290 = vrot.lane.b32.xlu0 %v2479, 16
      %v3291 = vpop.permute.xlu0 %3290
      %3292 = vrot.lane.b32.xlu0 %v2480, 16
      %v3293 = vpop.permute.xlu0 %3292
      %3294 = vrot.lane.b32.xlu0 %v2481, 16
      %v3295 = vpop.permute.xlu0 %3294
      %3296 = vrot.lane.b32.xlu0 %v2482, 16
      %v3297 = vpop.permute.xlu0 %3296
      %3298 = vrot.lane.b32.xlu0 %v2483, 16
      %v3299 = vpop.permute.xlu0 %3298
      %3300 = vrot.lane.b32.xlu0 %v2484, 16
      %v3301 = vpop.permute.xlu0 %3300
      %3302 = vrot.lane.b32.xlu0 %v2485, 16
      %v3303 = vpop.permute.xlu0 %3302
      %3304 = vrot.lane.b32.xlu0 %v2486, 16
      %v3305 = vpop.permute.xlu0 %3304
      %3306 = vrot.lane.b32.xlu0 %v2487, 16
      %v3307 = vpop.permute.xlu0 %3306
      %3308 = vrot.lane.b32.xlu0 %v2488, 16
      %v3309 = vpop.permute.xlu0 %3308
      %3310 = vrot.lane.b32.xlu0 %v2489, 16
      %v3311 = vpop.permute.xlu0 %3310
      %3312 = vrot.lane.b32.xlu0 %v2490, 16
      %v3313 = vpop.permute.xlu0 %3312
      %3314 = vrot.lane.b32.xlu0 %v2491, 16
      %v3315 = vpop.permute.xlu0 %3314
      %3316 = vrot.lane.b32.xlu0 %v2492, 16
      %v3317 = vpop.permute.xlu0 %3316
      %3318 = vrot.lane.b32.xlu0 %v2493, 16
      %v3319 = vpop.permute.xlu0 %3318
      %3320 = vrot.lane.b32.xlu0 %v2494, 16
      %v3321 = vpop.permute.xlu0 %3320
      %3322 = vrot.lane.b32.xlu0 %v2495, 16
      %v3323 = vpop.permute.xlu0 %3322
      %3324 = vrot.lane.b32.xlu0 %v2496, 16
      %v3325 = vpop.permute.xlu0 %3324
      %3326 = vrot.lane.b32.xlu0 %v2497, 16
      %v3327 = vpop.permute.xlu0 %3326
      %3328 = vrot.lane.b32.xlu0 %v2498, 16
      %v3329 = vpop.permute.xlu0 %3328
      %3330 = vrot.lane.b32.xlu0 %v2499, 16
      %v3331 = vpop.permute.xlu0 %3330
      %3332 = vrot.lane.b32.xlu0 %v2500, 16
      %v3333 = vpop.permute.xlu0 %3332
      %3334 = vrot.lane.b32.xlu0 %v2501, 16
      %v3335 = vpop.permute.xlu0 %3334
      %3336 = vrot.lane.b32.xlu0 %v2502, 16
      %v3337 = vpop.permute.xlu0 %3336
      %3338 = vrot.lane.b32.xlu0 %v2503, 16
      %v3339 = vpop.permute.xlu0 %3338
      %3340 = vrot.lane.b32.xlu0 %v2504, 16
      %v3341 = vpop.permute.xlu0 %3340
      %3342 = vrot.lane.b32.xlu0 %v2505, 16
      %v3343 = vpop.permute.xlu0 %3342
      %3344 = vrot.lane.b32.xlu0 %v2506, 16
      %v3345 = vpop.permute.xlu0 %3344
      %3346 = vrot.lane.b32.xlu0 %v2507, 16
      %v3347 = vpop.permute.xlu0 %3346
      %3348 = vrot.lane.b32.xlu0 %v2508, 16
      %v3349 = vpop.permute.xlu0 %3348
      %3350 = vrot.lane.b32.xlu0 %v2509, 16
      %v3351 = vpop.permute.xlu0 %3350
      %3352 = vrot.lane.b32.xlu0 %v2510, 16
      %v3353 = vpop.permute.xlu0 %3352
      %3354 = vrot.lane.b32.xlu0 %v2511, 16
      %v3355 = vpop.permute.xlu0 %3354
      %3356 = vrot.lane.b32.xlu0 %v2512, 16
      %v3357 = vpop.permute.xlu0 %3356
      %3358 = vrot.lane.b32.xlu0 %v2513, 16
      %v3359 = vpop.permute.xlu0 %3358
      %3360 = vrot.lane.b32.xlu0 %v2514, 16
      %v3361 = vpop.permute.xlu0 %3360
      %3362 = vrot.lane.b32.xlu0 %v2515, 16
      %v3363 = vpop.permute.xlu0 %3362
      %3574 = vrot.lane.b32.xlu0 %v2516, 32
      %v3575 = vpop.permute.xlu0 %3574
      %3576 = vrot.lane.b32.xlu0 %v2517, 32
      %v3577 = vpop.permute.xlu0 %3576
      %3578 = vrot.lane.b32.xlu0 %v2518, 32
      %v3579 = vpop.permute.xlu0 %3578
      %3580 = vrot.lane.b32.xlu0 %v2519, 32
      %v3581 = vpop.permute.xlu0 %3580
      %3582 = vrot.lane.b32.xlu0 %v2520, 32
      %v3583 = vpop.permute.xlu0 %3582
      %3584 = vrot.lane.b32.xlu0 %v2521, 32
      %v3585 = vpop.permute.xlu0 %3584
      %3586 = vrot.lane.b32.xlu0 %v2522, 32
      %v3587 = vpop.permute.xlu0 %3586
      %3588 = vrot.lane.b32.xlu0 %v2523, 32
      %v3589 = vpop.permute.xlu0 %3588
      %3590 = vrot.lane.b32.xlu0 %v2524, 32
      %v3591 = vpop.permute.xlu0 %3590
      %3592 = vrot.lane.b32.xlu0 %v2525, 32
      %v3593 = vpop.permute.xlu0 %3592
      %3594 = vrot.lane.b32.xlu0 %v2526, 32
      %v3595 = vpop.permute.xlu0 %3594
      %3596 = vrot.lane.b32.xlu0 %v2527, 32
      %v3597 = vpop.permute.xlu0 %3596
      %3598 = vrot.lane.b32.xlu0 %v2528, 32
      %v3599 = vpop.permute.xlu0 %3598
      %3600 = vrot.lane.b32.xlu0 %v2529, 32
      %v3601 = vpop.permute.xlu0 %3600
      %3602 = vrot.lane.b32.xlu0 %v2530, 32
      %v3603 = vpop.permute.xlu0 %3602
      %3604 = vrot.lane.b32.xlu0 %v2531, 32
      %v3605 = vpop.permute.xlu0 %3604
      %3606 = vrot.lane.b32.xlu0 %v2532, 32
      %v3607 = vpop.permute.xlu0 %3606
      %3608 = vrot.lane.b32.xlu0 %v2533, 32
      %v3609 = vpop.permute.xlu0 %3608
      %3610 = vrot.lane.b32.xlu0 %v2534, 32
      %v3611 = vpop.permute.xlu0 %3610
      %3612 = vrot.lane.b32.xlu0 %v2535, 32
      %v3613 = vpop.permute.xlu0 %3612
      %3614 = vrot.lane.b32.xlu0 %v2536, 32
      %v3615 = vpop.permute.xlu0 %3614
      %3616 = vrot.lane.b32.xlu0 %v2537, 32
      %v3617 = vpop.permute.xlu0 %3616
      %3618 = vrot.lane.b32.xlu0 %v2538, 32
      %v3619 = vpop.permute.xlu0 %3618
      %3620 = vrot.lane.b32.xlu0 %v2539, 32
      %v3621 = vpop.permute.xlu0 %3620
      %3622 = vrot.lane.b32.xlu0 %v2540, 32
      %v3623 = vpop.permute.xlu0 %3622
      %3624 = vrot.lane.b32.xlu0 %v2541, 32
      %v3625 = vpop.permute.xlu0 %3624
      %3626 = vrot.lane.b32.xlu0 %v2542, 32
      %v3627 = vpop.permute.xlu0 %3626
      %3628 = vrot.lane.b32.xlu0 %v2543, 32
      %v3629 = vpop.permute.xlu0 %3628
      %3630 = vrot.lane.b32.xlu0 %v2544, 32
      %v3631 = vpop.permute.xlu0 %3630
      %3632 = vrot.lane.b32.xlu0 %v2545, 32
      %v3633 = vpop.permute.xlu0 %3632
      %3634 = vrot.lane.b32.xlu0 %v2546, 32
      %v3635 = vpop.permute.xlu0 %3634
      %3636 = vrot.lane.b32.xlu0 %v2547, 32
      %v3637 = vpop.permute.xlu0 %3636
      %3638 = vrot.lane.b32.xlu0 %v2548, 32
      %v3639 = vpop.permute.xlu0 %3638
      %3640 = vrot.lane.b32.xlu0 %v2549, 32
      %v3641 = vpop.permute.xlu0 %3640
      %3642 = vrot.lane.b32.xlu0 %v2550, 32
      %v3643 = vpop.permute.xlu0 %3642
      %3644 = vrot.lane.b32.xlu0 %v2551, 32
      %v3645 = vpop.permute.xlu0 %3644
      %3646 = vrot.lane.b32.xlu0 %v2552, 32
      %v3647 = vpop.permute.xlu0 %3646
      %3648 = vrot.lane.b32.xlu0 %v2553, 32
      %v3649 = vpop.permute.xlu0 %3648
      %3650 = vrot.lane.b32.xlu0 %v2554, 32
      %v3651 = vpop.permute.xlu0 %3650
      %3652 = vrot.lane.b32.xlu0 %v2555, 32
      %v3653 = vpop.permute.xlu0 %3652
      %3654 = vrot.lane.b32.xlu0 %v2556, 32
      %v3655 = vpop.permute.xlu0 %3654
      %3656 = vrot.lane.b32.xlu0 %v2557, 32
      %v3657 = vpop.permute.xlu0 %3656
      %3658 = vrot.lane.b32.xlu0 %v2558, 32
      %v3659 = vpop.permute.xlu0 %3658
      %3660 = vrot.lane.b32.xlu0 %v2559, 32
      %v3661 = vpop.permute.xlu0 %3660
      %3662 = vrot.lane.b32.xlu0 %v2560, 32
      %v3663 = vpop.permute.xlu0 %3662
      %3664 = vrot.lane.b32.xlu0 %v2561, 32
      %v3665 = vpop.permute.xlu0 %3664
      %3666 = vrot.lane.b32.xlu0 %v2562, 32
      %v3667 = vpop.permute.xlu0 %3666
      %3668 = vrot.lane.b32.xlu0 %v2563, 32
      %v3669 = vpop.permute.xlu0 %3668
      %3670 = vrot.lane.b32.xlu0 %v2564, 32
      %v3671 = vpop.permute.xlu0 %3670
      %3672 = vrot.lane.b32.xlu0 %v2565, 32
      %v3673 = vpop.permute.xlu0 %3672
      %3674 = vrot.lane.b32.xlu0 %v2566, 32
      %v3675 = vpop.permute.xlu0 %3674
      %3676 = vrot.lane.b32.xlu0 %v2567, 32
      %v3677 = vpop.permute.xlu0 %3676
      %3678 = vrot.lane.b32.xlu0 %v2568, 32
      %v3679 = vpop.permute.xlu0 %3678
      %3680 = vrot.lane.b32.xlu0 %v2569, 32
      %v3681 = vpop.permute.xlu0 %3680
      %3682 = vrot.lane.b32.xlu0 %v2570, 32
      %v3683 = vpop.permute.xlu0 %3682
      %3684 = vrot.lane.b32.xlu0 %v2571, 32
      %v3685 = vpop.permute.xlu0 %3684
      %3686 = vrot.lane.b32.xlu0 %v2572, 32
      %v3687 = vpop.permute.xlu0 %3686
      %3688 = vrot.lane.b32.xlu0 %v2573, 32
      %v3689 = vpop.permute.xlu0 %3688
      %3690 = vrot.lane.b32.xlu0 %v2574, 32
      %v3691 = vpop.permute.xlu0 %3690
      %3692 = vrot.lane.b32.xlu0 %v2575, 32
      %v3693 = vpop.permute.xlu0 %3692
      %3694 = vrot.lane.b32.xlu0 %v2576, 32
      %v3695 = vpop.permute.xlu0 %3694
      %3696 = vrot.lane.b32.xlu0 %v2577, 32
      %v3697 = vpop.permute.xlu0 %3696
      %3698 = vrot.lane.b32.xlu0 %v2578, 32
      %v3699 = vpop.permute.xlu0 %3698
      %3700 = vrot.lane.b32.xlu0 %v2579, 32
      %v3701 = vpop.permute.xlu0 %3700
      %3702 = vrot.lane.b32.xlu0 %v2580, 32
      %v3703 = vpop.permute.xlu0 %3702
      %3704 = vrot.lane.b32.xlu0 %v2581, 32
      %v3705 = vpop.permute.xlu0 %3704
      %3706 = vrot.lane.b32.xlu0 %v2582, 32
      %v3707 = vpop.permute.xlu0 %3706
      %3708 = vrot.lane.b32.xlu0 %v2583, 32
      %v3709 = vpop.permute.xlu0 %3708
      %3710 = vrot.lane.b32.xlu0 %v2584, 32
      %v3711 = vpop.permute.xlu0 %3710
      %3712 = vrot.lane.b32.xlu0 %v2585, 32
      %v3713 = vpop.permute.xlu0 %3712
      %3714 = vrot.lane.b32.xlu0 %v2586, 32
      %v3715 = vpop.permute.xlu0 %3714
      %3716 = vrot.lane.b32.xlu0 %v2587, 32
      %v3717 = vpop.permute.xlu0 %3716
      %3718 = vrot.lane.b32.xlu0 %v2588, 32
      %v3719 = vpop.permute.xlu0 %3718
      %3720 = vrot.lane.b32.xlu0 %v2589, 32
      %v3721 = vpop.permute.xlu0 %3720
      %3722 = vrot.lane.b32.xlu0 %v2590, 32
      %v3723 = vpop.permute.xlu0 %3722
      %3724 = vrot.lane.b32.xlu0 %v2591, 32
      %v3725 = vpop.permute.xlu0 %3724
      %3726 = vrot.lane.b32.xlu0 %v2592, 32
      %v3727 = vpop.permute.xlu0 %3726
      %3728 = vrot.lane.b32.xlu0 %v2593, 32
      %v3729 = vpop.permute.xlu0 %3728
      %3730 = vrot.lane.b32.xlu0 %v2594, 32
      %v3731 = vpop.permute.xlu0 %3730
      %3732 = vrot.lane.b32.xlu0 %v2595, 32
      %v3733 = vpop.permute.xlu0 %3732
      %3734 = vrot.lane.b32.xlu0 %v2596, 32
      %v3735 = vpop.permute.xlu0 %3734
      %3736 = vrot.lane.b32.xlu0 %v2597, 32
      %v3737 = vpop.permute.xlu0 %3736
      %3738 = vrot.lane.b32.xlu0 %v2598, 32
      %v3739 = vpop.permute.xlu0 %3738
      %3740 = vrot.lane.b32.xlu0 %v2599, 32
      %v3741 = vpop.permute.xlu0 %3740
      %3742 = vrot.lane.b32.xlu0 %v2600, 32
      %v3743 = vpop.permute.xlu0 %3742
      %3744 = vrot.lane.b32.xlu0 %v2601, 32
      %v3745 = vpop.permute.xlu0 %3744
      %3746 = vrot.lane.b32.xlu0 %v2602, 32
      %v3747 = vpop.permute.xlu0 %3746
      %3748 = vrot.lane.b32.xlu0 %v2603, 32
      %v3749 = vpop.permute.xlu0 %3748
      %3750 = vrot.lane.b32.xlu0 %v2604, 32
      %v3751 = vpop.permute.xlu0 %3750
      %3752 = vrot.lane.b32.xlu0 %v2605, 32
      %v3753 = vpop.permute.xlu0 %3752
      %3754 = vrot.lane.b32.xlu0 %v2606, 32
      %v3755 = vpop.permute.xlu0 %3754
      %3756 = vrot.lane.b32.xlu0 %v2607, 32
      %v3757 = vpop.permute.xlu0 %3756
      %3758 = vrot.lane.b32.xlu0 %v2608, 32
      %v3759 = vpop.permute.xlu0 %3758
      %3760 = vrot.lane.b32.xlu0 %v2609, 32
      %v3761 = vpop.permute.xlu0 %3760
      %3762 = vrot.lane.b32.xlu0 %v2610, 32
      %v3763 = vpop.permute.xlu0 %3762
      %3764 = vrot.lane.b32.xlu0 %v2611, 32
      %v3765 = vpop.permute.xlu0 %3764
      %3766 = vrot.lane.b32.xlu0 %v2612, 32
      %v3767 = vpop.permute.xlu0 %3766
      %3768 = vrot.lane.b32.xlu0 %v2613, 32
      %v3769 = vpop.permute.xlu0 %3768
      %3770 = vrot.lane.b32.xlu0 %v2614, 32
      %v3771 = vpop.permute.xlu0 %3770
      %3772 = vrot.lane.b32.xlu0 %v2615, 32
      %v3773 = vpop.permute.xlu0 %3772
      %3774 = vrot.lane.b32.xlu0 %v2616, 32
      %v3775 = vpop.permute.xlu0 %3774
      %3776 = vrot.lane.b32.xlu0 %v2617, 32
      %v3777 = vpop.permute.xlu0 %3776
      %3778 = vrot.lane.b32.xlu0 %v2618, 32
      %v3779 = vpop.permute.xlu0 %3778
      %3780 = vrot.lane.b32.xlu0 %v2619, 32
      %v3781 = vpop.permute.xlu0 %3780
      %3782 = vrot.lane.b32.xlu0 %v2620, 32
      %v3783 = vpop.permute.xlu0 %3782
      %3994 = vrot.lane.b32.xlu0 %v2621, 48
      %v3995 = vpop.permute.xlu0 %3994
      %3996 = vrot.lane.b32.xlu0 %v2622, 48
      %v3997 = vpop.permute.xlu0 %3996
      %3998 = vrot.lane.b32.xlu0 %v2623, 48
      %v3999 = vpop.permute.xlu0 %3998
      %4000 = vrot.lane.b32.xlu0 %v2624, 48
      %v4001 = vpop.permute.xlu0 %4000
      %4002 = vrot.lane.b32.xlu0 %v2625, 48
      %v4003 = vpop.permute.xlu0 %4002
      %4004 = vrot.lane.b32.xlu0 %v2626, 48
      %v4005 = vpop.permute.xlu0 %4004
      %4006 = vrot.lane.b32.xlu0 %v2627, 48
      %v4007 = vpop.permute.xlu0 %4006
      %4008 = vrot.lane.b32.xlu0 %v2628, 48
      %v4009 = vpop.permute.xlu0 %4008
      %4010 = vrot.lane.b32.xlu0 %v2629, 48
      %v4011 = vpop.permute.xlu0 %4010
      %4012 = vrot.lane.b32.xlu0 %v2630, 48
      %v4013 = vpop.permute.xlu0 %4012
      %4014 = vrot.lane.b32.xlu0 %v2631, 48
      %v4015 = vpop.permute.xlu0 %4014
      %4016 = vrot.lane.b32.xlu0 %v2632, 48
      %v4017 = vpop.permute.xlu0 %4016
      %4018 = vrot.lane.b32.xlu0 %v2633, 48
      %v4019 = vpop.permute.xlu0 %4018
      %4020 = vrot.lane.b32.xlu0 %v2634, 48
      %v4021 = vpop.permute.xlu0 %4020
      %4022 = vrot.lane.b32.xlu0 %v2635, 48
      %v4023 = vpop.permute.xlu0 %4022
      %4024 = vrot.lane.b32.xlu0 %v2636, 48
      %v4025 = vpop.permute.xlu0 %4024
      %4026 = vrot.lane.b32.xlu0 %v2637, 48
      %v4027 = vpop.permute.xlu0 %4026
      %4028 = vrot.lane.b32.xlu0 %v2638, 48
      %v4029 = vpop.permute.xlu0 %4028
      %4030 = vrot.lane.b32.xlu0 %v2639, 48
      %v4031 = vpop.permute.xlu0 %4030
      %4032 = vrot.lane.b32.xlu0 %v2640, 48
      %v4033 = vpop.permute.xlu0 %4032
      %4034 = vrot.lane.b32.xlu0 %v2641, 48
      %v4035 = vpop.permute.xlu0 %4034
      %4036 = vrot.lane.b32.xlu0 %v2642, 48
      %v4037 = vpop.permute.xlu0 %4036
      %4038 = vrot.lane.b32.xlu0 %v2643, 48
      %v4039 = vpop.permute.xlu0 %4038
      %4040 = vrot.lane.b32.xlu0 %v2644, 48
      %v4041 = vpop.permute.xlu0 %4040
      %4042 = vrot.lane.b32.xlu0 %v2645, 48
      %v4043 = vpop.permute.xlu0 %4042
      %4044 = vrot.lane.b32.xlu0 %v2646, 48
      %v4045 = vpop.permute.xlu0 %4044
      %4046 = vrot.lane.b32.xlu0 %v2647, 48
      %v4047 = vpop.permute.xlu0 %4046
      %4048 = vrot.lane.b32.xlu0 %v2648, 48
      %v4049 = vpop.permute.xlu0 %4048
      %4050 = vrot.lane.b32.xlu0 %v2649, 48
      %v4051 = vpop.permute.xlu0 %4050
      %4052 = vrot.lane.b32.xlu0 %v2650, 48
      %v4053 = vpop.permute.xlu0 %4052
      %4054 = vrot.lane.b32.xlu0 %v2651, 48
      %v4055 = vpop.permute.xlu0 %4054
      %4056 = vrot.lane.b32.xlu0 %v2652, 48
      %v4057 = vpop.permute.xlu0 %4056
      %4058 = vrot.lane.b32.xlu0 %v2653, 48
      %v4059 = vpop.permute.xlu0 %4058
      %4060 = vrot.lane.b32.xlu0 %v2654, 48
      %v4061 = vpop.permute.xlu0 %4060
      %4062 = vrot.lane.b32.xlu0 %v2655, 48
      %v4063 = vpop.permute.xlu0 %4062
      %4064 = vrot.lane.b32.xlu0 %v2656, 48
      %v4065 = vpop.permute.xlu0 %4064
      %4066 = vrot.lane.b32.xlu0 %v2657, 48
      %v4067 = vpop.permute.xlu0 %4066
      %4068 = vrot.lane.b32.xlu0 %v2658, 48
      %v4069 = vpop.permute.xlu0 %4068
      %4070 = vrot.lane.b32.xlu0 %v2659, 48
      %v4071 = vpop.permute.xlu0 %4070
      %4072 = vrot.lane.b32.xlu0 %v2660, 48
      %v4073 = vpop.permute.xlu0 %4072
      %4074 = vrot.lane.b32.xlu0 %v2661, 48
      %v4075 = vpop.permute.xlu0 %4074
      %4076 = vrot.lane.b32.xlu0 %v2662, 48
      %v4077 = vpop.permute.xlu0 %4076
      %4078 = vrot.lane.b32.xlu0 %v2663, 48
      %v4079 = vpop.permute.xlu0 %4078
      %4080 = vrot.lane.b32.xlu0 %v2664, 48
      %v4081 = vpop.permute.xlu0 %4080
      %4082 = vrot.lane.b32.xlu0 %v2665, 48
      %v4083 = vpop.permute.xlu0 %4082
      %4084 = vrot.lane.b32.xlu0 %v2666, 48
      %v4085 = vpop.permute.xlu0 %4084
      %4086 = vrot.lane.b32.xlu0 %v2667, 48
      %v4087 = vpop.permute.xlu0 %4086
      %4088 = vrot.lane.b32.xlu0 %v2668, 48
      %v4089 = vpop.permute.xlu0 %4088
      %4090 = vrot.lane.b32.xlu0 %v2669, 48
      %v4091 = vpop.permute.xlu0 %4090
      %4092 = vrot.lane.b32.xlu0 %v2670, 48
      %v4093 = vpop.permute.xlu0 %4092
      %4094 = vrot.lane.b32.xlu0 %v2671, 48
      %v4095 = vpop.permute.xlu0 %4094
      %4096 = vrot.lane.b32.xlu0 %v2672, 48
      %v4097 = vpop.permute.xlu0 %4096
      %4098 = vrot.lane.b32.xlu0 %v2673, 48
      %v4099 = vpop.permute.xlu0 %4098
      %4100 = vrot.lane.b32.xlu0 %v2674, 48
      %v4101 = vpop.permute.xlu0 %4100
      %4102 = vrot.lane.b32.xlu0 %v2675, 48
      %v4103 = vpop.permute.xlu0 %4102
      %4104 = vrot.lane.b32.xlu0 %v2676, 48
      %v4105 = vpop.permute.xlu0 %4104
      %4106 = vrot.lane.b32.xlu0 %v2677, 48
      %v4107 = vpop.permute.xlu0 %4106
      %4108 = vrot.lane.b32.xlu0 %v2678, 48
      %v4109 = vpop.permute.xlu0 %4108
      %4110 = vrot.lane.b32.xlu0 %v2679, 48
      %v4111 = vpop.permute.xlu0 %4110
      %4112 = vrot.lane.b32.xlu0 %v2680, 48
      %v4113 = vpop.permute.xlu0 %4112
      %4114 = vrot.lane.b32.xlu0 %v2681, 48
      %v4115 = vpop.permute.xlu0 %4114
      %4116 = vrot.lane.b32.xlu0 %v2682, 48
      %v4117 = vpop.permute.xlu0 %4116
      %4118 = vrot.lane.b32.xlu0 %v2683, 48
      %v4119 = vpop.permute.xlu0 %4118
      %4120 = vrot.lane.b32.xlu0 %v2684, 48
      %v4121 = vpop.permute.xlu0 %4120
      %4122 = vrot.lane.b32.xlu0 %v2685, 48
      %v4123 = vpop.permute.xlu0 %4122
      %4124 = vrot.lane.b32.xlu0 %v2686, 48
      %v4125 = vpop.permute.xlu0 %4124
      %4126 = vrot.lane.b32.xlu0 %v2687, 48
      %v4127 = vpop.permute.xlu0 %4126
      %4128 = vrot.lane.b32.xlu0 %v2688, 48
      %v4129 = vpop.permute.xlu0 %4128
      %4130 = vrot.lane.b32.xlu0 %v2689, 48
      %v4131 = vpop.permute.xlu0 %4130
      %4132 = vrot.lane.b32.xlu0 %v2690, 48
      %v4133 = vpop.permute.xlu0 %4132
      %4134 = vrot.lane.b32.xlu0 %v2691, 48
      %v4135 = vpop.permute.xlu0 %4134
      %4136 = vrot.lane.b32.xlu0 %v2692, 48
      %v4137 = vpop.permute.xlu0 %4136
      %4138 = vrot.lane.b32.xlu0 %v2693, 48
      %v4139 = vpop.permute.xlu0 %4138
      %4140 = vrot.lane.b32.xlu0 %v2694, 48
      %v4141 = vpop.permute.xlu0 %4140
      %4142 = vrot.lane.b32.xlu0 %v2695, 48
      %v4143 = vpop.permute.xlu0 %4142
      %4144 = vrot.lane.b32.xlu0 %v2696, 48
      %v4145 = vpop.permute.xlu0 %4144
      %4146 = vrot.lane.b32.xlu0 %v2697, 48
      %v4147 = vpop.permute.xlu0 %4146
      %4148 = vrot.lane.b32.xlu0 %v2698, 48
      %v4149 = vpop.permute.xlu0 %4148
      %4150 = vrot.lane.b32.xlu0 %v2699, 48
      %v4151 = vpop.permute.xlu0 %4150
      %4152 = vrot.lane.b32.xlu0 %v2700, 48
      %v4153 = vpop.permute.xlu0 %4152
      %4154 = vrot.lane.b32.xlu0 %v2701, 48
      %v4155 = vpop.permute.xlu0 %4154
      %4156 = vrot.lane.b32.xlu0 %v2702, 48
      %v4157 = vpop.permute.xlu0 %4156
      %4158 = vrot.lane.b32.xlu0 %v2703, 48
      %v4159 = vpop.permute.xlu0 %4158
      %4160 = vrot.lane.b32.xlu0 %v2704, 48
      %v4161 = vpop.permute.xlu0 %4160
      %4162 = vrot.lane.b32.xlu0 %v2705, 48
      %v4163 = vpop.permute.xlu0 %4162
      %4164 = vrot.lane.b32.xlu0 %v2706, 48
      %v4165 = vpop.permute.xlu0 %4164
      %4166 = vrot.lane.b32.xlu0 %v2707, 48
      %v4167 = vpop.permute.xlu0 %4166
      %4168 = vrot.lane.b32.xlu0 %v2708, 48
      %v4169 = vpop.permute.xlu0 %4168
      %4170 = vrot.lane.b32.xlu0 %v2709, 48
      %v4171 = vpop.permute.xlu0 %4170
      %4172 = vrot.lane.b32.xlu0 %v2710, 48
      %v4173 = vpop.permute.xlu0 %4172
      %4174 = vrot.lane.b32.xlu0 %v2711, 48
      %v4175 = vpop.permute.xlu0 %4174
      %4176 = vrot.lane.b32.xlu0 %v2712, 48
      %v4177 = vpop.permute.xlu0 %4176
      %4178 = vrot.lane.b32.xlu0 %v2713, 48
      %v4179 = vpop.permute.xlu0 %4178
      %4180 = vrot.lane.b32.xlu0 %v2714, 48
      %v4181 = vpop.permute.xlu0 %4180
      %4182 = vrot.lane.b32.xlu0 %v2715, 48
      %v4183 = vpop.permute.xlu0 %4182
      %4184 = vrot.lane.b32.xlu0 %v2716, 48
      %v4185 = vpop.permute.xlu0 %4184
      %4186 = vrot.lane.b32.xlu0 %v2717, 48
      %v4187 = vpop.permute.xlu0 %4186
      %4188 = vrot.lane.b32.xlu0 %v2718, 48
      %v4189 = vpop.permute.xlu0 %4188
      %4190 = vrot.lane.b32.xlu0 %v2719, 48
      %v4191 = vpop.permute.xlu0 %4190
      %4192 = vrot.lane.b32.xlu0 %v2720, 48
      %v4193 = vpop.permute.xlu0 %4192
      %4194 = vrot.lane.b32.xlu0 %v2721, 48
      %v4195 = vpop.permute.xlu0 %4194
      %4196 = vrot.lane.b32.xlu0 %v2722, 48
      %v4197 = vpop.permute.xlu0 %4196
      %4198 = vrot.lane.b32.xlu0 %v2723, 48
      %v4199 = vpop.permute.xlu0 %4198
      %4200 = vrot.lane.b32.xlu0 %v2724, 48
      %v4201 = vpop.permute.xlu0 %4200
      %4202 = vrot.lane.b32.xlu0 %v2725, 48
      %v4203 = vpop.permute.xlu0 %4202
      %4414 = vrot.lane.b32.xlu0 %v2726, 64
      %v4415 = vpop.permute.xlu0 %4414
      %4416 = vrot.lane.b32.xlu0 %v2727, 64
      %v4417 = vpop.permute.xlu0 %4416
      %4418 = vrot.lane.b32.xlu0 %v2728, 64
      %v4419 = vpop.permute.xlu0 %4418
      %4420 = vrot.lane.b32.xlu0 %v2729, 64
      %v4421 = vpop.permute.xlu0 %4420
      %4422 = vrot.lane.b32.xlu0 %v2730, 64
      %v4423 = vpop.permute.xlu0 %4422
      %4424 = vrot.lane.b32.xlu0 %v2731, 64
      %v4425 = vpop.permute.xlu0 %4424
      %4426 = vrot.lane.b32.xlu0 %v2732, 64
      %v4427 = vpop.permute.xlu0 %4426
      %4428 = vrot.lane.b32.xlu0 %v2733, 64
      %v4429 = vpop.permute.xlu0 %4428
      %4430 = vrot.lane.b32.xlu0 %v2734, 64
      %v4431 = vpop.permute.xlu0 %4430
      %4432 = vrot.lane.b32.xlu0 %v2735, 64
      %v4433 = vpop.permute.xlu0 %4432
      %4434 = vrot.lane.b32.xlu0 %v2736, 64
      %v4435 = vpop.permute.xlu0 %4434
      %4436 = vrot.lane.b32.xlu0 %v2737, 64
      %v4437 = vpop.permute.xlu0 %4436
      %4438 = vrot.lane.b32.xlu0 %v2738, 64
      %v4439 = vpop.permute.xlu0 %4438
      %4440 = vrot.lane.b32.xlu0 %v2739, 64
      %v4441 = vpop.permute.xlu0 %4440
      %4442 = vrot.lane.b32.xlu0 %v2740, 64
      %v4443 = vpop.permute.xlu0 %4442
      %4444 = vrot.lane.b32.xlu0 %v2741, 64
      %v4445 = vpop.permute.xlu0 %4444
      %4446 = vrot.lane.b32.xlu0 %v2742, 64
      %v4447 = vpop.permute.xlu0 %4446
      %4448 = vrot.lane.b32.xlu0 %v2743, 64
      %v4449 = vpop.permute.xlu0 %4448
      %4450 = vrot.lane.b32.xlu0 %v2744, 64
      %v4451 = vpop.permute.xlu0 %4450
      %4452 = vrot.lane.b32.xlu0 %v2745, 64
      %v4453 = vpop.permute.xlu0 %4452
      %4454 = vrot.lane.b32.xlu0 %v2746, 64
      %v4455 = vpop.permute.xlu0 %4454
      %4456 = vrot.lane.b32.xlu0 %v2747, 64
      %v4457 = vpop.permute.xlu0 %4456
      %4458 = vrot.lane.b32.xlu0 %v2748, 64
      %v4459 = vpop.permute.xlu0 %4458
      %4460 = vrot.lane.b32.xlu0 %v2749, 64
      %v4461 = vpop.permute.xlu0 %4460
      %4462 = vrot.lane.b32.xlu0 %v2750, 64
      %v4463 = vpop.permute.xlu0 %4462
      %4464 = vrot.lane.b32.xlu0 %v2751, 64
      %v4465 = vpop.permute.xlu0 %4464
      %4466 = vrot.lane.b32.xlu0 %v2752, 64
      %v4467 = vpop.permute.xlu0 %4466
      %4468 = vrot.lane.b32.xlu0 %v2753, 64
      %v4469 = vpop.permute.xlu0 %4468
      %4470 = vrot.lane.b32.xlu0 %v2754, 64
      %v4471 = vpop.permute.xlu0 %4470
      %4472 = vrot.lane.b32.xlu0 %v2755, 64
      %v4473 = vpop.permute.xlu0 %4472
      %4474 = vrot.lane.b32.xlu0 %v2756, 64
      %v4475 = vpop.permute.xlu0 %4474
      %4476 = vrot.lane.b32.xlu0 %v2757, 64
      %v4477 = vpop.permute.xlu0 %4476
      %4478 = vrot.lane.b32.xlu0 %v2758, 64
      %v4479 = vpop.permute.xlu0 %4478
      %4480 = vrot.lane.b32.xlu0 %v2759, 64
      %v4481 = vpop.permute.xlu0 %4480
      %4482 = vrot.lane.b32.xlu0 %v2760, 64
      %v4483 = vpop.permute.xlu0 %4482
      %4484 = vrot.lane.b32.xlu0 %v2761, 64
      %v4485 = vpop.permute.xlu0 %4484
      %4486 = vrot.lane.b32.xlu0 %v2762, 64
      %v4487 = vpop.permute.xlu0 %4486
      %4488 = vrot.lane.b32.xlu0 %v2763, 64
      %v4489 = vpop.permute.xlu0 %4488
      %4490 = vrot.lane.b32.xlu0 %v2764, 64
      %v4491 = vpop.permute.xlu0 %4490
      %4492 = vrot.lane.b32.xlu0 %v2765, 64
      %v4493 = vpop.permute.xlu0 %4492
      %4494 = vrot.lane.b32.xlu0 %v2766, 64
      %v4495 = vpop.permute.xlu0 %4494
      %4496 = vrot.lane.b32.xlu0 %v2767, 64
      %v4497 = vpop.permute.xlu0 %4496
      %4498 = vrot.lane.b32.xlu0 %v2768, 64
      %v4499 = vpop.permute.xlu0 %4498
      %4500 = vrot.lane.b32.xlu0 %v2769, 64
      %v4501 = vpop.permute.xlu0 %4500
      %4502 = vrot.lane.b32.xlu0 %v2770, 64
      %v4503 = vpop.permute.xlu0 %4502
      %4504 = vrot.lane.b32.xlu0 %v2771, 64
      %v4505 = vpop.permute.xlu0 %4504
      %4506 = vrot.lane.b32.xlu0 %v2772, 64
      %v4507 = vpop.permute.xlu0 %4506
      %4508 = vrot.lane.b32.xlu0 %v2773, 64
      %v4509 = vpop.permute.xlu0 %4508
      %4510 = vrot.lane.b32.xlu0 %v2774, 64
      %v4511 = vpop.permute.xlu0 %4510
      %4512 = vrot.lane.b32.xlu0 %v2775, 64
      %v4513 = vpop.permute.xlu0 %4512
      %4514 = vrot.lane.b32.xlu0 %v2776, 64
      %v4515 = vpop.permute.xlu0 %4514
      %4516 = vrot.lane.b32.xlu0 %v2777, 64
      %v4517 = vpop.permute.xlu0 %4516
      %4518 = vrot.lane.b32.xlu0 %v2778, 64
      %v4519 = vpop.permute.xlu0 %4518
      %4520 = vrot.lane.b32.xlu0 %v2779, 64
      %v4521 = vpop.permute.xlu0 %4520
      %4522 = vrot.lane.b32.xlu0 %v2780, 64
      %v4523 = vpop.permute.xlu0 %4522
      %4524 = vrot.lane.b32.xlu0 %v2781, 64
      %v4525 = vpop.permute.xlu0 %4524
      %4526 = vrot.lane.b32.xlu0 %v2782, 64
      %v4527 = vpop.permute.xlu0 %4526
      %4528 = vrot.lane.b32.xlu0 %v2783, 64
      %v4529 = vpop.permute.xlu0 %4528
      %4530 = vrot.lane.b32.xlu0 %v2784, 64
      %v4531 = vpop.permute.xlu0 %4530
      %4532 = vrot.lane.b32.xlu0 %v2785, 64
      %v4533 = vpop.permute.xlu0 %4532
      %4534 = vrot.lane.b32.xlu0 %v2786, 64
      %v4535 = vpop.permute.xlu0 %4534
      %4536 = vrot.lane.b32.xlu0 %v2787, 64
      %v4537 = vpop.permute.xlu0 %4536
      %4538 = vrot.lane.b32.xlu0 %v2788, 64
      %v4539 = vpop.permute.xlu0 %4538
      %4540 = vrot.lane.b32.xlu0 %v2789, 64
      %v4541 = vpop.permute.xlu0 %4540
      %4542 = vrot.lane.b32.xlu0 %v2790, 64
      %v4543 = vpop.permute.xlu0 %4542
      %4544 = vrot.lane.b32.xlu0 %v2791, 64
      %v4545 = vpop.permute.xlu0 %4544
      %4546 = vrot.lane.b32.xlu0 %v2792, 64
      %v4547 = vpop.permute.xlu0 %4546
      %4548 = vrot.lane.b32.xlu0 %v2793, 64
      %v4549 = vpop.permute.xlu0 %4548
      %4550 = vrot.lane.b32.xlu0 %v2794, 64
      %v4551 = vpop.permute.xlu0 %4550
      %4552 = vrot.lane.b32.xlu0 %v2795, 64
      %v4553 = vpop.permute.xlu0 %4552
      %4554 = vrot.lane.b32.xlu0 %v2796, 64
      %v4555 = vpop.permute.xlu0 %4554
      %4556 = vrot.lane.b32.xlu0 %v2797, 64
      %v4557 = vpop.permute.xlu0 %4556
      %4558 = vrot.lane.b32.xlu0 %v2798, 64
      %v4559 = vpop.permute.xlu0 %4558
      %4560 = vrot.lane.b32.xlu0 %v2799, 64
      %v4561 = vpop.permute.xlu0 %4560
      %4562 = vrot.lane.b32.xlu0 %v2800, 64
      %v4563 = vpop.permute.xlu0 %4562
      %4564 = vrot.lane.b32.xlu0 %v2801, 64
      %v4565 = vpop.permute.xlu0 %4564
      %4566 = vrot.lane.b32.xlu0 %v2802, 64
      %v4567 = vpop.permute.xlu0 %4566
      %4568 = vrot.lane.b32.xlu0 %v2803, 64
      %v4569 = vpop.permute.xlu0 %4568
      %4570 = vrot.lane.b32.xlu0 %v2804, 64
      %v4571 = vpop.permute.xlu0 %4570
      %4572 = vrot.lane.b32.xlu0 %v2805, 64
      %v4573 = vpop.permute.xlu0 %4572
      %4574 = vrot.lane.b32.xlu0 %v2806, 64
      %v4575 = vpop.permute.xlu0 %4574
      %4576 = vrot.lane.b32.xlu0 %v2807, 64
      %v4577 = vpop.permute.xlu0 %4576
      %4578 = vrot.lane.b32.xlu0 %v2808, 64
      %v4579 = vpop.permute.xlu0 %4578
      %4580 = vrot.lane.b32.xlu0 %v2809, 64
      %v4581 = vpop.permute.xlu0 %4580
      %4582 = vrot.lane.b32.xlu0 %v2810, 64
      %v4583 = vpop.permute.xlu0 %4582
      %4584 = vrot.lane.b32.xlu0 %v2811, 64
      %v4585 = vpop.permute.xlu0 %4584
      %4586 = vrot.lane.b32.xlu0 %v2812, 64
      %v4587 = vpop.permute.xlu0 %4586
      %4588 = vrot.lane.b32.xlu0 %v2813, 64
      %v4589 = vpop.permute.xlu0 %4588
      %4590 = vrot.lane.b32.xlu0 %v2814, 64
      %v4591 = vpop.permute.xlu0 %4590
      %4592 = vrot.lane.b32.xlu0 %v2815, 64
      %v4593 = vpop.permute.xlu0 %4592
      %4594 = vrot.lane.b32.xlu0 %v2816, 64
      %v4595 = vpop.permute.xlu0 %4594
      %4596 = vrot.lane.b32.xlu0 %v2817, 64
      %v4597 = vpop.permute.xlu0 %4596
      %4598 = vrot.lane.b32.xlu0 %v2818, 64
      %v4599 = vpop.permute.xlu0 %4598
      %4600 = vrot.lane.b32.xlu0 %v2819, 64
      %v4601 = vpop.permute.xlu0 %4600
      %4602 = vrot.lane.b32.xlu0 %v2820, 64
      %v4603 = vpop.permute.xlu0 %4602
      %4604 = vrot.lane.b32.xlu0 %v2821, 64
      %v4605 = vpop.permute.xlu0 %4604
      %4606 = vrot.lane.b32.xlu0 %v2822, 64
      %v4607 = vpop.permute.xlu0 %4606
      %4608 = vrot.lane.b32.xlu0 %v2823, 64
      %v4609 = vpop.permute.xlu0 %4608
      %4610 = vrot.lane.b32.xlu0 %v2824, 64
      %v4611 = vpop.permute.xlu0 %4610
      %4612 = vrot.lane.b32.xlu0 %v2825, 64
      %v4613 = vpop.permute.xlu0 %4612
      %4614 = vrot.lane.b32.xlu0 %v2826, 64
      %v4615 = vpop.permute.xlu0 %4614
      %4616 = vrot.lane.b32.xlu0 %v2827, 64
      %v4617 = vpop.permute.xlu0 %4616
      %4618 = vrot.lane.b32.xlu0 %v2828, 64
      %v4619 = vpop.permute.xlu0 %4618
      %4620 = vrot.lane.b32.xlu0 %v2829, 64
      %v4621 = vpop.permute.xlu0 %4620
      %4622 = vrot.lane.b32.xlu0 %v2830, 64
      %v4623 = vpop.permute.xlu0 %4622
      %4834 = vrot.lane.b32.xlu0 %v2310, 80
      %v4835 = vpop.permute.xlu0 %4834
      %4836 = vrot.lane.b32.xlu0 %v2311, 80
      %v4837 = vpop.permute.xlu0 %4836
      %4838 = vrot.lane.b32.xlu0 %v2312, 80
      %v4839 = vpop.permute.xlu0 %4838
      %4840 = vrot.lane.b32.xlu0 %v2313, 80
      %v4841 = vpop.permute.xlu0 %4840
      %4842 = vrot.lane.b32.xlu0 %v2314, 80
      %v4843 = vpop.permute.xlu0 %4842
      %4844 = vrot.lane.b32.xlu0 %v2315, 80
      %v4845 = vpop.permute.xlu0 %4844
      %4846 = vrot.lane.b32.xlu0 %v2316, 80
      %v4847 = vpop.permute.xlu0 %4846
      %4848 = vrot.lane.b32.xlu0 %v2317, 80
      %v4849 = vpop.permute.xlu0 %4848
      %4850 = vrot.lane.b32.xlu0 %v2318, 80
      %v4851 = vpop.permute.xlu0 %4850
      %4852 = vrot.lane.b32.xlu0 %v2319, 80
      %v4853 = vpop.permute.xlu0 %4852
      %4854 = vrot.lane.b32.xlu0 %v2320, 80
      %v4855 = vpop.permute.xlu0 %4854
      %4856 = vrot.lane.b32.xlu0 %v2321, 80
      %v4857 = vpop.permute.xlu0 %4856
      %4858 = vrot.lane.b32.xlu0 %v2322, 80
      %v4859 = vpop.permute.xlu0 %4858
      %4860 = vrot.lane.b32.xlu0 %v2323, 80
      %v4861 = vpop.permute.xlu0 %4860
      %4862 = vrot.lane.b32.xlu0 %v2324, 80
      %v4863 = vpop.permute.xlu0 %4862
      %4864 = vrot.lane.b32.xlu0 %v2325, 80
      %v4865 = vpop.permute.xlu0 %4864
      %4866 = vrot.lane.b32.xlu0 %v2326, 80
      %v4867 = vpop.permute.xlu0 %4866
      %4868 = vrot.lane.b32.xlu0 %v2327, 80
      %v4869 = vpop.permute.xlu0 %4868
      %4870 = vrot.lane.b32.xlu0 %v2328, 80
      %v4871 = vpop.permute.xlu0 %4870
      %4872 = vrot.lane.b32.xlu0 %v2329, 80
      %v4873 = vpop.permute.xlu0 %4872
      %4874 = vrot.lane.b32.xlu0 %v2330, 80
      %v4875 = vpop.permute.xlu0 %4874
      %4876 = vrot.lane.b32.xlu0 %v2331, 80
      %v4877 = vpop.permute.xlu0 %4876
      %4878 = vrot.lane.b32.xlu0 %v2332, 80
      %v4879 = vpop.permute.xlu0 %4878
      %4880 = vrot.lane.b32.xlu0 %v2333, 80
      %v4881 = vpop.permute.xlu0 %4880
      %4882 = vrot.lane.b32.xlu0 %v2334, 80
      %v4883 = vpop.permute.xlu0 %4882
      %4884 = vrot.lane.b32.xlu0 %v2335, 80
      %v4885 = vpop.permute.xlu0 %4884
      %4886 = vrot.lane.b32.xlu0 %v2336, 80
      %v4887 = vpop.permute.xlu0 %4886
      %4888 = vrot.lane.b32.xlu0 %v2337, 80
      %v4889 = vpop.permute.xlu0 %4888
      %4890 = vrot.lane.b32.xlu0 %v2338, 80
      %v4891 = vpop.permute.xlu0 %4890
      %4892 = vrot.lane.b32.xlu0 %v2339, 80
      %v4893 = vpop.permute.xlu0 %4892
      %4894 = vrot.lane.b32.xlu0 %v2340, 80
      %v4895 = vpop.permute.xlu0 %4894
      %4896 = vrot.lane.b32.xlu0 %v2341, 80
      %v4897 = vpop.permute.xlu0 %4896
      %4898 = vrot.lane.b32.xlu0 %v2342, 80
      %v4899 = vpop.permute.xlu0 %4898
      %4900 = vrot.lane.b32.xlu0 %v2343, 80
      %v4901 = vpop.permute.xlu0 %4900
      %4902 = vrot.lane.b32.xlu0 %v2344, 80
      %v4903 = vpop.permute.xlu0 %4902
      %4904 = vrot.lane.b32.xlu0 %v2345, 80
      %v4905 = vpop.permute.xlu0 %4904
      %4906 = vrot.lane.b32.xlu0 %v2346, 80
      %v4907 = vpop.permute.xlu0 %4906
      %4908 = vrot.lane.b32.xlu0 %v2347, 80
      %v4909 = vpop.permute.xlu0 %4908
      %4910 = vrot.lane.b32.xlu0 %v2348, 80
      %v4911 = vpop.permute.xlu0 %4910
      %4912 = vrot.lane.b32.xlu0 %v2349, 80
      %v4913 = vpop.permute.xlu0 %4912
      %4914 = vrot.lane.b32.xlu0 %v2350, 80
      %v4915 = vpop.permute.xlu0 %4914
      %4916 = vrot.lane.b32.xlu0 %v2351, 80
      %v4917 = vpop.permute.xlu0 %4916
      %4918 = vrot.lane.b32.xlu0 %v2352, 80
      %v4919 = vpop.permute.xlu0 %4918
      %4920 = vrot.lane.b32.xlu0 %v2353, 80
      %v4921 = vpop.permute.xlu0 %4920
      %4922 = vrot.lane.b32.xlu0 %v2354, 80
      %v4923 = vpop.permute.xlu0 %4922
      %4924 = vrot.lane.b32.xlu0 %v2355, 80
      %v4925 = vpop.permute.xlu0 %4924
      %4926 = vrot.lane.b32.xlu0 %v2356, 80
      %v4927 = vpop.permute.xlu0 %4926
      %4928 = vrot.lane.b32.xlu0 %v2357, 80
      %v4929 = vpop.permute.xlu0 %4928
      %4930 = vrot.lane.b32.xlu0 %v2358, 80
      %v4931 = vpop.permute.xlu0 %4930
      %4932 = vrot.lane.b32.xlu0 %v2359, 80
      %v4933 = vpop.permute.xlu0 %4932
      %4934 = vrot.lane.b32.xlu0 %v2360, 80
      %v4935 = vpop.permute.xlu0 %4934
      %4936 = vrot.lane.b32.xlu0 %v2361, 80
      %v4937 = vpop.permute.xlu0 %4936
      %4938 = vrot.lane.b32.xlu0 %v2362, 80
      %v4939 = vpop.permute.xlu0 %4938
      %4940 = vrot.lane.b32.xlu0 %v2363, 80
      %v4941 = vpop.permute.xlu0 %4940
      %4942 = vrot.lane.b32.xlu0 %v2364, 80
      %v4943 = vpop.permute.xlu0 %4942
      %4944 = vrot.lane.b32.xlu0 %v2365, 80
      %v4945 = vpop.permute.xlu0 %4944
      %4946 = vrot.lane.b32.xlu0 %v2366, 80
      %v4947 = vpop.permute.xlu0 %4946
      %4948 = vrot.lane.b32.xlu0 %v2367, 80
      %v4949 = vpop.permute.xlu0 %4948
      %4950 = vrot.lane.b32.xlu0 %v2368, 80
      %v4951 = vpop.permute.xlu0 %4950
      %4952 = vrot.lane.b32.xlu0 %v2369, 80
      %v4953 = vpop.permute.xlu0 %4952
      %4954 = vrot.lane.b32.xlu0 %v2370, 80
      %v4955 = vpop.permute.xlu0 %4954
      %4956 = vrot.lane.b32.xlu0 %v2371, 80
      %v4957 = vpop.permute.xlu0 %4956
      %4958 = vrot.lane.b32.xlu0 %v2372, 80
      %v4959 = vpop.permute.xlu0 %4958
      %4960 = vrot.lane.b32.xlu0 %v2373, 80
      %v4961 = vpop.permute.xlu0 %4960
      %4962 = vrot.lane.b32.xlu0 %v2374, 80
      %v4963 = vpop.permute.xlu0 %4962
      %4964 = vrot.lane.b32.xlu0 %v2375, 80
      %v4965 = vpop.permute.xlu0 %4964
      %4966 = vrot.lane.b32.xlu0 %v2376, 80
      %v4967 = vpop.permute.xlu0 %4966
      %4968 = vrot.lane.b32.xlu0 %v2377, 80
      %v4969 = vpop.permute.xlu0 %4968
      %4970 = vrot.lane.b32.xlu0 %v2378, 80
      %v4971 = vpop.permute.xlu0 %4970
      %4972 = vrot.lane.b32.xlu0 %v2379, 80
      %v4973 = vpop.permute.xlu0 %4972
      %4974 = vrot.lane.b32.xlu0 %v2380, 80
      %v4975 = vpop.permute.xlu0 %4974
      %4976 = vrot.lane.b32.xlu0 %v2381, 80
      %v4977 = vpop.permute.xlu0 %4976
      %4978 = vrot.lane.b32.xlu0 %v2382, 80
      %v4979 = vpop.permute.xlu0 %4978
      %4980 = vrot.lane.b32.xlu0 %v2383, 80
      %v4981 = vpop.permute.xlu0 %4980
      %4982 = vrot.lane.b32.xlu0 %v2384, 80
      %v4983 = vpop.permute.xlu0 %4982
      %4984 = vrot.lane.b32.xlu0 %v2385, 80
      %v4985 = vpop.permute.xlu0 %4984
      %4986 = vrot.lane.b32.xlu0 %v2386, 80
      %v4987 = vpop.permute.xlu0 %4986
      %4988 = vrot.lane.b32.xlu0 %v2387, 80
      %v4989 = vpop.permute.xlu0 %4988
      %4990 = vrot.lane.b32.xlu0 %v2388, 80
      %v4991 = vpop.permute.xlu0 %4990
      %4992 = vrot.lane.b32.xlu0 %v2389, 80
      %v4993 = vpop.permute.xlu0 %4992
      %4994 = vrot.lane.b32.xlu0 %v2390, 80
      %v4995 = vpop.permute.xlu0 %4994
      %4996 = vrot.lane.b32.xlu0 %v2391, 80
      %v4997 = vpop.permute.xlu0 %4996
      %4998 = vrot.lane.b32.xlu0 %v2392, 80
      %v4999 = vpop.permute.xlu0 %4998
      %5000 = vrot.lane.b32.xlu0 %v2393, 80
      %v5001 = vpop.permute.xlu0 %5000
      %5002 = vrot.lane.b32.xlu0 %v2394, 80
      %v5003 = vpop.permute.xlu0 %5002
      %5004 = vrot.lane.b32.xlu0 %v2395, 80
      %v5005 = vpop.permute.xlu0 %5004
      %5006 = vrot.lane.b32.xlu0 %v2396, 80
      %v5007 = vpop.permute.xlu0 %5006
      %5008 = vrot.lane.b32.xlu0 %v2397, 80
      %v5009 = vpop.permute.xlu0 %5008
      %5010 = vrot.lane.b32.xlu0 %v2398, 80
      %v5011 = vpop.permute.xlu0 %5010
      %5012 = vrot.lane.b32.xlu0 %v2399, 80
      %v5013 = vpop.permute.xlu0 %5012
      %5014 = vrot.lane.b32.xlu0 %v2400, 80
      %v5015 = vpop.permute.xlu0 %5014
      %5016 = vrot.lane.b32.xlu0 %v2401, 80
      %v5017 = vpop.permute.xlu0 %5016
      %5018 = vrot.lane.b32.xlu0 %v2402, 80
      %v5019 = vpop.permute.xlu0 %5018
      %5020 = vrot.lane.b32.xlu0 %v2403, 80
      %v5021 = vpop.permute.xlu0 %5020
      %5022 = vrot.lane.b32.xlu0 %v2404, 80
      %v5023 = vpop.permute.xlu0 %5022
      %5024 = vrot.lane.b32.xlu0 %v2405, 80
      %v5025 = vpop.permute.xlu0 %5024
      %5026 = vrot.lane.b32.xlu0 %v2406, 80
      %v5027 = vpop.permute.xlu0 %5026
      %5028 = vrot.lane.b32.xlu0 %v2407, 80
      %v5029 = vpop.permute.xlu0 %5028
      %5030 = vrot.lane.b32.xlu0 %v2408, 80
      %v5031 = vpop.permute.xlu0 %5030
      %5032 = vrot.lane.b32.xlu0 %v2409, 80
      %v5033 = vpop.permute.xlu0 %5032
      %5034 = vrot.lane.b32.xlu0 %v2410, 80
      %v5035 = vpop.permute.xlu0 %5034
      %5036 = vrot.lane.b32.xlu0 %v2831, 80
      %v5037 = vpop.permute.xlu0 %5036
      %5038 = vrot.lane.b32.xlu0 %v2832, 80
      %v5039 = vpop.permute.xlu0 %5038
      %5040 = vrot.lane.b32.xlu0 %v2833, 80
      %v5041 = vpop.permute.xlu0 %5040
      %5042 = vrot.lane.b32.xlu0 %v2834, 80
      %v5043 = vpop.permute.xlu0 %5042
      %5254 = vrot.lane.b32.xlu0 %v2835, 96
      %v5255 = vpop.permute.xlu0 %5254
      %5256 = vrot.lane.b32.xlu0 %v2836, 96
      %v5257 = vpop.permute.xlu0 %5256
      %5258 = vrot.lane.b32.xlu0 %v2837, 96
      %v5259 = vpop.permute.xlu0 %5258
      %5260 = vrot.lane.b32.xlu0 %v2838, 96
      %v5261 = vpop.permute.xlu0 %5260
      %5262 = vrot.lane.b32.xlu0 %v2839, 96
      %v5263 = vpop.permute.xlu0 %5262
      %5264 = vrot.lane.b32.xlu0 %v2840, 96
      %v5265 = vpop.permute.xlu0 %5264
      %5266 = vrot.lane.b32.xlu0 %v2841, 96
      %v5267 = vpop.permute.xlu0 %5266
      %5268 = vrot.lane.b32.xlu0 %v2842, 96
      %v5269 = vpop.permute.xlu0 %5268
      %5270 = vrot.lane.b32.xlu0 %v2843, 96
      %v5271 = vpop.permute.xlu0 %5270
      %5272 = vrot.lane.b32.xlu0 %v2844, 96
      %v5273 = vpop.permute.xlu0 %5272
      %5274 = vrot.lane.b32.xlu0 %v2845, 96
      %v5275 = vpop.permute.xlu0 %5274
      %5276 = vrot.lane.b32.xlu0 %v2846, 96
      %v5277 = vpop.permute.xlu0 %5276
      %5278 = vrot.lane.b32.xlu0 %v2847, 96
      %v5279 = vpop.permute.xlu0 %5278
      %5280 = vrot.lane.b32.xlu0 %v2848, 96
      %v5281 = vpop.permute.xlu0 %5280
      %5282 = vrot.lane.b32.xlu0 %v2849, 96
      %v5283 = vpop.permute.xlu0 %5282
      %5284 = vrot.lane.b32.xlu0 %v2850, 96
      %v5285 = vpop.permute.xlu0 %5284
      %5286 = vrot.lane.b32.xlu0 %v2851, 96
      %v5287 = vpop.permute.xlu0 %5286
      %5288 = vrot.lane.b32.xlu0 %v2852, 96
      %v5289 = vpop.permute.xlu0 %5288
      %5290 = vrot.lane.b32.xlu0 %v2853, 96
      %v5291 = vpop.permute.xlu0 %5290
      %5292 = vrot.lane.b32.xlu0 %v2854, 96
      %v5293 = vpop.permute.xlu0 %5292
      %5294 = vrot.lane.b32.xlu0 %v2855, 96
      %v5295 = vpop.permute.xlu0 %5294
      %5296 = vrot.lane.b32.xlu0 %v2856, 96
      %v5297 = vpop.permute.xlu0 %5296
      %5298 = vrot.lane.b32.xlu0 %v2857, 96
      %v5299 = vpop.permute.xlu0 %5298
      %5300 = vrot.lane.b32.xlu0 %v2858, 96
      %v5301 = vpop.permute.xlu0 %5300
      %5302 = vrot.lane.b32.xlu0 %v2859, 96
      %v5303 = vpop.permute.xlu0 %5302
      %5304 = vrot.lane.b32.xlu0 %v2860, 96
      %v5305 = vpop.permute.xlu0 %5304
      %5306 = vrot.lane.b32.xlu0 %v2861, 96
      %v5307 = vpop.permute.xlu0 %5306
      %5308 = vrot.lane.b32.xlu0 %v2862, 96
      %v5309 = vpop.permute.xlu0 %5308
      %5310 = vrot.lane.b32.xlu0 %v2863, 96
      %v5311 = vpop.permute.xlu0 %5310
      %5312 = vrot.lane.b32.xlu0 %v2864, 96
      %v5313 = vpop.permute.xlu0 %5312
      %5314 = vrot.lane.b32.xlu0 %v2865, 96
      %v5315 = vpop.permute.xlu0 %5314
      %5316 = vrot.lane.b32.xlu0 %v2866, 96
      %v5317 = vpop.permute.xlu0 %5316
      %5318 = vrot.lane.b32.xlu0 %v2867, 96
      %v5319 = vpop.permute.xlu0 %5318
      %5320 = vrot.lane.b32.xlu0 %v2868, 96
      %v5321 = vpop.permute.xlu0 %5320
      %5322 = vrot.lane.b32.xlu0 %v2869, 96
      %v5323 = vpop.permute.xlu0 %5322
      %5324 = vrot.lane.b32.xlu0 %v2870, 96
      %v5325 = vpop.permute.xlu0 %5324
      %5326 = vrot.lane.b32.xlu0 %v2871, 96
      %v5327 = vpop.permute.xlu0 %5326
      %5328 = vrot.lane.b32.xlu0 %v2872, 96
      %v5329 = vpop.permute.xlu0 %5328
      %5330 = vrot.lane.b32.xlu0 %v2873, 96
      %v5331 = vpop.permute.xlu0 %5330
      %5332 = vrot.lane.b32.xlu0 %v2874, 96
      %v5333 = vpop.permute.xlu0 %5332
      %5334 = vrot.lane.b32.xlu0 %v2875, 96
      %v5335 = vpop.permute.xlu0 %5334
      %5336 = vrot.lane.b32.xlu0 %v2876, 96
      %v5337 = vpop.permute.xlu0 %5336
      %5338 = vrot.lane.b32.xlu0 %v2877, 96
      %v5339 = vpop.permute.xlu0 %5338
      %5340 = vrot.lane.b32.xlu0 %v2878, 96
      %v5341 = vpop.permute.xlu0 %5340
      %5342 = vrot.lane.b32.xlu0 %v2879, 96
      %v5343 = vpop.permute.xlu0 %5342
      %5344 = vrot.lane.b32.xlu0 %v2880, 96
      %v5345 = vpop.permute.xlu0 %5344
      %5346 = vrot.lane.b32.xlu0 %v2881, 96
      %v5347 = vpop.permute.xlu0 %5346
      %5348 = vrot.lane.b32.xlu0 %v2882, 96
      %v5349 = vpop.permute.xlu0 %5348
      %5350 = vrot.lane.b32.xlu0 %v2883, 96
      %v5351 = vpop.permute.xlu0 %5350
      %5352 = vrot.lane.b32.xlu0 %v2884, 96
      %v5353 = vpop.permute.xlu0 %5352
      %5354 = vrot.lane.b32.xlu0 %v2885, 96
      %v5355 = vpop.permute.xlu0 %5354
      %5356 = vrot.lane.b32.xlu0 %v2886, 96
      %v5357 = vpop.permute.xlu0 %5356
      %5358 = vrot.lane.b32.xlu0 %v2887, 96
      %v5359 = vpop.permute.xlu0 %5358
      %5360 = vrot.lane.b32.xlu0 %v2888, 96
      %v5361 = vpop.permute.xlu0 %5360
      %5362 = vrot.lane.b32.xlu0 %v2889, 96
      %v5363 = vpop.permute.xlu0 %5362
      %5364 = vrot.lane.b32.xlu0 %v2890, 96
      %v5365 = vpop.permute.xlu0 %5364
      %5366 = vrot.lane.b32.xlu0 %v2891, 96
      %v5367 = vpop.permute.xlu0 %5366
      %5368 = vrot.lane.b32.xlu0 %v2892, 96
      %v5369 = vpop.permute.xlu0 %5368
      %5370 = vrot.lane.b32.xlu0 %v2893, 96
      %v5371 = vpop.permute.xlu0 %5370
      %5372 = vrot.lane.b32.xlu0 %v2894, 96
      %v5373 = vpop.permute.xlu0 %5372
      %5374 = vrot.lane.b32.xlu0 %v2895, 96
      %v5375 = vpop.permute.xlu0 %5374
      %5376 = vrot.lane.b32.xlu0 %v2896, 96
      %v5377 = vpop.permute.xlu0 %5376
      %5378 = vrot.lane.b32.xlu0 %v2897, 96
      %v5379 = vpop.permute.xlu0 %5378
      %5380 = vrot.lane.b32.xlu0 %v2898, 96
      %v5381 = vpop.permute.xlu0 %5380
      %5382 = vrot.lane.b32.xlu0 %v2899, 96
      %v5383 = vpop.permute.xlu0 %5382
      %5384 = vrot.lane.b32.xlu0 %v2900, 96
      %v5385 = vpop.permute.xlu0 %5384
      %5386 = vrot.lane.b32.xlu0 %v2901, 96
      %v5387 = vpop.permute.xlu0 %5386
      %5388 = vrot.lane.b32.xlu0 %v2902, 96
      %v5389 = vpop.permute.xlu0 %5388
      %5390 = vrot.lane.b32.xlu0 %v2903, 96
      %v5391 = vpop.permute.xlu0 %5390
      %5392 = vrot.lane.b32.xlu0 %v2904, 96
      %v5393 = vpop.permute.xlu0 %5392
      %5394 = vrot.lane.b32.xlu0 %v2905, 96
      %v5395 = vpop.permute.xlu0 %5394
      %5396 = vrot.lane.b32.xlu0 %v2906, 96
      %v5397 = vpop.permute.xlu0 %5396
      %5398 = vrot.lane.b32.xlu0 %v2907, 96
      %v5399 = vpop.permute.xlu0 %5398
      %5400 = vrot.lane.b32.xlu0 %v2908, 96
      %v5401 = vpop.permute.xlu0 %5400
      %5402 = vrot.lane.b32.xlu0 %v2909, 96
      %v5403 = vpop.permute.xlu0 %5402
      %5404 = vrot.lane.b32.xlu0 %v2910, 96
      %v5405 = vpop.permute.xlu0 %5404
      %5406 = vrot.lane.b32.xlu0 %v2911, 96
      %v5407 = vpop.permute.xlu0 %5406
      %5408 = vrot.lane.b32.xlu0 %v2912, 96
      %v5409 = vpop.permute.xlu0 %5408
      %5410 = vrot.lane.b32.xlu0 %v2913, 96
      %v5411 = vpop.permute.xlu0 %5410
      %5412 = vrot.lane.b32.xlu0 %v2914, 96
      %v5413 = vpop.permute.xlu0 %5412
      %5414 = vrot.lane.b32.xlu0 %v2915, 96
      %v5415 = vpop.permute.xlu0 %5414
      %5416 = vrot.lane.b32.xlu0 %v2916, 96
      %v5417 = vpop.permute.xlu0 %5416
      %5418 = vrot.lane.b32.xlu0 %v2917, 96
      %v5419 = vpop.permute.xlu0 %5418
      %5420 = vrot.lane.b32.xlu0 %v2918, 96
      %v5421 = vpop.permute.xlu0 %5420
      %5422 = vrot.lane.b32.xlu0 %v2919, 96
      %v5423 = vpop.permute.xlu0 %5422
      %5424 = vrot.lane.b32.xlu0 %v2920, 96
      %v5425 = vpop.permute.xlu0 %5424
      %5426 = vrot.lane.b32.xlu0 %v2921, 96
      %v5427 = vpop.permute.xlu0 %5426
      %5428 = vrot.lane.b32.xlu0 %v2922, 96
      %v5429 = vpop.permute.xlu0 %5428
      %5430 = vrot.lane.b32.xlu0 %v2923, 96
      %v5431 = vpop.permute.xlu0 %5430
      %5432 = vrot.lane.b32.xlu0 %v2924, 96
      %v5433 = vpop.permute.xlu0 %5432
      %5434 = vrot.lane.b32.xlu0 %v2925, 96
      %v5435 = vpop.permute.xlu0 %5434
      %5436 = vrot.lane.b32.xlu0 %v2926, 96
      %v5437 = vpop.permute.xlu0 %5436
      %5438 = vrot.lane.b32.xlu0 %v2927, 96
      %v5439 = vpop.permute.xlu0 %5438
      %5440 = vrot.lane.b32.xlu0 %v2928, 96
      %v5441 = vpop.permute.xlu0 %5440
      %5442 = vrot.lane.b32.xlu0 %v2929, 96
      %v5443 = vpop.permute.xlu0 %5442
      %5444 = vrot.lane.b32.xlu0 %v2930, 96
      %v5445 = vpop.permute.xlu0 %5444
      %5446 = vrot.lane.b32.xlu0 %v2931, 96
      %v5447 = vpop.permute.xlu0 %5446
      %5448 = vrot.lane.b32.xlu0 %v2932, 96
      %v5449 = vpop.permute.xlu0 %5448
      %5450 = vrot.lane.b32.xlu0 %v2933, 96
      %v5451 = vpop.permute.xlu0 %5450
      %5452 = vrot.lane.b32.xlu0 %v2934, 96
      %v5453 = vpop.permute.xlu0 %5452
      %5454 = vrot.lane.b32.xlu0 %v2935, 96
      %v5455 = vpop.permute.xlu0 %5454
      %5456 = vrot.lane.b32.xlu0 %v2936, 96
      %v5457 = vpop.permute.xlu0 %5456
      %5458 = vrot.lane.b32.xlu0 %v2937, 96
      %v5459 = vpop.permute.xlu0 %5458
      %5460 = vrot.lane.b32.xlu0 %v2938, 96
      %v5461 = vpop.permute.xlu0 %5460
      %5462 = vrot.lane.b32.xlu0 %v2939, 96
      %v5463 = vpop.permute.xlu0 %5462
      %5674 = vrot.lane.b32.xlu0 %v2940, 112
      %v5675 = vpop.permute.xlu0 %5674
      %5676 = vrot.lane.b32.xlu0 %v2941, 112
      %v5677 = vpop.permute.xlu0 %5676
      %5678 = vrot.lane.b32.xlu0 %v2942, 112
      %v5679 = vpop.permute.xlu0 %5678
      %5680 = vrot.lane.b32.xlu0 %v2943, 112
      %v5681 = vpop.permute.xlu0 %5680
      %5682 = vrot.lane.b32.xlu0 %v2944, 112
      %v5683 = vpop.permute.xlu0 %5682
      %5684 = vrot.lane.b32.xlu0 %v2945, 112
      %v5685 = vpop.permute.xlu0 %5684
      %5686 = vrot.lane.b32.xlu0 %v2946, 112
      %v5687 = vpop.permute.xlu0 %5686
      %5688 = vrot.lane.b32.xlu0 %v2947, 112
      %v5689 = vpop.permute.xlu0 %5688
      %5690 = vrot.lane.b32.xlu0 %v2948, 112
      %v5691 = vpop.permute.xlu0 %5690
      %5692 = vrot.lane.b32.xlu0 %v2949, 112
      %v5693 = vpop.permute.xlu0 %5692
      %5694 = vrot.lane.b32.xlu0 %v2950, 112
      %v5695 = vpop.permute.xlu0 %5694
      %5696 = vrot.lane.b32.xlu0 %v2951, 112
      %v5697 = vpop.permute.xlu0 %5696
      %5698 = vrot.lane.b32.xlu0 %v2952, 112
      %v5699 = vpop.permute.xlu0 %5698
      %5700 = vrot.lane.b32.xlu0 %v2953, 112
      %v5701 = vpop.permute.xlu0 %5700
      %5702 = vrot.lane.b32.xlu0 %v2954, 112
      %v5703 = vpop.permute.xlu0 %5702
      %5704 = vrot.lane.b32.xlu0 %v2955, 112
      %v5705 = vpop.permute.xlu0 %5704
      %5706 = vrot.lane.b32.xlu0 %v2956, 112
      %v5707 = vpop.permute.xlu0 %5706
      %5708 = vrot.lane.b32.xlu0 %v2957, 112
      %v5709 = vpop.permute.xlu0 %5708
      %5710 = vrot.lane.b32.xlu0 %v2958, 112
      %v5711 = vpop.permute.xlu0 %5710
      %5712 = vrot.lane.b32.xlu0 %v2959, 112
      %v5713 = vpop.permute.xlu0 %5712
      %5714 = vrot.lane.b32.xlu0 %v2960, 112
      %v5715 = vpop.permute.xlu0 %5714
      %5716 = vrot.lane.b32.xlu0 %v2961, 112
      %v5717 = vpop.permute.xlu0 %5716
      %5718 = vrot.lane.b32.xlu0 %v2962, 112
      %v5719 = vpop.permute.xlu0 %5718
      %5720 = vrot.lane.b32.xlu0 %v2963, 112
      %v5721 = vpop.permute.xlu0 %5720
      %5722 = vrot.lane.b32.xlu0 %v2964, 112
      %v5723 = vpop.permute.xlu0 %5722
      %5724 = vrot.lane.b32.xlu0 %v2965, 112
      %v5725 = vpop.permute.xlu0 %5724
      %5726 = vrot.lane.b32.xlu0 %v2966, 112
      %v5727 = vpop.permute.xlu0 %5726
      %5728 = vrot.lane.b32.xlu0 %v2967, 112
      %v5729 = vpop.permute.xlu0 %5728
      %5730 = vrot.lane.b32.xlu0 %v2968, 112
      %v5731 = vpop.permute.xlu0 %5730
      %5732 = vrot.lane.b32.xlu0 %v2969, 112
      %v5733 = vpop.permute.xlu0 %5732
      %5734 = vrot.lane.b32.xlu0 %v2970, 112
      %v5735 = vpop.permute.xlu0 %5734
      %5736 = vrot.lane.b32.xlu0 %v2971, 112
      %v5737 = vpop.permute.xlu0 %5736
      %5738 = vrot.lane.b32.xlu0 %v2972, 112
      %v5739 = vpop.permute.xlu0 %5738
      %5740 = vrot.lane.b32.xlu0 %v2973, 112
      %v5741 = vpop.permute.xlu0 %5740
      %5742 = vrot.lane.b32.xlu0 %v2974, 112
      %v5743 = vpop.permute.xlu0 %5742
      %5744 = vrot.lane.b32.xlu0 %v2975, 112
      %v5745 = vpop.permute.xlu0 %5744
      %5746 = vrot.lane.b32.xlu0 %v2976, 112
      %v5747 = vpop.permute.xlu0 %5746
      %5748 = vrot.lane.b32.xlu0 %v2977, 112
      %v5749 = vpop.permute.xlu0 %5748
      %5750 = vrot.lane.b32.xlu0 %v2978, 112
      %v5751 = vpop.permute.xlu0 %5750
      %5752 = vrot.lane.b32.xlu0 %v2979, 112
      %v5753 = vpop.permute.xlu0 %5752
      %5754 = vrot.lane.b32.xlu0 %v2980, 112
      %v5755 = vpop.permute.xlu0 %5754
      %5756 = vrot.lane.b32.xlu0 %v2981, 112
      %v5757 = vpop.permute.xlu0 %5756
      %5758 = vrot.lane.b32.xlu0 %v2982, 112
      %v5759 = vpop.permute.xlu0 %5758
      %5760 = vrot.lane.b32.xlu0 %v2983, 112
      %v5761 = vpop.permute.xlu0 %5760
      %5762 = vrot.lane.b32.xlu0 %v2984, 112
      %v5763 = vpop.permute.xlu0 %5762
      %5764 = vrot.lane.b32.xlu0 %v2985, 112
      %v5765 = vpop.permute.xlu0 %5764
      %5766 = vrot.lane.b32.xlu0 %v2986, 112
      %v5767 = vpop.permute.xlu0 %5766
      %5768 = vrot.lane.b32.xlu0 %v2987, 112
      %v5769 = vpop.permute.xlu0 %5768
      %5770 = vrot.lane.b32.xlu0 %v2988, 112
      %v5771 = vpop.permute.xlu0 %5770
      %5772 = vrot.lane.b32.xlu0 %v2989, 112
      %v5773 = vpop.permute.xlu0 %5772
      %5774 = vrot.lane.b32.xlu0 %v2990, 112
      %v5775 = vpop.permute.xlu0 %5774
      %5776 = vrot.lane.b32.xlu0 %v2991, 112
      %v5777 = vpop.permute.xlu0 %5776
      %5778 = vrot.lane.b32.xlu0 %v2992, 112
      %v5779 = vpop.permute.xlu0 %5778
      %5780 = vrot.lane.b32.xlu0 %v2993, 112
      %v5781 = vpop.permute.xlu0 %5780
      %5782 = vrot.lane.b32.xlu0 %v2994, 112
      %v5783 = vpop.permute.xlu0 %5782
      %5784 = vrot.lane.b32.xlu0 %v2995, 112
      %v5785 = vpop.permute.xlu0 %5784
      %5786 = vrot.lane.b32.xlu0 %v2996, 112
      %v5787 = vpop.permute.xlu0 %5786
      %5788 = vrot.lane.b32.xlu0 %v2997, 112
      %v5789 = vpop.permute.xlu0 %5788
      %5790 = vrot.lane.b32.xlu0 %v2998, 112
      %v5791 = vpop.permute.xlu0 %5790
      %5792 = vrot.lane.b32.xlu0 %v2999, 112
      %v5793 = vpop.permute.xlu0 %5792
      %5794 = vrot.lane.b32.xlu0 %v3000, 112
      %v5795 = vpop.permute.xlu0 %5794
      %5796 = vrot.lane.b32.xlu0 %v3001, 112
      %v5797 = vpop.permute.xlu0 %5796
      %5798 = vrot.lane.b32.xlu0 %v3002, 112
      %v5799 = vpop.permute.xlu0 %5798
      %5800 = vrot.lane.b32.xlu0 %v3003, 112
      %v5801 = vpop.permute.xlu0 %5800
      %5802 = vrot.lane.b32.xlu0 %v3004, 112
      %v5803 = vpop.permute.xlu0 %5802
      %5804 = vrot.lane.b32.xlu0 %v3005, 112
      %v5805 = vpop.permute.xlu0 %5804
      %5806 = vrot.lane.b32.xlu0 %v3006, 112
      %v5807 = vpop.permute.xlu0 %5806
      %5808 = vrot.lane.b32.xlu0 %v3007, 112
      %v5809 = vpop.permute.xlu0 %5808
      %5810 = vrot.lane.b32.xlu0 %v3008, 112
      %v5811 = vpop.permute.xlu0 %5810
      %5812 = vrot.lane.b32.xlu0 %v3009, 112
      %v5813 = vpop.permute.xlu0 %5812
      %5814 = vrot.lane.b32.xlu0 %v3010, 112
      %v5815 = vpop.permute.xlu0 %5814
      %5816 = vrot.lane.b32.xlu0 %v3011, 112
      %v5817 = vpop.permute.xlu0 %5816
      %5818 = vrot.lane.b32.xlu0 %v3012, 112
      %v5819 = vpop.permute.xlu0 %5818
      %5820 = vrot.lane.b32.xlu0 %v3013, 112
      %v5821 = vpop.permute.xlu0 %5820
      %5822 = vrot.lane.b32.xlu0 %v3014, 112
      %v5823 = vpop.permute.xlu0 %5822
      %5824 = vrot.lane.b32.xlu0 %v3015, 112
      %v5825 = vpop.permute.xlu0 %5824
      %5826 = vrot.lane.b32.xlu0 %v3016, 112
      %v5827 = vpop.permute.xlu0 %5826
      %5828 = vrot.lane.b32.xlu0 %v3017, 112
      %v5829 = vpop.permute.xlu0 %5828
      %5830 = vrot.lane.b32.xlu0 %v3018, 112
      %v5831 = vpop.permute.xlu0 %5830
      %5832 = vrot.lane.b32.xlu0 %v3019, 112
      %v5833 = vpop.permute.xlu0 %5832
      %5834 = vrot.lane.b32.xlu0 %v3020, 112
      %v5835 = vpop.permute.xlu0 %5834
      %5836 = vrot.lane.b32.xlu0 %v3021, 112
      %v5837 = vpop.permute.xlu0 %5836
      %5838 = vrot.lane.b32.xlu0 %v3022, 112
      %v5839 = vpop.permute.xlu0 %5838
      %5840 = vrot.lane.b32.xlu0 %v3023, 112
      %v5841 = vpop.permute.xlu0 %5840
      %5842 = vrot.lane.b32.xlu0 %v3024, 112
      %v5843 = vpop.permute.xlu0 %5842
      %5844 = vrot.lane.b32.xlu0 %v3025, 112
      %v5845 = vpop.permute.xlu0 %5844
      %5846 = vrot.lane.b32.xlu0 %v3026, 112
      %v5847 = vpop.permute.xlu0 %5846
      %5848 = vrot.lane.b32.xlu0 %v3027, 112
      %v5849 = vpop.permute.xlu0 %5848
      %5850 = vrot.lane.b32.xlu0 %v3028, 112
      %v5851 = vpop.permute.xlu0 %5850
      %5852 = vrot.lane.b32.xlu0 %v3029, 112
      %v5853 = vpop.permute.xlu0 %5852
      %5854 = vrot.lane.b32.xlu0 %v3030, 112
      %v5855 = vpop.permute.xlu0 %5854
      %5856 = vrot.lane.b32.xlu0 %v3031, 112
      %v5857 = vpop.permute.xlu0 %5856
      %5858 = vrot.lane.b32.xlu0 %v3032, 112
      %v5859 = vpop.permute.xlu0 %5858
      %5860 = vrot.lane.b32.xlu0 %v3033, 112
      %v5861 = vpop.permute.xlu0 %5860
      %5862 = vrot.lane.b32.xlu0 %v3034, 112
      %v5863 = vpop.permute.xlu0 %5862
      %5864 = vrot.lane.b32.xlu0 %v3035, 112
      %v5865 = vpop.permute.xlu0 %5864
      %5866 = vrot.lane.b32.xlu0 %v3036, 112
      %v5867 = vpop.permute.xlu0 %5866
      %5868 = vrot.lane.b32.xlu0 %v3037, 112
      %v5869 = vpop.permute.xlu0 %5868
      %5870 = vrot.lane.b32.xlu0 %v3038, 112
      %v5871 = vpop.permute.xlu0 %5870
      %5872 = vrot.lane.b32.xlu0 %v3039, 112
      %v5873 = vpop.permute.xlu0 %5872
      %5874 = vrot.lane.b32.xlu0 %v3040, 112
      %v5875 = vpop.permute.xlu0 %5874
      %5876 = vrot.lane.b32.xlu0 %v3041, 112
      %v5877 = vpop.permute.xlu0 %5876
      %5878 = vrot.lane.b32.xlu0 %v3042, 112
      %v5879 = vpop.permute.xlu0 %5878
      %5880 = vrot.lane.b32.xlu0 %v3043, 112
      %v5881 = vpop.permute.xlu0 %5880
      %5882 = vrot.lane.b32.xlu0 %v3044, 112
      %v5883 = vpop.permute.xlu0 %5882
      %v5989 = vsel %vm2187, %v2306, %v3155
      %v5990 = vsel %vm2187, %v2307, %v3157
      %v5991 = vsel %vm2187, %v2308, %v3159
      %v5992 = vsel %vm2187, %v2309, %v3161
      %v5993 = vsel %vm2187, %v2310, %v3163
      %v5994 = vsel %vm2187, %v2311, %v3165
      %v5995 = vsel %vm2187, %v2312, %v3167
      %v5996 = vsel %vm2187, %v2313, %v3169
      %v5997 = vsel %vm2187, %v2314, %v3171
      %v5998 = vsel %vm2187, %v2315, %v3173
      %v5999 = vsel %vm2187, %v2316, %v3175
      %v6000 = vsel %vm2187, %v2317, %v3177
      %v6001 = vsel %vm2187, %v2318, %v3179
      %v6002 = vsel %vm2187, %v2319, %v3181
      %v6003 = vsel %vm2187, %v2320, %v3183
      %v6004 = vsel %vm2187, %v2321, %v3185
      %v6005 = vsel %vm2187, %v2322, %v3187
      %v6006 = vsel %vm2187, %v2323, %v3189
      %v6007 = vsel %vm2187, %v2324, %v3191
      %v6008 = vsel %vm2187, %v2325, %v3193
      %v6009 = vsel %vm2187, %v2326, %v3195
      %v6010 = vsel %vm2187, %v2327, %v3197
      %v6011 = vsel %vm2187, %v2328, %v3199
      %v6012 = vsel %vm2187, %v2329, %v3201
      %v6013 = vsel %vm2187, %v2330, %v3203
      %v6014 = vsel %vm2187, %v2331, %v3205
      %v6015 = vsel %vm2187, %v2332, %v3207
      %v6016 = vsel %vm2187, %v2333, %v3209
      %v6017 = vsel %vm2187, %v2334, %v3211
      %v6018 = vsel %vm2187, %v2335, %v3213
      %v6019 = vsel %vm2187, %v2336, %v3215
      %v6020 = vsel %vm2187, %v2337, %v3217
      %v6021 = vsel %vm2187, %v2338, %v3219
      %v6022 = vsel %vm2187, %v2339, %v3221
      %v6023 = vsel %vm2187, %v2340, %v3223
      %v6024 = vsel %vm2187, %v2341, %v3225
      %v6025 = vsel %vm2187, %v2342, %v3227
      %v6026 = vsel %vm2187, %v2343, %v3229
      %v6027 = vsel %vm2187, %v2344, %v3231
      %v6028 = vsel %vm2187, %v2345, %v3233
      %v6029 = vsel %vm2187, %v2346, %v3235
      %v6030 = vsel %vm2187, %v2347, %v3237
      %v6031 = vsel %vm2187, %v2348, %v3239
      %v6032 = vsel %vm2187, %v2349, %v3241
      %v6033 = vsel %vm2187, %v2350, %v3243
      %v6034 = vsel %vm2187, %v2351, %v3245
      %v6035 = vsel %vm2187, %v2352, %v3247
      %v6036 = vsel %vm2187, %v2353, %v3249
      %v6037 = vsel %vm2187, %v2354, %v3251
      %v6038 = vsel %vm2187, %v2355, %v3253
      %v6039 = vsel %vm2187, %v2356, %v3255
      %v6040 = vsel %vm2187, %v2357, %v3257
      %v6041 = vsel %vm2187, %v2358, %v3259
      %v6042 = vsel %vm2187, %v2359, %v3261
      %v6043 = vsel %vm2187, %v2360, %v3263
      %v6044 = vsel %vm2187, %v2361, %v3265
      %v6045 = vsel %vm2187, %v2362, %v3267
      %v6046 = vsel %vm2187, %v2363, %v3269
      %v6047 = vsel %vm2187, %v2364, %v3271
      %v6048 = vsel %vm2187, %v2365, %v3273
      %v6049 = vsel %vm2187, %v2366, %v3275
      %v6050 = vsel %vm2187, %v2367, %v3277
      %v6051 = vsel %vm2187, %v2368, %v3279
      %v6052 = vsel %vm2187, %v2369, %v3281
      %v6053 = vsel %vm2187, %v2370, %v3283
      %v6054 = vsel %vm2187, %v2371, %v3285
      %v6055 = vsel %vm2187, %v2372, %v3287
      %v6056 = vsel %vm2187, %v2373, %v3289
      %v6057 = vsel %vm2187, %v2374, %v3291
      %v6058 = vsel %vm2187, %v2375, %v3293
      %v6059 = vsel %vm2187, %v2376, %v3295
      %v6060 = vsel %vm2187, %v2377, %v3297
      %v6061 = vsel %vm2187, %v2378, %v3299
      %v6062 = vsel %vm2187, %v2379, %v3301
      %v6063 = vsel %vm2187, %v2380, %v3303
      %v6064 = vsel %vm2187, %v2381, %v3305
      %v6065 = vsel %vm2187, %v2382, %v3307
      %v6066 = vsel %vm2187, %v2383, %v3309
      %v6067 = vsel %vm2187, %v2384, %v3311
      %v6068 = vsel %vm2187, %v2385, %v3313
      %v6069 = vsel %vm2187, %v2386, %v3315
      %v6070 = vsel %vm2187, %v2387, %v3317
      %v6071 = vsel %vm2187, %v2388, %v3319
      %v6072 = vsel %vm2187, %v2389, %v3321
      %v6073 = vsel %vm2187, %v2390, %v3323
      %v6074 = vsel %vm2187, %v2391, %v3325
      %v6075 = vsel %vm2187, %v2392, %v3327
      %v6076 = vsel %vm2187, %v2393, %v3329
      %v6077 = vsel %vm2187, %v2394, %v3331
      %v6078 = vsel %vm2187, %v2395, %v3333
      %v6079 = vsel %vm2187, %v2396, %v3335
      %v6080 = vsel %vm2187, %v2397, %v3337
      %v6081 = vsel %vm2187, %v2398, %v3339
      %v6082 = vsel %vm2187, %v2399, %v3341
      %v6083 = vsel %vm2187, %v2400, %v3343
      %v6084 = vsel %vm2187, %v2401, %v3345
      %v6085 = vsel %vm2187, %v2402, %v3347
      %v6086 = vsel %vm2187, %v2403, %v3349
      %v6087 = vsel %vm2187, %v2404, %v3351
      %v6088 = vsel %vm2187, %v2405, %v3353
      %v6089 = vsel %vm2187, %v2406, %v3355
      %v6090 = vsel %vm2187, %v2407, %v3357
      %v6091 = vsel %vm2187, %v2408, %v3359
      %v6092 = vsel %vm2187, %v2409, %v3361
      %v6093 = vsel %vm2187, %v2410, %v3363
      %vm6094 = vcmask 261120
      %v6095 = vsel %vm6094, %v5989, %v3575
      %v6096 = vsel %vm6094, %v5990, %v3577
      %v6097 = vsel %vm6094, %v5991, %v3579
      %v6098 = vsel %vm6094, %v5992, %v3581
      %v6099 = vsel %vm6094, %v5993, %v3583
      %v6100 = vsel %vm6094, %v5994, %v3585
      %v6101 = vsel %vm6094, %v5995, %v3587
      %v6102 = vsel %vm6094, %v5996, %v3589
      %v6103 = vsel %vm6094, %v5997, %v3591
      %v6104 = vsel %vm6094, %v5998, %v3593
      %v6105 = vsel %vm6094, %v5999, %v3595
      %v6106 = vsel %vm6094, %v6000, %v3597
      %v6107 = vsel %vm6094, %v6001, %v3599
      %v6108 = vsel %vm6094, %v6002, %v3601
      %v6109 = vsel %vm6094, %v6003, %v3603
      %v6110 = vsel %vm6094, %v6004, %v3605
      %v6111 = vsel %vm6094, %v6005, %v3607
      %v6112 = vsel %vm6094, %v6006, %v3609
      %v6113 = vsel %vm6094, %v6007, %v3611
      %v6114 = vsel %vm6094, %v6008, %v3613
      %v6115 = vsel %vm6094, %v6009, %v3615
      %v6116 = vsel %vm6094, %v6010, %v3617
      %v6117 = vsel %vm6094, %v6011, %v3619
      %v6118 = vsel %vm6094, %v6012, %v3621
      %v6119 = vsel %vm6094, %v6013, %v3623
      %v6120 = vsel %vm6094, %v6014, %v3625
      %v6121 = vsel %vm6094, %v6015, %v3627
      %v6122 = vsel %vm6094, %v6016, %v3629
      %v6123 = vsel %vm6094, %v6017, %v3631
      %v6124 = vsel %vm6094, %v6018, %v3633
      %v6125 = vsel %vm6094, %v6019, %v3635
      %v6126 = vsel %vm6094, %v6020, %v3637
      %v6127 = vsel %vm6094, %v6021, %v3639
      %v6128 = vsel %vm6094, %v6022, %v3641
      %v6129 = vsel %vm6094, %v6023, %v3643
      %v6130 = vsel %vm6094, %v6024, %v3645
      %v6131 = vsel %vm6094, %v6025, %v3647
      %v6132 = vsel %vm6094, %v6026, %v3649
      %v6133 = vsel %vm6094, %v6027, %v3651
      %v6134 = vsel %vm6094, %v6028, %v3653
      %v6135 = vsel %vm6094, %v6029, %v3655
      %v6136 = vsel %vm6094, %v6030, %v3657
      %v6137 = vsel %vm6094, %v6031, %v3659
      %v6138 = vsel %vm6094, %v6032, %v3661
      %v6139 = vsel %vm6094, %v6033, %v3663
      %v6140 = vsel %vm6094, %v6034, %v3665
      %v6141 = vsel %vm6094, %v6035, %v3667
      %v6142 = vsel %vm6094, %v6036, %v3669
      %v6143 = vsel %vm6094, %v6037, %v3671
      %v6144 = vsel %vm6094, %v6038, %v3673
      %v6145 = vsel %vm6094, %v6039, %v3675
      %v6146 = vsel %vm6094, %v6040, %v3677
      %v6147 = vsel %vm6094, %v6041, %v3679
      %v6148 = vsel %vm6094, %v6042, %v3681
      %v6149 = vsel %vm6094, %v6043, %v3683
      %v6150 = vsel %vm6094, %v6044, %v3685
      %v6151 = vsel %vm6094, %v6045, %v3687
      %v6152 = vsel %vm6094, %v6046, %v3689
      %v6153 = vsel %vm6094, %v6047, %v3691
      %v6154 = vsel %vm6094, %v6048, %v3693
      %v6155 = vsel %vm6094, %v6049, %v3695
      %v6156 = vsel %vm6094, %v6050, %v3697
      %v6157 = vsel %vm6094, %v6051, %v3699
      %v6158 = vsel %vm6094, %v6052, %v3701
      %v6159 = vsel %vm6094, %v6053, %v3703
      %v6160 = vsel %vm6094, %v6054, %v3705
      %v6161 = vsel %vm6094, %v6055, %v3707
      %v6162 = vsel %vm6094, %v6056, %v3709
      %v6163 = vsel %vm6094, %v6057, %v3711
      %v6164 = vsel %vm6094, %v6058, %v3713
      %v6165 = vsel %vm6094, %v6059, %v3715
      %v6166 = vsel %vm6094, %v6060, %v3717
      %v6167 = vsel %vm6094, %v6061, %v3719
      %v6168 = vsel %vm6094, %v6062, %v3721
      %v6169 = vsel %vm6094, %v6063, %v3723
      %v6170 = vsel %vm6094, %v6064, %v3725
      %v6171 = vsel %vm6094, %v6065, %v3727
      %v6172 = vsel %vm6094, %v6066, %v3729
      %v6173 = vsel %vm6094, %v6067, %v3731
      %v6174 = vsel %vm6094, %v6068, %v3733
      %v6175 = vsel %vm6094, %v6069, %v3735
      %v6176 = vsel %vm6094, %v6070, %v3737
      %v6177 = vsel %vm6094, %v6071, %v3739
      %v6178 = vsel %vm6094, %v6072, %v3741
      %v6179 = vsel %vm6094, %v6073, %v3743
      %v6180 = vsel %vm6094, %v6074, %v3745
      %v6181 = vsel %vm6094, %v6075, %v3747
      %v6182 = vsel %vm6094, %v6076, %v3749
      %v6183 = vsel %vm6094, %v6077, %v3751
      %v6184 = vsel %vm6094, %v6078, %v3753
      %v6185 = vsel %vm6094, %v6079, %v3755
      %v6186 = vsel %vm6094, %v6080, %v3757
      %v6187 = vsel %vm6094, %v6081, %v3759
      %v6188 = vsel %vm6094, %v6082, %v3761
      %v6189 = vsel %vm6094, %v6083, %v3763
      %v6190 = vsel %vm6094, %v6084, %v3765
      %v6191 = vsel %vm6094, %v6085, %v3767
      %v6192 = vsel %vm6094, %v6086, %v3769
      %v6193 = vsel %vm6094, %v6087, %v3771
      %v6194 = vsel %vm6094, %v6088, %v3773
      %v6195 = vsel %vm6094, %v6089, %v3775
      %v6196 = vsel %vm6094, %v6090, %v3777
      %v6197 = vsel %vm6094, %v6091, %v3779
      %v6198 = vsel %vm6094, %v6092, %v3781
      %v6199 = vsel %vm6094, %v6093, %v3783
      %vm6200 = vcmask 392192
      %v6201 = vsel %vm6200, %v6095, %v3995
      %v6202 = vsel %vm6200, %v6096, %v3997
      %v6203 = vsel %vm6200, %v6097, %v3999
      %v6204 = vsel %vm6200, %v6098, %v4001
      %v6205 = vsel %vm6200, %v6099, %v4003
      %v6206 = vsel %vm6200, %v6100, %v4005
      %v6207 = vsel %vm6200, %v6101, %v4007
      %v6208 = vsel %vm6200, %v6102, %v4009
      %v6209 = vsel %vm6200, %v6103, %v4011
      %v6210 = vsel %vm6200, %v6104, %v4013
      %v6211 = vsel %vm6200, %v6105, %v4015
      %v6212 = vsel %vm6200, %v6106, %v4017
      %v6213 = vsel %vm6200, %v6107, %v4019
      %v6214 = vsel %vm6200, %v6108, %v4021
      %v6215 = vsel %vm6200, %v6109, %v4023
      %v6216 = vsel %vm6200, %v6110, %v4025
      %v6217 = vsel %vm6200, %v6111, %v4027
      %v6218 = vsel %vm6200, %v6112, %v4029
      %v6219 = vsel %vm6200, %v6113, %v4031
      %v6220 = vsel %vm6200, %v6114, %v4033
      %v6221 = vsel %vm6200, %v6115, %v4035
      %v6222 = vsel %vm6200, %v6116, %v4037
      %v6223 = vsel %vm6200, %v6117, %v4039
      %v6224 = vsel %vm6200, %v6118, %v4041
      %v6225 = vsel %vm6200, %v6119, %v4043
      %v6226 = vsel %vm6200, %v6120, %v4045
      %v6227 = vsel %vm6200, %v6121, %v4047
      %v6228 = vsel %vm6200, %v6122, %v4049
      %v6229 = vsel %vm6200, %v6123, %v4051
      %v6230 = vsel %vm6200, %v6124, %v4053
      %v6231 = vsel %vm6200, %v6125, %v4055
      %v6232 = vsel %vm6200, %v6126, %v4057
      %v6233 = vsel %vm6200, %v6127, %v4059
      %v6234 = vsel %vm6200, %v6128, %v4061
      %v6235 = vsel %vm6200, %v6129, %v4063
      %v6236 = vsel %vm6200, %v6130, %v4065
      %v6237 = vsel %vm6200, %v6131, %v4067
      %v6238 = vsel %vm6200, %v6132, %v4069
      %v6239 = vsel %vm6200, %v6133, %v4071
      %v6240 = vsel %vm6200, %v6134, %v4073
      %v6241 = vsel %vm6200, %v6135, %v4075
      %v6242 = vsel %vm6200, %v6136, %v4077
      %v6243 = vsel %vm6200, %v6137, %v4079
      %v6244 = vsel %vm6200, %v6138, %v4081
      %v6245 = vsel %vm6200, %v6139, %v4083
      %v6246 = vsel %vm6200, %v6140, %v4085
      %v6247 = vsel %vm6200, %v6141, %v4087
      %v6248 = vsel %vm6200, %v6142, %v4089
      %v6249 = vsel %vm6200, %v6143, %v4091
      %v6250 = vsel %vm6200, %v6144, %v4093
      %v6251 = vsel %vm6200, %v6145, %v4095
      %v6252 = vsel %vm6200, %v6146, %v4097
      %v6253 = vsel %vm6200, %v6147, %v4099
      %v6254 = vsel %vm6200, %v6148, %v4101
      %v6255 = vsel %vm6200, %v6149, %v4103
      %v6256 = vsel %vm6200, %v6150, %v4105
      %v6257 = vsel %vm6200, %v6151, %v4107
      %v6258 = vsel %vm6200, %v6152, %v4109
      %v6259 = vsel %vm6200, %v6153, %v4111
      %v6260 = vsel %vm6200, %v6154, %v4113
      %v6261 = vsel %vm6200, %v6155, %v4115
      %v6262 = vsel %vm6200, %v6156, %v4117
      %v6263 = vsel %vm6200, %v6157, %v4119
      %v6264 = vsel %vm6200, %v6158, %v4121
      %v6265 = vsel %vm6200, %v6159, %v4123
      %v6266 = vsel %vm6200, %v6160, %v4125
      %v6267 = vsel %vm6200, %v6161, %v4127
      %v6268 = vsel %vm6200, %v6162, %v4129
      %v6269 = vsel %vm6200, %v6163, %v4131
      %v6270 = vsel %vm6200, %v6164, %v4133
      %v6271 = vsel %vm6200, %v6165, %v4135
      %v6272 = vsel %vm6200, %v6166, %v4137
      %v6273 = vsel %vm6200, %v6167, %v4139
      %v6274 = vsel %vm6200, %v6168, %v4141
      %v6275 = vsel %vm6200, %v6169, %v4143
      %v6276 = vsel %vm6200, %v6170, %v4145
      %v6277 = vsel %vm6200, %v6171, %v4147
      %v6278 = vsel %vm6200, %v6172, %v4149
      %v6279 = vsel %vm6200, %v6173, %v4151
      %v6280 = vsel %vm6200, %v6174, %v4153
      %v6281 = vsel %vm6200, %v6175, %v4155
      %v6282 = vsel %vm6200, %v6176, %v4157
      %v6283 = vsel %vm6200, %v6177, %v4159
      %v6284 = vsel %vm6200, %v6178, %v4161
      %v6285 = vsel %vm6200, %v6179, %v4163
      %v6286 = vsel %vm6200, %v6180, %v4165
      %v6287 = vsel %vm6200, %v6181, %v4167
      %v6288 = vsel %vm6200, %v6182, %v4169
      %v6289 = vsel %vm6200, %v6183, %v4171
      %v6290 = vsel %vm6200, %v6184, %v4173
      %v6291 = vsel %vm6200, %v6185, %v4175
      %v6292 = vsel %vm6200, %v6186, %v4177
      %v6293 = vsel %vm6200, %v6187, %v4179
      %v6294 = vsel %vm6200, %v6188, %v4181
      %v6295 = vsel %vm6200, %v6189, %v4183
      %v6296 = vsel %vm6200, %v6190, %v4185
      %v6297 = vsel %vm6200, %v6191, %v4187
      %v6298 = vsel %vm6200, %v6192, %v4189
      %v6299 = vsel %vm6200, %v6193, %v4191
      %v6300 = vsel %vm6200, %v6194, %v4193
      %v6301 = vsel %vm6200, %v6195, %v4195
      %v6302 = vsel %vm6200, %v6196, %v4197
      %v6303 = vsel %vm6200, %v6197, %v4199
      %v6304 = vsel %vm6200, %v6198, %v4201
      %v6305 = vsel %vm6200, %v6199, %v4203
      %vm6306 = vcmask 523264
      %v6307 = vsel %vm6306, %v6201, %v4415
      %v6308 = vsel %vm6306, %v6202, %v4417
      %v6309 = vsel %vm6306, %v6203, %v4419
      %v6310 = vsel %vm6306, %v6204, %v4421
      %v6311 = vsel %vm6306, %v6205, %v4423
      %v6312 = vsel %vm6306, %v6206, %v4425
      %v6313 = vsel %vm6306, %v6207, %v4427
      %v6314 = vsel %vm6306, %v6208, %v4429
      %v6315 = vsel %vm6306, %v6209, %v4431
      %v6316 = vsel %vm6306, %v6210, %v4433
      %v6317 = vsel %vm6306, %v6211, %v4435
      %v6318 = vsel %vm6306, %v6212, %v4437
      %v6319 = vsel %vm6306, %v6213, %v4439
      %v6320 = vsel %vm6306, %v6214, %v4441
      %v6321 = vsel %vm6306, %v6215, %v4443
      %v6322 = vsel %vm6306, %v6216, %v4445
      %v6323 = vsel %vm6306, %v6217, %v4447
      %v6324 = vsel %vm6306, %v6218, %v4449
      %v6325 = vsel %vm6306, %v6219, %v4451
      %v6326 = vsel %vm6306, %v6220, %v4453
      %v6327 = vsel %vm6306, %v6221, %v4455
      %v6328 = vsel %vm6306, %v6222, %v4457
      %v6329 = vsel %vm6306, %v6223, %v4459
      %v6330 = vsel %vm6306, %v6224, %v4461
      %v6331 = vsel %vm6306, %v6225, %v4463
      %v6332 = vsel %vm6306, %v6226, %v4465
      %v6333 = vsel %vm6306, %v6227, %v4467
      %v6334 = vsel %vm6306, %v6228, %v4469
      %v6335 = vsel %vm6306, %v6229, %v4471
      %v6336 = vsel %vm6306, %v6230, %v4473
      %v6337 = vsel %vm6306, %v6231, %v4475
      %v6338 = vsel %vm6306, %v6232, %v4477
      %v6339 = vsel %vm6306, %v6233, %v4479
      %v6340 = vsel %vm6306, %v6234, %v4481
      %v6341 = vsel %vm6306, %v6235, %v4483
      %v6342 = vsel %vm6306, %v6236, %v4485
      %v6343 = vsel %vm6306, %v6237, %v4487
      %v6344 = vsel %vm6306, %v6238, %v4489
      %v6345 = vsel %vm6306, %v6239, %v4491
      %v6346 = vsel %vm6306, %v6240, %v4493
      %v6347 = vsel %vm6306, %v6241, %v4495
      %v6348 = vsel %vm6306, %v6242, %v4497
      %v6349 = vsel %vm6306, %v6243, %v4499
      %v6350 = vsel %vm6306, %v6244, %v4501
      %v6351 = vsel %vm6306, %v6245, %v4503
      %v6352 = vsel %vm6306, %v6246, %v4505
      %v6353 = vsel %vm6306, %v6247, %v4507
      %v6354 = vsel %vm6306, %v6248, %v4509
      %v6355 = vsel %vm6306, %v6249, %v4511
      %v6356 = vsel %vm6306, %v6250, %v4513
      %v6357 = vsel %vm6306, %v6251, %v4515
      %v6358 = vsel %vm6306, %v6252, %v4517
      %v6359 = vsel %vm6306, %v6253, %v4519
      %v6360 = vsel %vm6306, %v6254, %v4521
      %v6361 = vsel %vm6306, %v6255, %v4523
      %v6362 = vsel %vm6306, %v6256, %v4525
      %v6363 = vsel %vm6306, %v6257, %v4527
      %v6364 = vsel %vm6306, %v6258, %v4529
      %v6365 = vsel %vm6306, %v6259, %v4531
      %v6366 = vsel %vm6306, %v6260, %v4533
      %v6367 = vsel %vm6306, %v6261, %v4535
      %v6368 = vsel %vm6306, %v6262, %v4537
      %v6369 = vsel %vm6306, %v6263, %v4539
      %v6370 = vsel %vm6306, %v6264, %v4541
      %v6371 = vsel %vm6306, %v6265, %v4543
      %v6372 = vsel %vm6306, %v6266, %v4545
      %v6373 = vsel %vm6306, %v6267, %v4547
      %v6374 = vsel %vm6306, %v6268, %v4549
      %v6375 = vsel %vm6306, %v6269, %v4551
      %v6376 = vsel %vm6306, %v6270, %v4553
      %v6377 = vsel %vm6306, %v6271, %v4555
      %v6378 = vsel %vm6306, %v6272, %v4557
      %v6379 = vsel %vm6306, %v6273, %v4559
      %v6380 = vsel %vm6306, %v6274, %v4561
      %v6381 = vsel %vm6306, %v6275, %v4563
      %v6382 = vsel %vm6306, %v6276, %v4565
      %v6383 = vsel %vm6306, %v6277, %v4567
      %v6384 = vsel %vm6306, %v6278, %v4569
      %v6385 = vsel %vm6306, %v6279, %v4571
      %v6386 = vsel %vm6306, %v6280, %v4573
      %v6387 = vsel %vm6306, %v6281, %v4575
      %v6388 = vsel %vm6306, %v6282, %v4577
      %v6389 = vsel %vm6306, %v6283, %v4579
      %v6390 = vsel %vm6306, %v6284, %v4581
      %v6391 = vsel %vm6306, %v6285, %v4583
      %v6392 = vsel %vm6306, %v6286, %v4585
      %v6393 = vsel %vm6306, %v6287, %v4587
      %v6394 = vsel %vm6306, %v6288, %v4589
      %v6395 = vsel %vm6306, %v6289, %v4591
      %v6396 = vsel %vm6306, %v6290, %v4593
      %v6397 = vsel %vm6306, %v6291, %v4595
      %v6398 = vsel %vm6306, %v6292, %v4597
      %v6399 = vsel %vm6306, %v6293, %v4599
      %v6400 = vsel %vm6306, %v6294, %v4601
      %v6401 = vsel %vm6306, %v6295, %v4603
      %v6402 = vsel %vm6306, %v6296, %v4605
      %v6403 = vsel %vm6306, %v6297, %v4607
      %v6404 = vsel %vm6306, %v6298, %v4609
      %v6405 = vsel %vm6306, %v6299, %v4611
      %v6406 = vsel %vm6306, %v6300, %v4613
      %v6407 = vsel %vm6306, %v6301, %v4615
      %v6408 = vsel %vm6306, %v6302, %v4617
      %v6409 = vsel %vm6306, %v6303, %v4619
      %v6410 = vsel %vm6306, %v6304, %v4621
      %v6411 = vsel %vm6306, %v6305, %v4623
      %vm6412 = vcmask 654336
      %v6413 = vsel %vm6412, %v6307, %v4835
      %v6414 = vsel %vm6412, %v6308, %v4837
      %v6415 = vsel %vm6412, %v6309, %v4839
      %v6416 = vsel %vm6412, %v6310, %v4841
      %v6417 = vsel %vm6412, %v6311, %v4843
      %v6418 = vsel %vm6412, %v6312, %v4845
      %v6419 = vsel %vm6412, %v6313, %v4847
      %v6420 = vsel %vm6412, %v6314, %v4849
      %v6421 = vsel %vm6412, %v6315, %v4851
      %v6422 = vsel %vm6412, %v6316, %v4853
      %v6423 = vsel %vm6412, %v6317, %v4855
      %v6424 = vsel %vm6412, %v6318, %v4857
      %v6425 = vsel %vm6412, %v6319, %v4859
      %v6426 = vsel %vm6412, %v6320, %v4861
      %v6427 = vsel %vm6412, %v6321, %v4863
      %v6428 = vsel %vm6412, %v6322, %v4865
      %v6429 = vsel %vm6412, %v6323, %v4867
      %v6430 = vsel %vm6412, %v6324, %v4869
      %v6431 = vsel %vm6412, %v6325, %v4871
      %v6432 = vsel %vm6412, %v6326, %v4873
      %v6433 = vsel %vm6412, %v6327, %v4875
      %v6434 = vsel %vm6412, %v6328, %v4877
      %v6435 = vsel %vm6412, %v6329, %v4879
      %v6436 = vsel %vm6412, %v6330, %v4881
      %v6437 = vsel %vm6412, %v6331, %v4883
      %v6438 = vsel %vm6412, %v6332, %v4885
      %v6439 = vsel %vm6412, %v6333, %v4887
      %v6440 = vsel %vm6412, %v6334, %v4889
      %v6441 = vsel %vm6412, %v6335, %v4891
      %v6442 = vsel %vm6412, %v6336, %v4893
      %v6443 = vsel %vm6412, %v6337, %v4895
      %v6444 = vsel %vm6412, %v6338, %v4897
      %v6445 = vsel %vm6412, %v6339, %v4899
      %v6446 = vsel %vm6412, %v6340, %v4901
      %v6447 = vsel %vm6412, %v6341, %v4903
      %v6448 = vsel %vm6412, %v6342, %v4905
      %v6449 = vsel %vm6412, %v6343, %v4907
      %v6450 = vsel %vm6412, %v6344, %v4909
      %v6451 = vsel %vm6412, %v6345, %v4911
      %v6452 = vsel %vm6412, %v6346, %v4913
      %v6453 = vsel %vm6412, %v6347, %v4915
      %v6454 = vsel %vm6412, %v6348, %v4917
      %v6455 = vsel %vm6412, %v6349, %v4919
      %v6456 = vsel %vm6412, %v6350, %v4921
      %v6457 = vsel %vm6412, %v6351, %v4923
      %v6458 = vsel %vm6412, %v6352, %v4925
      %v6459 = vsel %vm6412, %v6353, %v4927
      %v6460 = vsel %vm6412, %v6354, %v4929
      %v6461 = vsel %vm6412, %v6355, %v4931
      %v6462 = vsel %vm6412, %v6356, %v4933
      %v6463 = vsel %vm6412, %v6357, %v4935
      %v6464 = vsel %vm6412, %v6358, %v4937
      %v6465 = vsel %vm6412, %v6359, %v4939
      %v6466 = vsel %vm6412, %v6360, %v4941
      %v6467 = vsel %vm6412, %v6361, %v4943
      %v6468 = vsel %vm6412, %v6362, %v4945
      %v6469 = vsel %vm6412, %v6363, %v4947
      %v6470 = vsel %vm6412, %v6364, %v4949
      %v6471 = vsel %vm6412, %v6365, %v4951
      %v6472 = vsel %vm6412, %v6366, %v4953
      %v6473 = vsel %vm6412, %v6367, %v4955
      %v6474 = vsel %vm6412, %v6368, %v4957
      %v6475 = vsel %vm6412, %v6369, %v4959
      %v6476 = vsel %vm6412, %v6370, %v4961
      %v6477 = vsel %vm6412, %v6371, %v4963
      %v6478 = vsel %vm6412, %v6372, %v4965
      %v6479 = vsel %vm6412, %v6373, %v4967
      %v6480 = vsel %vm6412, %v6374, %v4969
      %v6481 = vsel %vm6412, %v6375, %v4971
      %v6482 = vsel %vm6412, %v6376, %v4973
      %v6483 = vsel %vm6412, %v6377, %v4975
      %v6484 = vsel %vm6412, %v6378, %v4977
      %v6485 = vsel %vm6412, %v6379, %v4979
      %v6486 = vsel %vm6412, %v6380, %v4981
      %v6487 = vsel %vm6412, %v6381, %v4983
      %v6488 = vsel %vm6412, %v6382, %v4985
      %v6489 = vsel %vm6412, %v6383, %v4987
      %v6490 = vsel %vm6412, %v6384, %v4989
      %v6491 = vsel %vm6412, %v6385, %v4991
      %v6492 = vsel %vm6412, %v6386, %v4993
      %v6493 = vsel %vm6412, %v6387, %v4995
      %v6494 = vsel %vm6412, %v6388, %v4997
      %v6495 = vsel %vm6412, %v6389, %v4999
      %v6496 = vsel %vm6412, %v6390, %v5001
      %v6497 = vsel %vm6412, %v6391, %v5003
      %v6498 = vsel %vm6412, %v6392, %v5005
      %v6499 = vsel %vm6412, %v6393, %v5007
      %v6500 = vsel %vm6412, %v6394, %v5009
      %v6501 = vsel %vm6412, %v6395, %v5011
      %v6502 = vsel %vm6412, %v6396, %v5013
      %v6503 = vsel %vm6412, %v6397, %v5015
      %v6504 = vsel %vm6412, %v6398, %v5017
      %v6505 = vsel %vm6412, %v6399, %v5019
      %v6506 = vsel %vm6412, %v6400, %v5021
      %v6507 = vsel %vm6412, %v6401, %v5023
      %v6508 = vsel %vm6412, %v6402, %v5025
      %v6509 = vsel %vm6412, %v6403, %v5027
      %v6510 = vsel %vm6412, %v6404, %v5029
      %v6511 = vsel %vm6412, %v6405, %v5031
      %v6512 = vsel %vm6412, %v6406, %v5033
      %v6513 = vsel %vm6412, %v6407, %v5035
      %v6514 = vsel %vm6412, %v6408, %v5037
      %v6515 = vsel %vm6412, %v6409, %v5039
      %v6516 = vsel %vm6412, %v6410, %v5041
      %v6517 = vsel %vm6412, %v6411, %v5043
      %vm6518 = vcmask 785408
      %v6519 = vsel %vm6518, %v6413, %v5255
      %v6520 = vsel %vm6518, %v6414, %v5257
      %v6521 = vsel %vm6518, %v6415, %v5259
      %v6522 = vsel %vm6518, %v6416, %v5261
      %v6523 = vsel %vm6518, %v6417, %v5263
      %v6524 = vsel %vm6518, %v6418, %v5265
      %v6525 = vsel %vm6518, %v6419, %v5267
      %v6526 = vsel %vm6518, %v6420, %v5269
      %v6527 = vsel %vm6518, %v6421, %v5271
      %v6528 = vsel %vm6518, %v6422, %v5273
      %v6529 = vsel %vm6518, %v6423, %v5275
      %v6530 = vsel %vm6518, %v6424, %v5277
      %v6531 = vsel %vm6518, %v6425, %v5279
      %v6532 = vsel %vm6518, %v6426, %v5281
      %v6533 = vsel %vm6518, %v6427, %v5283
      %v6534 = vsel %vm6518, %v6428, %v5285
      %v6535 = vsel %vm6518, %v6429, %v5287
      %v6536 = vsel %vm6518, %v6430, %v5289
      %v6537 = vsel %vm6518, %v6431, %v5291
      %v6538 = vsel %vm6518, %v6432, %v5293
      %v6539 = vsel %vm6518, %v6433, %v5295
      %v6540 = vsel %vm6518, %v6434, %v5297
      %v6541 = vsel %vm6518, %v6435, %v5299
      %v6542 = vsel %vm6518, %v6436, %v5301
      %v6543 = vsel %vm6518, %v6437, %v5303
      %v6544 = vsel %vm6518, %v6438, %v5305
      %v6545 = vsel %vm6518, %v6439, %v5307
      %v6546 = vsel %vm6518, %v6440, %v5309
      %v6547 = vsel %vm6518, %v6441, %v5311
      %v6548 = vsel %vm6518, %v6442, %v5313
      %v6549 = vsel %vm6518, %v6443, %v5315
      %v6550 = vsel %vm6518, %v6444, %v5317
      %v6551 = vsel %vm6518, %v6445, %v5319
      %v6552 = vsel %vm6518, %v6446, %v5321
      %v6553 = vsel %vm6518, %v6447, %v5323
      %v6554 = vsel %vm6518, %v6448, %v5325
      %v6555 = vsel %vm6518, %v6449, %v5327
      %v6556 = vsel %vm6518, %v6450, %v5329
      %v6557 = vsel %vm6518, %v6451, %v5331
      %v6558 = vsel %vm6518, %v6452, %v5333
      %v6559 = vsel %vm6518, %v6453, %v5335
      %v6560 = vsel %vm6518, %v6454, %v5337
      %v6561 = vsel %vm6518, %v6455, %v5339
      %v6562 = vsel %vm6518, %v6456, %v5341
      %v6563 = vsel %vm6518, %v6457, %v5343
      %v6564 = vsel %vm6518, %v6458, %v5345
      %v6565 = vsel %vm6518, %v6459, %v5347
      %v6566 = vsel %vm6518, %v6460, %v5349
      %v6567 = vsel %vm6518, %v6461, %v5351
      %v6568 = vsel %vm6518, %v6462, %v5353
      %v6569 = vsel %vm6518, %v6463, %v5355
      %v6570 = vsel %vm6518, %v6464, %v5357
      %v6571 = vsel %vm6518, %v6465, %v5359
      %v6572 = vsel %vm6518, %v6466, %v5361
      %v6573 = vsel %vm6518, %v6467, %v5363
      %v6574 = vsel %vm6518, %v6468, %v5365
      %v6575 = vsel %vm6518, %v6469, %v5367
      %v6576 = vsel %vm6518, %v6470, %v5369
      %v6577 = vsel %vm6518, %v6471, %v5371
      %v6578 = vsel %vm6518, %v6472, %v5373
      %v6579 = vsel %vm6518, %v6473, %v5375
      %v6580 = vsel %vm6518, %v6474, %v5377
      %v6581 = vsel %vm6518, %v6475, %v5379
      %v6582 = vsel %vm6518, %v6476, %v5381
      %v6583 = vsel %vm6518, %v6477, %v5383
      %v6584 = vsel %vm6518, %v6478, %v5385
      %v6585 = vsel %vm6518, %v6479, %v5387
      %v6586 = vsel %vm6518, %v6480, %v5389
      %v6587 = vsel %vm6518, %v6481, %v5391
      %v6588 = vsel %vm6518, %v6482, %v5393
      %v6589 = vsel %vm6518, %v6483, %v5395
      %v6590 = vsel %vm6518, %v6484, %v5397
      %v6591 = vsel %vm6518, %v6485, %v5399
      %v6592 = vsel %vm6518, %v6486, %v5401
      %v6593 = vsel %vm6518, %v6487, %v5403
      %v6594 = vsel %vm6518, %v6488, %v5405
      %v6595 = vsel %vm6518, %v6489, %v5407
      %v6596 = vsel %vm6518, %v6490, %v5409
      %v6597 = vsel %vm6518, %v6491, %v5411
      %v6598 = vsel %vm6518, %v6492, %v5413
      %v6599 = vsel %vm6518, %v6493, %v5415
      %v6600 = vsel %vm6518, %v6494, %v5417
      %v6601 = vsel %vm6518, %v6495, %v5419
      %v6602 = vsel %vm6518, %v6496, %v5421
      %v6603 = vsel %vm6518, %v6497, %v5423
      %v6604 = vsel %vm6518, %v6498, %v5425
      %v6605 = vsel %vm6518, %v6499, %v5427
      %v6606 = vsel %vm6518, %v6500, %v5429
      %v6607 = vsel %vm6518, %v6501, %v5431
      %v6608 = vsel %vm6518, %v6502, %v5433
      %v6609 = vsel %vm6518, %v6503, %v5435
      %v6610 = vsel %vm6518, %v6504, %v5437
      %v6611 = vsel %vm6518, %v6505, %v5439
      %v6612 = vsel %vm6518, %v6506, %v5441
      %v6613 = vsel %vm6518, %v6507, %v5443
      %v6614 = vsel %vm6518, %v6508, %v5445
      %v6615 = vsel %vm6518, %v6509, %v5447
      %v6616 = vsel %vm6518, %v6510, %v5449
      %v6617 = vsel %vm6518, %v6511, %v5451
      %v6618 = vsel %vm6518, %v6512, %v5453
      %v6619 = vsel %vm6518, %v6513, %v5455
      %v6620 = vsel %vm6518, %v6514, %v5457
      %v6621 = vsel %vm6518, %v6515, %v5459
      %v6622 = vsel %vm6518, %v6516, %v5461
      %v6623 = vsel %vm6518, %v6517, %v5463
      %vm6624 = vcmask 916480
      %v6625 = vsel %vm6624, %v6519, %v5675
      %v6626 = vsel %vm6624, %v6520, %v5677
      %v6627 = vsel %vm6624, %v6521, %v5679
      %v6628 = vsel %vm6624, %v6522, %v5681
      %v6629 = vsel %vm6624, %v6523, %v5683
      %v6630 = vsel %vm6624, %v6524, %v5685
      %v6631 = vsel %vm6624, %v6525, %v5687
      %v6632 = vsel %vm6624, %v6526, %v5689
      %v6633 = vsel %vm6624, %v6527, %v5691
      %v6634 = vsel %vm6624, %v6528, %v5693
      %v6635 = vsel %vm6624, %v6529, %v5695
      %v6636 = vsel %vm6624, %v6530, %v5697
      %v6637 = vsel %vm6624, %v6531, %v5699
      %v6638 = vsel %vm6624, %v6532, %v5701
      %v6639 = vsel %vm6624, %v6533, %v5703
      %v6640 = vsel %vm6624, %v6534, %v5705
      %v6641 = vsel %vm6624, %v6535, %v5707
      %v6642 = vsel %vm6624, %v6536, %v5709
      %v6643 = vsel %vm6624, %v6537, %v5711
      %v6644 = vsel %vm6624, %v6538, %v5713
      %v6645 = vsel %vm6624, %v6539, %v5715
      %v6646 = vsel %vm6624, %v6540, %v5717
      %v6647 = vsel %vm6624, %v6541, %v5719
      %v6648 = vsel %vm6624, %v6542, %v5721
      %v6649 = vsel %vm6624, %v6543, %v5723
      %v6650 = vsel %vm6624, %v6544, %v5725
      %v6651 = vsel %vm6624, %v6545, %v5727
      %v6652 = vsel %vm6624, %v6546, %v5729
      %v6653 = vsel %vm6624, %v6547, %v5731
      %v6654 = vsel %vm6624, %v6548, %v5733
      %v6655 = vsel %vm6624, %v6549, %v5735
      %v6656 = vsel %vm6624, %v6550, %v5737
      %v6657 = vsel %vm6624, %v6551, %v5739
      %v6658 = vsel %vm6624, %v6552, %v5741
      %v6659 = vsel %vm6624, %v6553, %v5743
      %v6660 = vsel %vm6624, %v6554, %v5745
      %v6661 = vsel %vm6624, %v6555, %v5747
      %v6662 = vsel %vm6624, %v6556, %v5749
      %v6663 = vsel %vm6624, %v6557, %v5751
      %v6664 = vsel %vm6624, %v6558, %v5753
      %v6665 = vsel %vm6624, %v6559, %v5755
      %v6666 = vsel %vm6624, %v6560, %v5757
      %v6667 = vsel %vm6624, %v6561, %v5759
      %v6668 = vsel %vm6624, %v6562, %v5761
      %v6669 = vsel %vm6624, %v6563, %v5763
      %v6670 = vsel %vm6624, %v6564, %v5765
      %v6671 = vsel %vm6624, %v6565, %v5767
      %v6672 = vsel %vm6624, %v6566, %v5769
      %v6673 = vsel %vm6624, %v6567, %v5771
      %v6674 = vsel %vm6624, %v6568, %v5773
      %v6675 = vsel %vm6624, %v6569, %v5775
      %v6676 = vsel %vm6624, %v6570, %v5777
      %v6677 = vsel %vm6624, %v6571, %v5779
      %v6678 = vsel %vm6624, %v6572, %v5781
      %v6679 = vsel %vm6624, %v6573, %v5783
      %v6680 = vsel %vm6624, %v6574, %v5785
      %v6681 = vsel %vm6624, %v6575, %v5787
      %v6682 = vsel %vm6624, %v6576, %v5789
      %v6683 = vsel %vm6624, %v6577, %v5791
      %v6684 = vsel %vm6624, %v6578, %v5793
      %v6685 = vsel %vm6624, %v6579, %v5795
      %v6686 = vsel %vm6624, %v6580, %v5797
      %v6687 = vsel %vm6624, %v6581, %v5799
      %v6688 = vsel %vm6624, %v6582, %v5801
      %v6689 = vsel %vm6624, %v6583, %v5803
      %v6690 = vsel %vm6624, %v6584, %v5805
      %v6691 = vsel %vm6624, %v6585, %v5807
      %v6692 = vsel %vm6624, %v6586, %v5809
      %v6693 = vsel %vm6624, %v6587, %v5811
      %v6694 = vsel %vm6624, %v6588, %v5813
      %v6695 = vsel %vm6624, %v6589, %v5815
      %v6696 = vsel %vm6624, %v6590, %v5817
      %v6697 = vsel %vm6624, %v6591, %v5819
      %v6698 = vsel %vm6624, %v6592, %v5821
      %v6699 = vsel %vm6624, %v6593, %v5823
      %v6700 = vsel %vm6624, %v6594, %v5825
      %v6701 = vsel %vm6624, %v6595, %v5827
      %v6702 = vsel %vm6624, %v6596, %v5829
      %v6703 = vsel %vm6624, %v6597, %v5831
      %v6704 = vsel %vm6624, %v6598, %v5833
      %v6705 = vsel %vm6624, %v6599, %v5835
      %v6706 = vsel %vm6624, %v6600, %v5837
      %v6707 = vsel %vm6624, %v6601, %v5839
      %v6708 = vsel %vm6624, %v6602, %v5841
      %v6709 = vsel %vm6624, %v6603, %v5843
      %v6710 = vsel %vm6624, %v6604, %v5845
      %v6711 = vsel %vm6624, %v6605, %v5847
      %v6712 = vsel %vm6624, %v6606, %v5849
      %v6713 = vsel %vm6624, %v6607, %v5851
      %v6714 = vsel %vm6624, %v6608, %v5853
      %v6715 = vsel %vm6624, %v6609, %v5855
      %v6716 = vsel %vm6624, %v6610, %v5857
      %v6717 = vsel %vm6624, %v6611, %v5859
      %v6718 = vsel %vm6624, %v6612, %v5861
      %v6719 = vsel %vm6624, %v6613, %v5863
      %v6720 = vsel %vm6624, %v6614, %v5865
      %v6721 = vsel %vm6624, %v6615, %v5867
      %v6722 = vsel %vm6624, %v6616, %v5869
      %v6723 = vsel %vm6624, %v6617, %v5871
      %v6724 = vsel %vm6624, %v6618, %v5873
      %v6725 = vsel %vm6624, %v6619, %v5875
      %v6726 = vsel %vm6624, %v6620, %v5877
      %v6727 = vsel %vm6624, %v6621, %v5879
      %v6728 = vsel %vm6624, %v6622, %v5881
      %v6729 = vsel %vm6624, %v6623, %v5883
      %v6730 = vpack.c.bf16 %v6626, %v6625
      %v6731 = vpack.c.bf16 %v2626, %v2625
      %v6732 = vpack.c.bf16 %v6628, %v6627
      %v6733 = vpack.c.bf16 %v2628, %v2627
      %v6734 = vpack.c.bf16 %v6630, %v6629
      %v6735 = vpack.c.bf16 %v2630, %v2629
      %v6736 = vpack.c.bf16 %v6632, %v6631
      %v6737 = vpack.c.bf16 %v2632, %v2631
      %v6738 = vpack.c.bf16 %v6634, %v6633
      %v6739 = vpack.c.bf16 %v2634, %v2633
      %v6740 = vpack.c.bf16 %v6636, %v6635
      %v6741 = vpack.c.bf16 %v2636, %v2635
      %v6742 = vpack.c.bf16 %v6638, %v6637
      %v6743 = vpack.c.bf16 %v2638, %v2637
      %v6744 = vpack.c.bf16 %v6640, %v6639
      %v6745 = vpack.c.bf16 %v2640, %v2639
      %v6746 = vpack.c.bf16 %v6642, %v6641
      %v6747 = vpack.c.bf16 %v2642, %v2641
      %v6748 = vpack.c.bf16 %v6644, %v6643
      %v6749 = vpack.c.bf16 %v2644, %v2643
      %v6750 = vpack.c.bf16 %v6646, %v6645
      %v6751 = vpack.c.bf16 %v2646, %v2645
      %v6752 = vpack.c.bf16 %v6648, %v6647
      %v6753 = vpack.c.bf16 %v2648, %v2647
      %v6754 = vpack.c.bf16 %v6650, %v6649
      %v6755 = vpack.c.bf16 %v2650, %v2649
      %v6756 = vpack.c.bf16 %v6652, %v6651
      %v6757 = vpack.c.bf16 %v2652, %v2651
      %v6758 = vpack.c.bf16 %v6654, %v6653
      %v6759 = vpack.c.bf16 %v2654, %v2653
      %v6760 = vpack.c.bf16 %v6656, %v6655
      %v6761 = vpack.c.bf16 %v2656, %v2655
      %v6762 = vpack.c.bf16 %v6658, %v6657
      %v6763 = vpack.c.bf16 %v2658, %v2657
      %v6764 = vpack.c.bf16 %v6660, %v6659
      %v6765 = vpack.c.bf16 %v2660, %v2659
      %v6766 = vpack.c.bf16 %v6662, %v6661
      %v6767 = vpack.c.bf16 %v2662, %v2661
      %v6768 = vpack.c.bf16 %v6664, %v6663
      %v6769 = vpack.c.bf16 %v2664, %v2663
      %v6770 = vpack.c.bf16 %v6666, %v6665
      %v6771 = vpack.c.bf16 %v2666, %v2665
      %v6772 = vpack.c.bf16 %v6668, %v6667
      %v6773 = vpack.c.bf16 %v2668, %v2667
      %v6774 = vpack.c.bf16 %v6670, %v6669
      %v6775 = vpack.c.bf16 %v2670, %v2669
      %v6776 = vpack.c.bf16 %v6672, %v6671
      %v6777 = vpack.c.bf16 %v2672, %v2671
      %v6778 = vpack.c.bf16 %v6674, %v6673
      %v6779 = vpack.c.bf16 %v2674, %v2673
      %v6780 = vpack.c.bf16 %v6676, %v6675
      %v6781 = vpack.c.bf16 %v2676, %v2675
      %v6782 = vpack.c.bf16 %v6678, %v6677
      %v6783 = vpack.c.bf16 %v2678, %v2677
      %v6784 = vpack.c.bf16 %v6680, %v6679
      %v6785 = vpack.c.bf16 %v2680, %v2679
      %v6786 = vpack.c.bf16 %v6682, %v6681
      %v6787 = vpack.c.bf16 %v2682, %v2681
      %v6788 = vpack.c.bf16 %v6684, %v6683
      %v6789 = vpack.c.bf16 %v2684, %v2683
      %v6790 = vpack.c.bf16 %v6686, %v6685
      %v6791 = vpack.c.bf16 %v2686, %v2685
      %v6792 = vpack.c.bf16 %v6688, %v6687
      %v6793 = vpack.c.bf16 %v2688, %v2687
      %v6794 = vpack.c.bf16 %v6690, %v6689
      %v6795 = vpack.c.bf16 %v2690, %v2689
      %v6796 = vpack.c.bf16 %v6692, %v6691
      %v6797 = vpack.c.bf16 %v2692, %v2691
      %v6798 = vpack.c.bf16 %v6694, %v6693
      %v6799 = vpack.c.bf16 %v2694, %v2693
      %v6800 = vpack.c.bf16 %v6696, %v6695
      %v6801 = vpack.c.bf16 %v2696, %v2695
      %v6802 = vpack.c.bf16 %v6698, %v6697
      %v6803 = vpack.c.bf16 %v2698, %v2697
      %v6804 = vpack.c.bf16 %v6700, %v6699
      %v6805 = vpack.c.bf16 %v2700, %v2699
      %v6806 = vpack.c.bf16 %v6702, %v6701
      %v6807 = vpack.c.bf16 %v2702, %v2701
      %v6808 = vpack.c.bf16 %v6704, %v6703
      %v6809 = vpack.c.bf16 %v2704, %v2703
      %v6810 = vpack.c.bf16 %v6706, %v6705
      %v6811 = vpack.c.bf16 %v2706, %v2705
      %v6812 = vpack.c.bf16 %v6708, %v6707
      %v6813 = vpack.c.bf16 %v2708, %v2707
      %v6814 = vpack.c.bf16 %v6710, %v6709
      %v6815 = vpack.c.bf16 %v2710, %v2709
      %v6816 = vpack.c.bf16 %v6712, %v6711
      %v6817 = vpack.c.bf16 %v2712, %v2711
      %v6818 = vpack.c.bf16 %v6714, %v6713
      %v6819 = vpack.c.bf16 %v2714, %v2713
      %v6820 = vpack.c.bf16 %v6716, %v6715
      %v6821 = vpack.c.bf16 %v2716, %v2715
      %v6822 = vpack.c.bf16 %v6718, %v6717
      %v6823 = vpack.c.bf16 %v2718, %v2717
      %v6824 = vpack.c.bf16 %v6720, %v6719
      %v6825 = vpack.c.bf16 %v2720, %v2719
      %v6826 = vpack.c.bf16 %v6722, %v6721
      %v6827 = vpack.c.bf16 %v2722, %v2721
      %v6828 = vpack.c.bf16 %v6724, %v6723
      %v6829 = vpack.c.bf16 %v2724, %v2723
      %v6830 = vpack.c.bf16 %v6726, %v6725
      %v6831 = vpack.c.bf16 %v3045, %v2725
      %v6832 = vpack.c.bf16 %v6728, %v6727
      %v6833 = vpack.c.bf16 %v3047, %v3046
      %v6834 = vpack.c.bf16 %v6729, %v6729
      %v6835 = vpack.c.bf16 %v3048, %v3048
      %v6836 = vld [vmem:[%s4] sm:$0xf]
      %v6837 = vld [vmem:[%s4 + $0x4] sm:$0xf]
      %v6838 = vld [vmem:[%s4 + $0x8] sm:$0xf]
      %v6839 = vld [vmem:[%s4 + $0xc] sm:$0xf]
      %v6840 = vld [vmem:[%s4 + $0x10] sm:$0xf]
      %v6841 = vld [vmem:[%s4 + $0x14] sm:$0xf]
      %v6842 = vld [vmem:[%s4 + $0x18] sm:$0xf]
      %v6843 = vld [vmem:[%s4 + $0x1c] sm:$0xf]
      %v6844 = vld [vmem:[%s4 + $0x20] sm:$0xf]
      %v6845 = vld [vmem:[%s4 + $0x24] sm:$0xf]
      %v6846 = vld [vmem:[%s4 + $0x28] sm:$0xf]
      %v6847 = vld [vmem:[%s4 + $0x2c] sm:$0xf]
      %v6848 = vld [vmem:[%s4 + $0x30] sm:$0xf]
      %v6849 = vld [vmem:[%s4 + $0x34] sm:$0xf]
      %v6850 = vld [vmem:[%s4 + $0x38] sm:$0xf]
      %v6851 = vld [vmem:[%s4 + $0x3c] sm:$0xf]
      %v6852 = vld [vmem:[%s4 + $0x40] sm:$0xf]
      %v6853 = vld [vmem:[%s4 + $0x44] sm:$0xf]
      %v6854 = vld [vmem:[%s5] sm:$0x1]
      %v6856 = vperm.slane %v6854, 0
      %v6876 = vunpack.c.l.b16 %v6836
      %v6877 = vunpack.c.l.b16 %v6837
      %v6878 = vunpack.c.l.b16 %v6838
      %v6879 = vunpack.c.l.b16 %v6839
      %v6880 = vunpack.c.l.b16 %v6840
      %v6881 = vunpack.c.l.b16 %v6841
      %v6882 = vunpack.c.l.b16 %v6842
      %v6883 = vunpack.c.l.b16 %v6843
      %v6884 = vunpack.c.l.b16 %v6844
      %v6885 = vunpack.c.l.b16 %v6845
      %v6886 = vunpack.c.l.b16 %v6846
      %v6887 = vunpack.c.l.b16 %v6847
      %v6888 = vunpack.c.l.b16 %v6848
      %v6889 = vunpack.c.l.b16 %v6849
      %v6890 = vunpack.c.l.b16 %v6850
      %v6891 = vunpack.c.l.b16 %v6851
      %v6892 = vunpack.c.l.b16 %v6852
      %v6893 = vunpack.c.l.b16 %v6853
      %v6894 = vpack.c.b16 %v6877, %v6876
      %v6895 = vpack.c.b16 %v6879, %v6878
      %v6896 = vpack.c.b16 %v6881, %v6880
      %v6897 = vpack.c.b16 %v6883, %v6882
      %v6898 = vpack.c.b16 %v6885, %v6884
      %v6899 = vpack.c.b16 %v6887, %v6886
      %v6900 = vpack.c.b16 %v6889, %v6888
      %v6901 = vpack.c.b16 %v6891, %v6890
      %v6902 = vpack.c.b16 %v6893, %v6892
      %v6913 = vsel %vm2187, %v6731, 0
      %v6916 = vsel %vm2187, %v6733, 0
      %v6919 = vsel %vm2187, %v6735, 0
      %v6922 = vsel %vm2187, %v6737, 0
      %v6925 = vsel %vm2187, %v6739, 0
      %v6928 = vsel %vm2187, %v6741, 0
      %v6931 = vsel %vm2187, %v6743, 0
      %v6934 = vsel %vm2187, %v6745, 0
      %v6937 = vsel %vm2187, %v6747, 0
      %v6940 = vsel %vm2187, %v6749, 0
      %v6943 = vsel %vm2187, %v6751, 0
      %v6946 = vsel %vm2187, %v6753, 0
      %v6949 = vsel %vm2187, %v6755, 0
      %v6952 = vsel %vm2187, %v6757, 0
      %v6955 = vsel %vm2187, %v6759, 0
      %v6958 = vsel %vm2187, %v6761, 0
      %v6961 = vsel %vm2187, %v6763, 0
      %v6964 = vsel %vm2187, %v6765, 0
      %v6967 = vsel %vm2187, %v6767, 0
      %v6970 = vsel %vm2187, %v6769, 0
      %v6973 = vsel %vm2187, %v6771, 0
      %v6976 = vsel %vm2187, %v6773, 0
      %v6979 = vsel %vm2187, %v6775, 0
      %v6982 = vsel %vm2187, %v6777, 0
      %v6985 = vsel %vm2187, %v6779, 0
      %v6988 = vsel %vm2187, %v6781, 0
      %v6991 = vsel %vm2187, %v6783, 0
      %v6994 = vsel %vm2187, %v6785, 0
      %v6997 = vsel %vm2187, %v6787, 0
      %v7000 = vsel %vm2187, %v6789, 0
      %v7003 = vsel %vm2187, %v6791, 0
      %v7006 = vsel %vm2187, %v6793, 0
      %v7009 = vsel %vm2187, %v6795, 0
      %v7012 = vsel %vm2187, %v6797, 0
      %v7015 = vsel %vm2187, %v6799, 0
      %v7018 = vsel %vm2187, %v6801, 0
      %v7021 = vsel %vm2187, %v6803, 0
      %v7024 = vsel %vm2187, %v6805, 0
      %v7027 = vsel %vm2187, %v6807, 0
      %v7030 = vsel %vm2187, %v6809, 0
      %v7033 = vsel %vm2187, %v6811, 0
      %v7036 = vsel %vm2187, %v6813, 0
      %v7039 = vsel %vm2187, %v6815, 0
      %v7042 = vsel %vm2187, %v6817, 0
      %v7045 = vsel %vm2187, %v6819, 0
      %v7048 = vsel %vm2187, %v6821, 0
      %v7051 = vsel %vm2187, %v6823, 0
      %v7054 = vsel %vm2187, %v6825, 0
      %v7057 = vsel %vm2187, %v6827, 0
      %v7060 = vsel %vm2187, %v6829, 0
      %v7063 = vsel %vm2187, %v6831, 0
      %v7066 = vsel %vm2187, %v6833, 0
      %v7069 = vsel %vm2187, %v6835, 0
      %7071 = vmatpush.bf16.msra.mxu0 %v6901
      %7072 = vmatpush.bf16.msra.mxu0 %v6900
      %7073 = vmatpush.bf16.msra.mxu0 %v6899
      %7074 = vmatpush.bf16.msra.mxu0 %v6898
      %7075 = vmatpush.bf16.msra.mxu0 %v6897
      %7076 = vmatpush.bf16.msra.mxu0 %v6896
      %7077 = vmatpush.bf16.msra.mxu0 %v6895
      %7078 = vmatpush.bf16.msra.mxu0 %v6894
      %7079 = vmatmul.bf16.gmra.mxu0 %v6730
      %v7080 = vpop.f32.mrf.mxu0
      %v7081 = vadd.f32 %v6856, %v7080
      %v7082 = vpop.f32.mrf.mxu0
      %v7083 = vadd.f32 %v6856, %v7082
      %7084 = vmatmul.bf16.gmra.mxu0 %v6732
      %v7085 = vpop.f32.mrf.mxu0
      %v7086 = vadd.f32 %v6856, %v7085
      %v7087 = vpop.f32.mrf.mxu0
      %v7088 = vadd.f32 %v6856, %v7087
      %7089 = vmatmul.bf16.gmra.mxu0 %v6734
      %v7090 = vpop.f32.mrf.mxu0
      %v7091 = vadd.f32 %v6856, %v7090
      %v7092 = vpop.f32.mrf.mxu0
      %v7093 = vadd.f32 %v6856, %v7092
      %7094 = vmatmul.bf16.gmra.mxu0 %v6736
      %v7095 = vpop.f32.mrf.mxu0
      %v7096 = vadd.f32 %v6856, %v7095
      %v7097 = vpop.f32.mrf.mxu0
      %v7098 = vadd.f32 %v6856, %v7097
      %7099 = vmatmul.bf16.gmra.mxu0 %v6738
      %v7100 = vpop.f32.mrf.mxu0
      %v7101 = vadd.f32 %v6856, %v7100
      %v7102 = vpop.f32.mrf.mxu0
      %v7103 = vadd.f32 %v6856, %v7102
      %7104 = vmatmul.bf16.gmra.mxu0 %v6740
      %v7105 = vpop.f32.mrf.mxu0
      %v7106 = vadd.f32 %v6856, %v7105
      %v7107 = vpop.f32.mrf.mxu0
      %v7108 = vadd.f32 %v6856, %v7107
      %7109 = vmatmul.bf16.gmra.mxu0 %v6742
      %v7110 = vpop.f32.mrf.mxu0
      %v7111 = vadd.f32 %v6856, %v7110
      %v7112 = vpop.f32.mrf.mxu0
      %v7113 = vadd.f32 %v6856, %v7112
      %7114 = vmatmul.bf16.gmra.mxu0 %v6744
      %v7115 = vpop.f32.mrf.mxu0
      %v7116 = vadd.f32 %v6856, %v7115
      %v7117 = vpop.f32.mrf.mxu0
      %v7118 = vadd.f32 %v6856, %v7117
      %7119 = vmatmul.bf16.gmra.mxu0 %v6746
      %v7120 = vpop.f32.mrf.mxu0
      %v7121 = vadd.f32 %v6856, %v7120
      %v7122 = vpop.f32.mrf.mxu0
      %v7123 = vadd.f32 %v6856, %v7122
      %7124 = vmatmul.bf16.gmra.mxu0 %v6748
      %v7125 = vpop.f32.mrf.mxu0
      %v7126 = vadd.f32 %v6856, %v7125
      %v7127 = vpop.f32.mrf.mxu0
      %v7128 = vadd.f32 %v6856, %v7127
      %7129 = vmatmul.bf16.gmra.mxu0 %v6750
      %v7130 = vpop.f32.mrf.mxu0
      %v7131 = vadd.f32 %v6856, %v7130
      %v7132 = vpop.f32.mrf.mxu0
      %v7133 = vadd.f32 %v6856, %v7132
      %7134 = vmatmul.bf16.gmra.mxu0 %v6752
      %v7135 = vpop.f32.mrf.mxu0
      %v7136 = vadd.f32 %v6856, %v7135
      %v7137 = vpop.f32.mrf.mxu0
      %v7138 = vadd.f32 %v6856, %v7137
      %7139 = vmatmul.bf16.gmra.mxu0 %v6754
      %v7140 = vpop.f32.mrf.mxu0
      %v7141 = vadd.f32 %v6856, %v7140
      %v7142 = vpop.f32.mrf.mxu0
      %v7143 = vadd.f32 %v6856, %v7142
      %7144 = vmatmul.bf16.gmra.mxu0 %v6756
      %v7145 = vpop.f32.mrf.mxu0
      %v7146 = vadd.f32 %v6856, %v7145
      %v7147 = vpop.f32.mrf.mxu0
      %v7148 = vadd.f32 %v6856, %v7147
      %7149 = vmatmul.bf16.gmra.mxu0 %v6758
      %v7150 = vpop.f32.mrf.mxu0
      %v7151 = vadd.f32 %v6856, %v7150
      %v7152 = vpop.f32.mrf.mxu0
      %v7153 = vadd.f32 %v6856, %v7152
      %7154 = vmatmul.bf16.gmra.mxu0 %v6760
      %v7155 = vpop.f32.mrf.mxu0
      %v7156 = vadd.f32 %v6856, %v7155
      %v7157 = vpop.f32.mrf.mxu0
      %v7158 = vadd.f32 %v6856, %v7157
      %7159 = vmatmul.bf16.gmra.mxu0 %v6762
      %v7160 = vpop.f32.mrf.mxu0
      %v7161 = vadd.f32 %v6856, %v7160
      %v7162 = vpop.f32.mrf.mxu0
      %v7163 = vadd.f32 %v6856, %v7162
      %7164 = vmatmul.bf16.gmra.mxu0 %v6764
      %v7165 = vpop.f32.mrf.mxu0
      %v7166 = vadd.f32 %v6856, %v7165
      %v7167 = vpop.f32.mrf.mxu0
      %v7168 = vadd.f32 %v6856, %v7167
      %7169 = vmatmul.bf16.gmra.mxu0 %v6766
      %v7170 = vpop.f32.mrf.mxu0
      %v7171 = vadd.f32 %v6856, %v7170
      %v7172 = vpop.f32.mrf.mxu0
      %v7173 = vadd.f32 %v6856, %v7172
      %7174 = vmatmul.bf16.gmra.mxu0 %v6768
      %v7175 = vpop.f32.mrf.mxu0
      %v7176 = vadd.f32 %v6856, %v7175
      %v7177 = vpop.f32.mrf.mxu0
      %v7178 = vadd.f32 %v6856, %v7177
      %7179 = vmatmul.bf16.gmra.mxu0 %v6770
      %v7180 = vpop.f32.mrf.mxu0
      %v7181 = vadd.f32 %v6856, %v7180
      %v7182 = vpop.f32.mrf.mxu0
      %v7183 = vadd.f32 %v6856, %v7182
      %7184 = vmatmul.bf16.gmra.mxu0 %v6772
      %v7185 = vpop.f32.mrf.mxu0
      %v7186 = vadd.f32 %v6856, %v7185
      %v7187 = vpop.f32.mrf.mxu0
      %v7188 = vadd.f32 %v6856, %v7187
      %7189 = vmatmul.bf16.gmra.mxu0 %v6774
      %v7190 = vpop.f32.mrf.mxu0
      %v7191 = vadd.f32 %v6856, %v7190
      %v7192 = vpop.f32.mrf.mxu0
      %v7193 = vadd.f32 %v6856, %v7192
      %7194 = vmatmul.bf16.gmra.mxu0 %v6776
      %v7195 = vpop.f32.mrf.mxu0
      %v7196 = vadd.f32 %v6856, %v7195
      %v7197 = vpop.f32.mrf.mxu0
      %v7198 = vadd.f32 %v6856, %v7197
      %7199 = vmatmul.bf16.gmra.mxu0 %v6778
      %v7200 = vpop.f32.mrf.mxu0
      %v7201 = vadd.f32 %v6856, %v7200
      %v7202 = vpop.f32.mrf.mxu0
      %v7203 = vadd.f32 %v6856, %v7202
      %7204 = vmatmul.bf16.gmra.mxu0 %v6780
      %v7205 = vpop.f32.mrf.mxu0
      %v7206 = vadd.f32 %v6856, %v7205
      %v7207 = vpop.f32.mrf.mxu0
      %v7208 = vadd.f32 %v6856, %v7207
      %7209 = vmatmul.bf16.gmra.mxu0 %v6782
      %v7210 = vpop.f32.mrf.mxu0
      %v7211 = vadd.f32 %v6856, %v7210
      %v7212 = vpop.f32.mrf.mxu0
      %v7213 = vadd.f32 %v6856, %v7212
      %7214 = vmatmul.bf16.gmra.mxu0 %v6784
      %v7215 = vpop.f32.mrf.mxu0
      %v7216 = vadd.f32 %v6856, %v7215
      %v7217 = vpop.f32.mrf.mxu0
      %v7218 = vadd.f32 %v6856, %v7217
      %7219 = vmatmul.bf16.gmra.mxu0 %v6786
      %v7220 = vpop.f32.mrf.mxu0
      %v7221 = vadd.f32 %v6856, %v7220
      %v7222 = vpop.f32.mrf.mxu0
      %v7223 = vadd.f32 %v6856, %v7222
      %7224 = vmatmul.bf16.gmra.mxu0 %v6788
      %v7225 = vpop.f32.mrf.mxu0
      %v7226 = vadd.f32 %v6856, %v7225
      %v7227 = vpop.f32.mrf.mxu0
      %v7228 = vadd.f32 %v6856, %v7227
      %7229 = vmatmul.bf16.gmra.mxu0 %v6790
      %v7230 = vpop.f32.mrf.mxu0
      %v7231 = vadd.f32 %v6856, %v7230
      %v7232 = vpop.f32.mrf.mxu0
      %v7233 = vadd.f32 %v6856, %v7232
      %7234 = vmatmul.bf16.gmra.mxu0 %v6792
      %v7235 = vpop.f32.mrf.mxu0
      %v7236 = vadd.f32 %v6856, %v7235
      %v7237 = vpop.f32.mrf.mxu0
      %v7238 = vadd.f32 %v6856, %v7237
      %7239 = vmatmul.bf16.gmra.mxu0 %v6794
      %v7240 = vpop.f32.mrf.mxu0
      %v7241 = vadd.f32 %v6856, %v7240
      %v7242 = vpop.f32.mrf.mxu0
      %v7243 = vadd.f32 %v6856, %v7242
      %7244 = vmatmul.bf16.gmra.mxu0 %v6796
      %v7245 = vpop.f32.mrf.mxu0
      %v7246 = vadd.f32 %v6856, %v7245
      %v7247 = vpop.f32.mrf.mxu0
      %v7248 = vadd.f32 %v6856, %v7247
      %7249 = vmatmul.bf16.gmra.mxu0 %v6798
      %v7250 = vpop.f32.mrf.mxu0
      %v7251 = vadd.f32 %v6856, %v7250
      %v7252 = vpop.f32.mrf.mxu0
      %v7253 = vadd.f32 %v6856, %v7252
      %7254 = vmatmul.bf16.gmra.mxu0 %v6800
      %v7255 = vpop.f32.mrf.mxu0
      %v7256 = vadd.f32 %v6856, %v7255
      %v7257 = vpop.f32.mrf.mxu0
      %v7258 = vadd.f32 %v6856, %v7257
      %7259 = vmatmul.bf16.gmra.mxu0 %v6802
      %v7260 = vpop.f32.mrf.mxu0
      %v7261 = vadd.f32 %v6856, %v7260
      %v7262 = vpop.f32.mrf.mxu0
      %v7263 = vadd.f32 %v6856, %v7262
      %7264 = vmatmul.bf16.gmra.mxu0 %v6804
      %v7265 = vpop.f32.mrf.mxu0
      %v7266 = vadd.f32 %v6856, %v7265
      %v7267 = vpop.f32.mrf.mxu0
      %v7268 = vadd.f32 %v6856, %v7267
      %7269 = vmatmul.bf16.gmra.mxu0 %v6806
      %v7270 = vpop.f32.mrf.mxu0
      %v7271 = vadd.f32 %v6856, %v7270
      %v7272 = vpop.f32.mrf.mxu0
      %v7273 = vadd.f32 %v6856, %v7272
      %7274 = vmatmul.bf16.gmra.mxu0 %v6808
      %v7275 = vpop.f32.mrf.mxu0
      %v7276 = vadd.f32 %v6856, %v7275
      %v7277 = vpop.f32.mrf.mxu0
      %v7278 = vadd.f32 %v6856, %v7277
      %7279 = vmatmul.bf16.gmra.mxu0 %v6810
      %v7280 = vpop.f32.mrf.mxu0
      %v7281 = vadd.f32 %v6856, %v7280
      %v7282 = vpop.f32.mrf.mxu0
      %v7283 = vadd.f32 %v6856, %v7282
      %7284 = vmatmul.bf16.gmra.mxu0 %v6812
      %v7285 = vpop.f32.mrf.mxu0
      %v7286 = vadd.f32 %v6856, %v7285
      %v7287 = vpop.f32.mrf.mxu0
      %v7288 = vadd.f32 %v6856, %v7287
      %7289 = vmatmul.bf16.gmra.mxu0 %v6814
      %v7290 = vpop.f32.mrf.mxu0
      %v7291 = vadd.f32 %v6856, %v7290
      %v7292 = vpop.f32.mrf.mxu0
      %v7293 = vadd.f32 %v6856, %v7292
      %7294 = vmatmul.bf16.gmra.mxu0 %v6816
      %v7295 = vpop.f32.mrf.mxu0
      %v7296 = vadd.f32 %v6856, %v7295
      %v7297 = vpop.f32.mrf.mxu0
      %v7298 = vadd.f32 %v6856, %v7297
      %7299 = vmatmul.bf16.gmra.mxu0 %v6818
      %v7300 = vpop.f32.mrf.mxu0
      %v7301 = vadd.f32 %v6856, %v7300
      %v7302 = vpop.f32.mrf.mxu0
      %v7303 = vadd.f32 %v6856, %v7302
      %7304 = vmatmul.bf16.gmra.mxu0 %v6820
      %v7305 = vpop.f32.mrf.mxu0
      %v7306 = vadd.f32 %v6856, %v7305
      %v7307 = vpop.f32.mrf.mxu0
      %v7308 = vadd.f32 %v6856, %v7307
      %7309 = vmatmul.bf16.gmra.mxu0 %v6822
      %v7310 = vpop.f32.mrf.mxu0
      %v7311 = vadd.f32 %v6856, %v7310
      %v7312 = vpop.f32.mrf.mxu0
      %v7313 = vadd.f32 %v6856, %v7312
      %7314 = vmatmul.bf16.gmra.mxu0 %v6824
      %v7315 = vpop.f32.mrf.mxu0
      %v7316 = vadd.f32 %v6856, %v7315
      %v7317 = vpop.f32.mrf.mxu0
      %v7318 = vadd.f32 %v6856, %v7317
      %7319 = vmatmul.bf16.gmra.mxu0 %v6826
      %v7320 = vpop.f32.mrf.mxu0
      %v7321 = vadd.f32 %v6856, %v7320
      %v7322 = vpop.f32.mrf.mxu0
      %v7323 = vadd.f32 %v6856, %v7322
      %7324 = vmatmul.bf16.gmra.mxu0 %v6828
      %v7325 = vpop.f32.mrf.mxu0
      %v7326 = vadd.f32 %v6856, %v7325
      %v7327 = vpop.f32.mrf.mxu0
      %v7328 = vadd.f32 %v6856, %v7327
      %7329 = vmatmul.bf16.gmra.mxu0 %v6830
      %v7330 = vpop.f32.mrf.mxu0
      %v7331 = vadd.f32 %v6856, %v7330
      %v7332 = vpop.f32.mrf.mxu0
      %v7333 = vadd.f32 %v6856, %v7332
      %7334 = vmatmul.bf16.gmra.mxu0 %v6832
      %v7335 = vpop.f32.mrf.mxu0
      %v7336 = vadd.f32 %v6856, %v7335
      %v7337 = vpop.f32.mrf.mxu0
      %v7338 = vadd.f32 %v6856, %v7337
      %7339 = vmatmul.bf16.gmra.mxu0 %v6834
      %v7340 = vpop.f32.mrf.mxu0
      %v7341 = vadd.f32 %v6856, %v7340
      %v7342 = vpop.f32.mrf.mxu0
      %7343 = vdwg.mxu0
      %7344 = vmatpush.bf16.msra.mxu0 0
      %7345 = vmatpush.bf16.msra.mxu0 0
      %7346 = vmatpush.bf16.msra.mxu0 0
      %7347 = vmatpush.bf16.msra.mxu0 0
      %7348 = vmatpush.bf16.msra.mxu0 0
      %7349 = vmatpush.bf16.msra.mxu0 0
      %7350 = vmatpush.bf16.msra.mxu0 0
      %7351 = vmatpush.bf16.msra.mxu0 %v6902
      %7352 = vmatmul.bf16.gmra.mxu0 %v6913
      %v7353 = vpop.f32.mrf.mxu0
      %v7354 = vadd.f32 %v7081, %v7353
      %v7355 = vpop.f32.mrf.mxu0
      %v7356 = vadd.f32 %v7083, %v7355
      %7357 = vmatmul.bf16.gmra.mxu0 %v6916
      %v7358 = vpop.f32.mrf.mxu0
      %v7359 = vadd.f32 %v7086, %v7358
      %v7360 = vpop.f32.mrf.mxu0
      %v7361 = vadd.f32 %v7088, %v7360
      %7362 = vmatmul.bf16.gmra.mxu0 %v6919
      %v7363 = vpop.f32.mrf.mxu0
      %v7364 = vadd.f32 %v7091, %v7363
      %v7365 = vpop.f32.mrf.mxu0
      %v7366 = vadd.f32 %v7093, %v7365
      %7367 = vmatmul.bf16.gmra.mxu0 %v6922
      %v7368 = vpop.f32.mrf.mxu0
      %v7369 = vadd.f32 %v7096, %v7368
      %v7370 = vpop.f32.mrf.mxu0
      %v7371 = vadd.f32 %v7098, %v7370
      %7372 = vmatmul.bf16.gmra.mxu0 %v6925
      %v7373 = vpop.f32.mrf.mxu0
      %v7374 = vadd.f32 %v7101, %v7373
      %v7375 = vpop.f32.mrf.mxu0
      %v7376 = vadd.f32 %v7103, %v7375
      %7377 = vmatmul.bf16.gmra.mxu0 %v6928
      %v7378 = vpop.f32.mrf.mxu0
      %v7379 = vadd.f32 %v7106, %v7378
      %v7380 = vpop.f32.mrf.mxu0
      %v7381 = vadd.f32 %v7108, %v7380
      %7382 = vmatmul.bf16.gmra.mxu0 %v6931
      %v7383 = vpop.f32.mrf.mxu0
      %v7384 = vadd.f32 %v7111, %v7383
      %v7385 = vpop.f32.mrf.mxu0
      %v7386 = vadd.f32 %v7113, %v7385
      %7387 = vmatmul.bf16.gmra.mxu0 %v6934
      %v7388 = vpop.f32.mrf.mxu0
      %v7389 = vadd.f32 %v7116, %v7388
      %v7390 = vpop.f32.mrf.mxu0
      %v7391 = vadd.f32 %v7118, %v7390
      %7392 = vmatmul.bf16.gmra.mxu0 %v6937
      %v7393 = vpop.f32.mrf.mxu0
      %v7394 = vadd.f32 %v7121, %v7393
      %v7395 = vpop.f32.mrf.mxu0
      %v7396 = vadd.f32 %v7123, %v7395
      %7397 = vmatmul.bf16.gmra.mxu0 %v6940
      %v7398 = vpop.f32.mrf.mxu0
      %v7399 = vadd.f32 %v7126, %v7398
      %v7400 = vpop.f32.mrf.mxu0
      %v7401 = vadd.f32 %v7128, %v7400
      %7402 = vmatmul.bf16.gmra.mxu0 %v6943
      %v7403 = vpop.f32.mrf.mxu0
      %v7404 = vadd.f32 %v7131, %v7403
      %v7405 = vpop.f32.mrf.mxu0
      %v7406 = vadd.f32 %v7133, %v7405
      %7407 = vmatmul.bf16.gmra.mxu0 %v6946
      %v7408 = vpop.f32.mrf.mxu0
      %v7409 = vadd.f32 %v7136, %v7408
      %v7410 = vpop.f32.mrf.mxu0
      %v7411 = vadd.f32 %v7138, %v7410
      %7412 = vmatmul.bf16.gmra.mxu0 %v6949
      %v7413 = vpop.f32.mrf.mxu0
      %v7414 = vadd.f32 %v7141, %v7413
      %v7415 = vpop.f32.mrf.mxu0
      %v7416 = vadd.f32 %v7143, %v7415
      %7417 = vmatmul.bf16.gmra.mxu0 %v6952
      %v7418 = vpop.f32.mrf.mxu0
      %v7419 = vadd.f32 %v7146, %v7418
      %v7420 = vpop.f32.mrf.mxu0
      %v7421 = vadd.f32 %v7148, %v7420
      %7422 = vmatmul.bf16.gmra.mxu0 %v6955
      %v7423 = vpop.f32.mrf.mxu0
      %v7424 = vadd.f32 %v7151, %v7423
      %v7425 = vpop.f32.mrf.mxu0
      %v7426 = vadd.f32 %v7153, %v7425
      %7427 = vmatmul.bf16.gmra.mxu0 %v6958
      %v7428 = vpop.f32.mrf.mxu0
      %v7429 = vadd.f32 %v7156, %v7428
      %v7430 = vpop.f32.mrf.mxu0
      %v7431 = vadd.f32 %v7158, %v7430
      %7432 = vmatmul.bf16.gmra.mxu0 %v6961
      %v7433 = vpop.f32.mrf.mxu0
      %v7434 = vadd.f32 %v7161, %v7433
      %v7435 = vpop.f32.mrf.mxu0
      %v7436 = vadd.f32 %v7163, %v7435
      %7437 = vmatmul.bf16.gmra.mxu0 %v6964
      %v7438 = vpop.f32.mrf.mxu0
      %v7439 = vadd.f32 %v7166, %v7438
      %v7440 = vpop.f32.mrf.mxu0
      %v7441 = vadd.f32 %v7168, %v7440
      %7442 = vmatmul.bf16.gmra.mxu0 %v6967
      %v7443 = vpop.f32.mrf.mxu0
      %v7444 = vadd.f32 %v7171, %v7443
      %v7445 = vpop.f32.mrf.mxu0
      %v7446 = vadd.f32 %v7173, %v7445
      %7447 = vmatmul.bf16.gmra.mxu0 %v6970
      %v7448 = vpop.f32.mrf.mxu0
      %v7449 = vadd.f32 %v7176, %v7448
      %v7450 = vpop.f32.mrf.mxu0
      %v7451 = vadd.f32 %v7178, %v7450
      %7452 = vmatmul.bf16.gmra.mxu0 %v6973
      %v7453 = vpop.f32.mrf.mxu0
      %v7454 = vadd.f32 %v7181, %v7453
      %v7455 = vpop.f32.mrf.mxu0
      %v7456 = vadd.f32 %v7183, %v7455
      %7457 = vmatmul.bf16.gmra.mxu0 %v6976
      %v7458 = vpop.f32.mrf.mxu0
      %v7459 = vadd.f32 %v7186, %v7458
      %v7460 = vpop.f32.mrf.mxu0
      %v7461 = vadd.f32 %v7188, %v7460
      %7462 = vmatmul.bf16.gmra.mxu0 %v6979
      %v7463 = vpop.f32.mrf.mxu0
      %v7464 = vadd.f32 %v7191, %v7463
      %v7465 = vpop.f32.mrf.mxu0
      %v7466 = vadd.f32 %v7193, %v7465
      %7467 = vmatmul.bf16.gmra.mxu0 %v6982
      %v7468 = vpop.f32.mrf.mxu0
      %v7469 = vadd.f32 %v7196, %v7468
      %v7470 = vpop.f32.mrf.mxu0
      %v7471 = vadd.f32 %v7198, %v7470
      %7472 = vmatmul.bf16.gmra.mxu0 %v6985
      %v7473 = vpop.f32.mrf.mxu0
      %v7474 = vadd.f32 %v7201, %v7473
      %v7475 = vpop.f32.mrf.mxu0
      %v7476 = vadd.f32 %v7203, %v7475
      %7477 = vmatmul.bf16.gmra.mxu0 %v6988
      %v7478 = vpop.f32.mrf.mxu0
      %v7479 = vadd.f32 %v7206, %v7478
      %v7480 = vpop.f32.mrf.mxu0
      %v7481 = vadd.f32 %v7208, %v7480
      %7482 = vmatmul.bf16.gmra.mxu0 %v6991
      %v7483 = vpop.f32.mrf.mxu0
      %v7484 = vadd.f32 %v7211, %v7483
      %v7485 = vpop.f32.mrf.mxu0
      %v7486 = vadd.f32 %v7213, %v7485
      %7487 = vmatmul.bf16.gmra.mxu0 %v6994
      %v7488 = vpop.f32.mrf.mxu0
      %v7489 = vadd.f32 %v7216, %v7488
      %v7490 = vpop.f32.mrf.mxu0
      %v7491 = vadd.f32 %v7218, %v7490
      %7492 = vmatmul.bf16.gmra.mxu0 %v6997
      %v7493 = vpop.f32.mrf.mxu0
      %v7494 = vadd.f32 %v7221, %v7493
      %v7495 = vpop.f32.mrf.mxu0
      %v7496 = vadd.f32 %v7223, %v7495
      %7497 = vmatmul.bf16.gmra.mxu0 %v7000
      %v7498 = vpop.f32.mrf.mxu0
      %v7499 = vadd.f32 %v7226, %v7498
      %v7500 = vpop.f32.mrf.mxu0
      %v7501 = vadd.f32 %v7228, %v7500
      %7502 = vmatmul.bf16.gmra.mxu0 %v7003
      %v7503 = vpop.f32.mrf.mxu0
      %v7504 = vadd.f32 %v7231, %v7503
      %v7505 = vpop.f32.mrf.mxu0
      %v7506 = vadd.f32 %v7233, %v7505
      %7507 = vmatmul.bf16.gmra.mxu0 %v7006
      %v7508 = vpop.f32.mrf.mxu0
      %v7509 = vadd.f32 %v7236, %v7508
      %v7510 = vpop.f32.mrf.mxu0
      %v7511 = vadd.f32 %v7238, %v7510
      %7512 = vmatmul.bf16.gmra.mxu0 %v7009
      %v7513 = vpop.f32.mrf.mxu0
      %v7514 = vadd.f32 %v7241, %v7513
      %v7515 = vpop.f32.mrf.mxu0
      %v7516 = vadd.f32 %v7243, %v7515
      %7517 = vmatmul.bf16.gmra.mxu0 %v7012
      %v7518 = vpop.f32.mrf.mxu0
      %v7519 = vadd.f32 %v7246, %v7518
      %v7520 = vpop.f32.mrf.mxu0
      %v7521 = vadd.f32 %v7248, %v7520
      %7522 = vmatmul.bf16.gmra.mxu0 %v7015
      %v7523 = vpop.f32.mrf.mxu0
      %v7524 = vadd.f32 %v7251, %v7523
      %v7525 = vpop.f32.mrf.mxu0
      %v7526 = vadd.f32 %v7253, %v7525
      %7527 = vmatmul.bf16.gmra.mxu0 %v7018
      %v7528 = vpop.f32.mrf.mxu0
      %v7529 = vadd.f32 %v7256, %v7528
      %v7530 = vpop.f32.mrf.mxu0
      %v7531 = vadd.f32 %v7258, %v7530
      %7532 = vmatmul.bf16.gmra.mxu0 %v7021
      %v7533 = vpop.f32.mrf.mxu0
      %v7534 = vadd.f32 %v7261, %v7533
      %v7535 = vpop.f32.mrf.mxu0
      %v7536 = vadd.f32 %v7263, %v7535
      %7537 = vmatmul.bf16.gmra.mxu0 %v7024
      %v7538 = vpop.f32.mrf.mxu0
      %v7539 = vadd.f32 %v7266, %v7538
      %v7540 = vpop.f32.mrf.mxu0
      %v7541 = vadd.f32 %v7268, %v7540
      %7542 = vmatmul.bf16.gmra.mxu0 %v7027
      %v7543 = vpop.f32.mrf.mxu0
      %v7544 = vadd.f32 %v7271, %v7543
      %v7545 = vpop.f32.mrf.mxu0
      %v7546 = vadd.f32 %v7273, %v7545
      %7547 = vmatmul.bf16.gmra.mxu0 %v7030
      %v7548 = vpop.f32.mrf.mxu0
      %v7549 = vadd.f32 %v7276, %v7548
      %v7550 = vpop.f32.mrf.mxu0
      %v7551 = vadd.f32 %v7278, %v7550
      %7552 = vmatmul.bf16.gmra.mxu0 %v7033
      %v7553 = vpop.f32.mrf.mxu0
      %v7554 = vadd.f32 %v7281, %v7553
      %v7555 = vpop.f32.mrf.mxu0
      %v7556 = vadd.f32 %v7283, %v7555
      %7557 = vmatmul.bf16.gmra.mxu0 %v7036
      %v7558 = vpop.f32.mrf.mxu0
      %v7559 = vadd.f32 %v7286, %v7558
      %v7560 = vpop.f32.mrf.mxu0
      %v7561 = vadd.f32 %v7288, %v7560
      %7562 = vmatmul.bf16.gmra.mxu0 %v7039
      %v7563 = vpop.f32.mrf.mxu0
      %v7564 = vadd.f32 %v7291, %v7563
      %v7565 = vpop.f32.mrf.mxu0
      %v7566 = vadd.f32 %v7293, %v7565
      %7567 = vmatmul.bf16.gmra.mxu0 %v7042
      %v7568 = vpop.f32.mrf.mxu0
      %v7569 = vadd.f32 %v7296, %v7568
      %v7570 = vpop.f32.mrf.mxu0
      %v7571 = vadd.f32 %v7298, %v7570
      %7572 = vmatmul.bf16.gmra.mxu0 %v7045
      %v7573 = vpop.f32.mrf.mxu0
      %v7574 = vadd.f32 %v7301, %v7573
      %v7575 = vpop.f32.mrf.mxu0
      %v7576 = vadd.f32 %v7303, %v7575
      %7577 = vmatmul.bf16.gmra.mxu0 %v7048
      %v7578 = vpop.f32.mrf.mxu0
      %v7579 = vadd.f32 %v7306, %v7578
      %v7580 = vpop.f32.mrf.mxu0
      %v7581 = vadd.f32 %v7308, %v7580
      %7582 = vmatmul.bf16.gmra.mxu0 %v7051
      %v7583 = vpop.f32.mrf.mxu0
      %v7584 = vadd.f32 %v7311, %v7583
      %v7585 = vpop.f32.mrf.mxu0
      %v7586 = vadd.f32 %v7313, %v7585
      %7587 = vmatmul.bf16.gmra.mxu0 %v7054
      %v7588 = vpop.f32.mrf.mxu0
      %v7589 = vadd.f32 %v7316, %v7588
      %v7590 = vpop.f32.mrf.mxu0
      %v7591 = vadd.f32 %v7318, %v7590
      %7592 = vmatmul.bf16.gmra.mxu0 %v7057
      %v7593 = vpop.f32.mrf.mxu0
      %v7594 = vadd.f32 %v7321, %v7593
      %v7595 = vpop.f32.mrf.mxu0
      %v7596 = vadd.f32 %v7323, %v7595
      %7597 = vmatmul.bf16.gmra.mxu0 %v7060
      %v7598 = vpop.f32.mrf.mxu0
      %v7599 = vadd.f32 %v7326, %v7598
      %v7600 = vpop.f32.mrf.mxu0
      %v7601 = vadd.f32 %v7328, %v7600
      %7602 = vmatmul.bf16.gmra.mxu0 %v7063
      %v7603 = vpop.f32.mrf.mxu0
      %v7604 = vadd.f32 %v7331, %v7603
      %v7605 = vpop.f32.mrf.mxu0
      %v7606 = vadd.f32 %v7333, %v7605
      %7607 = vmatmul.bf16.gmra.mxu0 %v7066
      %v7608 = vpop.f32.mrf.mxu0
      %v7609 = vadd.f32 %v7336, %v7608
      %v7610 = vpop.f32.mrf.mxu0
      %v7611 = vadd.f32 %v7338, %v7610
      %7612 = vmatmul.bf16.gmra.mxu0 %v7069
      %v7613 = vpop.f32.mrf.mxu0
      %v7614 = vadd.f32 %v7341, %v7613
      %v7615 = vpop.f32.mrf.mxu0
      %7616 = vdwg.mxu0
      %v7617 = vmax.f32 %v7354, 0.0
      %v7618 = vmax.f32 %v7356, 0.0
      %v7619 = vmax.f32 %v7359, 0.0
      %v7620 = vmax.f32 %v7361, 0.0
      %v7621 = vmax.f32 %v7364, 0.0
      %v7622 = vmax.f32 %v7366, 0.0
      %v7623 = vmax.f32 %v7369, 0.0
      %v7624 = vmax.f32 %v7371, 0.0
      %v7625 = vmax.f32 %v7374, 0.0
      %v7626 = vmax.f32 %v7376, 0.0
      %v7627 = vmax.f32 %v7379, 0.0
      %v7628 = vmax.f32 %v7381, 0.0
      %v7629 = vmax.f32 %v7384, 0.0
      %v7630 = vmax.f32 %v7386, 0.0
      %v7631 = vmax.f32 %v7389, 0.0
      %v7632 = vmax.f32 %v7391, 0.0
      %v7633 = vmax.f32 %v7394, 0.0
      %v7634 = vmax.f32 %v7396, 0.0
      %v7635 = vmax.f32 %v7399, 0.0
      %v7636 = vmax.f32 %v7401, 0.0
      %v7637 = vmax.f32 %v7404, 0.0
      %v7638 = vmax.f32 %v7406, 0.0
      %v7639 = vmax.f32 %v7409, 0.0
      %v7640 = vmax.f32 %v7411, 0.0
      %v7641 = vmax.f32 %v7414, 0.0
      %v7642 = vmax.f32 %v7416, 0.0
      %v7643 = vmax.f32 %v7419, 0.0
      %v7644 = vmax.f32 %v7421, 0.0
      %v7645 = vmax.f32 %v7424, 0.0
      %v7646 = vmax.f32 %v7426, 0.0
      %v7647 = vmax.f32 %v7429, 0.0
      %v7648 = vmax.f32 %v7431, 0.0
      %v7649 = vmax.f32 %v7434, 0.0
      %v7650 = vmax.f32 %v7436, 0.0
      %v7651 = vmax.f32 %v7439, 0.0
      %v7652 = vmax.f32 %v7441, 0.0
      %v7653 = vmax.f32 %v7444, 0.0
      %v7654 = vmax.f32 %v7446, 0.0
      %v7655 = vmax.f32 %v7449, 0.0
      %v7656 = vmax.f32 %v7451, 0.0
      %v7657 = vmax.f32 %v7454, 0.0
      %v7658 = vmax.f32 %v7456, 0.0
      %v7659 = vmax.f32 %v7459, 0.0
      %v7660 = vmax.f32 %v7461, 0.0
      %v7661 = vmax.f32 %v7464, 0.0
      %v7662 = vmax.f32 %v7466, 0.0
      %v7663 = vmax.f32 %v7469, 0.0
      %v7664 = vmax.f32 %v7471, 0.0
      %v7665 = vmax.f32 %v7474, 0.0
      %v7666 = vmax.f32 %v7476, 0.0
      %v7667 = vmax.f32 %v7479, 0.0
      %v7668 = vmax.f32 %v7481, 0.0
      %v7669 = vmax.f32 %v7484, 0.0
      %v7670 = vmax.f32 %v7486, 0.0
      %v7671 = vmax.f32 %v7489, 0.0
      %v7672 = vmax.f32 %v7491, 0.0
      %v7673 = vmax.f32 %v7494, 0.0
      %v7674 = vmax.f32 %v7496, 0.0
      %v7675 = vmax.f32 %v7499, 0.0
      %v7676 = vmax.f32 %v7501, 0.0
      %v7677 = vmax.f32 %v7504, 0.0
      %v7678 = vmax.f32 %v7506, 0.0
      %v7679 = vmax.f32 %v7509, 0.0
      %v7680 = vmax.f32 %v7511, 0.0
      %v7681 = vmax.f32 %v7514, 0.0
      %v7682 = vmax.f32 %v7516, 0.0
      %v7683 = vmax.f32 %v7519, 0.0
      %v7684 = vmax.f32 %v7521, 0.0
      %v7685 = vmax.f32 %v7524, 0.0
      %v7686 = vmax.f32 %v7526, 0.0
      %v7687 = vmax.f32 %v7529, 0.0
      %v7688 = vmax.f32 %v7531, 0.0
      %v7689 = vmax.f32 %v7534, 0.0
      %v7690 = vmax.f32 %v7536, 0.0
      %v7691 = vmax.f32 %v7539, 0.0
      %v7692 = vmax.f32 %v7541, 0.0
      %v7693 = vmax.f32 %v7544, 0.0
      %v7694 = vmax.f32 %v7546, 0.0
      %v7695 = vmax.f32 %v7549, 0.0
      %v7696 = vmax.f32 %v7551, 0.0
      %v7697 = vmax.f32 %v7554, 0.0
      %v7698 = vmax.f32 %v7556, 0.0
      %v7699 = vmax.f32 %v7559, 0.0
      %v7700 = vmax.f32 %v7561, 0.0
      %v7701 = vmax.f32 %v7564, 0.0
      %v7702 = vmax.f32 %v7566, 0.0
      %v7703 = vmax.f32 %v7569, 0.0
      %v7704 = vmax.f32 %v7571, 0.0
      %v7705 = vmax.f32 %v7574, 0.0
      %v7706 = vmax.f32 %v7576, 0.0
      %v7707 = vmax.f32 %v7579, 0.0
      %v7708 = vmax.f32 %v7581, 0.0
      %v7709 = vmax.f32 %v7584, 0.0
      %v7710 = vmax.f32 %v7586, 0.0
      %v7711 = vmax.f32 %v7589, 0.0
      %v7712 = vmax.f32 %v7591, 0.0
      %v7713 = vmax.f32 %v7594, 0.0
      %v7714 = vmax.f32 %v7596, 0.0
      %v7715 = vmax.f32 %v7599, 0.0
      %v7716 = vmax.f32 %v7601, 0.0
      %v7717 = vmax.f32 %v7604, 0.0
      %v7718 = vmax.f32 %v7606, 0.0
      %v7719 = vmax.f32 %v7609, 0.0
      %v7720 = vmax.f32 %v7611, 0.0
      %v7721 = vmax.f32 %v7614, 0.0
      %7722 = vst.msk [vmem:[#allocation3] sm:$0xff] %vm6094, %v7617
      %7723 = vst.msk [vmem:[#allocation3 + $0x8] sm:$0xff] %vm6094, %v7618
      %7724 = vst.msk [vmem:[#allocation3 + $0x10] sm:$0xff] %vm6094, %v7619
      %7725 = vst.msk [vmem:[#allocation3 + $0x18] sm:$0xff] %vm6094, %v7620
      %7726 = vst.msk [vmem:[#allocation3 + $0x20] sm:$0xff] %vm6094, %v7621
      %7727 = vst.msk [vmem:[#allocation3 + $0x28] sm:$0xff] %vm6094, %v7622
      %7728 = vst.msk [vmem:[#allocation3 + $0x30] sm:$0xff] %vm6094, %v7623
      %7729 = vst.msk [vmem:[#allocation3 + $0x38] sm:$0xff] %vm6094, %v7624
      %7730 = vst.msk [vmem:[#allocation3 + $0x40] sm:$0xff] %vm6094, %v7625
      %7731 = vst.msk [vmem:[#allocation3 + $0x48] sm:$0xff] %vm6094, %v7626
      %7732 = vst.msk [vmem:[#allocation3 + $0x50] sm:$0xff] %vm6094, %v7627
      %7733 = vst.msk [vmem:[#allocation3 + $0x58] sm:$0xff] %vm6094, %v7628
      %7734 = vst.msk [vmem:[#allocation3 + $0x60] sm:$0xff] %vm6094, %v7629
      %7735 = vst.msk [vmem:[#allocation3 + $0x68] sm:$0xff] %vm6094, %v7630
      %7736 = vst.msk [vmem:[#allocation3 + $0x70] sm:$0xff] %vm6094, %v7631
      %7737 = vst.msk [vmem:[#allocation3 + $0x78] sm:$0xff] %vm6094, %v7632
      %7738 = vst.msk [vmem:[#allocation3 + $0x80] sm:$0xff] %vm6094, %v7633
      %7739 = vst.msk [vmem:[#allocation3 + $0x88] sm:$0xff] %vm6094, %v7634
      %7740 = vst.msk [vmem:[#allocation3 + $0x90] sm:$0xff] %vm6094, %v7635
      %7741 = vst.msk [vmem:[#allocation3 + $0x98] sm:$0xff] %vm6094, %v7636
      %7742 = vst.msk [vmem:[#allocation3 + $0xa0] sm:$0xff] %vm6094, %v7637
      %7743 = vst.msk [vmem:[#allocation3 + $0xa8] sm:$0xff] %vm6094, %v7638
      %7744 = vst.msk [vmem:[#allocation3 + $0xb0] sm:$0xff] %vm6094, %v7639
      %7745 = vst.msk [vmem:[#allocation3 + $0xb8] sm:$0xff] %vm6094, %v7640
      %7746 = vst.msk [vmem:[#allocation3 + $0xc0] sm:$0xff] %vm6094, %v7641
      %7747 = vst.msk [vmem:[#allocation3 + $0xc8] sm:$0xff] %vm6094, %v7642
      %7748 = vst.msk [vmem:[#allocation3 + $0xd0] sm:$0xff] %vm6094, %v7643
      %7749 = vst.msk [vmem:[#allocation3 + $0xd8] sm:$0xff] %vm6094, %v7644
      %7750 = vst.msk [vmem:[#allocation3 + $0xe0] sm:$0xff] %vm6094, %v7645
      %7751 = vst.msk [vmem:[#allocation3 + $0xe8] sm:$0xff] %vm6094, %v7646
      %7752 = vst.msk [vmem:[#allocation3 + $0xf0] sm:$0xff] %vm6094, %v7647
      %7753 = vst.msk [vmem:[#allocation3 + $0xf8] sm:$0xff] %vm6094, %v7648
      %7754 = vst.msk [vmem:[#allocation3 + $0x100] sm:$0xff] %vm6094, %v7649
      %7755 = vst.msk [vmem:[#allocation3 + $0x108] sm:$0xff] %vm6094, %v7650
      %7756 = vst.msk [vmem:[#allocation3 + $0x110] sm:$0xff] %vm6094, %v7651
      %7757 = vst.msk [vmem:[#allocation3 + $0x118] sm:$0xff] %vm6094, %v7652
      %7758 = vst.msk [vmem:[#allocation3 + $0x120] sm:$0xff] %vm6094, %v7653
      %7759 = vst.msk [vmem:[#allocation3 + $0x128] sm:$0xff] %vm6094, %v7654
      %7760 = vst.msk [vmem:[#allocation3 + $0x130] sm:$0xff] %vm6094, %v7655
      %7761 = vst.msk [vmem:[#allocation3 + $0x138] sm:$0xff] %vm6094, %v7656
      %7762 = vst.msk [vmem:[#allocation3 + $0x140] sm:$0xff] %vm6094, %v7657
      %7763 = vst.msk [vmem:[#allocation3 + $0x148] sm:$0xff] %vm6094, %v7658
      %7764 = vst.msk [vmem:[#allocation3 + $0x150] sm:$0xff] %vm6094, %v7659
      %7765 = vst.msk [vmem:[#allocation3 + $0x158] sm:$0xff] %vm6094, %v7660
      %7766 = vst.msk [vmem:[#allocation3 + $0x160] sm:$0xff] %vm6094, %v7661
      %7767 = vst.msk [vmem:[#allocation3 + $0x168] sm:$0xff] %vm6094, %v7662
      %7768 = vst.msk [vmem:[#allocation3 + $0x170] sm:$0xff] %vm6094, %v7663
      %7769 = vst.msk [vmem:[#allocation3 + $0x178] sm:$0xff] %vm6094, %v7664
      %7770 = vst.msk [vmem:[#allocation3 + $0x180] sm:$0xff] %vm6094, %v7665
      %7771 = vst.msk [vmem:[#allocation3 + $0x188] sm:$0xff] %vm6094, %v7666
      %7772 = vst.msk [vmem:[#allocation3 + $0x190] sm:$0xff] %vm6094, %v7667
      %7773 = vst.msk [vmem:[#allocation3 + $0x198] sm:$0xff] %vm6094, %v7668
      %7774 = vst.msk [vmem:[#allocation3 + $0x1a0] sm:$0xff] %vm6094, %v7669
      %7775 = vst.msk [vmem:[#allocation3 + $0x1a8] sm:$0xff] %vm6094, %v7670
      %7776 = vst.msk [vmem:[#allocation3 + $0x1b0] sm:$0xff] %vm6094, %v7671
      %7777 = vst.msk [vmem:[#allocation3 + $0x1b8] sm:$0xff] %vm6094, %v7672
      %7778 = vst.msk [vmem:[#allocation3 + $0x1c0] sm:$0xff] %vm6094, %v7673
      %7779 = vst.msk [vmem:[#allocation3 + $0x1c8] sm:$0xff] %vm6094, %v7674
      %7780 = vst.msk [vmem:[#allocation3 + $0x1d0] sm:$0xff] %vm6094, %v7675
      %7781 = vst.msk [vmem:[#allocation3 + $0x1d8] sm:$0xff] %vm6094, %v7676
      %7782 = vst.msk [vmem:[#allocation3 + $0x1e0] sm:$0xff] %vm6094, %v7677
      %7783 = vst.msk [vmem:[#allocation3 + $0x1e8] sm:$0xff] %vm6094, %v7678
      %7784 = vst.msk [vmem:[#allocation3 + $0x1f0] sm:$0xff] %vm6094, %v7679
      %7785 = vst.msk [vmem:[#allocation3 + $0x1f8] sm:$0xff] %vm6094, %v7680
      %7786 = vst.msk [vmem:[#allocation3 + $0x200] sm:$0xff] %vm6094, %v7681
      %7787 = vst.msk [vmem:[#allocation3 + $0x208] sm:$0xff] %vm6094, %v7682
      %7788 = vst.msk [vmem:[#allocation3 + $0x210] sm:$0xff] %vm6094, %v7683
      %7789 = vst.msk [vmem:[#allocation3 + $0x218] sm:$0xff] %vm6094, %v7684
      %7790 = vst.msk [vmem:[#allocation3 + $0x220] sm:$0xff] %vm6094, %v7685
      %7791 = vst.msk [vmem:[#allocation3 + $0x228] sm:$0xff] %vm6094, %v7686
      %7792 = vst.msk [vmem:[#allocation3 + $0x230] sm:$0xff] %vm6094, %v7687
      %7793 = vst.msk [vmem:[#allocation3 + $0x238] sm:$0xff] %vm6094, %v7688
      %7794 = vst.msk [vmem:[#allocation3 + $0x240] sm:$0xff] %vm6094, %v7689
      %7795 = vst.msk [vmem:[#allocation3 + $0x248] sm:$0xff] %vm6094, %v7690
      %7796 = vst.msk [vmem:[#allocation3 + $0x250] sm:$0xff] %vm6094, %v7691
      %7797 = vst.msk [vmem:[#allocation3 + $0x258] sm:$0xff] %vm6094, %v7692
      %7798 = vst.msk [vmem:[#allocation3 + $0x260] sm:$0xff] %vm6094, %v7693
      %7799 = vst.msk [vmem:[#allocation3 + $0x268] sm:$0xff] %vm6094, %v7694
      %7800 = vst.msk [vmem:[#allocation3 + $0x270] sm:$0xff] %vm6094, %v7695
      %7801 = vst.msk [vmem:[#allocation3 + $0x278] sm:$0xff] %vm6094, %v7696
      %7802 = vst.msk [vmem:[#allocation3 + $0x280] sm:$0xff] %vm6094, %v7697
      %7803 = vst.msk [vmem:[#allocation3 + $0x288] sm:$0xff] %vm6094, %v7698
      %7804 = vst.msk [vmem:[#allocation3 + $0x290] sm:$0xff] %vm6094, %v7699
      %7805 = vst.msk [vmem:[#allocation3 + $0x298] sm:$0xff] %vm6094, %v7700
      %7806 = vst.msk [vmem:[#allocation3 + $0x2a0] sm:$0xff] %vm6094, %v7701
      %7807 = vst.msk [vmem:[#allocation3 + $0x2a8] sm:$0xff] %vm6094, %v7702
      %7808 = vst.msk [vmem:[#allocation3 + $0x2b0] sm:$0xff] %vm6094, %v7703
      %7809 = vst.msk [vmem:[#allocation3 + $0x2b8] sm:$0xff] %vm6094, %v7704
      %7810 = vst.msk [vmem:[#allocation3 + $0x2c0] sm:$0xff] %vm6094, %v7705
      %7811 = vst.msk [vmem:[#allocation3 + $0x2c8] sm:$0xff] %vm6094, %v7706
      %7812 = vst.msk [vmem:[#allocation3 + $0x2d0] sm:$0xff] %vm6094, %v7707
      %7813 = vst.msk [vmem:[#allocation3 + $0x2d8] sm:$0xff] %vm6094, %v7708
      %7814 = vst.msk [vmem:[#allocation3 + $0x2e0] sm:$0xff] %vm6094, %v7709
      %7815 = vst.msk [vmem:[#allocation3 + $0x2e8] sm:$0xff] %vm6094, %v7710
      %7816 = vst.msk [vmem:[#allocation3 + $0x2f0] sm:$0xff] %vm6094, %v7711
      %7817 = vst.msk [vmem:[#allocation3 + $0x2f8] sm:$0xff] %vm6094, %v7712
      %7818 = vst.msk [vmem:[#allocation3 + $0x300] sm:$0xff] %vm6094, %v7713
      %7819 = vst.msk [vmem:[#allocation3 + $0x308] sm:$0xff] %vm6094, %v7714
      %7820 = vst.msk [vmem:[#allocation3 + $0x310] sm:$0xff] %vm6094, %v7715
      %7821 = vst.msk [vmem:[#allocation3 + $0x318] sm:$0xff] %vm6094, %v7716
      %7822 = vst.msk [vmem:[#allocation3 + $0x320] sm:$0xff] %vm6094, %v7717
      %7823 = vst.msk [vmem:[#allocation3 + $0x328] sm:$0xff] %vm6094, %v7718
      %7824 = vst.msk [vmem:[#allocation3 + $0x330] sm:$0xff] %vm6094, %v7719
      %7825 = vst.msk [vmem:[#allocation3 + $0x338] sm:$0xff] %vm6094, %v7720
      %7826 = vst.msk [vmem:[#allocation3 + $0x340] sm:$0xff] %vm6094, %v7721
      %7827 = vst.msk [vmem:[#allocation4] sm:$0xff] %vm6094, 0.0
      %7828 = vst.msk [vmem:[#allocation4 + $0x8] sm:$0xff] %vm6094, 0.0
      %7829 = vst.msk [vmem:[#allocation4 + $0x10] sm:$0xff] %vm6094, 0.0
      %7830 = vst.msk [vmem:[#allocation4 + $0x18] sm:$0xff] %vm6094, 0.0
      %7831 = vst.msk [vmem:[#allocation4 + $0x20] sm:$0xff] %vm6094, 0.0
      %7832 = vst.msk [vmem:[#allocation4 + $0x28] sm:$0xff] %vm6094, 0.0
      %7833 = vst.msk [vmem:[#allocation4 + $0x30] sm:$0xff] %vm6094, 0.0
      %7834 = vst.msk [vmem:[#allocation4 + $0x38] sm:$0xff] %vm6094, 0.0
      %7835 = vst.msk [vmem:[#allocation4 + $0x40] sm:$0xff] %vm6094, 0.0
      %7836 = vst.msk [vmem:[#allocation4 + $0x48] sm:$0xff] %vm6094, 0.0
      %7837 = vst.msk [vmem:[#allocation4 + $0x50] sm:$0xff] %vm6094, 0.0
      %7838 = vst.msk [vmem:[#allocation4 + $0x58] sm:$0xff] %vm6094, 0.0
      %7839 = vst.msk [vmem:[#allocation4 + $0x60] sm:$0xff] %vm6094, 0.0
      %7840 = vst.msk [vmem:[#allocation4 + $0x68] sm:$0xff] %vm6094, 0.0
      %7841 = vst.msk [vmem:[#allocation4 + $0x70] sm:$0xff] %vm6094, 0.0
      %7842 = vst.msk [vmem:[#allocation4 + $0x78] sm:$0xff] %vm6094, 0.0
      %7843 = vst.msk [vmem:[#allocation4 + $0x80] sm:$0xff] %vm6094, 0.0
      %7844 = vst.msk [vmem:[#allocation4 + $0x88] sm:$0xff] %vm6094, 0.0
      %7845 = vst.msk [vmem:[#allocation4 + $0x90] sm:$0xff] %vm6094, 0.0
      %7846 = vst.msk [vmem:[#allocation4 + $0x98] sm:$0xff] %vm6094, 0.0
      %7847 = vst.msk [vmem:[#allocation4 + $0xa0] sm:$0xff] %vm6094, 0.0
      %7848 = vst.msk [vmem:[#allocation4 + $0xa8] sm:$0xff] %vm6094, 0.0
      %7849 = vst.msk [vmem:[#allocation4 + $0xb0] sm:$0xff] %vm6094, 0.0
      %7850 = vst.msk [vmem:[#allocation4 + $0xb8] sm:$0xff] %vm6094, 0.0
      %7851 = vst.msk [vmem:[#allocation4 + $0xc0] sm:$0xff] %vm6094, 0.0
      %7852 = vst.msk [vmem:[#allocation4 + $0xc8] sm:$0xff] %vm6094, 0.0
      %7853 = vst.msk [vmem:[#allocation4 + $0xd0] sm:$0xff] %vm6094, 0.0
      %7854 = vst.msk [vmem:[#allocation4 + $0xd8] sm:$0xff] %vm6094, 0.0
      %7855 = vst.msk [vmem:[#allocation4 + $0xe0] sm:$0xff] %vm6094, 0.0
      %7856 = vst.msk [vmem:[#allocation4 + $0xe8] sm:$0xff] %vm6094, 0.0
      %7857 = vst.msk [vmem:[#allocation4 + $0xf0] sm:$0xff] %vm6094, 0.0
      %7858 = vst.msk [vmem:[#allocation4 + $0xf8] sm:$0xff] %vm6094, 0.0
      %7859 = vst.msk [vmem:[#allocation4 + $0x100] sm:$0xff] %vm6094, 0.0
      %7860 = vst.msk [vmem:[#allocation4 + $0x108] sm:$0xff] %vm6094, 0.0
      %v7861 = vld [vmem:[#allocation3] ss:$2 sm:$0xff]
      %s7862 = scalar_lea.vmem [#allocation3], 16
      %v7863 = vld [vmem:[%s7862] ss:$2 sm:$0x3f]
      %s7864 = scalar_lea.vmem [#allocation3], 1
      %v7865 = vld [vmem:[%s7864] ss:$2 sm:$0xff]
      %s7866 = scalar_lea.vmem [#allocation3], 17
      %v7867 = vld [vmem:[%s7866] ss:$2 sm:$0x3f]
      %v7868 = vmax.f32 %v7861, %v7865
      %v7869 = vmax.f32 %v7863, %v7867
      %s7870 = scalar_lea.vmem [#allocation3], 30
      %v7871 = vld [vmem:[%s7870] ss:$2 sm:$0xff]
      %s7872 = scalar_lea.vmem [#allocation3], 46
      %v7873 = vld [vmem:[%s7872] ss:$2 sm:$0x3f]
      %s7874 = scalar_lea.vmem [#allocation3], 31
      %v7875 = vld [vmem:[%s7874] ss:$2 sm:$0xff]
      %s7876 = scalar_lea.vmem [#allocation3], 47
      %v7877 = vld [vmem:[%s7876] ss:$2 sm:$0x3f]
      %v7878 = vmax.f32 %v7871, %v7875
      %v7879 = vmax.f32 %v7873, %v7877
      %v7880 = vmax.f32 %v7868, %v7878
      %v7881 = vmax.f32 %v7869, %v7879
      %7882 = vst.msk [vmem:[#allocation4 + $0x11] sm:$0xff] %vm6094, %v7880
      %vm7883 = vcmask 259072
      %7884 = vst.msk [vmem:[#allocation4 + $0x19] sm:$0x3f] %vm7883, %v7881
      %s7885 = scalar_lea.vmem [#allocation3], 60
      %v7886 = vld [vmem:[%s7885] ss:$2 sm:$0xff]
      %s7887 = scalar_lea.vmem [#allocation3], 76
      %v7888 = vld [vmem:[%s7887] ss:$2 sm:$0x3f]
      %s7889 = scalar_lea.vmem [#allocation3], 61
      %v7890 = vld [vmem:[%s7889] ss:$2 sm:$0xff]
      %s7891 = scalar_lea.vmem [#allocation3], 77
      %v7892 = vld [vmem:[%s7891] ss:$2 sm:$0x3f]
      %v7893 = vmax.f32 %v7886, %v7890
      %v7894 = vmax.f32 %v7888, %v7892
      %s7895 = scalar_lea.vmem [#allocation3], 90
      %v7896 = vld [vmem:[%s7895] ss:$2 sm:$0xff]
      %s7897 = scalar_lea.vmem [#allocation3], 106
      %v7898 = vld [vmem:[%s7897] ss:$2 sm:$0x3f]
      %s7899 = scalar_lea.vmem [#allocation3], 91
      %v7900 = vld [vmem:[%s7899] ss:$2 sm:$0xff]
      %s7901 = scalar_lea.vmem [#allocation3], 107
      %v7902 = vld [vmem:[%s7901] ss:$2 sm:$0x3f]
      %v7903 = vmax.f32 %v7896, %v7900
      %v7904 = vmax.f32 %v7898, %v7902
      %v7905 = vmax.f32 %v7893, %v7903
      %v7906 = vmax.f32 %v7894, %v7904
      %7907 = vst.msk [vmem:[#allocation4 + $0x21] sm:$0xff] %vm6094, %v7905
      %7908 = vst.msk [vmem:[#allocation4 + $0x29] sm:$0x3f] %vm7883, %v7906
      %s7909 = scalar_lea.vmem [#allocation3], 120
      %v7910 = vld [vmem:[%s7909] ss:$2 sm:$0xff]
      %s7911 = scalar_lea.vmem [#allocation3], 136
      %v7912 = vld [vmem:[%s7911] ss:$2 sm:$0x3f]
      %s7913 = scalar_lea.vmem [#allocation3], 121
      %v7914 = vld [vmem:[%s7913] ss:$2 sm:$0xff]
      %s7915 = scalar_lea.vmem [#allocation3], 137
      %v7916 = vld [vmem:[%s7915] ss:$2 sm:$0x3f]
      %v7917 = vmax.f32 %v7910, %v7914
      %v7918 = vmax.f32 %v7912, %v7916
      %s7919 = scalar_lea.vmem [#allocation3], 150
      %v7920 = vld [vmem:[%s7919] ss:$2 sm:$0xff]
      %s7921 = scalar_lea.vmem [#allocation3], 166
      %v7922 = vld [vmem:[%s7921] ss:$2 sm:$0x3f]
      %s7923 = scalar_lea.vmem [#allocation3], 151
      %v7924 = vld [vmem:[%s7923] ss:$2 sm:$0xff]
      %s7925 = scalar_lea.vmem [#allocation3], 167
      %v7926 = vld [vmem:[%s7925] ss:$2 sm:$0x3f]
      %v7927 = vmax.f32 %v7920, %v7924
      %v7928 = vmax.f32 %v7922, %v7926
      %v7929 = vmax.f32 %v7917, %v7927
      %v7930 = vmax.f32 %v7918, %v7928
      %7931 = vst.msk [vmem:[#allocation4 + $0x31] sm:$0xff] %vm6094, %v7929
      %7932 = vst.msk [vmem:[#allocation4 + $0x39] sm:$0x3f] %vm7883, %v7930
      %s7933 = scalar_lea.vmem [#allocation3], 180
      %v7934 = vld [vmem:[%s7933] ss:$2 sm:$0xff]
      %s7935 = scalar_lea.vmem [#allocation3], 196
      %v7936 = vld [vmem:[%s7935] ss:$2 sm:$0x3f]
      %s7937 = scalar_lea.vmem [#allocation3], 181
      %v7938 = vld [vmem:[%s7937] ss:$2 sm:$0xff]
      %s7939 = scalar_lea.vmem [#allocation3], 197
      %v7940 = vld [vmem:[%s7939] ss:$2 sm:$0x3f]
      %v7941 = vmax.f32 %v7934, %v7938
      %v7942 = vmax.f32 %v7936, %v7940
      %s7943 = scalar_lea.vmem [#allocation3], 210
      %v7944 = vld [vmem:[%s7943] ss:$2 sm:$0xff]
      %s7945 = scalar_lea.vmem [#allocation3], 226
      %v7946 = vld [vmem:[%s7945] ss:$2 sm:$0x3f]
      %s7947 = scalar_lea.vmem [#allocation3], 211
      %v7948 = vld [vmem:[%s7947] ss:$2 sm:$0xff]
      %s7949 = scalar_lea.vmem [#allocation3], 227
      %v7950 = vld [vmem:[%s7949] ss:$2 sm:$0x3f]
      %v7951 = vmax.f32 %v7944, %v7948
      %v7952 = vmax.f32 %v7946, %v7950
      %v7953 = vmax.f32 %v7941, %v7951
      %v7954 = vmax.f32 %v7942, %v7952
      %7955 = vst.msk [vmem:[#allocation4 + $0x41] sm:$0xff] %vm6094, %v7953
      %7956 = vst.msk [vmem:[#allocation4 + $0x49] sm:$0x3f] %vm7883, %v7954
      %s7957 = scalar_lea.vmem [#allocation3], 240
      %v7958 = vld [vmem:[%s7957] ss:$2 sm:$0xff]
      %s7959 = scalar_lea.vmem [#allocation3], 256
      %v7960 = vld [vmem:[%s7959] ss:$2 sm:$0x3f]
      %s7961 = scalar_lea.vmem [#allocation3], 241
      %v7962 = vld [vmem:[%s7961] ss:$2 sm:$0xff]
      %s7963 = scalar_lea.vmem [#allocation3], 257
      %v7964 = vld [vmem:[%s7963] ss:$2 sm:$0x3f]
      %v7965 = vmax.f32 %v7958, %v7962
      %v7966 = vmax.f32 %v7960, %v7964
      %s7967 = scalar_lea.vmem [#allocation3], 270
      %v7968 = vld [vmem:[%s7967] ss:$2 sm:$0xff]
      %s7969 = scalar_lea.vmem [#allocation3], 286
      %v7970 = vld [vmem:[%s7969] ss:$2 sm:$0x3f]
      %s7971 = scalar_lea.vmem [#allocation3], 271
      %v7972 = vld [vmem:[%s7971] ss:$2 sm:$0xff]
      %s7973 = scalar_lea.vmem [#allocation3], 287
      %v7974 = vld [vmem:[%s7973] ss:$2 sm:$0x3f]
      %v7975 = vmax.f32 %v7968, %v7972
      %v7976 = vmax.f32 %v7970, %v7974
      %v7977 = vmax.f32 %v7965, %v7975
      %v7978 = vmax.f32 %v7966, %v7976
      %7979 = vst.msk [vmem:[#allocation4 + $0x51] sm:$0xff] %vm6094, %v7977
      %7980 = vst.msk [vmem:[#allocation4 + $0x59] sm:$0x3f] %vm7883, %v7978
      %s7981 = scalar_lea.vmem [#allocation3], 300
      %v7982 = vld [vmem:[%s7981] ss:$2 sm:$0xff]
      %s7983 = scalar_lea.vmem [#allocation3], 316
      %v7984 = vld [vmem:[%s7983] ss:$2 sm:$0x3f]
      %s7985 = scalar_lea.vmem [#allocation3], 301
      %v7986 = vld [vmem:[%s7985] ss:$2 sm:$0xff]
      %s7987 = scalar_lea.vmem [#allocation3], 317
      %v7988 = vld [vmem:[%s7987] ss:$2 sm:$0x3f]
      %v7989 = vmax.f32 %v7982, %v7986
      %v7990 = vmax.f32 %v7984, %v7988
      %s7991 = scalar_lea.vmem [#allocation3], 330
      %v7992 = vld [vmem:[%s7991] ss:$2 sm:$0xff]
      %s7993 = scalar_lea.vmem [#allocation3], 346
      %v7994 = vld [vmem:[%s7993] ss:$2 sm:$0x3f]
      %s7995 = scalar_lea.vmem [#allocation3], 331
      %v7996 = vld [vmem:[%s7995] ss:$2 sm:$0xff]
      %s7997 = scalar_lea.vmem [#allocation3], 347
      %v7998 = vld [vmem:[%s7997] ss:$2 sm:$0x3f]
      %v7999 = vmax.f32 %v7992, %v7996
      %v8000 = vmax.f32 %v7994, %v7998
      %v8001 = vmax.f32 %v7989, %v7999
      %v8002 = vmax.f32 %v7990, %v8000
      %8003 = vst.msk [vmem:[#allocation4 + $0x61] sm:$0xff] %vm6094, %v8001
      %8004 = vst.msk [vmem:[#allocation4 + $0x69] sm:$0x3f] %vm7883, %v8002
      %s8005 = scalar_lea.vmem [#allocation3], 360
      %v8006 = vld [vmem:[%s8005] ss:$2 sm:$0xff]
      %s8007 = scalar_lea.vmem [#allocation3], 376
      %v8008 = vld [vmem:[%s8007] ss:$2 sm:$0x3f]
      %s8009 = scalar_lea.vmem [#allocation3], 361
      %v8010 = vld [vmem:[%s8009] ss:$2 sm:$0xff]
      %s8011 = scalar_lea.vmem [#allocation3], 377
      %v8012 = vld [vmem:[%s8011] ss:$2 sm:$0x3f]
      %v8013 = vmax.f32 %v8006, %v8010
      %v8014 = vmax.f32 %v8008, %v8012
      %s8015 = scalar_lea.vmem [#allocation3], 390
      %v8016 = vld [vmem:[%s8015] ss:$2 sm:$0xff]
      %s8017 = scalar_lea.vmem [#allocation3], 406
      %v8018 = vld [vmem:[%s8017] ss:$2 sm:$0x3f]
      %s8019 = scalar_lea.vmem [#allocation3], 391
      %v8020 = vld [vmem:[%s8019] ss:$2 sm:$0xff]
      %s8021 = scalar_lea.vmem [#allocation3], 407
      %v8022 = vld [vmem:[%s8021] ss:$2 sm:$0x3f]
      %v8023 = vmax.f32 %v8016, %v8020
      %v8024 = vmax.f32 %v8018, %v8022
      %v8025 = vmax.f32 %v8013, %v8023
      %v8026 = vmax.f32 %v8014, %v8024
      %8027 = vst.msk [vmem:[#allocation4 + $0x71] sm:$0xff] %vm6094, %v8025
      %8028 = vst.msk [vmem:[#allocation4 + $0x79] sm:$0x3f] %vm7883, %v8026
      %s8029 = scalar_lea.vmem [#allocation3], 420
      %v8030 = vld [vmem:[%s8029] ss:$2 sm:$0xff]
      %s8031 = scalar_lea.vmem [#allocation3], 436
      %v8032 = vld [vmem:[%s8031] ss:$2 sm:$0x3f]
      %s8033 = scalar_lea.vmem [#allocation3], 421
      %v8034 = vld [vmem:[%s8033] ss:$2 sm:$0xff]
      %s8035 = scalar_lea.vmem [#allocation3], 437
      %v8036 = vld [vmem:[%s8035] ss:$2 sm:$0x3f]
      %v8037 = vmax.f32 %v8030, %v8034
      %v8038 = vmax.f32 %v8032, %v8036
      %s8039 = scalar_lea.vmem [#allocation3], 450
      %v8040 = vld [vmem:[%s8039] ss:$2 sm:$0xff]
      %s8041 = scalar_lea.vmem [#allocation3], 466
      %v8042 = vld [vmem:[%s8041] ss:$2 sm:$0x3f]
      %s8043 = scalar_lea.vmem [#allocation3], 451
      %v8044 = vld [vmem:[%s8043] ss:$2 sm:$0xff]
      %s8045 = scalar_lea.vmem [#allocation3], 467
      %v8046 = vld [vmem:[%s8045] ss:$2 sm:$0x3f]
      %v8047 = vmax.f32 %v8040, %v8044
      %v8048 = vmax.f32 %v8042, %v8046
      %v8049 = vmax.f32 %v8037, %v8047
      %v8050 = vmax.f32 %v8038, %v8048
      %8051 = vst.msk [vmem:[#allocation4 + $0x81] sm:$0xff] %vm6094, %v8049
      %8052 = vst.msk [vmem:[#allocation4 + $0x89] sm:$0x3f] %vm7883, %v8050
      %s8053 = scalar_lea.vmem [#allocation3], 480
      %v8054 = vld [vmem:[%s8053] ss:$2 sm:$0xff]
      %s8055 = scalar_lea.vmem [#allocation3], 496
      %v8056 = vld [vmem:[%s8055] ss:$2 sm:$0x3f]
      %s8057 = scalar_lea.vmem [#allocation3], 481
      %v8058 = vld [vmem:[%s8057] ss:$2 sm:$0xff]
      %s8059 = scalar_lea.vmem [#allocation3], 497
      %v8060 = vld [vmem:[%s8059] ss:$2 sm:$0x3f]
      %v8061 = vmax.f32 %v8054, %v8058
      %v8062 = vmax.f32 %v8056, %v8060
      %s8063 = scalar_lea.vmem [#allocation3], 510
      %v8064 = vld [vmem:[%s8063] ss:$2 sm:$0xff]
      %s8065 = scalar_lea.vmem [#allocation3], 526
      %v8066 = vld [vmem:[%s8065] ss:$2 sm:$0x3f]
      %s8067 = scalar_lea.vmem [#allocation3], 511
      %v8068 = vld [vmem:[%s8067] ss:$2 sm:$0xff]
      %s8069 = scalar_lea.vmem [#allocation3], 527
      %v8070 = vld [vmem:[%s8069] ss:$2 sm:$0x3f]
      %v8071 = vmax.f32 %v8064, %v8068
      %v8072 = vmax.f32 %v8066, %v8070
      %v8073 = vmax.f32 %v8061, %v8071
      %v8074 = vmax.f32 %v8062, %v8072
      %8075 = vst.msk [vmem:[#allocation4 + $0x91] sm:$0xff] %vm6094, %v8073
      %8076 = vst.msk [vmem:[#allocation4 + $0x99] sm:$0x3f] %vm7883, %v8074
      %s8077 = scalar_lea.vmem [#allocation3], 540
      %v8078 = vld [vmem:[%s8077] ss:$2 sm:$0xff]
      %s8079 = scalar_lea.vmem [#allocation3], 556
      %v8080 = vld [vmem:[%s8079] ss:$2 sm:$0x3f]
      %s8081 = scalar_lea.vmem [#allocation3], 541
      %v8082 = vld [vmem:[%s8081] ss:$2 sm:$0xff]
      %s8083 = scalar_lea.vmem [#allocation3], 557
      %v8084 = vld [vmem:[%s8083] ss:$2 sm:$0x3f]
      %v8085 = vmax.f32 %v8078, %v8082
      %v8086 = vmax.f32 %v8080, %v8084
      %s8087 = scalar_lea.vmem [#allocation3], 570
      %v8088 = vld [vmem:[%s8087] ss:$2 sm:$0xff]
      %s8089 = scalar_lea.vmem [#allocation3], 586
      %v8090 = vld [vmem:[%s8089] ss:$2 sm:$0x3f]
      %s8091 = scalar_lea.vmem [#allocation3], 571
      %v8092 = vld [vmem:[%s8091] ss:$2 sm:$0xff]
      %s8093 = scalar_lea.vmem [#allocation3], 587
      %v8094 = vld [vmem:[%s8093] ss:$2 sm:$0x3f]
      %v8095 = vmax.f32 %v8088, %v8092
      %v8096 = vmax.f32 %v8090, %v8094
      %v8097 = vmax.f32 %v8085, %v8095
      %v8098 = vmax.f32 %v8086, %v8096
      %8099 = vst.msk [vmem:[#allocation4 + $0xa1] sm:$0xff] %vm6094, %v8097
      %8100 = vst.msk [vmem:[#allocation4 + $0xa9] sm:$0x3f] %vm7883, %v8098
      %s8101 = scalar_lea.vmem [#allocation3], 600
      %v8102 = vld [vmem:[%s8101] ss:$2 sm:$0xff]
      %s8103 = scalar_lea.vmem [#allocation3], 616
      %v8104 = vld [vmem:[%s8103] ss:$2 sm:$0x3f]
      %s8105 = scalar_lea.vmem [#allocation3], 601
      %v8106 = vld [vmem:[%s8105] ss:$2 sm:$0xff]
      %s8107 = scalar_lea.vmem [#allocation3], 617
      %v8108 = vld [vmem:[%s8107] ss:$2 sm:$0x3f]
      %v8109 = vmax.f32 %v8102, %v8106
      %v8110 = vmax.f32 %v8104, %v8108
      %s8111 = scalar_lea.vmem [#allocation3], 630
      %v8112 = vld [vmem:[%s8111] ss:$2 sm:$0xff]
      %s8113 = scalar_lea.vmem [#allocation3], 646
      %v8114 = vld [vmem:[%s8113] ss:$2 sm:$0x3f]
      %s8115 = scalar_lea.vmem [#allocation3], 631
      %v8116 = vld [vmem:[%s8115] ss:$2 sm:$0xff]
      %s8117 = scalar_lea.vmem [#allocation3], 647
      %v8118 = vld [vmem:[%s8117] ss:$2 sm:$0x3f]
      %v8119 = vmax.f32 %v8112, %v8116
      %v8120 = vmax.f32 %v8114, %v8118
      %v8121 = vmax.f32 %v8109, %v8119
      %v8122 = vmax.f32 %v8110, %v8120
      %8123 = vst.msk [vmem:[#allocation4 + $0xb1] sm:$0xff] %vm6094, %v8121
      %8124 = vst.msk [vmem:[#allocation4 + $0xb9] sm:$0x3f] %vm7883, %v8122
      %s8125 = scalar_lea.vmem [#allocation3], 660
      %v8126 = vld [vmem:[%s8125] ss:$2 sm:$0xff]
      %s8127 = scalar_lea.vmem [#allocation3], 676
      %v8128 = vld [vmem:[%s8127] ss:$2 sm:$0x3f]
      %s8129 = scalar_lea.vmem [#allocation3], 661
      %v8130 = vld [vmem:[%s8129] ss:$2 sm:$0xff]
      %s8131 = scalar_lea.vmem [#allocation3], 677
      %v8132 = vld [vmem:[%s8131] ss:$2 sm:$0x3f]
      %v8133 = vmax.f32 %v8126, %v8130
      %v8134 = vmax.f32 %v8128, %v8132
      %s8135 = scalar_lea.vmem [#allocation3], 690
      %v8136 = vld [vmem:[%s8135] ss:$2 sm:$0xff]
      %s8137 = scalar_lea.vmem [#allocation3], 706
      %v8138 = vld [vmem:[%s8137] ss:$2 sm:$0x3f]
      %s8139 = scalar_lea.vmem [#allocation3], 691
      %v8140 = vld [vmem:[%s8139] ss:$2 sm:$0xff]
      %s8141 = scalar_lea.vmem [#allocation3], 707
      %v8142 = vld [vmem:[%s8141] ss:$2 sm:$0x3f]
      %v8143 = vmax.f32 %v8136, %v8140
      %v8144 = vmax.f32 %v8138, %v8142
      %v8145 = vmax.f32 %v8133, %v8143
      %v8146 = vmax.f32 %v8134, %v8144
      %8147 = vst.msk [vmem:[#allocation4 + $0xc1] sm:$0xff] %vm6094, %v8145
      %8148 = vst.msk [vmem:[#allocation4 + $0xc9] sm:$0x3f] %vm7883, %v8146
      %s8149 = scalar_lea.vmem [#allocation3], 720
      %v8150 = vld [vmem:[%s8149] ss:$2 sm:$0xff]
      %s8151 = scalar_lea.vmem [#allocation3], 736
      %v8152 = vld [vmem:[%s8151] ss:$2 sm:$0x3f]
      %s8153 = scalar_lea.vmem [#allocation3], 721
      %v8154 = vld [vmem:[%s8153] ss:$2 sm:$0xff]
      %s8155 = scalar_lea.vmem [#allocation3], 737
      %v8156 = vld [vmem:[%s8155] ss:$2 sm:$0x3f]
      %v8157 = vmax.f32 %v8150, %v8154
      %v8158 = vmax.f32 %v8152, %v8156
      %s8159 = scalar_lea.vmem [#allocation3], 750
      %v8160 = vld [vmem:[%s8159] ss:$2 sm:$0xff]
      %s8161 = scalar_lea.vmem [#allocation3], 766
      %v8162 = vld [vmem:[%s8161] ss:$2 sm:$0x3f]
      %s8163 = scalar_lea.vmem [#allocation3], 751
      %v8164 = vld [vmem:[%s8163] ss:$2 sm:$0xff]
      %s8165 = scalar_lea.vmem [#allocation3], 767
      %v8166 = vld [vmem:[%s8165] ss:$2 sm:$0x3f]
      %v8167 = vmax.f32 %v8160, %v8164
      %v8168 = vmax.f32 %v8162, %v8166
      %v8169 = vmax.f32 %v8157, %v8167
      %v8170 = vmax.f32 %v8158, %v8168
      %8171 = vst.msk [vmem:[#allocation4 + $0xd1] sm:$0xff] %vm6094, %v8169
      %8172 = vst.msk [vmem:[#allocation4 + $0xd9] sm:$0x3f] %vm7883, %v8170
      %s8173 = scalar_lea.vmem [#allocation3], 780
      %v8174 = vld [vmem:[%s8173] ss:$2 sm:$0xff]
      %s8175 = scalar_lea.vmem [#allocation3], 796
      %v8176 = vld [vmem:[%s8175] ss:$2 sm:$0x3f]
      %s8177 = scalar_lea.vmem [#allocation3], 781
      %v8178 = vld [vmem:[%s8177] ss:$2 sm:$0xff]
      %s8179 = scalar_lea.vmem [#allocation3], 797
      %v8180 = vld [vmem:[%s8179] ss:$2 sm:$0x3f]
      %v8181 = vmax.f32 %v8174, %v8178
      %v8182 = vmax.f32 %v8176, %v8180
      %s8183 = scalar_lea.vmem [#allocation3], 810
      %v8184 = vld [vmem:[%s8183] ss:$2 sm:$0xff]
      %s8185 = scalar_lea.vmem [#allocation3], 826
      %v8186 = vld [vmem:[%s8185] ss:$2 sm:$0x3f]
      %s8187 = scalar_lea.vmem [#allocation3], 811
      %v8188 = vld [vmem:[%s8187] ss:$2 sm:$0xff]
      %s8189 = scalar_lea.vmem [#allocation3], 827
      %v8190 = vld [vmem:[%s8189] ss:$2 sm:$0x3f]
      %v8191 = vmax.f32 %v8184, %v8188
      %v8192 = vmax.f32 %v8186, %v8190
      %v8193 = vmax.f32 %v8181, %v8191
      %v8194 = vmax.f32 %v8182, %v8192
      %8195 = vst.msk [vmem:[#allocation4 + $0xe1] sm:$0xff] %vm6094, %v8193
      %8196 = vst.msk [vmem:[#allocation4 + $0xe9] sm:$0x3f] %vm7883, %v8194
      %v8197 = vld [vmem:[#allocation4] sm:$0xff]
      %v8198 = vld [vmem:[#allocation4 + $0x8] sm:$0xff]
      %v8199 = vld [vmem:[#allocation4 + $0x10] sm:$0xff]
      %v8200 = vld [vmem:[#allocation4 + $0x18] sm:$0xff]
      %v8201 = vld [vmem:[#allocation4 + $0x20] sm:$0xff]
      %v8202 = vld [vmem:[#allocation4 + $0x28] sm:$0xff]
      %v8203 = vld [vmem:[#allocation4 + $0x30] sm:$0xff]
      %v8204 = vld [vmem:[#allocation4 + $0x38] sm:$0xff]
      %v8205 = vld [vmem:[#allocation4 + $0x40] sm:$0xff]
      %v8206 = vld [vmem:[#allocation4 + $0x48] sm:$0xff]
      %v8207 = vld [vmem:[#allocation4 + $0x50] sm:$0xff]
      %v8208 = vld [vmem:[#allocation4 + $0x58] sm:$0xff]
      %v8209 = vld [vmem:[#allocation4 + $0x60] sm:$0xff]
      %v8210 = vld [vmem:[#allocation4 + $0x68] sm:$0xff]
      %v8211 = vld [vmem:[#allocation4 + $0x70] sm:$0xff]
      %v8212 = vld [vmem:[#allocation4 + $0x78] sm:$0xff]
      %v8213 = vld [vmem:[#allocation4 + $0x80] sm:$0xff]
      %v8214 = vld [vmem:[#allocation4 + $0x88] sm:$0xff]
      %v8215 = vld [vmem:[#allocation4 + $0x90] sm:$0xff]
      %v8216 = vld [vmem:[#allocation4 + $0x98] sm:$0xff]
      %v8217 = vld [vmem:[#allocation4 + $0xa0] sm:$0xff]
      %v8218 = vld [vmem:[#allocation4 + $0xa8] sm:$0xff]
      %v8219 = vld [vmem:[#allocation4 + $0xb0] sm:$0xff]
      %v8220 = vld [vmem:[#allocation4 + $0xb8] sm:$0xff]
      %v8221 = vld [vmem:[#allocation4 + $0xc0] sm:$0xff]
      %v8222 = vld [vmem:[#allocation4 + $0xc8] sm:$0xff]
      %v8223 = vld [vmem:[#allocation4 + $0xd0] sm:$0xff]
      %v8224 = vld [vmem:[#allocation4 + $0xd8] sm:$0xff]
      %v8225 = vld [vmem:[#allocation4 + $0x1] sm:$0xff]
      %v8226 = vld [vmem:[#allocation4 + $0x9] sm:$0xff]
      %v8227 = vld [vmem:[#allocation4 + $0x11] sm:$0xff]
      %v8228 = vld [vmem:[#allocation4 + $0x19] sm:$0xff]
      %v8229 = vld [vmem:[#allocation4 + $0x21] sm:$0xff]
      %v8230 = vld [vmem:[#allocation4 + $0x29] sm:$0xff]
      %v8231 = vld [vmem:[#allocation4 + $0x31] sm:$0xff]
      %v8232 = vld [vmem:[#allocation4 + $0x39] sm:$0xff]
      %v8233 = vld [vmem:[#allocation4 + $0x41] sm:$0xff]
      %v8234 = vld [vmem:[#allocation4 + $0x49] sm:$0xff]
      %v8235 = vld [vmem:[#allocation4 + $0x51] sm:$0xff]
      %v8236 = vld [vmem:[#allocation4 + $0x59] sm:$0xff]
      %v8237 = vld [vmem:[#allocation4 + $0x61] sm:$0xff]
      %v8238 = vld [vmem:[#allocation4 + $0x69] sm:$0xff]
      %v8239 = vld [vmem:[#allocation4 + $0x71] sm:$0xff]
      %v8240 = vld [vmem:[#allocation4 + $0x79] sm:$0xff]
      %v8241 = vld [vmem:[#allocation4 + $0x81] sm:$0xff]
      %v8242 = vld [vmem:[#allocation4 + $0x89] sm:$0xff]
      %v8243 = vld [vmem:[#allocation4 + $0x91] sm:$0xff]
      %v8244 = vld [vmem:[#allocation4 + $0x99] sm:$0xff]
      %v8245 = vld [vmem:[#allocation4 + $0xa1] sm:$0xff]
      %v8246 = vld [vmem:[#allocation4 + $0xa9] sm:$0xff]
      %v8247 = vld [vmem:[#allocation4 + $0xb1] sm:$0xff]
      %v8248 = vld [vmem:[#allocation4 + $0xb9] sm:$0xff]
      %v8249 = vld [vmem:[#allocation4 + $0xc1] sm:$0xff]
      %v8250 = vld [vmem:[#allocation4 + $0xc9] sm:$0xff]
      %v8251 = vld [vmem:[#allocation4 + $0xd1] sm:$0xff]
      %v8252 = vld [vmem:[#allocation4 + $0xd9] sm:$0xff]
      %v8253 = vld [vmem:[#allocation4 + $0x2] sm:$0xff]
      %v8254 = vld [vmem:[#allocation4 + $0xa] sm:$0xff]
      %v8255 = vld [vmem:[#allocation4 + $0x12] sm:$0xff]
      %v8256 = vld [vmem:[#allocation4 + $0x1a] sm:$0xff]
      %v8257 = vld [vmem:[#allocation4 + $0x22] sm:$0xff]
      %v8258 = vld [vmem:[#allocation4 + $0x2a] sm:$0xff]
      %v8259 = vld [vmem:[#allocation4 + $0x32] sm:$0xff]
      %v8260 = vld [vmem:[#allocation4 + $0x3a] sm:$0xff]
      %v8261 = vld [vmem:[#allocation4 + $0x42] sm:$0xff]
      %v8262 = vld [vmem:[#allocation4 + $0x4a] sm:$0xff]
      %v8263 = vld [vmem:[#allocation4 + $0x52] sm:$0xff]
      %v8264 = vld [vmem:[#allocation4 + $0x5a] sm:$0xff]
      %v8265 = vld [vmem:[#allocation4 + $0x62] sm:$0xff]
      %v8266 = vld [vmem:[#allocation4 + $0x6a] sm:$0xff]
      %v8267 = vld [vmem:[#allocation4 + $0x72] sm:$0xff]
      %v8268 = vld [vmem:[#allocation4 + $0x7a] sm:$0xff]
      %v8269 = vld [vmem:[#allocation4 + $0x82] sm:$0xff]
      %v8270 = vld [vmem:[#allocation4 + $0x8a] sm:$0xff]
      %v8271 = vld [vmem:[#allocation4 + $0x92] sm:$0xff]
      %v8272 = vld [vmem:[#allocation4 + $0x9a] sm:$0xff]
      %v8273 = vld [vmem:[#allocation4 + $0xa2] sm:$0xff]
      %v8274 = vld [vmem:[#allocation4 + $0xaa] sm:$0xff]
      %v8275 = vld [vmem:[#allocation4 + $0xb2] sm:$0xff]
      %v8276 = vld [vmem:[#allocation4 + $0xba] sm:$0xff]
      %v8277 = vld [vmem:[#allocation4 + $0xc2] sm:$0xff]
      %v8278 = vld [vmem:[#allocation4 + $0xca] sm:$0xff]
      %v8279 = vld [vmem:[#allocation4 + $0xd2] sm:$0xff]
      %v8280 = vld [vmem:[#allocation4 + $0xda] sm:$0xff]
      %v8281 = vld [vmem:[#allocation4 + $0xe0] sm:$0xff]
      %v8282 = vld [vmem:[#allocation4 + $0xe8] sm:$0xff]
      %v8283 = vld [vmem:[#allocation4 + $0xe1] sm:$0xff]
      %v8284 = vld [vmem:[#allocation4 + $0xe9] sm:$0xff]
      %v8285 = vld [vmem:[#allocation4 + $0xe2] sm:$0xff]
      %v8286 = vld [vmem:[#allocation4 + $0xea] sm:$0xff]
      %v8287 = vld [vmem:[#allocation4 + $0xf0] sm:$0xff]
      %v8288 = vld [vmem:[#allocation4 + $0xf8] sm:$0xff]
      %v8289 = vld [vmem:[#allocation4 + $0xf1] sm:$0xff]
      %v8290 = vld [vmem:[#allocation4 + $0xf9] sm:$0xff]
      %v8291 = vld [vmem:[#allocation4 + $0xf2] sm:$0xff]
      %v8292 = vld [vmem:[#allocation4 + $0xfa] sm:$0xff]
      %8321 = vrot.lane.b32.xlu0 %v8225, 32
      %v8322 = vpop.permute.xlu0 %8321
      %8323 = vrot.lane.b32.xlu0 %v8226, 32
      %v8324 = vpop.permute.xlu0 %8323
      %8325 = vrot.lane.b32.xlu0 %v8227, 32
      %v8326 = vpop.permute.xlu0 %8325
      %8327 = vrot.lane.b32.xlu0 %v8228, 32
      %v8328 = vpop.permute.xlu0 %8327
      %8329 = vrot.lane.b32.xlu0 %v8229, 32
      %v8330 = vpop.permute.xlu0 %8329
      %8331 = vrot.lane.b32.xlu0 %v8230, 32
      %v8332 = vpop.permute.xlu0 %8331
      %8333 = vrot.lane.b32.xlu0 %v8231, 32
      %v8334 = vpop.permute.xlu0 %8333
      %8335 = vrot.lane.b32.xlu0 %v8232, 32
      %v8336 = vpop.permute.xlu0 %8335
      %8337 = vrot.lane.b32.xlu0 %v8233, 32
      %v8338 = vpop.permute.xlu0 %8337
      %8339 = vrot.lane.b32.xlu0 %v8234, 32
      %v8340 = vpop.permute.xlu0 %8339
      %8341 = vrot.lane.b32.xlu0 %v8235, 32
      %v8342 = vpop.permute.xlu0 %8341
      %8343 = vrot.lane.b32.xlu0 %v8236, 32
      %v8344 = vpop.permute.xlu0 %8343
      %8345 = vrot.lane.b32.xlu0 %v8237, 32
      %v8346 = vpop.permute.xlu0 %8345
      %8347 = vrot.lane.b32.xlu0 %v8238, 32
      %v8348 = vpop.permute.xlu0 %8347
      %8349 = vrot.lane.b32.xlu0 %v8239, 32
      %v8350 = vpop.permute.xlu0 %8349
      %8351 = vrot.lane.b32.xlu0 %v8240, 32
      %v8352 = vpop.permute.xlu0 %8351
      %8353 = vrot.lane.b32.xlu0 %v8241, 32
      %v8354 = vpop.permute.xlu0 %8353
      %8355 = vrot.lane.b32.xlu0 %v8242, 32
      %v8356 = vpop.permute.xlu0 %8355
      %8357 = vrot.lane.b32.xlu0 %v8243, 32
      %v8358 = vpop.permute.xlu0 %8357
      %8359 = vrot.lane.b32.xlu0 %v8244, 32
      %v8360 = vpop.permute.xlu0 %8359
      %8361 = vrot.lane.b32.xlu0 %v8245, 32
      %v8362 = vpop.permute.xlu0 %8361
      %8363 = vrot.lane.b32.xlu0 %v8246, 32
      %v8364 = vpop.permute.xlu0 %8363
      %8365 = vrot.lane.b32.xlu0 %v8247, 32
      %v8366 = vpop.permute.xlu0 %8365
      %8367 = vrot.lane.b32.xlu0 %v8248, 32
      %v8368 = vpop.permute.xlu0 %8367
      %8369 = vrot.lane.b32.xlu0 %v8249, 32
      %v8370 = vpop.permute.xlu0 %8369
      %8371 = vrot.lane.b32.xlu0 %v8250, 32
      %v8372 = vpop.permute.xlu0 %8371
      %8373 = vrot.lane.b32.xlu0 %v8251, 32
      %v8374 = vpop.permute.xlu0 %8373
      %8375 = vrot.lane.b32.xlu0 %v8252, 32
      %v8376 = vpop.permute.xlu0 %8375
      %8433 = vrot.lane.b32.xlu0 %v8253, 64
      %v8434 = vpop.permute.xlu0 %8433
      %8435 = vrot.lane.b32.xlu0 %v8254, 64
      %v8436 = vpop.permute.xlu0 %8435
      %8437 = vrot.lane.b32.xlu0 %v8255, 64
      %v8438 = vpop.permute.xlu0 %8437
      %8439 = vrot.lane.b32.xlu0 %v8256, 64
      %v8440 = vpop.permute.xlu0 %8439
      %8441 = vrot.lane.b32.xlu0 %v8257, 64
      %v8442 = vpop.permute.xlu0 %8441
      %8443 = vrot.lane.b32.xlu0 %v8258, 64
      %v8444 = vpop.permute.xlu0 %8443
      %8445 = vrot.lane.b32.xlu0 %v8259, 64
      %v8446 = vpop.permute.xlu0 %8445
      %8447 = vrot.lane.b32.xlu0 %v8260, 64
      %v8448 = vpop.permute.xlu0 %8447
      %8449 = vrot.lane.b32.xlu0 %v8261, 64
      %v8450 = vpop.permute.xlu0 %8449
      %8451 = vrot.lane.b32.xlu0 %v8262, 64
      %v8452 = vpop.permute.xlu0 %8451
      %8453 = vrot.lane.b32.xlu0 %v8263, 64
      %v8454 = vpop.permute.xlu0 %8453
      %8455 = vrot.lane.b32.xlu0 %v8264, 64
      %v8456 = vpop.permute.xlu0 %8455
      %8457 = vrot.lane.b32.xlu0 %v8265, 64
      %v8458 = vpop.permute.xlu0 %8457
      %8459 = vrot.lane.b32.xlu0 %v8266, 64
      %v8460 = vpop.permute.xlu0 %8459
      %8461 = vrot.lane.b32.xlu0 %v8267, 64
      %v8462 = vpop.permute.xlu0 %8461
      %8463 = vrot.lane.b32.xlu0 %v8268, 64
      %v8464 = vpop.permute.xlu0 %8463
      %8465 = vrot.lane.b32.xlu0 %v8269, 64
      %v8466 = vpop.permute.xlu0 %8465
      %8467 = vrot.lane.b32.xlu0 %v8270, 64
      %v8468 = vpop.permute.xlu0 %8467
      %8469 = vrot.lane.b32.xlu0 %v8271, 64
      %v8470 = vpop.permute.xlu0 %8469
      %8471 = vrot.lane.b32.xlu0 %v8272, 64
      %v8472 = vpop.permute.xlu0 %8471
      %8473 = vrot.lane.b32.xlu0 %v8273, 64
      %v8474 = vpop.permute.xlu0 %8473
      %8475 = vrot.lane.b32.xlu0 %v8274, 64
      %v8476 = vpop.permute.xlu0 %8475
      %8477 = vrot.lane.b32.xlu0 %v8275, 64
      %v8478 = vpop.permute.xlu0 %8477
      %8479 = vrot.lane.b32.xlu0 %v8276, 64
      %v8480 = vpop.permute.xlu0 %8479
      %8481 = vrot.lane.b32.xlu0 %v8277, 64
      %v8482 = vpop.permute.xlu0 %8481
      %8483 = vrot.lane.b32.xlu0 %v8278, 64
      %v8484 = vpop.permute.xlu0 %8483
      %8485 = vrot.lane.b32.xlu0 %v8279, 64
      %v8486 = vpop.permute.xlu0 %8485
      %8487 = vrot.lane.b32.xlu0 %v8280, 64
      %v8488 = vpop.permute.xlu0 %8487
      %8545 = vrot.lane.b32.xlu0 %v8199, 96
      %v8546 = vpop.permute.xlu0 %8545
      %8547 = vrot.lane.b32.xlu0 %v8200, 96
      %v8548 = vpop.permute.xlu0 %8547
      %8549 = vrot.lane.b32.xlu0 %v8201, 96
      %v8550 = vpop.permute.xlu0 %8549
      %8551 = vrot.lane.b32.xlu0 %v8202, 96
      %v8552 = vpop.permute.xlu0 %8551
      %8553 = vrot.lane.b32.xlu0 %v8203, 96
      %v8554 = vpop.permute.xlu0 %8553
      %8555 = vrot.lane.b32.xlu0 %v8204, 96
      %v8556 = vpop.permute.xlu0 %8555
      %8557 = vrot.lane.b32.xlu0 %v8205, 96
      %v8558 = vpop.permute.xlu0 %8557
      %8559 = vrot.lane.b32.xlu0 %v8206, 96
      %v8560 = vpop.permute.xlu0 %8559
      %8561 = vrot.lane.b32.xlu0 %v8207, 96
      %v8562 = vpop.permute.xlu0 %8561
      %8563 = vrot.lane.b32.xlu0 %v8208, 96
      %v8564 = vpop.permute.xlu0 %8563
      %8565 = vrot.lane.b32.xlu0 %v8209, 96
      %v8566 = vpop.permute.xlu0 %8565
      %8567 = vrot.lane.b32.xlu0 %v8210, 96
      %v8568 = vpop.permute.xlu0 %8567
      %8569 = vrot.lane.b32.xlu0 %v8211, 96
      %v8570 = vpop.permute.xlu0 %8569
      %8571 = vrot.lane.b32.xlu0 %v8212, 96
      %v8572 = vpop.permute.xlu0 %8571
      %8573 = vrot.lane.b32.xlu0 %v8213, 96
      %v8574 = vpop.permute.xlu0 %8573
      %8575 = vrot.lane.b32.xlu0 %v8214, 96
      %v8576 = vpop.permute.xlu0 %8575
      %8577 = vrot.lane.b32.xlu0 %v8215, 96
      %v8578 = vpop.permute.xlu0 %8577
      %8579 = vrot.lane.b32.xlu0 %v8216, 96
      %v8580 = vpop.permute.xlu0 %8579
      %8581 = vrot.lane.b32.xlu0 %v8217, 96
      %v8582 = vpop.permute.xlu0 %8581
      %8583 = vrot.lane.b32.xlu0 %v8218, 96
      %v8584 = vpop.permute.xlu0 %8583
      %8585 = vrot.lane.b32.xlu0 %v8219, 96
      %v8586 = vpop.permute.xlu0 %8585
      %8587 = vrot.lane.b32.xlu0 %v8220, 96
      %v8588 = vpop.permute.xlu0 %8587
      %8589 = vrot.lane.b32.xlu0 %v8221, 96
      %v8590 = vpop.permute.xlu0 %8589
      %8591 = vrot.lane.b32.xlu0 %v8222, 96
      %v8592 = vpop.permute.xlu0 %8591
      %8593 = vrot.lane.b32.xlu0 %v8223, 96
      %v8594 = vpop.permute.xlu0 %8593
      %8595 = vrot.lane.b32.xlu0 %v8224, 96
      %v8596 = vpop.permute.xlu0 %8595
      %8597 = vrot.lane.b32.xlu0 %v8281, 96
      %v8598 = vpop.permute.xlu0 %8597
      %8599 = vrot.lane.b32.xlu0 %v8282, 96
      %v8600 = vpop.permute.xlu0 %8599
      %8631 = vrot.lane.b32.xlu0 %v8255, 32
      %v8632 = vpop.permute.xlu0 %8631
      %8633 = vrot.lane.b32.xlu0 %v8256, 32
      %v8634 = vpop.permute.xlu0 %8633
      %8635 = vrot.lane.b32.xlu0 %v8257, 32
      %v8636 = vpop.permute.xlu0 %8635
      %8637 = vrot.lane.b32.xlu0 %v8258, 32
      %v8638 = vpop.permute.xlu0 %8637
      %8639 = vrot.lane.b32.xlu0 %v8259, 32
      %v8640 = vpop.permute.xlu0 %8639
      %8641 = vrot.lane.b32.xlu0 %v8260, 32
      %v8642 = vpop.permute.xlu0 %8641
      %8643 = vrot.lane.b32.xlu0 %v8261, 32
      %v8644 = vpop.permute.xlu0 %8643
      %8645 = vrot.lane.b32.xlu0 %v8262, 32
      %v8646 = vpop.permute.xlu0 %8645
      %8647 = vrot.lane.b32.xlu0 %v8263, 32
      %v8648 = vpop.permute.xlu0 %8647
      %8649 = vrot.lane.b32.xlu0 %v8264, 32
      %v8650 = vpop.permute.xlu0 %8649
      %8651 = vrot.lane.b32.xlu0 %v8265, 32
      %v8652 = vpop.permute.xlu0 %8651
      %8653 = vrot.lane.b32.xlu0 %v8266, 32
      %v8654 = vpop.permute.xlu0 %8653
      %8655 = vrot.lane.b32.xlu0 %v8267, 32
      %v8656 = vpop.permute.xlu0 %8655
      %8657 = vrot.lane.b32.xlu0 %v8268, 32
      %v8658 = vpop.permute.xlu0 %8657
      %8659 = vrot.lane.b32.xlu0 %v8269, 32
      %v8660 = vpop.permute.xlu0 %8659
      %8661 = vrot.lane.b32.xlu0 %v8270, 32
      %v8662 = vpop.permute.xlu0 %8661
      %8663 = vrot.lane.b32.xlu0 %v8271, 32
      %v8664 = vpop.permute.xlu0 %8663
      %8665 = vrot.lane.b32.xlu0 %v8272, 32
      %v8666 = vpop.permute.xlu0 %8665
      %8667 = vrot.lane.b32.xlu0 %v8273, 32
      %v8668 = vpop.permute.xlu0 %8667
      %8669 = vrot.lane.b32.xlu0 %v8274, 32
      %v8670 = vpop.permute.xlu0 %8669
      %8671 = vrot.lane.b32.xlu0 %v8275, 32
      %v8672 = vpop.permute.xlu0 %8671
      %8673 = vrot.lane.b32.xlu0 %v8276, 32
      %v8674 = vpop.permute.xlu0 %8673
      %8675 = vrot.lane.b32.xlu0 %v8277, 32
      %v8676 = vpop.permute.xlu0 %8675
      %8677 = vrot.lane.b32.xlu0 %v8278, 32
      %v8678 = vpop.permute.xlu0 %8677
      %8679 = vrot.lane.b32.xlu0 %v8279, 32
      %v8680 = vpop.permute.xlu0 %8679
      %8681 = vrot.lane.b32.xlu0 %v8280, 32
      %v8682 = vpop.permute.xlu0 %8681
      %8683 = vrot.lane.b32.xlu0 %v8285, 32
      %v8684 = vpop.permute.xlu0 %8683
      %8685 = vrot.lane.b32.xlu0 %v8286, 32
      %v8686 = vpop.permute.xlu0 %8685
      %8717 = vrot.lane.b32.xlu0 %v8201, 64
      %v8718 = vpop.permute.xlu0 %8717
      %8719 = vrot.lane.b32.xlu0 %v8202, 64
      %v8720 = vpop.permute.xlu0 %8719
      %8721 = vrot.lane.b32.xlu0 %v8203, 64
      %v8722 = vpop.permute.xlu0 %8721
      %8723 = vrot.lane.b32.xlu0 %v8204, 64
      %v8724 = vpop.permute.xlu0 %8723
      %8725 = vrot.lane.b32.xlu0 %v8205, 64
      %v8726 = vpop.permute.xlu0 %8725
      %8727 = vrot.lane.b32.xlu0 %v8206, 64
      %v8728 = vpop.permute.xlu0 %8727
      %8729 = vrot.lane.b32.xlu0 %v8207, 64
      %v8730 = vpop.permute.xlu0 %8729
      %8731 = vrot.lane.b32.xlu0 %v8208, 64
      %v8732 = vpop.permute.xlu0 %8731
      %8733 = vrot.lane.b32.xlu0 %v8209, 64
      %v8734 = vpop.permute.xlu0 %8733
      %8735 = vrot.lane.b32.xlu0 %v8210, 64
      %v8736 = vpop.permute.xlu0 %8735
      %8737 = vrot.lane.b32.xlu0 %v8211, 64
      %v8738 = vpop.permute.xlu0 %8737
      %8739 = vrot.lane.b32.xlu0 %v8212, 64
      %v8740 = vpop.permute.xlu0 %8739
      %8741 = vrot.lane.b32.xlu0 %v8213, 64
      %v8742 = vpop.permute.xlu0 %8741
      %8743 = vrot.lane.b32.xlu0 %v8214, 64
      %v8744 = vpop.permute.xlu0 %8743
      %8745 = vrot.lane.b32.xlu0 %v8215, 64
      %v8746 = vpop.permute.xlu0 %8745
      %8747 = vrot.lane.b32.xlu0 %v8216, 64
      %v8748 = vpop.permute.xlu0 %8747
      %8749 = vrot.lane.b32.xlu0 %v8217, 64
      %v8750 = vpop.permute.xlu0 %8749
      %8751 = vrot.lane.b32.xlu0 %v8218, 64
      %v8752 = vpop.permute.xlu0 %8751
      %8753 = vrot.lane.b32.xlu0 %v8219, 64
      %v8754 = vpop.permute.xlu0 %8753
      %8755 = vrot.lane.b32.xlu0 %v8220, 64
      %v8756 = vpop.permute.xlu0 %8755
      %8757 = vrot.lane.b32.xlu0 %v8221, 64
      %v8758 = vpop.permute.xlu0 %8757
      %8759 = vrot.lane.b32.xlu0 %v8222, 64
      %v8760 = vpop.permute.xlu0 %8759
      %8761 = vrot.lane.b32.xlu0 %v8223, 64
      %v8762 = vpop.permute.xlu0 %8761
      %8763 = vrot.lane.b32.xlu0 %v8224, 64
      %v8764 = vpop.permute.xlu0 %8763
      %8765 = vrot.lane.b32.xlu0 %v8281, 64
      %v8766 = vpop.permute.xlu0 %8765
      %8767 = vrot.lane.b32.xlu0 %v8282, 64
      %v8768 = vpop.permute.xlu0 %8767
      %8769 = vrot.lane.b32.xlu0 %v8287, 64
      %v8770 = vpop.permute.xlu0 %8769
      %8771 = vrot.lane.b32.xlu0 %v8288, 64
      %v8772 = vpop.permute.xlu0 %8771
      %8805 = vrot.lane.b32.xlu0 %v8229, 96
      %v8806 = vpop.permute.xlu0 %8805
      %8807 = vrot.lane.b32.xlu0 %v8230, 96
      %v8808 = vpop.permute.xlu0 %8807
      %8809 = vrot.lane.b32.xlu0 %v8231, 96
      %v8810 = vpop.permute.xlu0 %8809
      %8811 = vrot.lane.b32.xlu0 %v8232, 96
      %v8812 = vpop.permute.xlu0 %8811
      %8813 = vrot.lane.b32.xlu0 %v8233, 96
      %v8814 = vpop.permute.xlu0 %8813
      %8815 = vrot.lane.b32.xlu0 %v8234, 96
      %v8816 = vpop.permute.xlu0 %8815
      %8817 = vrot.lane.b32.xlu0 %v8235, 96
      %v8818 = vpop.permute.xlu0 %8817
      %8819 = vrot.lane.b32.xlu0 %v8236, 96
      %v8820 = vpop.permute.xlu0 %8819
      %8821 = vrot.lane.b32.xlu0 %v8237, 96
      %v8822 = vpop.permute.xlu0 %8821
      %8823 = vrot.lane.b32.xlu0 %v8238, 96
      %v8824 = vpop.permute.xlu0 %8823
      %8825 = vrot.lane.b32.xlu0 %v8239, 96
      %v8826 = vpop.permute.xlu0 %8825
      %8827 = vrot.lane.b32.xlu0 %v8240, 96
      %v8828 = vpop.permute.xlu0 %8827
      %8829 = vrot.lane.b32.xlu0 %v8241, 96
      %v8830 = vpop.permute.xlu0 %8829
      %8831 = vrot.lane.b32.xlu0 %v8242, 96
      %v8832 = vpop.permute.xlu0 %8831
      %8833 = vrot.lane.b32.xlu0 %v8243, 96
      %v8834 = vpop.permute.xlu0 %8833
      %8835 = vrot.lane.b32.xlu0 %v8244, 96
      %v8836 = vpop.permute.xlu0 %8835
      %8837 = vrot.lane.b32.xlu0 %v8245, 96
      %v8838 = vpop.permute.xlu0 %8837
      %8839 = vrot.lane.b32.xlu0 %v8246, 96
      %v8840 = vpop.permute.xlu0 %8839
      %8841 = vrot.lane.b32.xlu0 %v8247, 96
      %v8842 = vpop.permute.xlu0 %8841
      %8843 = vrot.lane.b32.xlu0 %v8248, 96
      %v8844 = vpop.permute.xlu0 %8843
      %8845 = vrot.lane.b32.xlu0 %v8249, 96
      %v8846 = vpop.permute.xlu0 %8845
      %8847 = vrot.lane.b32.xlu0 %v8250, 96
      %v8848 = vpop.permute.xlu0 %8847
      %8849 = vrot.lane.b32.xlu0 %v8251, 96
      %v8850 = vpop.permute.xlu0 %8849
      %8851 = vrot.lane.b32.xlu0 %v8252, 96
      %v8852 = vpop.permute.xlu0 %8851
      %8853 = vrot.lane.b32.xlu0 %v8283, 96
      %v8854 = vpop.permute.xlu0 %8853
      %8855 = vrot.lane.b32.xlu0 %v8284, 96
      %v8856 = vpop.permute.xlu0 %8855
      %8857 = vrot.lane.b32.xlu0 %v8289, 96
      %v8858 = vpop.permute.xlu0 %8857
      %8859 = vrot.lane.b32.xlu0 %v8290, 96
      %v8860 = vpop.permute.xlu0 %8859
      %v8889 = vsel %vm6094, %v8197, %v8322
      %v8890 = vsel %vm6094, %v8198, %v8324
      %v8891 = vsel %vm6094, %v8199, %v8326
      %v8892 = vsel %vm6094, %v8200, %v8328
      %v8893 = vsel %vm6094, %v8201, %v8330
      %v8894 = vsel %vm6094, %v8202, %v8332
      %v8895 = vsel %vm6094, %v8203, %v8334
      %v8896 = vsel %vm6094, %v8204, %v8336
      %v8897 = vsel %vm6094, %v8205, %v8338
      %v8898 = vsel %vm6094, %v8206, %v8340
      %v8899 = vsel %vm6094, %v8207, %v8342
      %v8900 = vsel %vm6094, %v8208, %v8344
      %v8901 = vsel %vm6094, %v8209, %v8346
      %v8902 = vsel %vm6094, %v8210, %v8348
      %v8903 = vsel %vm6094, %v8211, %v8350
      %v8904 = vsel %vm6094, %v8212, %v8352
      %v8905 = vsel %vm6094, %v8213, %v8354
      %v8906 = vsel %vm6094, %v8214, %v8356
      %v8907 = vsel %vm6094, %v8215, %v8358
      %v8908 = vsel %vm6094, %v8216, %v8360
      %v8909 = vsel %vm6094, %v8217, %v8362
      %v8910 = vsel %vm6094, %v8218, %v8364
      %v8911 = vsel %vm6094, %v8219, %v8366
      %v8912 = vsel %vm6094, %v8220, %v8368
      %v8913 = vsel %vm6094, %v8221, %v8370
      %v8914 = vsel %vm6094, %v8222, %v8372
      %v8915 = vsel %vm6094, %v8223, %v8374
      %v8916 = vsel %vm6094, %v8224, %v8376
      %v8917 = vsel %vm6306, %v8889, %v8434
      %v8918 = vsel %vm6306, %v8890, %v8436
      %v8919 = vsel %vm6306, %v8891, %v8438
      %v8920 = vsel %vm6306, %v8892, %v8440
      %v8921 = vsel %vm6306, %v8893, %v8442
      %v8922 = vsel %vm6306, %v8894, %v8444
      %v8923 = vsel %vm6306, %v8895, %v8446
      %v8924 = vsel %vm6306, %v8896, %v8448
      %v8925 = vsel %vm6306, %v8897, %v8450
      %v8926 = vsel %vm6306, %v8898, %v8452
      %v8927 = vsel %vm6306, %v8899, %v8454
      %v8928 = vsel %vm6306, %v8900, %v8456
      %v8929 = vsel %vm6306, %v8901, %v8458
      %v8930 = vsel %vm6306, %v8902, %v8460
      %v8931 = vsel %vm6306, %v8903, %v8462
      %v8932 = vsel %vm6306, %v8904, %v8464
      %v8933 = vsel %vm6306, %v8905, %v8466
      %v8934 = vsel %vm6306, %v8906, %v8468
      %v8935 = vsel %vm6306, %v8907, %v8470
      %v8936 = vsel %vm6306, %v8908, %v8472
      %v8937 = vsel %vm6306, %v8909, %v8474
      %v8938 = vsel %vm6306, %v8910, %v8476
      %v8939 = vsel %vm6306, %v8911, %v8478
      %v8940 = vsel %vm6306, %v8912, %v8480
      %v8941 = vsel %vm6306, %v8913, %v8482
      %v8942 = vsel %vm6306, %v8914, %v8484
      %v8943 = vsel %vm6306, %v8915, %v8486
      %v8944 = vsel %vm6306, %v8916, %v8488
      %v8945 = vsel %vm6518, %v8917, %v8546
      %v8946 = vsel %vm6518, %v8918, %v8548
      %v8947 = vsel %vm6518, %v8919, %v8550
      %v8948 = vsel %vm6518, %v8920, %v8552
      %v8949 = vsel %vm6518, %v8921, %v8554
      %v8950 = vsel %vm6518, %v8922, %v8556
      %v8951 = vsel %vm6518, %v8923, %v8558
      %v8952 = vsel %vm6518, %v8924, %v8560
      %v8953 = vsel %vm6518, %v8925, %v8562
      %v8954 = vsel %vm6518, %v8926, %v8564
      %v8955 = vsel %vm6518, %v8927, %v8566
      %v8956 = vsel %vm6518, %v8928, %v8568
      %v8957 = vsel %vm6518, %v8929, %v8570
      %v8958 = vsel %vm6518, %v8930, %v8572
      %v8959 = vsel %vm6518, %v8931, %v8574
      %v8960 = vsel %vm6518, %v8932, %v8576
      %v8961 = vsel %vm6518, %v8933, %v8578
      %v8962 = vsel %vm6518, %v8934, %v8580
      %v8963 = vsel %vm6518, %v8935, %v8582
      %v8964 = vsel %vm6518, %v8936, %v8584
      %v8965 = vsel %vm6518, %v8937, %v8586
      %v8966 = vsel %vm6518, %v8938, %v8588
      %v8967 = vsel %vm6518, %v8939, %v8590
      %v8968 = vsel %vm6518, %v8940, %v8592
      %v8969 = vsel %vm6518, %v8941, %v8594
      %v8970 = vsel %vm6518, %v8942, %v8596
      %v8971 = vsel %vm6518, %v8943, %v8598
      %v8972 = vsel %vm6518, %v8944, %v8600
      %v8973 = vsel %vm6094, %v8227, %v8632
      %v8974 = vsel %vm6094, %v8228, %v8634
      %v8975 = vsel %vm6094, %v8229, %v8636
      %v8976 = vsel %vm6094, %v8230, %v8638
      %v8977 = vsel %vm6094, %v8231, %v8640
      %v8978 = vsel %vm6094, %v8232, %v8642
      %v8979 = vsel %vm6094, %v8233, %v8644
      %v8980 = vsel %vm6094, %v8234, %v8646
      %v8981 = vsel %vm6094, %v8235, %v8648
      %v8982 = vsel %vm6094, %v8236, %v8650
      %v8983 = vsel %vm6094, %v8237, %v8652
      %v8984 = vsel %vm6094, %v8238, %v8654
      %v8985 = vsel %vm6094, %v8239, %v8656
      %v8986 = vsel %vm6094, %v8240, %v8658
      %v8987 = vsel %vm6094, %v8241, %v8660
      %v8988 = vsel %vm6094, %v8242, %v8662
      %v8989 = vsel %vm6094, %v8243, %v8664
      %v8990 = vsel %vm6094, %v8244, %v8666
      %v8991 = vsel %vm6094, %v8245, %v8668
      %v8992 = vsel %vm6094, %v8246, %v8670
      %v8993 = vsel %vm6094, %v8247, %v8672
      %v8994 = vsel %vm6094, %v8248, %v8674
      %v8995 = vsel %vm6094, %v8249, %v8676
      %v8996 = vsel %vm6094, %v8250, %v8678
      %v8997 = vsel %vm6094, %v8251, %v8680
      %v8998 = vsel %vm6094, %v8252, %v8682
      %v8999 = vsel %vm6094, %v8283, %v8684
      %v9000 = vsel %vm6094, %v8284, %v8686
      %v9001 = vsel %vm6306, %v8973, %v8718
      %v9002 = vsel %vm6306, %v8974, %v8720
      %v9003 = vsel %vm6306, %v8975, %v8722
      %v9004 = vsel %vm6306, %v8976, %v8724
      %v9005 = vsel %vm6306, %v8977, %v8726
      %v9006 = vsel %vm6306, %v8978, %v8728
      %v9007 = vsel %vm6306, %v8979, %v8730
      %v9008 = vsel %vm6306, %v8980, %v8732
      %v9009 = vsel %vm6306, %v8981, %v8734
      %v9010 = vsel %vm6306, %v8982, %v8736
      %v9011 = vsel %vm6306, %v8983, %v8738
      %v9012 = vsel %vm6306, %v8984, %v8740
      %v9013 = vsel %vm6306, %v8985, %v8742
      %v9014 = vsel %vm6306, %v8986, %v8744
      %v9015 = vsel %vm6306, %v8987, %v8746
      %v9016 = vsel %vm6306, %v8988, %v8748
      %v9017 = vsel %vm6306, %v8989, %v8750
      %v9018 = vsel %vm6306, %v8990, %v8752
      %v9019 = vsel %vm6306, %v8991, %v8754
      %v9020 = vsel %vm6306, %v8992, %v8756
      %v9021 = vsel %vm6306, %v8993, %v8758
      %v9022 = vsel %vm6306, %v8994, %v8760
      %v9023 = vsel %vm6306, %v8995, %v8762
      %v9024 = vsel %vm6306, %v8996, %v8764
      %v9025 = vsel %vm6306, %v8997, %v8766
      %v9026 = vsel %vm6306, %v8998, %v8768
      %v9027 = vsel %vm6306, %v8999, %v8770
      %v9028 = vsel %vm6306, %v9000, %v8772
      %v9029 = vsel %vm6518, %v9001, %v8806
      %v9030 = vsel %vm6518, %v9002, %v8808
      %v9031 = vsel %vm6518, %v9003, %v8810
      %v9032 = vsel %vm6518, %v9004, %v8812
      %v9033 = vsel %vm6518, %v9005, %v8814
      %v9034 = vsel %vm6518, %v9006, %v8816
      %v9035 = vsel %vm6518, %v9007, %v8818
      %v9036 = vsel %vm6518, %v9008, %v8820
      %v9037 = vsel %vm6518, %v9009, %v8822
      %v9038 = vsel %vm6518, %v9010, %v8824
      %v9039 = vsel %vm6518, %v9011, %v8826
      %v9040 = vsel %vm6518, %v9012, %v8828
      %v9041 = vsel %vm6518, %v9013, %v8830
      %v9042 = vsel %vm6518, %v9014, %v8832
      %v9043 = vsel %vm6518, %v9015, %v8834
      %v9044 = vsel %vm6518, %v9016, %v8836
      %v9045 = vsel %vm6518, %v9017, %v8838
      %v9046 = vsel %vm6518, %v9018, %v8840
      %v9047 = vsel %vm6518, %v9019, %v8842
      %v9048 = vsel %vm6518, %v9020, %v8844
      %v9049 = vsel %vm6518, %v9021, %v8846
      %v9050 = vsel %vm6518, %v9022, %v8848
      %v9051 = vsel %vm6518, %v9023, %v8850
      %v9052 = vsel %vm6518, %v9024, %v8852
      %v9053 = vsel %vm6518, %v9025, %v8854
      %v9054 = vsel %vm6518, %v9026, %v8856
      %v9055 = vsel %vm6518, %v9027, %v8858
      %v9056 = vsel %vm6518, %v9028, %v8860
      %v9057 = vpack.c.bf16 %v8946, %v8945
      %v9058 = vpack.c.bf16 %v9030, %v9029
      %v9059 = vpack.c.bf16 %v8258, %v8257
      %v9060 = vpack.c.bf16 %v8948, %v8947
      %v9061 = vpack.c.bf16 %v9032, %v9031
      %v9062 = vpack.c.bf16 %v8260, %v8259
      %v9063 = vpack.c.bf16 %v8950, %v8949
      %v9064 = vpack.c.bf16 %v9034, %v9033
      %v9065 = vpack.c.bf16 %v8262, %v8261
      %v9066 = vpack.c.bf16 %v8952, %v8951
      %v9067 = vpack.c.bf16 %v9036, %v9035
      %v9068 = vpack.c.bf16 %v8264, %v8263
      %v9069 = vpack.c.bf16 %v8954, %v8953
      %v9070 = vpack.c.bf16 %v9038, %v9037
      %v9071 = vpack.c.bf16 %v8266, %v8265
      %v9072 = vpack.c.bf16 %v8956, %v8955
      %v9073 = vpack.c.bf16 %v9040, %v9039
      %v9074 = vpack.c.bf16 %v8268, %v8267
      %v9075 = vpack.c.bf16 %v8958, %v8957
      %v9076 = vpack.c.bf16 %v9042, %v9041
      %v9077 = vpack.c.bf16 %v8270, %v8269
      %v9078 = vpack.c.bf16 %v8960, %v8959
      %v9079 = vpack.c.bf16 %v9044, %v9043
      %v9080 = vpack.c.bf16 %v8272, %v8271
      %v9081 = vpack.c.bf16 %v8962, %v8961
      %v9082 = vpack.c.bf16 %v9046, %v9045
      %v9083 = vpack.c.bf16 %v8274, %v8273
      %v9084 = vpack.c.bf16 %v8964, %v8963
      %v9085 = vpack.c.bf16 %v9048, %v9047
      %v9086 = vpack.c.bf16 %v8276, %v8275
      %v9087 = vpack.c.bf16 %v8966, %v8965
      %v9088 = vpack.c.bf16 %v9050, %v9049
      %v9089 = vpack.c.bf16 %v8278, %v8277
      %v9090 = vpack.c.bf16 %v8968, %v8967
      %v9091 = vpack.c.bf16 %v9052, %v9051
      %v9092 = vpack.c.bf16 %v8280, %v8279
      %v9093 = vpack.c.bf16 %v8970, %v8969
      %v9094 = vpack.c.bf16 %v9054, %v9053
      %v9095 = vpack.c.bf16 %v8286, %v8285
      %v9096 = vpack.c.bf16 %v8972, %v8971
      %v9097 = vpack.c.bf16 %v9056, %v9055
      %v9098 = vpack.c.bf16 %v8292, %v8291
      %v9099 = vld [vmem:[%s6] sm:$0xf]
      %v9100 = vld [vmem:[%s6 + $0x4] sm:$0xf]
      %v9101 = vld [vmem:[%s6 + $0x8] sm:$0xf]
      %v9102 = vld [vmem:[%s6 + $0xc] sm:$0xf]
      %v9103 = vld [vmem:[%s6 + $0x10] sm:$0xf]
      %v9104 = vld [vmem:[%s6 + $0x14] sm:$0xf]
      %v9105 = vld [vmem:[%s6 + $0x18] sm:$0xf]
      %v9106 = vld [vmem:[%s6 + $0x1c] sm:$0xf]
      %v9107 = vld [vmem:[%s6 + $0x20] sm:$0xf]
      %v9108 = vld [vmem:[%s6 + $0x24] sm:$0xf]
      %v9109 = vld [vmem:[%s6 + $0x28] sm:$0xf]
      %v9110 = vld [vmem:[%s6 + $0x2c] sm:$0xf]
      %v9111 = vld [vmem:[%s6 + $0x30] sm:$0xf]
      %v9112 = vld [vmem:[%s6 + $0x34] sm:$0xf]
      %v9113 = vld [vmem:[%s6 + $0x38] sm:$0xf]
      %v9114 = vld [vmem:[%s6 + $0x3c] sm:$0xf]
      %v9115 = vld [vmem:[%s6 + $0x40] sm:$0xf]
      %v9116 = vld [vmem:[%s6 + $0x44] sm:$0xf]
      %v9117 = vld [vmem:[%s6 + $0x48] sm:$0xf]
      %v9118 = vld [vmem:[%s6 + $0x4c] sm:$0xf]
      %v9119 = vld [vmem:[%s6 + $0x50] sm:$0xf]
      %v9120 = vld [vmem:[%s6 + $0x54] sm:$0xf]
      %v9121 = vld [vmem:[%s6 + $0x58] sm:$0xf]
      %v9122 = vld [vmem:[%s6 + $0x5c] sm:$0xf]
      %v9123 = vld [vmem:[%s6 + $0x60] sm:$0xf]
      %v9124 = vld [vmem:[%s6 + $0x64] sm:$0xf]
      %v9125 = vld [vmem:[%s6 + $0x68] sm:$0xf]
      %v9126 = vld [vmem:[%s6 + $0x6c] sm:$0xf]
      %v9127 = vld [vmem:[%s6 + $0x70] sm:$0xf]
      %v9128 = vld [vmem:[%s6 + $0x74] sm:$0xf]
      %v9129 = vld [vmem:[%s6 + $0x78] sm:$0xf]
      %v9130 = vld [vmem:[%s6 + $0x7c] sm:$0xf]
      %v9131 = vld [vmem:[%s6 + $0x80] sm:$0xf]
      %v9132 = vld [vmem:[%s6 + $0x84] sm:$0xf]
      %v9133 = vld [vmem:[%s6 + $0x88] sm:$0xf]
      %v9134 = vld [vmem:[%s6 + $0x8c] sm:$0xf]
      %v9135 = vld [vmem:[%s7] sm:$0x1]
      %v9137 = vperm.slane %v9135, 0
      %v9175 = vunpack.c.l.b16 %v9099
      %v9176 = vunpack.c.l.b16 %v9100
      %v9177 = vunpack.c.l.b16 %v9101
      %v9178 = vunpack.c.l.b16 %v9102
      %v9179 = vunpack.c.l.b16 %v9103
      %v9180 = vunpack.c.l.b16 %v9104
      %v9181 = vunpack.c.l.b16 %v9105
      %v9182 = vunpack.c.l.b16 %v9106
      %v9183 = vunpack.c.l.b16 %v9107
      %v9184 = vunpack.c.l.b16 %v9108
      %v9185 = vunpack.c.l.b16 %v9109
      %v9186 = vunpack.c.l.b16 %v9110
      %v9187 = vunpack.c.l.b16 %v9111
      %v9188 = vunpack.c.l.b16 %v9112
      %v9189 = vunpack.c.l.b16 %v9113
      %v9190 = vunpack.c.l.b16 %v9114
      %v9191 = vunpack.c.l.b16 %v9115
      %v9192 = vunpack.c.l.b16 %v9116
      %v9193 = vunpack.c.l.b16 %v9117
      %v9194 = vunpack.c.l.b16 %v9118
      %v9195 = vunpack.c.l.b16 %v9119
      %v9196 = vunpack.c.l.b16 %v9120
      %v9197 = vunpack.c.l.b16 %v9121
      %v9198 = vunpack.c.l.b16 %v9122
      %v9199 = vunpack.c.l.b16 %v9123
      %v9200 = vunpack.c.l.b16 %v9124
      %v9201 = vunpack.c.l.b16 %v9125
      %v9202 = vunpack.c.l.b16 %v9126
      %v9203 = vunpack.c.l.b16 %v9127
      %v9204 = vunpack.c.l.b16 %v9128
      %v9205 = vunpack.c.l.b16 %v9129
      %v9206 = vunpack.c.l.b16 %v9130
      %v9207 = vunpack.c.l.b16 %v9131
      %v9208 = vunpack.c.l.b16 %v9132
      %v9209 = vunpack.c.l.b16 %v9133
      %v9210 = vunpack.c.l.b16 %v9134
      %v9211 = vpack.c.b16 %v9176, %v9175
      %v9212 = vpack.c.b16 %v9178, %v9177
      %v9213 = vpack.c.b16 %v9180, %v9179
      %v9214 = vpack.c.b16 %v9182, %v9181
      %v9215 = vpack.c.b16 %v9184, %v9183
      %v9216 = vpack.c.b16 %v9186, %v9185
      %v9217 = vpack.c.b16 %v9188, %v9187
      %v9218 = vpack.c.b16 %v9190, %v9189
      %v9219 = vpack.c.b16 %v9192, %v9191
      %v9220 = vpack.c.b16 %v9194, %v9193
      %v9221 = vpack.c.b16 %v9196, %v9195
      %v9222 = vpack.c.b16 %v9198, %v9197
      %v9223 = vpack.c.b16 %v9200, %v9199
      %v9224 = vpack.c.b16 %v9202, %v9201
      %v9225 = vpack.c.b16 %v9204, %v9203
      %v9226 = vpack.c.b16 %v9206, %v9205
      %v9227 = vpack.c.b16 %v9208, %v9207
      %v9228 = vpack.c.b16 %v9210, %v9209
      %v9248 = vsel %vm6094, %v9059, 0
      %v9251 = vsel %vm6094, %v9062, 0
      %v9254 = vsel %vm6094, %v9065, 0
      %v9257 = vsel %vm6094, %v9068, 0
      %v9260 = vsel %vm6094, %v9071, 0
      %v9263 = vsel %vm6094, %v9074, 0
      %v9266 = vsel %vm6094, %v9077, 0
      %v9269 = vsel %vm6094, %v9080, 0
      %v9272 = vsel %vm6094, %v9083, 0
      %v9275 = vsel %vm6094, %v9086, 0
      %v9278 = vsel %vm6094, %v9089, 0
      %v9281 = vsel %vm6094, %v9092, 0
      %v9284 = vsel %vm6094, %v9095, 0
      %v9287 = vsel %vm6094, %v9098, 0
      %9289 = vmatpush.bf16.msra.mxu0 %v9218
      %9290 = vmatpush.bf16.msra.mxu0 %v9217
      %9291 = vmatpush.bf16.msra.mxu0 %v9216
      %9292 = vmatpush.bf16.msra.mxu0 %v9215
      %9293 = vmatpush.bf16.msra.mxu0 %v9214
      %9294 = vmatpush.bf16.msra.mxu0 %v9213
      %9295 = vmatpush.bf16.msra.mxu0 %v9212
      %9296 = vmatpush.bf16.msra.mxu0 %v9211
      %9297 = vmatmul.bf16.gmra.mxu0 %v9057
      %v9298 = vpop.f32.mrf.mxu0
      %v9299 = vadd.f32 %v9137, %v9298
      %v9300 = vpop.f32.mrf.mxu0
      %v9301 = vadd.f32 %v9137, %v9300
      %9302 = vmatmul.bf16.gmra.mxu0 %v9060
      %v9303 = vpop.f32.mrf.mxu0
      %v9304 = vadd.f32 %v9137, %v9303
      %v9305 = vpop.f32.mrf.mxu0
      %v9306 = vadd.f32 %v9137, %v9305
      %9307 = vmatmul.bf16.gmra.mxu0 %v9063
      %v9308 = vpop.f32.mrf.mxu0
      %v9309 = vadd.f32 %v9137, %v9308
      %v9310 = vpop.f32.mrf.mxu0
      %v9311 = vadd.f32 %v9137, %v9310
      %9312 = vmatmul.bf16.gmra.mxu0 %v9066
      %v9313 = vpop.f32.mrf.mxu0
      %v9314 = vadd.f32 %v9137, %v9313
      %v9315 = vpop.f32.mrf.mxu0
      %v9316 = vadd.f32 %v9137, %v9315
      %9317 = vmatmul.bf16.gmra.mxu0 %v9069
      %v9318 = vpop.f32.mrf.mxu0
      %v9319 = vadd.f32 %v9137, %v9318
      %v9320 = vpop.f32.mrf.mxu0
      %v9321 = vadd.f32 %v9137, %v9320
      %9322 = vmatmul.bf16.gmra.mxu0 %v9072
      %v9323 = vpop.f32.mrf.mxu0
      %v9324 = vadd.f32 %v9137, %v9323
      %v9325 = vpop.f32.mrf.mxu0
      %v9326 = vadd.f32 %v9137, %v9325
      %9327 = vmatmul.bf16.gmra.mxu0 %v9075
      %v9328 = vpop.f32.mrf.mxu0
      %v9329 = vadd.f32 %v9137, %v9328
      %v9330 = vpop.f32.mrf.mxu0
      %v9331 = vadd.f32 %v9137, %v9330
      %9332 = vmatmul.bf16.gmra.mxu0 %v9078
      %v9333 = vpop.f32.mrf.mxu0
      %v9334 = vadd.f32 %v9137, %v9333
      %v9335 = vpop.f32.mrf.mxu0
      %v9336 = vadd.f32 %v9137, %v9335
      %9337 = vmatmul.bf16.gmra.mxu0 %v9081
      %v9338 = vpop.f32.mrf.mxu0
      %v9339 = vadd.f32 %v9137, %v9338
      %v9340 = vpop.f32.mrf.mxu0
      %v9341 = vadd.f32 %v9137, %v9340
      %9342 = vmatmul.bf16.gmra.mxu0 %v9084
      %v9343 = vpop.f32.mrf.mxu0
      %v9344 = vadd.f32 %v9137, %v9343
      %v9345 = vpop.f32.mrf.mxu0
      %v9346 = vadd.f32 %v9137, %v9345
      %9347 = vmatmul.bf16.gmra.mxu0 %v9087
      %v9348 = vpop.f32.mrf.mxu0
      %v9349 = vadd.f32 %v9137, %v9348
      %v9350 = vpop.f32.mrf.mxu0
      %v9351 = vadd.f32 %v9137, %v9350
      %9352 = vmatmul.bf16.gmra.mxu0 %v9090
      %v9353 = vpop.f32.mrf.mxu0
      %v9354 = vadd.f32 %v9137, %v9353
      %v9355 = vpop.f32.mrf.mxu0
      %v9356 = vadd.f32 %v9137, %v9355
      %9357 = vmatmul.bf16.gmra.mxu0 %v9093
      %v9358 = vpop.f32.mrf.mxu0
      %v9359 = vadd.f32 %v9137, %v9358
      %v9360 = vpop.f32.mrf.mxu0
      %v9361 = vadd.f32 %v9137, %v9360
      %9362 = vmatmul.bf16.gmra.mxu0 %v9096
      %v9363 = vpop.f32.mrf.mxu0
      %v9364 = vadd.f32 %v9137, %v9363
      %v9365 = vpop.f32.mrf.mxu0
      %v9366 = vadd.f32 %v9137, %v9365
      %9367 = vdwg.mxu0
      %9368 = vmatpush.bf16.msra.mxu0 %v9226
      %9369 = vmatpush.bf16.msra.mxu0 %v9225
      %9370 = vmatpush.bf16.msra.mxu0 %v9224
      %9371 = vmatpush.bf16.msra.mxu0 %v9223
      %9372 = vmatpush.bf16.msra.mxu0 %v9222
      %9373 = vmatpush.bf16.msra.mxu0 %v9221
      %9374 = vmatpush.bf16.msra.mxu0 %v9220
      %9375 = vmatpush.bf16.msra.mxu0 %v9219
      %9376 = vmatmul.bf16.gmra.mxu0 %v9058
      %v9377 = vpop.f32.mrf.mxu0
      %v9378 = vadd.f32 %v9299, %v9377
      %v9379 = vpop.f32.mrf.mxu0
      %v9380 = vadd.f32 %v9301, %v9379
      %9381 = vmatmul.bf16.gmra.mxu0 %v9061
      %v9382 = vpop.f32.mrf.mxu0
      %v9383 = vadd.f32 %v9304, %v9382
      %v9384 = vpop.f32.mrf.mxu0
      %v9385 = vadd.f32 %v9306, %v9384
      %9386 = vmatmul.bf16.gmra.mxu0 %v9064
      %v9387 = vpop.f32.mrf.mxu0
      %v9388 = vadd.f32 %v9309, %v9387
      %v9389 = vpop.f32.mrf.mxu0
      %v9390 = vadd.f32 %v9311, %v9389
      %9391 = vmatmul.bf16.gmra.mxu0 %v9067
      %v9392 = vpop.f32.mrf.mxu0
      %v9393 = vadd.f32 %v9314, %v9392
      %v9394 = vpop.f32.mrf.mxu0
      %v9395 = vadd.f32 %v9316, %v9394
      %9396 = vmatmul.bf16.gmra.mxu0 %v9070
      %v9397 = vpop.f32.mrf.mxu0
      %v9398 = vadd.f32 %v9319, %v9397
      %v9399 = vpop.f32.mrf.mxu0
      %v9400 = vadd.f32 %v9321, %v9399
      %9401 = vmatmul.bf16.gmra.mxu0 %v9073
      %v9402 = vpop.f32.mrf.mxu0
      %v9403 = vadd.f32 %v9324, %v9402
      %v9404 = vpop.f32.mrf.mxu0
      %v9405 = vadd.f32 %v9326, %v9404
      %9406 = vmatmul.bf16.gmra.mxu0 %v9076
      %v9407 = vpop.f32.mrf.mxu0
      %v9408 = vadd.f32 %v9329, %v9407
      %v9409 = vpop.f32.mrf.mxu0
      %v9410 = vadd.f32 %v9331, %v9409
      %9411 = vmatmul.bf16.gmra.mxu0 %v9079
      %v9412 = vpop.f32.mrf.mxu0
      %v9413 = vadd.f32 %v9334, %v9412
      %v9414 = vpop.f32.mrf.mxu0
      %v9415 = vadd.f32 %v9336, %v9414
      %9416 = vmatmul.bf16.gmra.mxu0 %v9082
      %v9417 = vpop.f32.mrf.mxu0
      %v9418 = vadd.f32 %v9339, %v9417
      %v9419 = vpop.f32.mrf.mxu0
      %v9420 = vadd.f32 %v9341, %v9419
      %9421 = vmatmul.bf16.gmra.mxu0 %v9085
      %v9422 = vpop.f32.mrf.mxu0
      %v9423 = vadd.f32 %v9344, %v9422
      %v9424 = vpop.f32.mrf.mxu0
      %v9425 = vadd.f32 %v9346, %v9424
      %9426 = vmatmul.bf16.gmra.mxu0 %v9088
      %v9427 = vpop.f32.mrf.mxu0
      %v9428 = vadd.f32 %v9349, %v9427
      %v9429 = vpop.f32.mrf.mxu0
      %v9430 = vadd.f32 %v9351, %v9429
      %9431 = vmatmul.bf16.gmra.mxu0 %v9091
      %v9432 = vpop.f32.mrf.mxu0
      %v9433 = vadd.f32 %v9354, %v9432
      %v9434 = vpop.f32.mrf.mxu0
      %v9435 = vadd.f32 %v9356, %v9434
      %9436 = vmatmul.bf16.gmra.mxu0 %v9094
      %v9437 = vpop.f32.mrf.mxu0
      %v9438 = vadd.f32 %v9359, %v9437
      %v9439 = vpop.f32.mrf.mxu0
      %v9440 = vadd.f32 %v9361, %v9439
      %9441 = vmatmul.bf16.gmra.mxu0 %v9097
      %v9442 = vpop.f32.mrf.mxu0
      %v9443 = vadd.f32 %v9364, %v9442
      %v9444 = vpop.f32.mrf.mxu0
      %v9445 = vadd.f32 %v9366, %v9444
      %9446 = vdwg.mxu0
      %9447 = vmatpush.bf16.msra.mxu0 0
      %9448 = vmatpush.bf16.msra.mxu0 0
      %9449 = vmatpush.bf16.msra.mxu0 0
      %9450 = vmatpush.bf16.msra.mxu0 0
      %9451 = vmatpush.bf16.msra.mxu0 0
      %9452 = vmatpush.bf16.msra.mxu0 0
      %9453 = vmatpush.bf16.msra.mxu0 %v9228
      %9454 = vmatpush.bf16.msra.mxu0 %v9227
      %9455 = vmatmul.bf16.gmra.mxu0 %v9248
      %v9456 = vpop.f32.mrf.mxu0
      %v9457 = vadd.f32 %v9378, %v9456
      %v9458 = vpop.f32.mrf.mxu0
      %v9459 = vadd.f32 %v9380, %v9458
      %9460 = vmatmul.bf16.gmra.mxu0 %v9251
      %v9461 = vpop.f32.mrf.mxu0
      %v9462 = vadd.f32 %v9383, %v9461
      %v9463 = vpop.f32.mrf.mxu0
      %v9464 = vadd.f32 %v9385, %v9463
      %9465 = vmatmul.bf16.gmra.mxu0 %v9254
      %v9466 = vpop.f32.mrf.mxu0
      %v9467 = vadd.f32 %v9388, %v9466
      %v9468 = vpop.f32.mrf.mxu0
      %v9469 = vadd.f32 %v9390, %v9468
      %9470 = vmatmul.bf16.gmra.mxu0 %v9257
      %v9471 = vpop.f32.mrf.mxu0
      %v9472 = vadd.f32 %v9393, %v9471
      %v9473 = vpop.f32.mrf.mxu0
      %v9474 = vadd.f32 %v9395, %v9473
      %9475 = vmatmul.bf16.gmra.mxu0 %v9260
      %v9476 = vpop.f32.mrf.mxu0
      %v9477 = vadd.f32 %v9398, %v9476
      %v9478 = vpop.f32.mrf.mxu0
      %v9479 = vadd.f32 %v9400, %v9478
      %9480 = vmatmul.bf16.gmra.mxu0 %v9263
      %v9481 = vpop.f32.mrf.mxu0
      %v9482 = vadd.f32 %v9403, %v9481
      %v9483 = vpop.f32.mrf.mxu0
      %v9484 = vadd.f32 %v9405, %v9483
      %9485 = vmatmul.bf16.gmra.mxu0 %v9266
      %v9486 = vpop.f32.mrf.mxu0
      %v9487 = vadd.f32 %v9408, %v9486
      %v9488 = vpop.f32.mrf.mxu0
      %v9489 = vadd.f32 %v9410, %v9488
      %9490 = vmatmul.bf16.gmra.mxu0 %v9269
      %v9491 = vpop.f32.mrf.mxu0
      %v9492 = vadd.f32 %v9413, %v9491
      %v9493 = vpop.f32.mrf.mxu0
      %v9494 = vadd.f32 %v9415, %v9493
      %9495 = vmatmul.bf16.gmra.mxu0 %v9272
      %v9496 = vpop.f32.mrf.mxu0
      %v9497 = vadd.f32 %v9418, %v9496
      %v9498 = vpop.f32.mrf.mxu0
      %v9499 = vadd.f32 %v9420, %v9498
      %9500 = vmatmul.bf16.gmra.mxu0 %v9275
      %v9501 = vpop.f32.mrf.mxu0
      %v9502 = vadd.f32 %v9423, %v9501
      %v9503 = vpop.f32.mrf.mxu0
      %v9504 = vadd.f32 %v9425, %v9503
      %9505 = vmatmul.bf16.gmra.mxu0 %v9278
      %v9506 = vpop.f32.mrf.mxu0
      %v9507 = vadd.f32 %v9428, %v9506
      %v9508 = vpop.f32.mrf.mxu0
      %v9509 = vadd.f32 %v9430, %v9508
      %9510 = vmatmul.bf16.gmra.mxu0 %v9281
      %v9511 = vpop.f32.mrf.mxu0
      %v9512 = vadd.f32 %v9433, %v9511
      %v9513 = vpop.f32.mrf.mxu0
      %v9514 = vadd.f32 %v9435, %v9513
      %9515 = vmatmul.bf16.gmra.mxu0 %v9284
      %v9516 = vpop.f32.mrf.mxu0
      %v9517 = vadd.f32 %v9438, %v9516
      %v9518 = vpop.f32.mrf.mxu0
      %v9519 = vadd.f32 %v9440, %v9518
      %9520 = vmatmul.bf16.gmra.mxu0 %v9287
      %v9521 = vpop.f32.mrf.mxu0
      %v9522 = vadd.f32 %v9443, %v9521
      %v9523 = vpop.f32.mrf.mxu0
      %v9524 = vadd.f32 %v9445, %v9523
      %9525 = vdwg.mxu0
      %v9526 = vmax.f32 %v9457, 0.0
      %v9527 = vmax.f32 %v9459, 0.0
      %v9528 = vmax.f32 %v9462, 0.0
      %v9529 = vmax.f32 %v9464, 0.0
      %v9530 = vmax.f32 %v9467, 0.0
      %v9531 = vmax.f32 %v9469, 0.0
      %v9532 = vmax.f32 %v9472, 0.0
      %v9533 = vmax.f32 %v9474, 0.0
      %v9534 = vmax.f32 %v9477, 0.0
      %v9535 = vmax.f32 %v9479, 0.0
      %v9536 = vmax.f32 %v9482, 0.0
      %v9537 = vmax.f32 %v9484, 0.0
      %v9538 = vmax.f32 %v9487, 0.0
      %v9539 = vmax.f32 %v9489, 0.0
      %v9540 = vmax.f32 %v9492, 0.0
      %v9541 = vmax.f32 %v9494, 0.0
      %v9542 = vmax.f32 %v9497, 0.0
      %v9543 = vmax.f32 %v9499, 0.0
      %v9544 = vmax.f32 %v9502, 0.0
      %v9545 = vmax.f32 %v9504, 0.0
      %v9546 = vmax.f32 %v9507, 0.0
      %v9547 = vmax.f32 %v9509, 0.0
      %v9548 = vmax.f32 %v9512, 0.0
      %v9549 = vmax.f32 %v9514, 0.0
      %v9550 = vmax.f32 %v9517, 0.0
      %v9551 = vmax.f32 %v9519, 0.0
      %v9552 = vmax.f32 %v9522, 0.0
      %v9553 = vmax.f32 %v9524, 0.0
      %9554 = vst.msk [vmem:[#allocation5] sm:$0xff] %vm6306, %v9526
      %9555 = vst.msk [vmem:[#allocation5 + $0x8] sm:$0xff] %vm6306, %v9527
      %9556 = vst.msk [vmem:[#allocation5 + $0x10] sm:$0xff] %vm6306, %v9528
      %9557 = vst.msk [vmem:[#allocation5 + $0x18] sm:$0xff] %vm6306, %v9529
      %9558 = vst.msk [vmem:[#allocation5 + $0x20] sm:$0xff] %vm6306, %v9530
      %9559 = vst.msk [vmem:[#allocation5 + $0x28] sm:$0xff] %vm6306, %v9531
      %9560 = vst.msk [vmem:[#allocation5 + $0x30] sm:$0xff] %vm6306, %v9532
      %9561 = vst.msk [vmem:[#allocation5 + $0x38] sm:$0xff] %vm6306, %v9533
      %9562 = vst.msk [vmem:[#allocation5 + $0x40] sm:$0xff] %vm6306, %v9534
      %9563 = vst.msk [vmem:[#allocation5 + $0x48] sm:$0xff] %vm6306, %v9535
      %9564 = vst.msk [vmem:[#allocation5 + $0x50] sm:$0xff] %vm6306, %v9536
      %9565 = vst.msk [vmem:[#allocation5 + $0x58] sm:$0xff] %vm6306, %v9537
      %9566 = vst.msk [vmem:[#allocation5 + $0x60] sm:$0xff] %vm6306, %v9538
      %9567 = vst.msk [vmem:[#allocation5 + $0x68] sm:$0xff] %vm6306, %v9539
      %9568 = vst.msk [vmem:[#allocation5 + $0x70] sm:$0xff] %vm6306, %v9540
      %9569 = vst.msk [vmem:[#allocation5 + $0x78] sm:$0xff] %vm6306, %v9541
      %9570 = vst.msk [vmem:[#allocation5 + $0x80] sm:$0xff] %vm6306, %v9542
      %9571 = vst.msk [vmem:[#allocation5 + $0x88] sm:$0xff] %vm6306, %v9543
      %9572 = vst.msk [vmem:[#allocation5 + $0x90] sm:$0xff] %vm6306, %v9544
      %9573 = vst.msk [vmem:[#allocation5 + $0x98] sm:$0xff] %vm6306, %v9545
      %9574 = vst.msk [vmem:[#allocation5 + $0xa0] sm:$0xff] %vm6306, %v9546
      %9575 = vst.msk [vmem:[#allocation5 + $0xa8] sm:$0xff] %vm6306, %v9547
      %9576 = vst.msk [vmem:[#allocation5 + $0xb0] sm:$0xff] %vm6306, %v9548
      %9577 = vst.msk [vmem:[#allocation5 + $0xb8] sm:$0xff] %vm6306, %v9549
      %9578 = vst.msk [vmem:[#allocation5 + $0xc0] sm:$0xff] %vm6306, %v9550
      %9579 = vst.msk [vmem:[#allocation5 + $0xc8] sm:$0xff] %vm6306, %v9551
      %9580 = vst.msk [vmem:[#allocation5 + $0xd0] sm:$0xff] %vm6306, %v9552
      %9581 = vst.msk [vmem:[#allocation5 + $0xd8] sm:$0xff] %vm6306, %v9553
      %v9582 = vld [vmem:[#allocation5] ss:$2 sm:$0x7f]
      %s9583 = scalar_lea.vmem [#allocation5], 1
      %v9584 = vld [vmem:[%s9583] ss:$2 sm:$0x7f]
      %v9585 = vmax.f32 %v9582, %v9584
      %s9586 = scalar_lea.vmem [#allocation5], 16
      %v9587 = vld [vmem:[%s9586] ss:$2 sm:$0x7f]
      %s9588 = scalar_lea.vmem [#allocation5], 17
      %v9589 = vld [vmem:[%s9588] ss:$2 sm:$0x7f]
      %v9590 = vmax.f32 %v9587, %v9589
      %v9591 = vmax.f32 %v9585, %v9590
      %v9592 = vpack.c.bf16 %v9591, %v9591
      %vm9593 = vcmask 519168
      %vm9594 = vsmask.f32 3328
      %vm9595 = vmand %vm9593, %vm9594
      %v9596 = vld [vmem:[%s305] sm:$0xf]
      %v9597 = vsel %vm9595, %v9592, %v9596
      %9598 = vst [vmem:[%s305] sm:$0xf] %v9597
      %s9599 = scalar_lea.vmem [#allocation5], 32
      %v9600 = vld [vmem:[%s9599] ss:$2 sm:$0x7f]
      %s9601 = scalar_lea.vmem [#allocation5], 33
      %v9602 = vld [vmem:[%s9601] ss:$2 sm:$0x7f]
      %v9603 = vmax.f32 %v9600, %v9602
      %s9604 = scalar_lea.vmem [#allocation5], 48
      %v9605 = vld [vmem:[%s9604] ss:$2 sm:$0x7f]
      %s9606 = scalar_lea.vmem [#allocation5], 49
      %v9607 = vld [vmem:[%s9606] ss:$2 sm:$0x7f]
      %v9608 = vmax.f32 %v9605, %v9607
      %v9609 = vmax.f32 %v9603, %v9608
      %v9610 = vpack.c.bf16 %v9609, %v9609
      %v9612 = vshll.u32 %v9610, 16
      %v9614 = vrot.slane %v9612, 5
      %v9615 = vshrl.u32 %v9610, 16
      %v9617 = vrot.slane %v9615, 4
      %v9618 = vor.u32 %v9617, %v9614
      %v9619 = vrot.slane %v9618, 4
      %vm9622 = vcmask 519171
      %vm9623 = vsmask.f32 7950
      %vm9624 = vmand %vm9622, %vm9623
      %v9625 = vld [vmem:[%s305] sm:$0x8]
      %v9626 = vsel %vm9624, %v9614, %v9625
      %9627 = vst [vmem:[%s305] sm:$0x8] %v9626
      %vm9628 = vcmask 518144
      %9629 = vst.msk [vmem:[%s305 + $0x4] sm:$0x7] %vm9628, %v9619
      %s9630 = scalar_lea.vmem [#allocation5], 64
      %v9631 = vld [vmem:[%s9630] ss:$2 sm:$0x7f]
      %s9632 = scalar_lea.vmem [#allocation5], 65
      %v9633 = vld [vmem:[%s9632] ss:$2 sm:$0x7f]
      %v9634 = vmax.f32 %v9631, %v9633
      %s9635 = scalar_lea.vmem [#allocation5], 80
      %v9636 = vld [vmem:[%s9635] ss:$2 sm:$0x7f]
      %s9637 = scalar_lea.vmem [#allocation5], 81
      %v9638 = vld [vmem:[%s9637] ss:$2 sm:$0x7f]
      %v9639 = vmax.f32 %v9636, %v9638
      %v9640 = vmax.f32 %v9634, %v9639
      %v9641 = vpack.c.bf16 %v9640, %v9640
      %v9643 = vrot.slane %v9641, 5
      %v9644 = vrot.slane %v9643, 4
      %vm9647 = vcmask 519171
      %9648 = vst.msk [vmem:[%s305 + $0x4] sm:$0x8] %vm9647, %v9643
      %vm9649 = vcmask 518144
      %vm9650 = vsmask.f32 2304
      %vm9651 = vmand %vm9649, %vm9650
      %v9652 = vld [vmem:[%s305 + $0x8] sm:$0x7]
      %v9653 = vsel %vm9651, %v9644, %v9652
      %9654 = vst [vmem:[%s305 + $0x8] sm:$0x7] %v9653
      %s9655 = scalar_lea.vmem [#allocation5], 96
      %v9656 = vld [vmem:[%s9655] ss:$2 sm:$0x7f]
      %s9657 = scalar_lea.vmem [#allocation5], 97
      %v9658 = vld [vmem:[%s9657] ss:$2 sm:$0x7f]
      %v9659 = vmax.f32 %v9656, %v9658
      %s9660 = scalar_lea.vmem [#allocation5], 112
      %v9661 = vld [vmem:[%s9660] ss:$2 sm:$0x7f]
      %s9662 = scalar_lea.vmem [#allocation5], 113
      %v9663 = vld [vmem:[%s9662] ss:$2 sm:$0x7f]
      %v9664 = vmax.f32 %v9661, %v9663
      %v9665 = vmax.f32 %v9659, %v9664
      %v9666 = vpack.c.bf16 %v9665, %v9665
      %v9668 = vshrl.u32 %v9666, 16
      %v9670 = vrot.slane %v9668, 5
      %v9671 = vshll.u32 %v9666, 16
      %v9673 = vrot.slane %v9671, 6
      %v9674 = vor.u32 %v9670, %v9673
      %v9675 = vrot.slane %v9674, 4
      %vm9678 = vcmask 519170
      %vm9679 = vsmask.f32 7946
      %vm9680 = vmand %vm9678, %vm9679
      %v9681 = vld [vmem:[%s305 + $0x8] sm:$0xc]
      %v9682 = vsel %vm9680, %v9674, %v9681
      %9683 = vst [vmem:[%s305 + $0x8] sm:$0xc] %v9682
      %vm9684 = vcmask 517120
      %9685 = vst.msk [vmem:[%s305 + $0xc] sm:$0x3] %vm9684, %v9675
      %s9686 = scalar_lea.vmem [#allocation5], 128
      %v9687 = vld [vmem:[%s9686] ss:$2 sm:$0x7f]
      %s9688 = scalar_lea.vmem [#allocation5], 129
      %v9689 = vld [vmem:[%s9688] ss:$2 sm:$0x7f]
      %v9690 = vmax.f32 %v9687, %v9689
      %s9691 = scalar_lea.vmem [#allocation5], 144
      %v9692 = vld [vmem:[%s9691] ss:$2 sm:$0x7f]
      %s9693 = scalar_lea.vmem [#allocation5], 145
      %v9694 = vld [vmem:[%s9693] ss:$2 sm:$0x7f]
      %v9695 = vmax.f32 %v9692, %v9694
      %v9696 = vmax.f32 %v9690, %v9695
      %v9697 = vpack.c.bf16 %v9696, %v9696
      %v9699 = vrot.slane %v9697, 6
      %v9700 = vrot.slane %v9699, 4
      %vm9703 = vcmask 519170
      %9704 = vst.msk [vmem:[%s305 + $0xc] sm:$0xc] %vm9703, %v9699
      %vm9705 = vcmask 517120
      %vm9706 = vsmask.f32 1280
      %vm9707 = vmand %vm9705, %vm9706
      %v9708 = vld [vmem:[%s305 + $0x10] sm:$0x3]
      %v9709 = vsel %vm9707, %v9700, %v9708
      %9710 = vst [vmem:[%s305 + $0x10] sm:$0x3] %v9709
      %s9711 = scalar_lea.vmem [#allocation5], 160
      %v9712 = vld [vmem:[%s9711] ss:$2 sm:$0x7f]
      %s9713 = scalar_lea.vmem [#allocation5], 161
      %v9714 = vld [vmem:[%s9713] ss:$2 sm:$0x7f]
      %v9715 = vmax.f32 %v9712, %v9714
      %s9716 = scalar_lea.vmem [#allocation5], 176
      %v9717 = vld [vmem:[%s9716] ss:$2 sm:$0x7f]
      %s9718 = scalar_lea.vmem [#allocation5], 177
      %v9719 = vld [vmem:[%s9718] ss:$2 sm:$0x7f]
      %v9720 = vmax.f32 %v9717, %v9719
      %v9721 = vmax.f32 %v9715, %v9720
      %v9722 = vpack.c.bf16 %v9721, %v9721
      %v9724 = vshrl.u32 %v9722, 16
      %v9726 = vrot.slane %v9724, 6
      %v9727 = vshll.u32 %v9722, 16
      %v9729 = vrot.slane %v9727, 7
      %v9730 = vor.u32 %v9726, %v9729
      %v9731 = vrot.slane %v9730, 4
      %vm9734 = vcmask 519169
      %vm9735 = vsmask.f32 7942
      %vm9736 = vmand %vm9734, %vm9735
      %v9737 = vld [vmem:[%s305 + $0x10] sm:$0xe]
      %v9738 = vsel %vm9736, %v9730, %v9737
      %9739 = vst [vmem:[%s305 + $0x10] sm:$0xe] %v9738
      %vm9740 = vcmask 516096
      %9741 = vst.msk [vmem:[%s305 + $0x14] sm:$0x1] %vm9740, %v9731
      %s9742 = scalar_lea.vmem [#allocation5], 192
      %v9743 = vld [vmem:[%s9742] ss:$2 sm:$0x7f]
      %s9744 = scalar_lea.vmem [#allocation5], 193
      %v9745 = vld [vmem:[%s9744] ss:$2 sm:$0x7f]
      %v9746 = vmax.f32 %v9743, %v9745
      %s9747 = scalar_lea.vmem [#allocation5], 208
      %v9748 = vld [vmem:[%s9747] ss:$2 sm:$0x7f]
      %s9749 = scalar_lea.vmem [#allocation5], 209
      %v9750 = vld [vmem:[%s9749] ss:$2 sm:$0x7f]
      %v9751 = vmax.f32 %v9748, %v9750
      %v9752 = vmax.f32 %v9746, %v9751
      %v9753 = vpack.c.bf16 %v9752, %v9752
      %v9755 = vrot.slane %v9753, 7
      %v9756 = vrot.slane %v9755, 4
      %vm9759 = vcmask 519169
      %9760 = vst.msk [vmem:[%s305 + $0x14] sm:$0xe] %vm9759, %v9755
      %vm9761 = vcmask 516096
      %vm9762 = vsmask.f32 256
      %vm9763 = vmand %vm9761, %vm9762
      %v9764 = vld [vmem:[%s305 + $0x18] sm:$0x1]
      %v9765 = vsel %vm9763, %v9756, %v9764
      %9766 = vst [vmem:[%s305 + $0x18] sm:$0x1] %v9765
      %p9767 = scmp.lt.s32.totalorder %s19, 1
      %s9768 = scalar_select %p9767, %s19, 1
      %s9769 = smul.addr %s9768, 7
      %s9770 = smul.addr %s9769, 4
      %s9771 = scalar_lea.vmem %s8, %s9770
      // Predicated region
      $region53: #{cnn_forward.2} parent=51 // pred_check
        %p9772 = pneg %p210
      $region54: #{cnn_forward.2} parent=51 // pred_check_branch
        %9774 = sbr.rel (%p9772) target = $region56
      $region55: #{cnn_forward.2} parent=51 // pred_region
        _
      $region56: #{cnn_forward.2} parent=51 // pred_fallthru
        _
    $region52: #{cnn_forward.2} parent=5 // pred_fallthru
      _
    %p9775 = scmp.le.s32.totalorder 2, %s14
    // Predicated region
    $region57: #{cnn_forward.2} parent=5 // pred_check
      %p9776 = pneg %p9775
    $region58: #{cnn_forward.2} parent=5 // pred_check_branch
      %9778 = sbr.rel (%p9776) target = $region60
    $region59: #{cnn_forward.2} parent=5 // pred_region
      %s9779 = ssub.s32 %s14, 2
      // Predicated region
      $region61: #{cnn_forward.2} parent=59 // pred_check
        %p9780 = pneg %p216
      $region62: #{cnn_forward.2} parent=59 // pred_check_branch
        %9782 = sbr.rel (%p9780) target = $region64
      $region63: #{cnn_forward.2} parent=59 // pred_region
        %p9783 = scmp.lt.s32.totalorder %s20, 1
        %s9784 = scalar_select %p9783, %s20, 1
        %s9785 = smul.addr %s9784, 7
        %s9786 = smul.addr %s9785, 4
        %s9787 = scalar_lea.vmem %s8, %s9786
      $region64: #{cnn_forward.2} parent=59 // pred_fallthru
        _
    $region60: #{cnn_forward.2} parent=5 // pred_fallthru
      _
  $region6: #{cnn_forward.2} parent=0 // loop_footer
    %s18 = sadd.s32 1, %s14
  $region7: #{cnn_forward.2} parent=0 // loop_footer_branch
    %13 = sbr.rel target = $region3
  $region8: #{cnn_forward.2} parent=0 // loop_exit
    _

</llo_original>
